<compile_context>
chip_gen: v6e
topology: v6e:2x2x1
jax: 0.10.0
libtpu: 0.0.40
codegen_flags: <defaults>
</compile_context>

<pallas_src>
import math

import jax
import jax.numpy as jnp
from jax.experimental import pallas as pl
from jax.experimental.pallas import tpu as pltpu

d_k = d_v = 64
n_heads = 12
d_model = 768

_VMEM_LIMIT = 48 * 1024 * 1024   # explicit scoped-VMEM cap; below v7x's 64 MiB physical
_HEADS_PER_BLOCK = 2             # 2 heads x 64 = 128 lanes -> lane-dense slabs
_TM = 512                        # M-tile for the projection / output kernels


# ----------------------------------------------------------------------------
# Kernel 1: fused Q/K/V projections  (y_i = x_i @ W_i + b_i, i in {Q,K,V})
# ----------------------------------------------------------------------------
def qkv_proj_kernel(xq_ref, xk_ref, xv_ref, w_ref, b_ref, oq_ref, ok_ref, ov_ref):
    # bf16 MXU operands, f32 accumulation, bf16 stores (kernel 2 consumes bf16 anyway).
    xq = xq_ref[...].astype(jnp.bfloat16)
    xk = xk_ref[...].astype(jnp.bfloat16)
    xv = xv_ref[...].astype(jnp.bfloat16)
    oq_ref[...] = (jnp.dot(xq, w_ref[0], preferred_element_type=jnp.float32)
                   + b_ref[0]).astype(jnp.bfloat16)
    ok_ref[...] = (jnp.dot(xk, w_ref[1], preferred_element_type=jnp.float32)
                   + b_ref[1]).astype(jnp.bfloat16)
    ov_ref[...] = (jnp.dot(xv, w_ref[2], preferred_element_type=jnp.float32)
                   + b_ref[2]).astype(jnp.bfloat16)


def qkv_proj_self_kernel(x_ref, w_ref, b_ref, oq_ref, ok_ref, ov_ref):
    # Self-attention fast path: the activation tile is streamed from HBM once.
    x = x_ref[...].astype(jnp.bfloat16)
    oq_ref[...] = (jnp.dot(x, w_ref[0], preferred_element_type=jnp.float32)
                   + b_ref[0]).astype(jnp.bfloat16)
    ok_ref[...] = (jnp.dot(x, w_ref[1], preferred_element_type=jnp.float32)
                   + b_ref[1]).astype(jnp.bfloat16)
    ov_ref[...] = (jnp.dot(x, w_ref[2], preferred_element_type=jnp.float32)
                   + b_ref[2]).astype(jnp.bfloat16)


def qkv_proj_pallas(xs, w_qkv_bf16, b_qkv):
    # xs: tuple of 1 (self-attention) or 3 activation matrices, each [M, d_model] f32.
    M, K = xs[0].shape
    N = w_qkv_bf16.shape[-1]
    TM = min(M, _TM)                       # HBM-bound kernel: big tiles -> ~85% roofline
    grid = (pl.cdiv(M, TM),)
    row_spec = pl.BlockSpec((TM, K), lambda i: (i, 0))
    out_spec = pl.BlockSpec((TM, N), lambda i: (i, 0))
    kernel = qkv_proj_self_kernel if len(xs) == 1 else qkv_proj_kernel
    return pl.pallas_call(
        kernel,
        out_shape=[jax.ShapeDtypeStruct((M, N), jnp.bfloat16)] * 3,
        grid=grid,
        in_specs=[row_spec] * len(xs) + [
            # TODO(synk): pipeline_mode=pl.Buffered(1) on these resident operands would
            #             shave ~4.5 MiB VMEM headroom on v7x.
            pl.BlockSpec((3, K, N), lambda i: (0, 0, 0)),   # stacked weights resident
            pl.BlockSpec((3, 1, N), lambda i: (0, 0, 0)),   # stacked biases resident
        ],
        out_specs=[out_spec, out_spec, out_spec],
        compiler_params=pltpu.CompilerParams(
            dimension_semantics=("parallel",),
            vmem_limit_bytes=_VMEM_LIMIT),
    )(*xs, w_qkv_bf16, b_qkv)


# ----------------------------------------------------------------------------
# Kernel 2: scaled dot-product attention over lane-dense two-head (128-wide) slabs.
#           grid = (batch, n_heads // 2); mask block stays resident across the head axis.
# ----------------------------------------------------------------------------
def attn_kernel(q_ref, k_ref, v_ref, mask_ref, o_ref):
    # q/k/v/o: [1, S, 128] bf16 (two heads); mask: [1, S, S] int8 (1 == masked out).
    bias = mask_ref[0].astype(jnp.float32) * jnp.float32(-1e9)     # additive mask bias
    scale = 1.0 / math.sqrt(d_k)            # 0.125: exact in bf16, folded into Q
    qb = q_ref[0] * scale                    # VPU: S*128 muls instead of 2*S*S
    kb = k_ref[0]
    vb = v_ref[0]

    outs = []
    for hh in range(_HEADS_PER_BLOCK):       # static unroll over the 2 heads in the slab
        sl = slice(hh * d_k, (hh + 1) * d_k)
        q = qb[:, sl]                        # [S, d_k] bf16
        k = kb[:, sl]
        v = vb[:, sl]
        # contract on the feature axis directly (no K^T materialization / XLU transpose)
        s = jax.lax.dot_general(q, k, (((1,), (1,)), ((), ())),
                                preferred_element_type=jnp.float32) + bias
        # numerically-stable softmax along last axis (f32), EUP approx reciprocal
        s = s - jnp.max(s, axis=-1, keepdims=True)
        e = jnp.exp(s)
        p = e * pl.reciprocal(jnp.sum(e, axis=-1, keepdims=True), approx=True)
        outs.append(jnp.dot(p.astype(jnp.bfloat16), v,
                            preferred_element_type=jnp.float32))

    # single lane-dense 128-wide store (no masked partial stores)
    o_ref[0] = jnp.concatenate(outs, axis=-1).astype(jnp.bfloat16)


def attention_pallas(q_s, k_s, v_s, mask_i8):
    B, S, N = q_s.shape
    HW = _HEADS_PER_BLOCK * d_k              # 128-wide head slab
    qkv_spec = pl.BlockSpec((1, S, HW), lambda b, h: (b, 0, h))
    return pl.pallas_call(
        attn_kernel,
        out_shape=jax.ShapeDtypeStruct((B, S, N), jnp.bfloat16),
        grid=(B, N // HW),
        in_specs=[qkv_spec, qkv_spec, qkv_spec,
                  pl.BlockSpec((1, S, S), lambda b, h: (b, 0, 0))],  # resident across h
        out_specs=qkv_spec,
        compiler_params=pltpu.CompilerParams(
            dimension_semantics=("parallel", "parallel"),
            vmem_limit_bytes=_VMEM_LIMIT),
    )(q_s, k_s, v_s, mask_i8)


# ----------------------------------------------------------------------------
# Kernel 3: output projection + residual add + LayerNorm(d_model), M-tiled
# ----------------------------------------------------------------------------
def out_ln_kernel(ctx_ref, w_ref, b_ref, res_ref, g_ref, beta_ref, o_ref):
    # ctx_ref / w_ref are bf16 MXU operands; everything after the dot is f32.
    y = jnp.dot(ctx_ref[...], w_ref[...],
                preferred_element_type=jnp.float32) + b_ref[...] + res_ref[...]
    mean = jnp.mean(y, axis=-1, keepdims=True)
    var = jnp.mean(jnp.square(y - mean), axis=-1, keepdims=True)
    norm = (y - mean) * jax.lax.rsqrt(var + 1e-5)
    o_ref[...] = norm * g_ref[...] + beta_ref[...]


def output_layernorm_pallas(ctx2d, w_o_bf16, b_o, residual2d, gamma, beta):
    M, K = ctx2d.shape
    N = w_o_bf16.shape[1]
    TM = min(M, _TM)
    grid = (pl.cdiv(M, TM),)
    row_in = pl.BlockSpec((TM, K), lambda i: (i, 0))
    row_out = pl.BlockSpec((TM, N), lambda i: (i, 0))
    vec_spec = pl.BlockSpec((1, N), lambda i: (0, 0))
    return pl.pallas_call(
        out_ln_kernel,
        out_shape=jax.ShapeDtypeStruct((M, N), jnp.float32),
        grid=grid,
        in_specs=[
            row_in,                                    # bf16 context tile
            pl.BlockSpec((K, N), lambda i: (0, 0)),    # W_O resident (bf16)
            vec_spec,                                  # b_O
            row_out,                                   # residual tile (f32)
            vec_spec,                                  # gamma
            vec_spec,                                  # beta
        ],
        out_specs=row_out,
        compiler_params=pltpu.CompilerParams(
            dimension_semantics=("parallel",),
            vmem_limit_bytes=_VMEM_LIMIT),
    )(ctx2d, w_o_bf16, b_o.reshape(1, N), residual2d,
      gamma.reshape(1, N), beta.reshape(1, N))


# ----------------------------------------------------------------------------
# Full forward (mirrors MultiHeadAttention.forward)
# ----------------------------------------------------------------------------
def multi_head_attention(Q, K, V, attn_mask, params, *, self_attention=False):
    B, S, _ = Q.shape
    M = B * S

    xq = Q.reshape(M, d_model)

    # Stack Q/K/V weights so a single kernel call streams each activation tile once.
    w_qkv = jnp.stack([params["W_Q"], params["W_K"], params["W_V"]]).astype(jnp.bfloat16)
    b_qkv = jnp.stack([params["b_Q"], params["b_K"], params["b_V"]]).reshape(3, 1, d_model)

    if self_attention:
        xs = (xq,)                                   # read the activation from HBM once
    else:
        xs = (xq, K.reshape(M, d_model), V.reshape(M, d_model))
    q_p, k_p, v_p = qkv_proj_pallas(xs, w_qkv, b_qkv)   # bf16 outputs

    # Head h lives in columns [h*d_k, (h+1)*d_k): no [B,H,S,d] transposes needed.
    q_s = q_p.reshape(B, S, n_heads * d_k)
    k_s = k_p.reshape(B, S, n_heads * d_k)
    v_s = v_p.reshape(B, S, n_heads * d_v)

    # Raw 0/1 mask (int8); the -1e9 additive bias is built in-kernel.
    mask_i8 = attn_mask.astype(jnp.int8)

    context = attention_pallas(q_s, k_s, v_s, mask_i8)   # [B, S, n_heads*d_v] bf16
    ctx2 = context.reshape(M, n_heads * d_v)             # free reshape, no transpose

    out2 = output_layernorm_pallas(
        ctx2,
        params["W_O"].astype(jnp.bfloat16),
        params["b_O"],
        xq,                                              # residual = Q
        params["ln_gamma"],
        params["ln_beta"],
    )
    return out2.reshape(B, S, d_model)


# ----------------------------------------------------------------------------
# Deterministic parameter init (nn.Linear-style uniform; LayerNorm gamma=1, beta=0)
# ----------------------------------------------------------------------------
def init_params(key):
    def lin_init(k, fan_in, fan_out):
        kw, kb = jax.random.split(k)
        bound = 1.0 / math.sqrt(fan_in)
        w = jax.random.uniform(kw, (fan_in, fan_out), jnp.float32, -bound, bound)
        b = jax.random.uniform(kb, (fan_out,), jnp.float32, -bound, bound)
        return w, b

    k1, k2, k3, k4 = jax.random.split(key, 4)
    W_Q, b_Q = lin_init(k1, d_model, d_k * n_heads)
    W_K, b_K = lin_init(k2, d_model, d_k * n_heads)
    W_V, b_V = lin_init(k3, d_model, d_v * n_heads)
    W_O, b_O = lin_init(k4, n_heads * d_v, d_model)
    return {
        "W_Q": W_Q, "b_Q": b_Q,
        "W_K": W_K, "b_K": b_K,
        "W_V": W_V, "b_V": b_V,
        "W_O": W_O, "b_O": b_O,
        "ln_gamma": jnp.ones((d_model,), jnp.float32),
        "ln_beta": jnp.zeros((d_model,), jnp.float32),
    }


if __name__ == "__main__":
    B, S = 2, 8
    key = jax.random.PRNGKey(0)
    kp, kq, kk, kv = jax.random.split(key, 4)

    params = init_params(kp)
    Q = jax.random.normal(kq, (B, S, d_model), jnp.float32)
    K = jax.random.normal(kk, (B, S, d_model), jnp.float32)
    V = jax.random.normal(kv, (B, S, d_model), jnp.float32)
    # padding-style mask: last 2 key positions masked out for every query
    attn_mask = jnp.zeros((B, S, S), jnp.bool_).at[:, :, -2:].set(True)

    mha = jax.jit(multi_head_attention, static_argnames=("self_attention",))

    # general (cross-attention-capable) path
    out = mha(Q, K, V, attn_mask, params)
    jax.block_until_ready(out)
    assert out.shape == (B, S, d_model)
    assert bool(jnp.all(jnp.isfinite(out)))

    # self-attention fast path: single activation stream for all three projections
    out_self = mha(Q, Q, Q, attn_mask, params, self_attention=True)
    out_same = mha(Q, Q, Q, attn_mask, params)
    jax.block_until_ready((out_self, out_same))
    assert bool(jnp.all(jnp.isfinite(out_self)))
    assert bool(jnp.allclose(out_self, out_same, atol=2e-2, rtol=2e-2))

    print("KERNEL_OK")
</pallas_src>

<mosaic_0001>
module attributes {stable_mosaic.version = 11 : i64} {
  func.func @attn_kernel(%arg0: i32, %arg1: i32, %arg2: memref<1x8x128xbf16, #tpu.memory_space<vmem>>, %arg3: memref<1x8x128xbf16, #tpu.memory_space<vmem>>, %arg4: memref<1x8x128xbf16, #tpu.memory_space<vmem>>, %arg5: memref<1x8x8xi8, #tpu.memory_space<vmem>>, %arg6: memref<1x8x128xbf16, #tpu.memory_space<vmem>>) attributes {dimension_semantics = [#tpu.dimension_semantics<parallel>, #tpu.dimension_semantics<parallel>], iteration_bounds = array<i64: 2, 6>, scalar_prefetch = 0 : i64, scratch_operands = 0 : i64, tpu.core_type = #tpu.core_type<tc>, window_params = [{transform_indices = @transform_0, window_bounds = array<i64: 1, 8, 128>}, {transform_indices = @transform_1, window_bounds = array<i64: 1, 8, 128>}, {transform_indices = @transform_2, window_bounds = array<i64: 1, 8, 128>}, {transform_indices = @transform_3, window_bounds = array<i64: 1, 8, 8>}, {transform_indices = @transform_4, window_bounds = array<i64: 1, 8, 128>}]} {
    %c0 = arith.constant 0 : index
    %c0_0 = arith.constant 0 : index
    %c0_1 = arith.constant 0 : index
    %0 = vector.load %arg5[%c0, %c0_0, %c0_1] : memref<1x8x8xi8, #tpu.memory_space<vmem>>, vector<1x8x8xi8>
    %1 = vector.shape_cast %0 : vector<1x8x8xi8> to vector<8x8xi8>
    %2 = arith.sitofp %1 : vector<8x8xi8> to vector<8x8xf32>
    %cst = arith.constant -1.000000e+09 : f32
    %3 = vector.broadcast %cst : f32 to vector<8x8xf32>
    %4 = arith.mulf %2, %3 : vector<8x8xf32>
    %c0_2 = arith.constant 0 : index
    %c0_3 = arith.constant 0 : index
    %c0_4 = arith.constant 0 : index
    %5 = vector.load %arg2[%c0_2, %c0_3, %c0_4] : memref<1x8x128xbf16, #tpu.memory_space<vmem>>, vector<1x8x128xbf16>
    %6 = vector.shape_cast %5 : vector<1x8x128xbf16> to vector<8x128xbf16>
    %cst_5 = arith.constant 1.250000e-01 : bf16
    %7 = vector.broadcast %cst_5 : bf16 to vector<8x128xbf16>
    %8 = arith.mulf %6, %7 : vector<8x128xbf16>
    %c0_6 = arith.constant 0 : index
    %c0_7 = arith.constant 0 : index
    %c0_8 = arith.constant 0 : index
    %9 = vector.load %arg3[%c0_6, %c0_7, %c0_8] : memref<1x8x128xbf16, #tpu.memory_space<vmem>>, vector<1x8x128xbf16>
    %10 = vector.shape_cast %9 : vector<1x8x128xbf16> to vector<8x128xbf16>
    %c0_9 = arith.constant 0 : index
    %c0_10 = arith.constant 0 : index
    %c0_11 = arith.constant 0 : index
    %11 = vector.load %arg4[%c0_9, %c0_10, %c0_11] : memref<1x8x128xbf16, #tpu.memory_space<vmem>>, vector<1x8x128xbf16>
    %12 = vector.shape_cast %11 : vector<1x8x128xbf16> to vector<8x128xbf16>
    %13 = vector.extract_strided_slice %8 {offsets = [0, 0], sizes = [8, 64], strides = [1, 1]} : vector<8x128xbf16> to vector<8x64xbf16>
    %14 = vector.extract_strided_slice %10 {offsets = [0, 0], sizes = [8, 64], strides = [1, 1]} : vector<8x128xbf16> to vector<8x64xbf16>
    %15 = vector.extract_strided_slice %12 {offsets = [0, 0], sizes = [8, 64], strides = [1, 1]} : vector<8x128xbf16> to vector<8x64xbf16>
    %cst_12 = arith.constant dense<0.000000e+00> : vector<8x8xf32>
    %16 = tpu.matmul %13, %14, %cst_12 {dimension_numbers = #tpu.dot_dimension_numbers<[1], [1], [0], [0], [0, 0, 1, 0], [], []>} : vector<8x64xbf16>, vector<8x64xbf16>, vector<8x8xf32> -> vector<8x8xf32>
    %17 = arith.addf %16, %4 : vector<8x8xf32>
    %cst_13 = arith.constant dense<0xFF800000> : vector<8xf32>
    %18 = vector.multi_reduction <maximumf>, %17, %cst_13 [1] : vector<8x8xf32> to vector<8xf32>
    %19 = vector.shape_cast %18 : vector<8xf32> to vector<8x1xf32>
    %20 = vector.broadcast %19 : vector<8x1xf32> to vector<8x8xf32>
    %21 = arith.subf %17, %20 : vector<8x8xf32>
    %22 = math.exp %21 : vector<8x8xf32>
    %cst_14 = arith.constant dense<0.000000e+00> : vector<8xf32>
    %23 = vector.multi_reduction <add>, %22, %cst_14 [1] : vector<8x8xf32> to vector<8xf32>
    %24 = vector.shape_cast %23 : vector<8xf32> to vector<8x1xf32>
    %25 = tpu.reciprocal %24 {approx = true} : vector<8x1xf32> -> vector<8x1xf32>
    %26 = vector.broadcast %25 : vector<8x1xf32> to vector<8x8xf32>
    %27 = arith.mulf %22, %26 : vector<8x8xf32>
    %28 = arith.truncf %27 : vector<8x8xf32> to vector<8x8xbf16>
    %cst_15 = arith.constant dense<0.000000e+00> : vector<8x64xf32>
    %29 = tpu.matmul %28, %15, %cst_15 {dimension_numbers = #tpu.dot_dimension_numbers<[1], [0], [0], [1], [0, 0, 1, 1], [], []>} : vector<8x8xbf16>, vector<8x64xbf16>, vector<8x64xf32> -> vector<8x64xf32>
    %30 = vector.extract_strided_slice %8 {offsets = [0, 64], sizes = [8, 64], strides = [1, 1]} : vector<8x128xbf16> to vector<8x64xbf16>
    %31 = vector.extract_strided_slice %10 {offsets = [0, 64], sizes = [8, 64], strides = [1, 1]} : vector<8x128xbf16> to vector<8x64xbf16>
    %32 = vector.extract_strided_slice %12 {offsets = [0, 64], sizes = [8, 64], strides = [1, 1]} : vector<8x128xbf16> to vector<8x64xbf16>
    %cst_16 = arith.constant dense<0.000000e+00> : vector<8x8xf32>
    %33 = tpu.matmul %30, %31, %cst_16 {dimension_numbers = #tpu.dot_dimension_numbers<[1], [1], [0], [0], [0, 0, 1, 0], [], []>} : vector<8x64xbf16>, vector<8x64xbf16>, vector<8x8xf32> -> vector<8x8xf32>
    %34 = arith.addf %33, %4 : vector<8x8xf32>
    %cst_17 = arith.constant dense<0xFF800000> : vector<8xf32>
    %35 = vector.multi_reduction <maximumf>, %34, %cst_17 [1] : vector<8x8xf32> to vector<8xf32>
    %36 = vector.shape_cast %35 : vector<8xf32> to vector<8x1xf32>
    %37 = vector.broadcast %36 : vector<8x1xf32> to vector<8x8xf32>
    %38 = arith.subf %34, %37 : vector<8x8xf32>
    %39 = math.exp %38 : vector<8x8xf32>
    %cst_18 = arith.constant dense<0.000000e+00> : vector<8xf32>
    %40 = vector.multi_reduction <add>, %39, %cst_18 [1] : vector<8x8xf32> to vector<8xf32>
    %41 = vector.shape_cast %40 : vector<8xf32> to vector<8x1xf32>
    %42 = tpu.reciprocal %41 {approx = true} : vector<8x1xf32> -> vector<8x1xf32>
    %43 = vector.broadcast %42 : vector<8x1xf32> to vector<8x8xf32>
    %44 = arith.mulf %39, %43 : vector<8x8xf32>
    %45 = arith.truncf %44 : vector<8x8xf32> to vector<8x8xbf16>
    %cst_19 = arith.constant dense<0.000000e+00> : vector<8x64xf32>
    %46 = tpu.matmul %45, %32, %cst_19 {dimension_numbers = #tpu.dot_dimension_numbers<[1], [0], [0], [1], [0, 0, 1, 1], [], []>} : vector<8x8xbf16>, vector<8x64xbf16>, vector<8x64xf32> -> vector<8x64xf32>
    %47 = tpu.concatenate %29, %46 in 1 : vector<8x64xf32>, vector<8x64xf32> -> vector<8x128xf32>
    %48 = arith.truncf %47 : vector<8x128xf32> to vector<8x128xbf16>
    %c0_20 = arith.constant 0 : index
    %c0_21 = arith.constant 0 : index
    %c0_22 = arith.constant 0 : index
    %49 = vector.load %arg6[%c0_20, %c0_21, %c0_22] : memref<1x8x128xbf16, #tpu.memory_space<vmem>>, vector<1x8x128xbf16>
    %50 = vector.shape_cast %49 : vector<1x8x128xbf16> to vector<8x128xbf16>
    %51 = vector.shape_cast %48 : vector<8x128xbf16> to vector<1x8x128xbf16>
    tpu.vector_store %arg6[%c0_20, %c0_21, %c0_22], %51 {strides = array<i32>} : memref<1x8x128xbf16, #tpu.memory_space<vmem>>, vector<1x8x128xbf16>,
    return
  }
  func.func @transform_0(%arg0: i32, %arg1: i32) -> (i32, i32, i32) {
    %c0_i32 = arith.constant 0 : i32
    %c0_i32_0 = arith.constant 0 : i32
    return %arg0, %c0_i32, %arg1 : i32, i32, i32
  }
  func.func @transform_1(%arg0: i32, %arg1: i32) -> (i32, i32, i32) {
    %c0_i32 = arith.constant 0 : i32
    %c0_i32_0 = arith.constant 0 : i32
    return %arg0, %c0_i32, %arg1 : i32, i32, i32
  }
  func.func @transform_2(%arg0: i32, %arg1: i32) -> (i32, i32, i32) {
    %c0_i32 = arith.constant 0 : i32
    %c0_i32_0 = arith.constant 0 : i32
    return %arg0, %c0_i32, %arg1 : i32, i32, i32
  }
  func.func @transform_3(%arg0: i32, %arg1: i32) -> (i32, i32, i32) {
    %c0_i32 = arith.constant 0 : i32
    %c0_i32_0 = arith.constant 0 : i32
    %c0_i32_1 = arith.constant 0 : i32
    return %arg0, %c0_i32, %c0_i32_0 : i32, i32, i32
  }
  func.func @transform_4(%arg0: i32, %arg1: i32) -> (i32, i32, i32) {
    %c0_i32 = arith.constant 0 : i32
    %c0_i32_0 = arith.constant 0 : i32
    return %arg0, %c0_i32, %arg1 : i32, i32, i32
  }
}

module attributes {stable_mosaic.version = 11 : i64} {
  func.func @qkv_proj_kernel(%arg0: i32, %arg1: memref<16x768xf32, #tpu.memory_space<vmem>>, %arg2: memref<16x768xf32, #tpu.memory_space<vmem>>, %arg3: memref<16x768xf32, #tpu.memory_space<vmem>>, %arg4: memref<3x768x768xbf16, #tpu.memory_space<vmem>>, %arg5: memref<3x1x768xf32, #tpu.memory_space<vmem>>, %arg6: memref<16x768xbf16, #tpu.memory_space<vmem>>, %arg7: memref<16x768xbf16, #tpu.memory_space<vmem>>, %arg8: memref<16x768xbf16, #tpu.memory_space<vmem>>) attributes {dimension_semantics = [#tpu.dimension_semantics<parallel>], iteration_bounds = array<i64: 1>, scalar_prefetch = 0 : i64, scratch_operands = 0 : i64, tpu.core_type = #tpu.core_type<tc>, window_params = [{transform_indices = @transform_0, window_bounds = array<i64: 16, 768>}, {transform_indices = @transform_1, window_bounds = array<i64: 16, 768>}, {transform_indices = @transform_2, window_bounds = array<i64: 16, 768>}, {pipeline_mode = #tpu.pipeline_mode<synchronous>, transform_indices = @transform_3, window_bounds = array<i64: 3, 768, 768>}, {pipeline_mode = #tpu.pipeline_mode<synchronous>, transform_indices = @transform_4, window_bounds = array<i64: 3, 1, 768>}, {transform_indices = @transform_5, window_bounds = array<i64: 16, 768>}, {transform_indices = @transform_6, window_bounds = array<i64: 16, 768>}, {transform_indices = @transform_7, window_bounds = array<i64: 16, 768>}]} {
    %c0 = arith.constant 0 : index
    %c0_0 = arith.constant 0 : index
    %0 = vector.load %arg1[%c0, %c0_0] : memref<16x768xf32, #tpu.memory_space<vmem>>, vector<16x768xf32>
    %1 = arith.truncf %0 : vector<16x768xf32> to vector<16x768xbf16>
    %c0_1 = arith.constant 0 : index
    %c0_2 = arith.constant 0 : index
    %2 = vector.load %arg2[%c0_1, %c0_2] : memref<16x768xf32, #tpu.memory_space<vmem>>, vector<16x768xf32>
    %3 = arith.truncf %2 : vector<16x768xf32> to vector<16x768xbf16>
    %c0_3 = arith.constant 0 : index
    %c0_4 = arith.constant 0 : index
    %4 = vector.load %arg3[%c0_3, %c0_4] : memref<16x768xf32, #tpu.memory_space<vmem>>, vector<16x768xf32>
    %5 = arith.truncf %4 : vector<16x768xf32> to vector<16x768xbf16>
    %c0_5 = arith.constant 0 : index
    %c0_6 = arith.constant 0 : index
    %c0_7 = arith.constant 0 : index
    %6 = vector.load %arg4[%c0_5, %c0_6, %c0_7] : memref<3x768x768xbf16, #tpu.memory_space<vmem>>, vector<1x768x768xbf16>
    %7 = vector.shape_cast %6 : vector<1x768x768xbf16> to vector<768x768xbf16>
    %cst = arith.constant dense<0.000000e+00> : vector<16x768xf32>
    %8 = tpu.matmul %1, %7, %cst {dimension_numbers = #tpu.dot_dimension_numbers<[1], [0], [0], [1], [0, 0, 1, 1], [], []>} : vector<16x768xbf16>, vector<768x768xbf16>, vector<16x768xf32> -> vector<16x768xf32>
    %c0_8 = arith.constant 0 : index
    %c0_9 = arith.constant 0 : index
    %c0_10 = arith.constant 0 : index
    %9 = vector.load %arg5[%c0_8, %c0_9, %c0_10] : memref<3x1x768xf32, #tpu.memory_space<vmem>>, vector<1x1x768xf32>
    %10 = vector.shape_cast %9 : vector<1x1x768xf32> to vector<1x768xf32>
    %11 = vector.broadcast %10 : vector<1x768xf32> to vector<16x768xf32>
    %12 = arith.addf %8, %11 : vector<16x768xf32>
    %13 = arith.truncf %12 : vector<16x768xf32> to vector<16x768xbf16>
    %c0_11 = arith.constant 0 : index
    %c0_12 = arith.constant 0 : index
    %14 = vector.load %arg6[%c0_11, %c0_12] : memref<16x768xbf16, #tpu.memory_space<vmem>>, vector<16x768xbf16>
    tpu.vector_store %arg6[%c0_11, %c0_12], %13 {strides = array<i32>} : memref<16x768xbf16, #tpu.memory_space<vmem>>, vector<16x768xbf16>,
    %c1 = arith.constant 1 : index
    %c0_13 = arith.constant 0 : index
    %c0_14 = arith.constant 0 : index
    %15 = vector.load %arg4[%c1, %c0_13, %c0_14] : memref<3x768x768xbf16, #tpu.memory_space<vmem>>, vector<1x768x768xbf16>
    %16 = vector.shape_cast %15 : vector<1x768x768xbf16> to vector<768x768xbf16>
    %cst_15 = arith.constant dense<0.000000e+00> : vector<16x768xf32>
    %17 = tpu.matmul %3, %16, %cst_15 {dimension_numbers = #tpu.dot_dimension_numbers<[1], [0], [0], [1], [0, 0, 1, 1], [], []>} : vector<16x768xbf16>, vector<768x768xbf16>, vector<16x768xf32> -> vector<16x768xf32>
    %c1_16 = arith.constant 1 : index
    %c0_17 = arith.constant 0 : index
    %c0_18 = arith.constant 0 : index
    %18 = vector.load %arg5[%c1_16, %c0_17, %c0_18] : memref<3x1x768xf32, #tpu.memory_space<vmem>>, vector<1x1x768xf32>
    %19 = vector.shape_cast %18 : vector<1x1x768xf32> to vector<1x768xf32>
    %20 = vector.broadcast %19 : vector<1x768xf32> to vector<16x768xf32>
    %21 = arith.addf %17, %20 : vector<16x768xf32>
    %22 = arith.truncf %21 : vector<16x768xf32> to vector<16x768xbf16>
    %c0_19 = arith.constant 0 : index
    %c0_20 = arith.constant 0 : index
    %23 = vector.load %arg7[%c0_19, %c0_20] : memref<16x768xbf16, #tpu.memory_space<vmem>>, vector<16x768xbf16>
    tpu.vector_store %arg7[%c0_19, %c0_20], %22 {strides = array<i32>} : memref<16x768xbf16, #tpu.memory_space<vmem>>, vector<16x768xbf16>,
    %c2 = arith.constant 2 : index
    %c0_21 = arith.constant 0 : index
    %c0_22 = arith.constant 0 : index
    %24 = vector.load %arg4[%c2, %c0_21, %c0_22] : memref<3x768x768xbf16, #tpu.memory_space<vmem>>, vector<1x768x768xbf16>
    %25 = vector.shape_cast %24 : vector<1x768x768xbf16> to vector<768x768xbf16>
    %cst_23 = arith.constant dense<0.000000e+00> : vector<16x768xf32>
    %26 = tpu.matmul %5, %25, %cst_23 {dimension_numbers = #tpu.dot_dimension_numbers<[1], [0], [0], [1], [0, 0, 1, 1], [], []>} : vector<16x768xbf16>, vector<768x768xbf16>, vector<16x768xf32> -> vector<16x768xf32>
    %c2_24 = arith.constant 2 : index
    %c0_25 = arith.constant 0 : index
    %c0_26 = arith.constant 0 : index
    %27 = vector.load %arg5[%c2_24, %c0_25, %c0_26] : memref<3x1x768xf32, #tpu.memory_space<vmem>>, vector<1x1x768xf32>
    %28 = vector.shape_cast %27 : vector<1x1x768xf32> to vector<1x768xf32>
    %29 = vector.broadcast %28 : vector<1x768xf32> to vector<16x768xf32>
    %30 = arith.addf %26, %29 : vector<16x768xf32>
    %31 = arith.truncf %30 : vector<16x768xf32> to vector<16x768xbf16>
    %c0_27 = arith.constant 0 : index
    %c0_28 = arith.constant 0 : index
    %32 = vector.load %arg8[%c0_27, %c0_28] : memref<16x768xbf16, #tpu.memory_space<vmem>>, vector<16x768xbf16>
    tpu.vector_store %arg8[%c0_27, %c0_28], %31 {strides = array<i32>} : memref<16x768xbf16, #tpu.memory_space<vmem>>, vector<16x768xbf16>,
    return
  }
  func.func @transform_0(%arg0: i32) -> (i32, i32) {
    %c0_i32 = arith.constant 0 : i32
    %c0_i32_0 = arith.constant 0 : i32
    return %arg0, %c0_i32 : i32, i32
  }
  func.func @transform_1(%arg0: i32) -> (i32, i32) {
    %c0_i32 = arith.constant 0 : i32
    %c0_i32_0 = arith.constant 0 : i32
    return %arg0, %c0_i32 : i32, i32
  }
  func.func @transform_2(%arg0: i32) -> (i32, i32) {
    %c0_i32 = arith.constant 0 : i32
    %c0_i32_0 = arith.constant 0 : i32
    return %arg0, %c0_i32 : i32, i32
  }
  func.func @transform_3(%arg0: i32) -> (i32, i32, i32) {
    %c0_i32 = arith.constant 0 : i32
    %c0_i32_0 = arith.constant 0 : i32
    %c0_i32_1 = arith.constant 0 : i32
    %c0_i32_2 = arith.constant 0 : i32
    return %c0_i32, %c0_i32_0, %c0_i32_1 : i32, i32, i32
  }
  func.func @transform_4(%arg0: i32) -> (i32, i32, i32) {
    %c0_i32 = arith.constant 0 : i32
    %c0_i32_0 = arith.constant 0 : i32
    %c0_i32_1 = arith.constant 0 : i32
    %c0_i32_2 = arith.constant 0 : i32
    return %c0_i32, %c0_i32_0, %c0_i32_1 : i32, i32, i32
  }
  func.func @transform_5(%arg0: i32) -> (i32, i32) {
    %c0_i32 = arith.constant 0 : i32
    %c0_i32_0 = arith.constant 0 : i32
    return %arg0, %c0_i32 : i32, i32
  }
  func.func @transform_6(%arg0: i32) -> (i32, i32) {
    %c0_i32 = arith.constant 0 : i32
    %c0_i32_0 = arith.constant 0 : i32
    return %arg0, %c0_i32 : i32, i32
  }
  func.func @transform_7(%arg0: i32) -> (i32, i32) {
    %c0_i32 = arith.constant 0 : i32
    %c0_i32_0 = arith.constant 0 : i32
    return %arg0, %c0_i32 : i32, i32
  }
}

module attributes {stable_mosaic.version = 11 : i64} {
  func.func @out_ln_kernel(%arg0: i32, %arg1: memref<16x768xbf16, #tpu.memory_space<vmem>>, %arg2: memref<768x768xbf16, #tpu.memory_space<vmem>>, %arg3: memref<1x768xf32, #tpu.memory_space<vmem>>, %arg4: memref<16x768xf32, #tpu.memory_space<vmem>>, %arg5: memref<1x768xf32, #tpu.memory_space<vmem>>, %arg6: memref<1x768xf32, #tpu.memory_space<vmem>>, %arg7: memref<16x768xf32, #tpu.memory_space<vmem>>) attributes {dimension_semantics = [#tpu.dimension_semantics<parallel>], iteration_bounds = array<i64: 1>, scalar_prefetch = 0 : i64, scratch_operands = 0 : i64, tpu.core_type = #tpu.core_type<tc>, window_params = [{transform_indices = @transform_0, window_bounds = array<i64: 16, 768>}, {pipeline_mode = #tpu.pipeline_mode<synchronous>, transform_indices = @transform_1, window_bounds = array<i64: 768, 768>}, {pipeline_mode = #tpu.pipeline_mode<synchronous>, transform_indices = @transform_2, window_bounds = array<i64: 1, 768>}, {transform_indices = @transform_3, window_bounds = array<i64: 16, 768>}, {pipeline_mode = #tpu.pipeline_mode<synchronous>, transform_indices = @transform_4, window_bounds = array<i64: 1, 768>}, {pipeline_mode = #tpu.pipeline_mode<synchronous>, transform_indices = @transform_5, window_bounds = array<i64: 1, 768>}, {transform_indices = @transform_6, window_bounds = array<i64: 16, 768>}]} {
    %c0 = arith.constant 0 : index
    %c0_0 = arith.constant 0 : index
    %0 = vector.load %arg1[%c0, %c0_0] : memref<16x768xbf16, #tpu.memory_space<vmem>>, vector<16x768xbf16>
    %c0_1 = arith.constant 0 : index
    %c0_2 = arith.constant 0 : index
    %1 = vector.load %arg2[%c0_1, %c0_2] : memref<768x768xbf16, #tpu.memory_space<vmem>>, vector<768x768xbf16>
    %cst = arith.constant dense<0.000000e+00> : vector<16x768xf32>
    %2 = tpu.matmul %0, %1, %cst {dimension_numbers = #tpu.dot_dimension_numbers<[1], [0], [0], [1], [0, 0, 1, 1], [], []>} : vector<16x768xbf16>, vector<768x768xbf16>, vector<16x768xf32> -> vector<16x768xf32>
    %c0_3 = arith.constant 0 : index
    %c0_4 = arith.constant 0 : index
    %3 = vector.load %arg3[%c0_3, %c0_4] : memref<1x768xf32, #tpu.memory_space<vmem>>, vector<1x768xf32>
    %4 = vector.broadcast %3 : vector<1x768xf32> to vector<16x768xf32>
    %5 = arith.addf %2, %4 : vector<16x768xf32>
    %c0_5 = arith.constant 0 : index
    %c0_6 = arith.constant 0 : index
    %6 = vector.load %arg4[%c0_5, %c0_6] : memref<16x768xf32, #tpu.memory_space<vmem>>, vector<16x768xf32>
    %7 = arith.addf %5, %6 : vector<16x768xf32>
    %cst_7 = arith.constant dense<0.000000e+00> : vector<16xf32>
    %8 = vector.multi_reduction <add>, %7, %cst_7 [1] : vector<16x768xf32> to vector<16xf32>
    %9 = vector.shape_cast %8 : vector<16xf32> to vector<16x1xf32>
    %cst_8 = arith.constant 7.680000e+02 : f32
    %10 = vector.broadcast %cst_8 : f32 to vector<16x1xf32>
    %11 = arith.divf %9, %10 : vector<16x1xf32>
    %12 = vector.broadcast %11 : vector<16x1xf32> to vector<16x768xf32>
    %13 = arith.subf %7, %12 : vector<16x768xf32>
    %14 = arith.mulf %13, %13 : vector<16x768xf32>
    %cst_9 = arith.constant dense<0.000000e+00> : vector<16xf32>
    %15 = vector.multi_reduction <add>, %14, %cst_9 [1] : vector<16x768xf32> to vector<16xf32>
    %16 = vector.shape_cast %15 : vector<16xf32> to vector<16x1xf32>
    %cst_10 = arith.constant 7.680000e+02 : f32
    %17 = vector.broadcast %cst_10 : f32 to vector<16x1xf32>
    %18 = arith.divf %16, %17 : vector<16x1xf32>
    %19 = vector.broadcast %11 : vector<16x1xf32> to vector<16x768xf32>
    %20 = arith.subf %7, %19 : vector<16x768xf32>
    %cst_11 = arith.constant 9.99999974E-6 : f32
    %21 = vector.broadcast %cst_11 : f32 to vector<16x1xf32>
    %22 = arith.addf %18, %21 : vector<16x1xf32>
    %23 = math.rsqrt %22 : vector<16x1xf32>
    %24 = vector.broadcast %23 : vector<16x1xf32> to vector<16x768xf32>
    %25 = arith.mulf %20, %24 : vector<16x768xf32>
    %c0_12 = arith.constant 0 : index
    %c0_13 = arith.constant 0 : index
    %26 = vector.load %arg5[%c0_12, %c0_13] : memref<1x768xf32, #tpu.memory_space<vmem>>, vector<1x768xf32>
    %27 = vector.broadcast %26 : vector<1x768xf32> to vector<16x768xf32>
    %28 = arith.mulf %25, %27 : vector<16x768xf32>
    %c0_14 = arith.constant 0 : index
    %c0_15 = arith.constant 0 : index
    %29 = vector.load %arg6[%c0_14, %c0_15] : memref<1x768xf32, #tpu.memory_space<vmem>>, vector<1x768xf32>
    %30 = vector.broadcast %29 : vector<1x768xf32> to vector<16x768xf32>
    %31 = arith.addf %28, %30 : vector<16x768xf32>
    %c0_16 = arith.constant 0 : index
    %c0_17 = arith.constant 0 : index
    %32 = vector.load %arg7[%c0_16, %c0_17] : memref<16x768xf32, #tpu.memory_space<vmem>>, vector<16x768xf32>
    tpu.vector_store %arg7[%c0_16, %c0_17], %31 {strides = array<i32>} : memref<16x768xf32, #tpu.memory_space<vmem>>, vector<16x768xf32>,
    return
  }
  func.func @transform_0(%arg0: i32) -> (i32, i32) {
    %c0_i32 = arith.constant 0 : i32
    %c0_i32_0 = arith.constant 0 : i32
    return %arg0, %c0_i32 : i32, i32
  }
  func.func @transform_1(%arg0: i32) -> (i32, i32) {
    %c0_i32 = arith.constant 0 : i32
    %c0_i32_0 = arith.constant 0 : i32
    %c0_i32_1 = arith.constant 0 : i32
    return %c0_i32, %c0_i32_0 : i32, i32
  }
  func.func @transform_2(%arg0: i32) -> (i32, i32) {
    %c0_i32 = arith.constant 0 : i32
    %c0_i32_0 = arith.constant 0 : i32
    %c0_i32_1 = arith.constant 0 : i32
    return %c0_i32, %c0_i32_0 : i32, i32
  }
  func.func @transform_3(%arg0: i32) -> (i32, i32) {
    %c0_i32 = arith.constant 0 : i32
    %c0_i32_0 = arith.constant 0 : i32
    return %arg0, %c0_i32 : i32, i32
  }
  func.func @transform_4(%arg0: i32) -> (i32, i32) {
    %c0_i32 = arith.constant 0 : i32
    %c0_i32_0 = arith.constant 0 : i32
    %c0_i32_1 = arith.constant 0 : i32
    return %c0_i32, %c0_i32_0 : i32, i32
  }
  func.func @transform_5(%arg0: i32) -> (i32, i32) {
    %c0_i32 = arith.constant 0 : i32
    %c0_i32_0 = arith.constant 0 : i32
    %c0_i32_1 = arith.constant 0 : i32
    return %c0_i32, %c0_i32_0 : i32, i32
  }
  func.func @transform_6(%arg0: i32) -> (i32, i32) {
    %c0_i32 = arith.constant 0 : i32
    %c0_i32_0 = arith.constant 0 : i32
    return %arg0, %c0_i32 : i32, i32
  }
}

</mosaic_0001>

<llo_original>
// kernel: multi_head_attention.4
$region0: #{multi_head_attention.4}
  #allocation0 [shape = 'u32[]', space=smem, size = 0x4, offset = 0x4, fixed_abs, tag = 'smem constant byte address 0x4 - core index']
  #allocation1 [shape = 'u32[144,128]{1,0:T(1,128)}', space=vmem, size = 0x12000, scoped, tag = 'internal scratch']
  %s0 = inlined_call_operand.vmem [shape: bf16[2,8,768], index: 0, kind: input, shape index: {}]
  %s1 = inlined_call_operand.vmem [shape: bf16[2,8,768], index: 1, kind: input, shape index: {}]
  %s2 = inlined_call_operand.vmem [shape: bf16[2,8,768], index: 2, kind: input, shape index: {}]
  %s3 = inlined_call_operand.vmem [shape: s8[2,8,8], index: 3, kind: input, shape index: {}]
  %s4 = inlined_call_operand.vmem [shape: bf16[2,8,768], index: 4, kind: output, shape index: {}]
  %s5 = sld [smem:[#allocation0]]
  $region49: #{multi_head_attention.4} parent=0
    _
  %s7 = ssub.s32 1, %s5
  %s8 = scalar_select 0, %s7, %s5
  loop: start=0, step=1, limit=14
  $region2: #{multi_head_attention.4} parent=0 // loop_pre_header
    _
  $region3: #{multi_head_attention.4} parent=0 // loop_header
    %s10 = sphi 0, %s14
    %p11 = scmp.ge.s32.totalorder %s10, 14
    %s17 = sphi 0, %s29
    %s18 = sphi 0, %s25
    %s19 = sphi 0, %s17
    %s20 = sphi 0, %s18
    %s21 = sphi 0, %s19
    %s22 = sphi 0, %s20
    %s34 = sphi 0, %s36
    %s37 = sphi 0, %s34
    %s38 = sphi 0, %s37
    %s54 = sphi 0, %s38
    %s62 = sphi 0, %s64
    %s65 = sphi 0, %s62
    %s66 = sphi 0, %s65
    %s82 = sphi 0, %s66
    %s90 = sphi 0, %s92
    %s93 = sphi 0, %s90
    %s94 = sphi 0, %s93
    %s110 = sphi 0, %s94
    %s116 = sphi 0, %s118
    %s119 = sphi 0, %s116
    %s120 = sphi 0, %s119
    %s136 = sphi 0, %s120
    %s144 = sphi 0, %s146
    %s147 = sphi 0, %s144
    %s148 = sphi 0, %s147
    %s164 = sphi 0, %s148
  $region4: #{multi_head_attention.4} parent=0 // loop_header_branch
    %13 = sbr.rel (%p11) target = $region8
  $region5: #{multi_head_attention.4} parent=0 // loop_body
    %s15 = ssub.s32 %s10, 1
    %s16 = ssub.s32 %s10, 2
    %s23 = sadd.s32 1, %s18
    %p24 = scmp.ge.s32.totalorder %s23, 6
    %s25 = scalar_select %p24, 0, %s23
    %s26 = sadd.s32 1, %s17
    %s27 = scalar_select %p24, %s26, %s17
    %p28 = scmp.ge.s32.totalorder %s27, 2
    %s29 = scalar_select %p28, 0, %s27
    %s30 = ssub.s32 %s17, %s29
    %s31 = ssub.s32 %s18, %s25
    %s32 = sor.u32 %s30, %s31
    %p33 = scmp.eq.s32.totalorder %s32, 0
    %s35 = sadd.s32 %s34, 1
    %s36 = scalar_select %p33, %s34, %s35
    %p39 = pneg %p33
    %p40 = scmp.eq.s32.totalorder %s10, 11
    %p41 = por %p39, %p40
    %p42 = scmp.ne.s32.totalorder %s34, %s37
    %p43 = scmp.eq.s32.totalorder %s10, 0
    %p44 = por %p42, %p43
    %p45 = scmp.ne.s32.totalorder %s34, %s37
    %p46 = scmp.eq.s32.totalorder %s15, 11
    %p47 = por %p45, %p46
    %p48 = scmp.ne.s32.totalorder %s37, %s38
    %p49 = scmp.eq.s32.totalorder %s15, 0
    %p50 = por %p48, %p49
    %p51 = scmp.ne.s32.totalorder %s37, %s38
    %p52 = scmp.eq.s32.totalorder %s16, 11
    %p53 = por %p51, %p52
    %p55 = scmp.ne.s32.totalorder %s38, %s54
    %p56 = scmp.eq.s32.totalorder %s16, 0
    %p57 = por %p55, %p56
    %s58 = ssub.s32 %s17, %s29
    %s59 = ssub.s32 %s18, %s25
    %s60 = sor.u32 %s58, %s59
    %p61 = scmp.eq.s32.totalorder %s60, 0
    %s63 = sadd.s32 %s62, 1
    %s64 = scalar_select %p61, %s62, %s63
    %p67 = pneg %p61
    %p68 = scmp.eq.s32.totalorder %s10, 11
    %p69 = por %p67, %p68
    %p70 = scmp.ne.s32.totalorder %s62, %s65
    %p71 = scmp.eq.s32.totalorder %s10, 0
    %p72 = por %p70, %p71
    %p73 = scmp.ne.s32.totalorder %s62, %s65
    %p74 = scmp.eq.s32.totalorder %s15, 11
    %p75 = por %p73, %p74
    %p76 = scmp.ne.s32.totalorder %s65, %s66
    %p77 = scmp.eq.s32.totalorder %s15, 0
    %p78 = por %p76, %p77
    %p79 = scmp.ne.s32.totalorder %s65, %s66
    %p80 = scmp.eq.s32.totalorder %s16, 11
    %p81 = por %p79, %p80
    %p83 = scmp.ne.s32.totalorder %s66, %s82
    %p84 = scmp.eq.s32.totalorder %s16, 0
    %p85 = por %p83, %p84
    %s86 = ssub.s32 %s17, %s29
    %s87 = ssub.s32 %s18, %s25
    %s88 = sor.u32 %s86, %s87
    %p89 = scmp.eq.s32.totalorder %s88, 0
    %s91 = sadd.s32 %s90, 1
    %s92 = scalar_select %p89, %s90, %s91
    %p95 = pneg %p89
    %p96 = scmp.eq.s32.totalorder %s10, 11
    %p97 = por %p95, %p96
    %p98 = scmp.ne.s32.totalorder %s90, %s93
    %p99 = scmp.eq.s32.totalorder %s10, 0
    %p100 = por %p98, %p99
    %p101 = scmp.ne.s32.totalorder %s90, %s93
    %p102 = scmp.eq.s32.totalorder %s15, 11
    %p103 = por %p101, %p102
    %p104 = scmp.ne.s32.totalorder %s93, %s94
    %p105 = scmp.eq.s32.totalorder %s15, 0
    %p106 = por %p104, %p105
    %p107 = scmp.ne.s32.totalorder %s93, %s94
    %p108 = scmp.eq.s32.totalorder %s16, 11
    %p109 = por %p107, %p108
    %p111 = scmp.ne.s32.totalorder %s94, %s110
    %p112 = scmp.eq.s32.totalorder %s16, 0
    %p113 = por %p111, %p112
    %s114 = ssub.s32 %s17, %s29
    %p115 = scmp.eq.s32.totalorder %s114, 0
    %s117 = sadd.s32 %s116, 1
    %s118 = scalar_select %p115, %s116, %s117
    %p121 = pneg %p115
    %p122 = scmp.eq.s32.totalorder %s10, 11
    %p123 = por %p121, %p122
    %p124 = scmp.ne.s32.totalorder %s116, %s119
    %p125 = scmp.eq.s32.totalorder %s10, 0
    %p126 = por %p124, %p125
    %p127 = scmp.ne.s32.totalorder %s116, %s119
    %p128 = scmp.eq.s32.totalorder %s15, 11
    %p129 = por %p127, %p128
    %p130 = scmp.ne.s32.totalorder %s119, %s120
    %p131 = scmp.eq.s32.totalorder %s15, 0
    %p132 = por %p130, %p131
    %p133 = scmp.ne.s32.totalorder %s119, %s120
    %p134 = scmp.eq.s32.totalorder %s16, 11
    %p135 = por %p133, %p134
    %p137 = scmp.ne.s32.totalorder %s120, %s136
    %p138 = scmp.eq.s32.totalorder %s16, 0
    %p139 = por %p137, %p138
    %s140 = ssub.s32 %s17, %s29
    %s141 = ssub.s32 %s18, %s25
    %s142 = sor.u32 %s140, %s141
    %p143 = scmp.eq.s32.totalorder %s142, 0
    %s145 = sadd.s32 %s144, 1
    %s146 = scalar_select %p143, %s144, %s145
    %p149 = pneg %p143
    %p150 = scmp.eq.s32.totalorder %s10, 11
    %p151 = por %p149, %p150
    %p152 = scmp.ne.s32.totalorder %s144, %s147
    %p153 = scmp.eq.s32.totalorder %s10, 0
    %p154 = por %p152, %p153
    %p155 = scmp.ne.s32.totalorder %s144, %s147
    %p156 = scmp.eq.s32.totalorder %s15, 11
    %p157 = por %p155, %p156
    %p158 = scmp.ne.s32.totalorder %s147, %s148
    %p159 = scmp.eq.s32.totalorder %s15, 0
    %p160 = por %p158, %p159
    %p161 = scmp.ne.s32.totalorder %s147, %s148
    %p162 = scmp.eq.s32.totalorder %s16, 11
    %p163 = por %p161, %p162
    %p165 = scmp.ne.s32.totalorder %s148, %s164
    %p166 = scmp.eq.s32.totalorder %s16, 0
    %p167 = por %p165, %p166
    %p168 = scmp.le.s32.totalorder 1, %s10
    %p169 = scmp.lt.s32.totalorder %s10, 13
    %p170 = pnand %p168, %p169
    %p171 = pneg %p170
    // Predicated region
    $region9: #{multi_head_attention.4} parent=5 // pred_check
      _
    $region10: #{multi_head_attention.4} parent=5 // pred_check_branch
      %173 = sbr.rel (%p170) target = $region12
    $region11: #{multi_head_attention.4} parent=5 // pred_region
      %s174 = ssub.s32 %s10, 1
    $region12: #{multi_head_attention.4} parent=5 // pred_fallthru
      _
    %p175 = scmp.lt.s32.totalorder %s10, 12
    // Predicated region
    $region13: #{multi_head_attention.4} parent=5 // pred_check
      %p176 = pneg %p175
    $region14: #{multi_head_attention.4} parent=5 // pred_check_branch
      %178 = sbr.rel (%p176) target = $region16
    $region15: #{multi_head_attention.4} parent=5 // pred_region
      // Predicated region
      $region17: #{multi_head_attention.4} parent=15 // pred_check
        %p179 = pneg %p44
      $region18: #{multi_head_attention.4} parent=15 // pred_check_branch
        %181 = sbr.rel (%p179) target = $region20
      $region19: #{multi_head_attention.4} parent=15 // pred_region
        %p182 = scmp.lt.s32.totalorder %s17, 1
        %s183 = scalar_select %p182, %s17, 1
        %p184 = scmp.lt.s32.totalorder %s18, 5
        %s185 = scalar_select %p184, %s18, 5
        %s186 = smul.addr %s183, 6
        %s187 = sadd.s32 %s185, %s186
        %s188 = smul.addr %s187, 4
        %s189 = scalar_lea.vmem %s0, %s188
      $region20: #{multi_head_attention.4} parent=15 // pred_fallthru
        _
      // Predicated region
      $region21: #{multi_head_attention.4} parent=15 // pred_check
        %p190 = pneg %p72
      $region22: #{multi_head_attention.4} parent=15 // pred_check_branch
        %192 = sbr.rel (%p190) target = $region24
      $region23: #{multi_head_attention.4} parent=15 // pred_region
        %p193 = scmp.lt.s32.totalorder %s17, 1
        %s194 = scalar_select %p193, %s17, 1
        %p195 = scmp.lt.s32.totalorder %s18, 5
        %s196 = scalar_select %p195, %s18, 5
        %s197 = smul.addr %s194, 6
        %s198 = sadd.s32 %s196, %s197
        %s199 = smul.addr %s198, 4
        %s200 = scalar_lea.vmem %s1, %s199
      $region24: #{multi_head_attention.4} parent=15 // pred_fallthru
        _
      // Predicated region
      $region25: #{multi_head_attention.4} parent=15 // pred_check
        %p201 = pneg %p100
      $region26: #{multi_head_attention.4} parent=15 // pred_check_branch
        %203 = sbr.rel (%p201) target = $region28
      $region27: #{multi_head_attention.4} parent=15 // pred_region
        %p204 = scmp.lt.s32.totalorder %s17, 1
        %s205 = scalar_select %p204, %s17, 1
        %p206 = scmp.lt.s32.totalorder %s18, 5
        %s207 = scalar_select %p206, %s18, 5
        %s208 = smul.addr %s205, 6
        %s209 = sadd.s32 %s207, %s208
        %s210 = smul.addr %s209, 4
        %s211 = scalar_lea.vmem %s2, %s210
      $region28: #{multi_head_attention.4} parent=15 // pred_fallthru
        _
      // Predicated region
      $region29: #{multi_head_attention.4} parent=15 // pred_check
        %p212 = pneg %p126
      $region30: #{multi_head_attention.4} parent=15 // pred_check_branch
        %214 = sbr.rel (%p212) target = $region32
      $region31: #{multi_head_attention.4} parent=15 // pred_region
        %p215 = scmp.lt.s32.totalorder %s17, 1
        %s216 = scalar_select %p215, %s17, 1
        %s217 = smul.addr %s216, 2
        %s218 = scalar_lea.vmem %s3, %s217
      $region32: #{multi_head_attention.4} parent=15 // pred_fallthru
        _
    $region16: #{multi_head_attention.4} parent=5 // pred_fallthru
      _
    %p219 = scmp.le.s32.totalorder 1, %s10
    %p220 = scmp.lt.s32.totalorder %s10, 13
    %p221 = pnand %p219, %p220
    %p222 = pneg %p221
    // Predicated region
    $region33: #{multi_head_attention.4} parent=5 // pred_check
      _
    $region34: #{multi_head_attention.4} parent=5 // pred_check_branch
      %224 = sbr.rel (%p221) target = $region36
    $region35: #{multi_head_attention.4} parent=5 // pred_region
      %s225 = ssub.s32 %s10, 1
      %p226 = scmp.lt.s32.totalorder %s19, 1
      %s227 = scalar_select %p226, %s19, 1
      %p228 = scmp.lt.s32.totalorder %s20, 5
      %s229 = scalar_select %p228, %s20, 5
      %s230 = smul.addr %s227, 6
      %s231 = sadd.s32 %s229, %s230
      %s232 = smul.addr %s231, 4
      %s233 = scalar_lea.vmem %s0, %s232
      %p234 = pneg %p50
      %p235 = pneg %p47
      %p236 = scmp.lt.s32.totalorder %s19, 1
      %s237 = scalar_select %p236, %s19, 1
      %p238 = scmp.lt.s32.totalorder %s20, 5
      %s239 = scalar_select %p238, %s20, 5
      %s240 = smul.addr %s237, 6
      %s241 = sadd.s32 %s239, %s240
      %s242 = smul.addr %s241, 4
      %s243 = scalar_lea.vmem %s1, %s242
      %p244 = pneg %p78
      %p245 = pneg %p75
      %p246 = scmp.lt.s32.totalorder %s19, 1
      %s247 = scalar_select %p246, %s19, 1
      %p248 = scmp.lt.s32.totalorder %s20, 5
      %s249 = scalar_select %p248, %s20, 5
      %s250 = smul.addr %s247, 6
      %s251 = sadd.s32 %s249, %s250
      %s252 = smul.addr %s251, 4
      %s253 = scalar_lea.vmem %s2, %s252
      %p254 = pneg %p106
      %p255 = pneg %p103
      %p256 = scmp.lt.s32.totalorder %s19, 1
      %s257 = scalar_select %p256, %s19, 1
      %s258 = smul.addr %s257, 2
      %s259 = scalar_lea.vmem %s3, %s258
      %p260 = pneg %p132
      %p261 = pneg %p129
      %p262 = pneg %p160
      %p263 = pneg %p157
      %p264 = scmp.lt.s32.totalorder %s19, 1
      %s265 = scalar_select %p264, %s19, 1
      %p266 = scmp.lt.s32.totalorder %s20, 5
      %s267 = scalar_select %p266, %s20, 5
      %s268 = smul.addr %s265, 6
      %s269 = sadd.s32 %s267, %s268
      %s270 = smul.addr %s269, 4
      %s271 = scalar_lea.vmem %s4, %s270
      %p272 = scmp.lt.s32.totalorder %s19, 1
      %s273 = scalar_select %p272, %s19, 1
      %p274 = scmp.lt.s32.totalorder %s20, 5
      %s275 = scalar_select %p274, %s20, 5
      %s276 = smul.addr %s273, 6
      %s277 = sadd.s32 %s275, %s276
      %s278 = smul.addr %s277, 4
      %s279 = scalar_lea.vmem %s0, %s278
      %p280 = scmp.lt.s32.totalorder %s19, 1
      %s281 = scalar_select %p280, %s19, 1
      %p282 = scmp.lt.s32.totalorder %s20, 5
      %s283 = scalar_select %p282, %s20, 5
      %s284 = smul.addr %s281, 6
      %s285 = sadd.s32 %s283, %s284
      %s286 = smul.addr %s285, 4
      %s287 = scalar_lea.vmem %s1, %s286
      %p288 = scmp.lt.s32.totalorder %s19, 1
      %s289 = scalar_select %p288, %s19, 1
      %p290 = scmp.lt.s32.totalorder %s20, 5
      %s291 = scalar_select %p290, %s20, 5
      %s292 = smul.addr %s289, 6
      %s293 = sadd.s32 %s291, %s292
      %s294 = smul.addr %s293, 4
      %s295 = scalar_lea.vmem %s2, %s294
      %p296 = scmp.lt.s32.totalorder %s19, 1
      %s297 = scalar_select %p296, %s19, 1
      %s298 = smul.addr %s297, 2
      %s299 = scalar_lea.vmem %s3, %s298
      %p300 = scmp.lt.s32.totalorder %s19, 1
      %s301 = scalar_select %p300, %s19, 1
      %p302 = scmp.lt.s32.totalorder %s20, 5
      %s303 = scalar_select %p302, %s20, 5
      %s304 = smul.addr %s301, 6
      %s305 = sadd.s32 %s303, %s304
      %s306 = smul.addr %s305, 4
      %s307 = scalar_lea.vmem %s4, %s306
      %v310 = vld [vmem:[%s299] sm:$0x3]
      %v311 = vunpack.c.0.s8 %v310
      %v312 = vcvt.s32.f32 %v311
      %v313 = vmul.f32 %v312, -1e+09
      %v314 = vld [vmem:[%s279] sm:$0xf]
      %v315 = vmul.bf16 %v314, 1040203264
      %v316 = vld [vmem:[%s287] sm:$0xf]
      %v317 = vld [vmem:[%s295] sm:$0xf]
      %vm318 = vcmask 523264
      %v320 = vsel %vm318, %v315, 0
      %v323 = vsel %vm318, %v316, 0
      %325 = vmatprep.subr.bf16.mxu0 0
      %326 = vmatpush1.bf16.xpose.msra.mxu0 0
      %327 = vmatprep.subr.bf16.mxu0 0
      %328 = vmatpush1.bf16.xpose.msra.mxu0 0
      %329 = vmatprep.subr.bf16.mxu0 0
      %330 = vmatpush1.bf16.xpose.msra.mxu0 0
      %331 = vmatprep.subr.bf16.mxu0 0
      %332 = vmatpush1.bf16.xpose.msra.mxu0 0
      %333 = vmatprep.subr.bf16.mxu0 0
      %334 = vmatpush1.bf16.xpose.msra.mxu0 0
      %335 = vmatprep.subr.bf16.mxu0 0
      %336 = vmatpush1.bf16.xpose.msra.mxu0 0
      %337 = vmatprep.subr.bf16.mxu0 0
      %338 = vmatpush1.bf16.xpose.msra.mxu0 0
      %339 = vmatprep.subr.bf16.mxu0 0
      %340 = vmatpush1.bf16.xpose.msra.mxu0 %v323
      %341 = vmatprep.subr.bf16.mxu0 0
      %342 = vmatpush2.bf16.xpose.msra.mxu0 0
      %343 = vmatprep.subr.bf16.mxu0 0
      %344 = vmatpush2.bf16.xpose.msra.mxu0 0
      %345 = vmatprep.subr.bf16.mxu0 0
      %346 = vmatpush2.bf16.xpose.msra.mxu0 0
      %347 = vmatprep.subr.bf16.mxu0 0
      %348 = vmatpush2.bf16.xpose.msra.mxu0 0
      %349 = vmatprep.subr.bf16.mxu0 0
      %350 = vmatpush2.bf16.xpose.msra.mxu0 0
      %351 = vmatprep.subr.bf16.mxu0 0
      %352 = vmatpush2.bf16.xpose.msra.mxu0 0
      %353 = vmatprep.subr.bf16.mxu0 0
      %354 = vmatpush2.bf16.xpose.msra.mxu0 0
      %355 = vmatprep.subr.bf16.mxu0 0
      %356 = vmatpush2.bf16.xpose.msra.mxu0 0
      %357 = vmatprep.mubr.bf16.mxu0 0
      %358 = vmatmul.mubr.bf16.gmra.mxu0 %v320
      %v359 = vpop.f32.mrf.mxu0
      %v360 = vadd.f32 %v313, %v359
      %v361 = vpop.f32.mrf.mxu0
      %v362 = vpop.f32.mrf.mxu0
      %v363 = vpop.f32.mrf.mxu0
      %364 = vdwg.mxu0
      %vm365 = vcmask 64512
      %v366 = vsel %vm365, %v360, -inf
      %367 = vmax.xlane.f32.xlu0 %v366
      %v368 = vpop.xlane.xlu0 %367
      %v369 = vsub.f32 %v360, %v368
      %v370 = vmul.f32 %v369, 1.442695
      %v371 = vpow.pop %v370
      %v372 = vsel %vm365, %v371, 0.0
      %373 = vadd.xlane.f32.xlu0 %v372
      %v374 = vpop.xlane.xlu0 %373
      %v375 = vrcp.pop %v374
      %v376 = vmul.f32 %v371, %v375
      %v377 = vpack.c.bf16 %v376, %v376
      %v379 = vsel %vm365, %v377, 0
      %vm381 = vcmask 1043456
      %v383 = vsel %vm381, %v317, 0
      %385 = vmatprep.subr.bf16.mxu0 0
      %386 = vmatpush1.bf16.msra.mxu0 0
      %387 = vmatprep.subr.bf16.mxu0 0
      %388 = vmatpush1.bf16.msra.mxu0 0
      %389 = vmatprep.subr.bf16.mxu0 0
      %390 = vmatpush1.bf16.msra.mxu0 0
      %391 = vmatprep.subr.bf16.mxu0 0
      %392 = vmatpush1.bf16.msra.mxu0 0
      %393 = vmatprep.subr.bf16.mxu0 0
      %394 = vmatpush1.bf16.msra.mxu0 0
      %395 = vmatprep.subr.bf16.mxu0 0
      %396 = vmatpush1.bf16.msra.mxu0 0
      %397 = vmatprep.subr.bf16.mxu0 0
      %398 = vmatpush1.bf16.msra.mxu0 0
      %399 = vmatprep.subr.bf16.mxu0 0
      %400 = vmatpush1.bf16.msra.mxu0 %v383
      %401 = vmatprep.subr.bf16.mxu0 0
      %402 = vmatpush2.bf16.msra.mxu0 0
      %403 = vmatprep.subr.bf16.mxu0 0
      %404 = vmatpush2.bf16.msra.mxu0 0
      %405 = vmatprep.subr.bf16.mxu0 0
      %406 = vmatpush2.bf16.msra.mxu0 0
      %407 = vmatprep.subr.bf16.mxu0 0
      %408 = vmatpush2.bf16.msra.mxu0 0
      %409 = vmatprep.subr.bf16.mxu0 0
      %410 = vmatpush2.bf16.msra.mxu0 0
      %411 = vmatprep.subr.bf16.mxu0 0
      %412 = vmatpush2.bf16.msra.mxu0 0
      %413 = vmatprep.subr.bf16.mxu0 0
      %414 = vmatpush2.bf16.msra.mxu0 0
      %415 = vmatprep.subr.bf16.mxu0 0
      %416 = vmatpush2.bf16.msra.mxu0 0
      %417 = vmatprep.mubr.bf16.mxu0 0
      %418 = vmatmul.mubr.bf16.gmra.mxu0 %v379
      %v419 = vpop.f32.mrf.mxu0
      %v420 = vadd.f32 0.0, %v419
      %v421 = vpop.f32.mrf.mxu0
      %v422 = vpop.f32.mrf.mxu0
      %v423 = vpop.f32.mrf.mxu0
      %424 = vdwg.mxu0
      %v426 = vunpack.c.l.b16 %v315
      %v427 = vpack.c.b16 %v426, %v426
      %428 = vrot.lane.b32.xlu0 %v427, 64
      %v429 = vpop.permute.xlu0 %428
      %v431 = vunpack.c.l.b16 %v316
      %v432 = vpack.c.b16 %v431, %v431
      %433 = vrot.lane.b32.xlu0 %v432, 64
      %v434 = vpop.permute.xlu0 %433
      %v436 = vsel %vm318, %v429, 0
      %v439 = vsel %vm318, %v434, 0
      %441 = vmatprep.subr.bf16.mxu0 0
      %442 = vmatpush1.bf16.xpose.msra.mxu0 0
      %443 = vmatprep.subr.bf16.mxu0 0
      %444 = vmatpush1.bf16.xpose.msra.mxu0 0
      %445 = vmatprep.subr.bf16.mxu0 0
      %446 = vmatpush1.bf16.xpose.msra.mxu0 0
      %447 = vmatprep.subr.bf16.mxu0 0
      %448 = vmatpush1.bf16.xpose.msra.mxu0 0
      %449 = vmatprep.subr.bf16.mxu0 0
      %450 = vmatpush1.bf16.xpose.msra.mxu0 0
      %451 = vmatprep.subr.bf16.mxu0 0
      %452 = vmatpush1.bf16.xpose.msra.mxu0 0
      %453 = vmatprep.subr.bf16.mxu0 0
      %454 = vmatpush1.bf16.xpose.msra.mxu0 0
      %455 = vmatprep.subr.bf16.mxu0 0
      %456 = vmatpush1.bf16.xpose.msra.mxu0 %v439
      %457 = vmatprep.subr.bf16.mxu0 0
      %458 = vmatpush2.bf16.xpose.msra.mxu0 0
      %459 = vmatprep.subr.bf16.mxu0 0
      %460 = vmatpush2.bf16.xpose.msra.mxu0 0
      %461 = vmatprep.subr.bf16.mxu0 0
      %462 = vmatpush2.bf16.xpose.msra.mxu0 0
      %463 = vmatprep.subr.bf16.mxu0 0
      %464 = vmatpush2.bf16.xpose.msra.mxu0 0
      %465 = vmatprep.subr.bf16.mxu0 0
      %466 = vmatpush2.bf16.xpose.msra.mxu0 0
      %467 = vmatprep.subr.bf16.mxu0 0
      %468 = vmatpush2.bf16.xpose.msra.mxu0 0
      %469 = vmatprep.subr.bf16.mxu0 0
      %470 = vmatpush2.bf16.xpose.msra.mxu0 0
      %471 = vmatprep.subr.bf16.mxu0 0
      %472 = vmatpush2.bf16.xpose.msra.mxu0 0
      %473 = vmatprep.mubr.bf16.mxu0 0
      %474 = vmatmul.mubr.bf16.gmra.mxu0 %v436
      %v475 = vpop.f32.mrf.mxu0
      %v476 = vadd.f32 %v313, %v475
      %v477 = vpop.f32.mrf.mxu0
      %v478 = vpop.f32.mrf.mxu0
      %v479 = vpop.f32.mrf.mxu0
      %480 = vdwg.mxu0
      %v481 = vsel %vm365, %v476, -inf
      %482 = vmax.xlane.f32.xlu0 %v481
      %v483 = vpop.xlane.xlu0 %482
      %v484 = vsub.f32 %v476, %v483
      %v485 = vmul.f32 %v484, 1.442695
      %v486 = vpow.pop %v485
      %v487 = vsel %vm365, %v486, 0.0
      %488 = vadd.xlane.f32.xlu0 %v487
      %v489 = vpop.xlane.xlu0 %488
      %v490 = vrcp.pop %v489
      %v491 = vmul.f32 %v486, %v490
      %v492 = vpack.c.bf16 %v491, %v491
      %v494 = vunpack.c.l.b16 %v317
      %v495 = vpack.c.b16 %v494, %v494
      %496 = vrot.lane.b32.xlu0 %v495, 64
      %v497 = vpop.permute.xlu0 %496
      %v499 = vsel %vm365, %v492, 0
      %v502 = vsel %vm381, %v497, 0
      %504 = vmatprep.subr.bf16.mxu0 0
      %505 = vmatpush1.bf16.msra.mxu0 0
      %506 = vmatprep.subr.bf16.mxu0 0
      %507 = vmatpush1.bf16.msra.mxu0 0
      %508 = vmatprep.subr.bf16.mxu0 0
      %509 = vmatpush1.bf16.msra.mxu0 0
      %510 = vmatprep.subr.bf16.mxu0 0
      %511 = vmatpush1.bf16.msra.mxu0 0
      %512 = vmatprep.subr.bf16.mxu0 0
      %513 = vmatpush1.bf16.msra.mxu0 0
      %514 = vmatprep.subr.bf16.mxu0 0
      %515 = vmatpush1.bf16.msra.mxu0 0
      %516 = vmatprep.subr.bf16.mxu0 0
      %517 = vmatpush1.bf16.msra.mxu0 0
      %518 = vmatprep.subr.bf16.mxu0 0
      %519 = vmatpush1.bf16.msra.mxu0 %v502
      %520 = vmatprep.subr.bf16.mxu0 0
      %521 = vmatpush2.bf16.msra.mxu0 0
      %522 = vmatprep.subr.bf16.mxu0 0
      %523 = vmatpush2.bf16.msra.mxu0 0
      %524 = vmatprep.subr.bf16.mxu0 0
      %525 = vmatpush2.bf16.msra.mxu0 0
      %526 = vmatprep.subr.bf16.mxu0 0
      %527 = vmatpush2.bf16.msra.mxu0 0
      %528 = vmatprep.subr.bf16.mxu0 0
      %529 = vmatpush2.bf16.msra.mxu0 0
      %530 = vmatprep.subr.bf16.mxu0 0
      %531 = vmatpush2.bf16.msra.mxu0 0
      %532 = vmatprep.subr.bf16.mxu0 0
      %533 = vmatpush2.bf16.msra.mxu0 0
      %534 = vmatprep.subr.bf16.mxu0 0
      %535 = vmatpush2.bf16.msra.mxu0 0
      %536 = vmatprep.mubr.bf16.mxu0 0
      %537 = vmatmul.mubr.bf16.gmra.mxu0 %v499
      %v538 = vpop.f32.mrf.mxu0
      %v539 = vadd.f32 0.0, %v538
      %v540 = vpop.f32.mrf.mxu0
      %v541 = vpop.f32.mrf.mxu0
      %v542 = vpop.f32.mrf.mxu0
      %543 = vdwg.mxu0
      %545 = vrot.lane.b32.xlu0 %v539, 64
      %v546 = vpop.permute.xlu0 %545
      %v548 = vsel %vm318, %v420, %v546
      %v549 = vpack.c.bf16 %v548, %v548
      %550 = vst [vmem:[%s307] sm:$0xf] %v549
      %p551 = scmp.lt.s32.totalorder %s19, 1
      %s552 = scalar_select %p551, %s19, 1
      %p553 = scmp.lt.s32.totalorder %s20, 5
      %s554 = scalar_select %p553, %s20, 5
      %s555 = smul.addr %s552, 6
      %s556 = sadd.s32 %s554, %s555
      %s557 = smul.addr %s556, 4
      %s558 = scalar_lea.vmem %s4, %s557
      // Predicated region
      $region37: #{multi_head_attention.4} parent=35 // pred_check
        %p559 = pneg %p157
      $region38: #{multi_head_attention.4} parent=35 // pred_check_branch
        %561 = sbr.rel (%p559) target = $region40
      $region39: #{multi_head_attention.4} parent=35 // pred_region
        _
      $region40: #{multi_head_attention.4} parent=35 // pred_fallthru
        _
    $region36: #{multi_head_attention.4} parent=5 // pred_fallthru
      _
    %p562 = scmp.le.s32.totalorder 2, %s10
    // Predicated region
    $region41: #{multi_head_attention.4} parent=5 // pred_check
      %p563 = pneg %p562
    $region42: #{multi_head_attention.4} parent=5 // pred_check_branch
      %565 = sbr.rel (%p563) target = $region44
    $region43: #{multi_head_attention.4} parent=5 // pred_region
      %s566 = ssub.s32 %s10, 2
      // Predicated region
      $region45: #{multi_head_attention.4} parent=43 // pred_check
        %p567 = pneg %p163
      $region46: #{multi_head_attention.4} parent=43 // pred_check_branch
        %569 = sbr.rel (%p567) target = $region48
      $region47: #{multi_head_attention.4} parent=43 // pred_region
        %p570 = scmp.lt.s32.totalorder %s21, 1
        %s571 = scalar_select %p570, %s21, 1
        %p572 = scmp.lt.s32.totalorder %s22, 5
        %s573 = scalar_select %p572, %s22, 5
        %s574 = smul.addr %s571, 6
        %s575 = sadd.s32 %s573, %s574
        %s576 = smul.addr %s575, 4
        %s577 = scalar_lea.vmem %s4, %s576
      $region48: #{multi_head_attention.4} parent=43 // pred_fallthru
        _
    $region44: #{multi_head_attention.4} parent=5 // pred_fallthru
      _
  $region6: #{multi_head_attention.4} parent=0 // loop_footer
    %s14 = sadd.s32 1, %s10
  $region7: #{multi_head_attention.4} parent=0 // loop_footer_branch
    %9 = sbr.rel target = $region3
  $region8: #{multi_head_attention.4} parent=0 // loop_exit
    _

// kernel: multi_head_attention.5
$region0: #{multi_head_attention.5}
  #allocation0 [shape = 'u32[]', space=smem, size = 0x4, offset = 0x4, fixed_abs, tag = 'smem constant byte address 0x4 - core index']
  #allocation1 [shape = 'u32[144,128]{1,0:T(1,128)}', space=vmem, size = 0x12000, scoped, tag = 'internal scratch']
  %s0 = inlined_call_operand.vmem [shape: bf16[16,768], index: 0, kind: input, shape index: {}]
  %s1 = inlined_call_operand.vmem [shape: bf16[768,768], index: 1, kind: input, shape index: {}]
  %s2 = inlined_call_operand.vmem [shape: f32[1,768], index: 2, kind: input, shape index: {}]
  %s3 = inlined_call_operand.vmem [shape: f32[16,768], index: 3, kind: input, shape index: {}]
  %s4 = inlined_call_operand.vmem [shape: f32[1,768], index: 4, kind: input, shape index: {}]
  %s5 = inlined_call_operand.vmem [shape: f32[1,768], index: 5, kind: input, shape index: {}]
  %s6 = inlined_call_operand.hbm [shape: f32[16,768], index: 6, kind: output, shape index: {}]
  %s7 = sld [smem:[#allocation0]]
  $region34: #{multi_head_attention.5} parent=0
    _
  %s9 = ssub.s32 1, %s7
  %s10 = scalar_select 0, %s9, %s7
  $region1: #{multi_head_attention.5} parent=0
    #allocation2 [shape = 'u8[49152]{0}', space=vmem, size = 0xc000, scoped, tag = 'output window, operand 0, single buffered']
    #allocation3 [shape = 's32[1]{0}', space=sflag, size = 0x4, scoped, tag = 'scoped memory for multi_head_attention.5']
    %11 = vsyncpa [#allocation3], 0
    // Predicated region
    $region2: #{multi_head_attention.5} parent=1 // pred_check
      _
    $region3: #{multi_head_attention.5} parent=1 // pred_check_branch
      %13 = sbr.rel (0) target = $region5
    $region4: #{multi_head_attention.5} parent=1 // pred_region
      _
    $region5: #{multi_head_attention.5} parent=1 // pred_fallthru
      _
    // Predicated region
    $region6: #{multi_head_attention.5} parent=1 // pred_check
      _
    $region7: #{multi_head_attention.5} parent=1 // pred_check_branch
      %15 = sbr.rel (0) target = $region9
    $region8: #{multi_head_attention.5} parent=1 // pred_region
      _
    $region9: #{multi_head_attention.5} parent=1 // pred_fallthru
      _
    // Predicated region
    $region10: #{multi_head_attention.5} parent=1 // pred_check
      _
    $region11: #{multi_head_attention.5} parent=1 // pred_check_branch
      %17 = sbr.rel (0) target = $region13
    $region12: #{multi_head_attention.5} parent=1 // pred_region
      _
    $region13: #{multi_head_attention.5} parent=1 // pred_fallthru
      _
    // Predicated region
    $region14: #{multi_head_attention.5} parent=1 // pred_check
      _
    $region15: #{multi_head_attention.5} parent=1 // pred_check_branch
      %19 = sbr.rel (0) target = $region17
    $region16: #{multi_head_attention.5} parent=1 // pred_region
      _
    $region17: #{multi_head_attention.5} parent=1 // pred_fallthru
      _
    // Predicated region
    $region18: #{multi_head_attention.5} parent=1 // pred_check
      _
    $region19: #{multi_head_attention.5} parent=1 // pred_check_branch
      %21 = sbr.rel (0) target = $region21
    $region20: #{multi_head_attention.5} parent=1 // pred_region
      _
    $region21: #{multi_head_attention.5} parent=1 // pred_fallthru
      _
    // Predicated region
    $region22: #{multi_head_attention.5} parent=1 // pred_check
      _
    $region23: #{multi_head_attention.5} parent=1 // pred_check_branch
      %23 = sbr.rel (0) target = $region25
    $region24: #{multi_head_attention.5} parent=1 // pred_region
      _
    $region25: #{multi_head_attention.5} parent=1 // pred_fallthru
      _
    %v24 = vld [vmem:[%s0] sm:$0xff]
    %v25 = vld [vmem:[%s0 + $0x8] sm:$0xff]
    %v26 = vld [vmem:[%s0 + $0x10] sm:$0xff]
    %v27 = vld [vmem:[%s0 + $0x18] sm:$0xff]
    %v28 = vld [vmem:[%s0 + $0x20] sm:$0xff]
    %v29 = vld [vmem:[%s0 + $0x28] sm:$0xff]
    %v30 = vld [vmem:[%s1] sm:$0xff]
    %v31 = vld [vmem:[%s1 + $0x8] sm:$0xff]
    %v32 = vld [vmem:[%s1 + $0x10] sm:$0xff]
    %v33 = vld [vmem:[%s1 + $0x18] sm:$0xff]
    %v34 = vld [vmem:[%s1 + $0x20] sm:$0xff]
    %v35 = vld [vmem:[%s1 + $0x28] sm:$0xff]
    %v36 = vld [vmem:[%s1 + $0x30] sm:$0xff]
    %v37 = vld [vmem:[%s1 + $0x38] sm:$0xff]
    %v38 = vld [vmem:[%s1 + $0x40] sm:$0xff]
    %v39 = vld [vmem:[%s1 + $0x48] sm:$0xff]
    %v40 = vld [vmem:[%s1 + $0x50] sm:$0xff]
    %v41 = vld [vmem:[%s1 + $0x58] sm:$0xff]
    %v42 = vld [vmem:[%s1 + $0x60] sm:$0xff]
    %v43 = vld [vmem:[%s1 + $0x68] sm:$0xff]
    %v44 = vld [vmem:[%s1 + $0x70] sm:$0xff]
    %v45 = vld [vmem:[%s1 + $0x78] sm:$0xff]
    %v46 = vld [vmem:[%s1 + $0x80] sm:$0xff]
    %v47 = vld [vmem:[%s1 + $0x88] sm:$0xff]
    %v48 = vld [vmem:[%s1 + $0x90] sm:$0xff]
    %v49 = vld [vmem:[%s1 + $0x98] sm:$0xff]
    %v50 = vld [vmem:[%s1 + $0xa0] sm:$0xff]
    %v51 = vld [vmem:[%s1 + $0xa8] sm:$0xff]
    %v52 = vld [vmem:[%s1 + $0xb0] sm:$0xff]
    %v53 = vld [vmem:[%s1 + $0xb8] sm:$0xff]
    %v54 = vld [vmem:[%s1 + $0xc0] sm:$0xff]
    %v55 = vld [vmem:[%s1 + $0xc8] sm:$0xff]
    %v56 = vld [vmem:[%s1 + $0xd0] sm:$0xff]
    %v57 = vld [vmem:[%s1 + $0xd8] sm:$0xff]
    %v58 = vld [vmem:[%s1 + $0xe0] sm:$0xff]
    %v59 = vld [vmem:[%s1 + $0xe8] sm:$0xff]
    %v60 = vld [vmem:[%s1 + $0xf0] sm:$0xff]
    %v61 = vld [vmem:[%s1 + $0xf8] sm:$0xff]
    %v62 = vld [vmem:[%s1 + $0x100] sm:$0xff]
    %v63 = vld [vmem:[%s1 + $0x108] sm:$0xff]
    %v64 = vld [vmem:[%s1 + $0x110] sm:$0xff]
    %v65 = vld [vmem:[%s1 + $0x118] sm:$0xff]
    %v66 = vld [vmem:[%s1 + $0x120] sm:$0xff]
    %v67 = vld [vmem:[%s1 + $0x128] sm:$0xff]
    %v68 = vld [vmem:[%s1 + $0x130] sm:$0xff]
    %v69 = vld [vmem:[%s1 + $0x138] sm:$0xff]
    %v70 = vld [vmem:[%s1 + $0x140] sm:$0xff]
    %v71 = vld [vmem:[%s1 + $0x148] sm:$0xff]
    %v72 = vld [vmem:[%s1 + $0x150] sm:$0xff]
    %v73 = vld [vmem:[%s1 + $0x158] sm:$0xff]
    %v74 = vld [vmem:[%s1 + $0x160] sm:$0xff]
    %v75 = vld [vmem:[%s1 + $0x168] sm:$0xff]
    %v76 = vld [vmem:[%s1 + $0x170] sm:$0xff]
    %v77 = vld [vmem:[%s1 + $0x178] sm:$0xff]
    %v78 = vld [vmem:[%s1 + $0x180] sm:$0xff]
    %v79 = vld [vmem:[%s1 + $0x188] sm:$0xff]
    %v80 = vld [vmem:[%s1 + $0x190] sm:$0xff]
    %v81 = vld [vmem:[%s1 + $0x198] sm:$0xff]
    %v82 = vld [vmem:[%s1 + $0x1a0] sm:$0xff]
    %v83 = vld [vmem:[%s1 + $0x1a8] sm:$0xff]
    %v84 = vld [vmem:[%s1 + $0x1b0] sm:$0xff]
    %v85 = vld [vmem:[%s1 + $0x1b8] sm:$0xff]
    %v86 = vld [vmem:[%s1 + $0x1c0] sm:$0xff]
    %v87 = vld [vmem:[%s1 + $0x1c8] sm:$0xff]
    %v88 = vld [vmem:[%s1 + $0x1d0] sm:$0xff]
    %v89 = vld [vmem:[%s1 + $0x1d8] sm:$0xff]
    %v90 = vld [vmem:[%s1 + $0x1e0] sm:$0xff]
    %v91 = vld [vmem:[%s1 + $0x1e8] sm:$0xff]
    %v92 = vld [vmem:[%s1 + $0x1f0] sm:$0xff]
    %v93 = vld [vmem:[%s1 + $0x1f8] sm:$0xff]
    %v94 = vld [vmem:[%s1 + $0x200] sm:$0xff]
    %v95 = vld [vmem:[%s1 + $0x208] sm:$0xff]
    %v96 = vld [vmem:[%s1 + $0x210] sm:$0xff]
    %v97 = vld [vmem:[%s1 + $0x218] sm:$0xff]
    %v98 = vld [vmem:[%s1 + $0x220] sm:$0xff]
    %v99 = vld [vmem:[%s1 + $0x228] sm:$0xff]
    %v100 = vld [vmem:[%s1 + $0x230] sm:$0xff]
    %v101 = vld [vmem:[%s1 + $0x238] sm:$0xff]
    %v102 = vld [vmem:[%s1 + $0x240] sm:$0xff]
    %v103 = vld [vmem:[%s1 + $0x248] sm:$0xff]
    %v104 = vld [vmem:[%s1 + $0x250] sm:$0xff]
    %v105 = vld [vmem:[%s1 + $0x258] sm:$0xff]
    %v106 = vld [vmem:[%s1 + $0x260] sm:$0xff]
    %v107 = vld [vmem:[%s1 + $0x268] sm:$0xff]
    %v108 = vld [vmem:[%s1 + $0x270] sm:$0xff]
    %v109 = vld [vmem:[%s1 + $0x278] sm:$0xff]
    %v110 = vld [vmem:[%s1 + $0x280] sm:$0xff]
    %v111 = vld [vmem:[%s1 + $0x288] sm:$0xff]
    %v112 = vld [vmem:[%s1 + $0x290] sm:$0xff]
    %v113 = vld [vmem:[%s1 + $0x298] sm:$0xff]
    %v114 = vld [vmem:[%s1 + $0x2a0] sm:$0xff]
    %v115 = vld [vmem:[%s1 + $0x2a8] sm:$0xff]
    %v116 = vld [vmem:[%s1 + $0x2b0] sm:$0xff]
    %v117 = vld [vmem:[%s1 + $0x2b8] sm:$0xff]
    %v118 = vld [vmem:[%s1 + $0x2c0] sm:$0xff]
    %v119 = vld [vmem:[%s1 + $0x2c8] sm:$0xff]
    %v120 = vld [vmem:[%s1 + $0x2d0] sm:$0xff]
    %v121 = vld [vmem:[%s1 + $0x2d8] sm:$0xff]
    %v122 = vld [vmem:[%s1 + $0x2e0] sm:$0xff]
    %v123 = vld [vmem:[%s1 + $0x2e8] sm:$0xff]
    %v124 = vld [vmem:[%s1 + $0x2f0] sm:$0xff]
    %v125 = vld [vmem:[%s1 + $0x2f8] sm:$0xff]
    %v126 = vld [vmem:[%s1 + $0x300] sm:$0xff]
    %v127 = vld [vmem:[%s1 + $0x308] sm:$0xff]
    %v128 = vld [vmem:[%s1 + $0x310] sm:$0xff]
    %v129 = vld [vmem:[%s1 + $0x318] sm:$0xff]
    %v130 = vld [vmem:[%s1 + $0x320] sm:$0xff]
    %v131 = vld [vmem:[%s1 + $0x328] sm:$0xff]
    %v132 = vld [vmem:[%s1 + $0x330] sm:$0xff]
    %v133 = vld [vmem:[%s1 + $0x338] sm:$0xff]
    %v134 = vld [vmem:[%s1 + $0x340] sm:$0xff]
    %v135 = vld [vmem:[%s1 + $0x348] sm:$0xff]
    %v136 = vld [vmem:[%s1 + $0x350] sm:$0xff]
    %v137 = vld [vmem:[%s1 + $0x358] sm:$0xff]
    %v138 = vld [vmem:[%s1 + $0x360] sm:$0xff]
    %v139 = vld [vmem:[%s1 + $0x368] sm:$0xff]
    %v140 = vld [vmem:[%s1 + $0x370] sm:$0xff]
    %v141 = vld [vmem:[%s1 + $0x378] sm:$0xff]
    %v142 = vld [vmem:[%s1 + $0x380] sm:$0xff]
    %v143 = vld [vmem:[%s1 + $0x388] sm:$0xff]
    %v144 = vld [vmem:[%s1 + $0x390] sm:$0xff]
    %v145 = vld [vmem:[%s1 + $0x398] sm:$0xff]
    %v146 = vld [vmem:[%s1 + $0x3a0] sm:$0xff]
    %v147 = vld [vmem:[%s1 + $0x3a8] sm:$0xff]
    %v148 = vld [vmem:[%s1 + $0x3b0] sm:$0xff]
    %v149 = vld [vmem:[%s1 + $0x3b8] sm:$0xff]
    %v150 = vld [vmem:[%s1 + $0x3c0] sm:$0xff]
    %v151 = vld [vmem:[%s1 + $0x3c8] sm:$0xff]
    %v152 = vld [vmem:[%s1 + $0x3d0] sm:$0xff]
    %v153 = vld [vmem:[%s1 + $0x3d8] sm:$0xff]
    %v154 = vld [vmem:[%s1 + $0x3e0] sm:$0xff]
    %v155 = vld [vmem:[%s1 + $0x3e8] sm:$0xff]
    %v156 = vld [vmem:[%s1 + $0x3f0] sm:$0xff]
    %v157 = vld [vmem:[%s1 + $0x3f8] sm:$0xff]
    %v158 = vld [vmem:[%s1 + $0x400] sm:$0xff]
    %v159 = vld [vmem:[%s1 + $0x408] sm:$0xff]
    %v160 = vld [vmem:[%s1 + $0x410] sm:$0xff]
    %v161 = vld [vmem:[%s1 + $0x418] sm:$0xff]
    %v162 = vld [vmem:[%s1 + $0x420] sm:$0xff]
    %v163 = vld [vmem:[%s1 + $0x428] sm:$0xff]
    %v164 = vld [vmem:[%s1 + $0x430] sm:$0xff]
    %v165 = vld [vmem:[%s1 + $0x438] sm:$0xff]
    %v166 = vld [vmem:[%s1 + $0x440] sm:$0xff]
    %v167 = vld [vmem:[%s1 + $0x448] sm:$0xff]
    %v168 = vld [vmem:[%s1 + $0x450] sm:$0xff]
    %v169 = vld [vmem:[%s1 + $0x458] sm:$0xff]
    %v170 = vld [vmem:[%s1 + $0x460] sm:$0xff]
    %v171 = vld [vmem:[%s1 + $0x468] sm:$0xff]
    %v172 = vld [vmem:[%s1 + $0x470] sm:$0xff]
    %v173 = vld [vmem:[%s1 + $0x478] sm:$0xff]
    %v174 = vld [vmem:[%s1 + $0x480] sm:$0xff]
    %v175 = vld [vmem:[%s1 + $0x488] sm:$0xff]
    %v176 = vld [vmem:[%s1 + $0x490] sm:$0xff]
    %v177 = vld [vmem:[%s1 + $0x498] sm:$0xff]
    %v178 = vld [vmem:[%s1 + $0x4a0] sm:$0xff]
    %v179 = vld [vmem:[%s1 + $0x4a8] sm:$0xff]
    %v180 = vld [vmem:[%s1 + $0x4b0] sm:$0xff]
    %v181 = vld [vmem:[%s1 + $0x4b8] sm:$0xff]
    %v182 = vld [vmem:[%s1 + $0x4c0] sm:$0xff]
    %v183 = vld [vmem:[%s1 + $0x4c8] sm:$0xff]
    %v184 = vld [vmem:[%s1 + $0x4d0] sm:$0xff]
    %v185 = vld [vmem:[%s1 + $0x4d8] sm:$0xff]
    %v186 = vld [vmem:[%s1 + $0x4e0] sm:$0xff]
    %v187 = vld [vmem:[%s1 + $0x4e8] sm:$0xff]
    %v188 = vld [vmem:[%s1 + $0x4f0] sm:$0xff]
    %v189 = vld [vmem:[%s1 + $0x4f8] sm:$0xff]
    %v190 = vld [vmem:[%s1 + $0x500] sm:$0xff]
    %v191 = vld [vmem:[%s1 + $0x508] sm:$0xff]
    %v192 = vld [vmem:[%s1 + $0x510] sm:$0xff]
    %v193 = vld [vmem:[%s1 + $0x518] sm:$0xff]
    %v194 = vld [vmem:[%s1 + $0x520] sm:$0xff]
    %v195 = vld [vmem:[%s1 + $0x528] sm:$0xff]
    %v196 = vld [vmem:[%s1 + $0x530] sm:$0xff]
    %v197 = vld [vmem:[%s1 + $0x538] sm:$0xff]
    %v198 = vld [vmem:[%s1 + $0x540] sm:$0xff]
    %v199 = vld [vmem:[%s1 + $0x548] sm:$0xff]
    %v200 = vld [vmem:[%s1 + $0x550] sm:$0xff]
    %v201 = vld [vmem:[%s1 + $0x558] sm:$0xff]
    %v202 = vld [vmem:[%s1 + $0x560] sm:$0xff]
    %v203 = vld [vmem:[%s1 + $0x568] sm:$0xff]
    %v204 = vld [vmem:[%s1 + $0x570] sm:$0xff]
    %v205 = vld [vmem:[%s1 + $0x578] sm:$0xff]
    %v206 = vld [vmem:[%s1 + $0x580] sm:$0xff]
    %v207 = vld [vmem:[%s1 + $0x588] sm:$0xff]
    %v208 = vld [vmem:[%s1 + $0x590] sm:$0xff]
    %v209 = vld [vmem:[%s1 + $0x598] sm:$0xff]
    %v210 = vld [vmem:[%s1 + $0x5a0] sm:$0xff]
    %v211 = vld [vmem:[%s1 + $0x5a8] sm:$0xff]
    %v212 = vld [vmem:[%s1 + $0x5b0] sm:$0xff]
    %v213 = vld [vmem:[%s1 + $0x5b8] sm:$0xff]
    %v214 = vld [vmem:[%s1 + $0x5c0] sm:$0xff]
    %v215 = vld [vmem:[%s1 + $0x5c8] sm:$0xff]
    %v216 = vld [vmem:[%s1 + $0x5d0] sm:$0xff]
    %v217 = vld [vmem:[%s1 + $0x5d8] sm:$0xff]
    %v218 = vld [vmem:[%s1 + $0x5e0] sm:$0xff]
    %v219 = vld [vmem:[%s1 + $0x5e8] sm:$0xff]
    %v220 = vld [vmem:[%s1 + $0x5f0] sm:$0xff]
    %v221 = vld [vmem:[%s1 + $0x5f8] sm:$0xff]
    %v222 = vld [vmem:[%s1 + $0x600] sm:$0xff]
    %v223 = vld [vmem:[%s1 + $0x608] sm:$0xff]
    %v224 = vld [vmem:[%s1 + $0x610] sm:$0xff]
    %v225 = vld [vmem:[%s1 + $0x618] sm:$0xff]
    %v226 = vld [vmem:[%s1 + $0x620] sm:$0xff]
    %v227 = vld [vmem:[%s1 + $0x628] sm:$0xff]
    %v228 = vld [vmem:[%s1 + $0x630] sm:$0xff]
    %v229 = vld [vmem:[%s1 + $0x638] sm:$0xff]
    %v230 = vld [vmem:[%s1 + $0x640] sm:$0xff]
    %v231 = vld [vmem:[%s1 + $0x648] sm:$0xff]
    %v232 = vld [vmem:[%s1 + $0x650] sm:$0xff]
    %v233 = vld [vmem:[%s1 + $0x658] sm:$0xff]
    %v234 = vld [vmem:[%s1 + $0x660] sm:$0xff]
    %v235 = vld [vmem:[%s1 + $0x668] sm:$0xff]
    %v236 = vld [vmem:[%s1 + $0x670] sm:$0xff]
    %v237 = vld [vmem:[%s1 + $0x678] sm:$0xff]
    %v238 = vld [vmem:[%s1 + $0x680] sm:$0xff]
    %v239 = vld [vmem:[%s1 + $0x688] sm:$0xff]
    %v240 = vld [vmem:[%s1 + $0x690] sm:$0xff]
    %v241 = vld [vmem:[%s1 + $0x698] sm:$0xff]
    %v242 = vld [vmem:[%s1 + $0x6a0] sm:$0xff]
    %v243 = vld [vmem:[%s1 + $0x6a8] sm:$0xff]
    %v244 = vld [vmem:[%s1 + $0x6b0] sm:$0xff]
    %v245 = vld [vmem:[%s1 + $0x6b8] sm:$0xff]
    %v246 = vld [vmem:[%s1 + $0x6c0] sm:$0xff]
    %v247 = vld [vmem:[%s1 + $0x6c8] sm:$0xff]
    %v248 = vld [vmem:[%s1 + $0x6d0] sm:$0xff]
    %v249 = vld [vmem:[%s1 + $0x6d8] sm:$0xff]
    %v250 = vld [vmem:[%s1 + $0x6e0] sm:$0xff]
    %v251 = vld [vmem:[%s1 + $0x6e8] sm:$0xff]
    %v252 = vld [vmem:[%s1 + $0x6f0] sm:$0xff]
    %v253 = vld [vmem:[%s1 + $0x6f8] sm:$0xff]
    %v254 = vld [vmem:[%s1 + $0x700] sm:$0xff]
    %v255 = vld [vmem:[%s1 + $0x708] sm:$0xff]
    %v256 = vld [vmem:[%s1 + $0x710] sm:$0xff]
    %v257 = vld [vmem:[%s1 + $0x718] sm:$0xff]
    %v258 = vld [vmem:[%s1 + $0x720] sm:$0xff]
    %v259 = vld [vmem:[%s1 + $0x728] sm:$0xff]
    %v260 = vld [vmem:[%s1 + $0x730] sm:$0xff]
    %v261 = vld [vmem:[%s1 + $0x738] sm:$0xff]
    %v262 = vld [vmem:[%s1 + $0x740] sm:$0xff]
    %v263 = vld [vmem:[%s1 + $0x748] sm:$0xff]
    %v264 = vld [vmem:[%s1 + $0x750] sm:$0xff]
    %v265 = vld [vmem:[%s1 + $0x758] sm:$0xff]
    %v266 = vld [vmem:[%s1 + $0x760] sm:$0xff]
    %v267 = vld [vmem:[%s1 + $0x768] sm:$0xff]
    %v268 = vld [vmem:[%s1 + $0x770] sm:$0xff]
    %v269 = vld [vmem:[%s1 + $0x778] sm:$0xff]
    %v270 = vld [vmem:[%s1 + $0x780] sm:$0xff]
    %v271 = vld [vmem:[%s1 + $0x788] sm:$0xff]
    %v272 = vld [vmem:[%s1 + $0x790] sm:$0xff]
    %v273 = vld [vmem:[%s1 + $0x798] sm:$0xff]
    %v274 = vld [vmem:[%s1 + $0x7a0] sm:$0xff]
    %v275 = vld [vmem:[%s1 + $0x7a8] sm:$0xff]
    %v276 = vld [vmem:[%s1 + $0x7b0] sm:$0xff]
    %v277 = vld [vmem:[%s1 + $0x7b8] sm:$0xff]
    %v278 = vld [vmem:[%s1 + $0x7c0] sm:$0xff]
    %v279 = vld [vmem:[%s1 + $0x7c8] sm:$0xff]
    %v280 = vld [vmem:[%s1 + $0x7d0] sm:$0xff]
    %v281 = vld [vmem:[%s1 + $0x7d8] sm:$0xff]
    %v282 = vld [vmem:[%s1 + $0x7e0] sm:$0xff]
    %v283 = vld [vmem:[%s1 + $0x7e8] sm:$0xff]
    %v284 = vld [vmem:[%s1 + $0x7f0] sm:$0xff]
    %v285 = vld [vmem:[%s1 + $0x7f8] sm:$0xff]
    %v286 = vld [vmem:[%s1 + $0x800] sm:$0xff]
    %v287 = vld [vmem:[%s1 + $0x808] sm:$0xff]
    %v288 = vld [vmem:[%s1 + $0x810] sm:$0xff]
    %v289 = vld [vmem:[%s1 + $0x818] sm:$0xff]
    %v290 = vld [vmem:[%s1 + $0x820] sm:$0xff]
    %v291 = vld [vmem:[%s1 + $0x828] sm:$0xff]
    %v292 = vld [vmem:[%s1 + $0x830] sm:$0xff]
    %v293 = vld [vmem:[%s1 + $0x838] sm:$0xff]
    %v294 = vld [vmem:[%s1 + $0x840] sm:$0xff]
    %v295 = vld [vmem:[%s1 + $0x848] sm:$0xff]
    %v296 = vld [vmem:[%s1 + $0x850] sm:$0xff]
    %v297 = vld [vmem:[%s1 + $0x858] sm:$0xff]
    %v298 = vld [vmem:[%s1 + $0x860] sm:$0xff]
    %v299 = vld [vmem:[%s1 + $0x868] sm:$0xff]
    %v300 = vld [vmem:[%s1 + $0x870] sm:$0xff]
    %v301 = vld [vmem:[%s1 + $0x878] sm:$0xff]
    %v302 = vld [vmem:[%s1 + $0x880] sm:$0xff]
    %v303 = vld [vmem:[%s1 + $0x888] sm:$0xff]
    %v304 = vld [vmem:[%s1 + $0x890] sm:$0xff]
    %v305 = vld [vmem:[%s1 + $0x898] sm:$0xff]
    %v306 = vld [vmem:[%s1 + $0x8a0] sm:$0xff]
    %v307 = vld [vmem:[%s1 + $0x8a8] sm:$0xff]
    %v308 = vld [vmem:[%s1 + $0x8b0] sm:$0xff]
    %v309 = vld [vmem:[%s1 + $0x8b8] sm:$0xff]
    %v310 = vld [vmem:[%s1 + $0x8c0] sm:$0xff]
    %v311 = vld [vmem:[%s1 + $0x8c8] sm:$0xff]
    %v312 = vld [vmem:[%s1 + $0x8d0] sm:$0xff]
    %v313 = vld [vmem:[%s1 + $0x8d8] sm:$0xff]
    %v314 = vld [vmem:[%s1 + $0x8e0] sm:$0xff]
    %v315 = vld [vmem:[%s1 + $0x8e8] sm:$0xff]
    %v316 = vld [vmem:[%s1 + $0x8f0] sm:$0xff]
    %v317 = vld [vmem:[%s1 + $0x8f8] sm:$0xff]
    %v318 = vld [vmem:[%s2] sm:$0x3f]
    %v320 = vlaneseq
    %v321 = vshrl.u32 %v320, 7
    %v322 = vsub.s32 0, %v321
    %v323 = vrot.slane %v318, %v322
    %v324 = vlaneseq
    %v325 = vshrl.u32 %v324, 7
    %v326 = vsub.s32 1, %v325
    %v327 = vrot.slane %v318, %v326
    %v328 = vlaneseq
    %v329 = vshrl.u32 %v328, 7
    %v330 = vsub.s32 2, %v329
    %v331 = vrot.slane %v318, %v330
    %v332 = vlaneseq
    %v333 = vshrl.u32 %v332, 7
    %v334 = vsub.s32 3, %v333
    %v335 = vrot.slane %v318, %v334
    %v336 = vlaneseq
    %v337 = vshrl.u32 %v336, 7
    %v338 = vsub.s32 4, %v337
    %v339 = vrot.slane %v318, %v338
    %v340 = vlaneseq
    %v341 = vshrl.u32 %v340, 7
    %v342 = vsub.s32 5, %v341
    %v343 = vrot.slane %v318, %v342
    %v356 = vunpack.c.l.b16 %v24
    %v357 = vunpack.c.h.b16 %v24
    %v358 = vunpack.c.l.b16 %v25
    %v359 = vunpack.c.h.b16 %v25
    %v360 = vunpack.c.l.b16 %v26
    %v361 = vunpack.c.h.b16 %v26
    %v362 = vunpack.c.l.b16 %v27
    %v363 = vunpack.c.h.b16 %v27
    %v364 = vunpack.c.l.b16 %v28
    %v365 = vunpack.c.h.b16 %v28
    %v366 = vunpack.c.l.b16 %v29
    %v367 = vunpack.c.h.b16 %v29
    %v368 = vpack.c.b16 %v362, %v356
    %v369 = vpack.c.b16 %v363, %v357
    %v370 = vpack.c.b16 %v364, %v358
    %v371 = vpack.c.b16 %v365, %v359
    %v372 = vpack.c.b16 %v366, %v360
    %v373 = vpack.c.b16 %v367, %v361
    %v668 = vunpack.c.l.b16 %v30
    %v669 = vunpack.c.h.b16 %v30
    %v670 = vunpack.c.l.b16 %v31
    %v671 = vunpack.c.h.b16 %v31
    %v672 = vunpack.c.l.b16 %v32
    %v673 = vunpack.c.h.b16 %v32
    %v674 = vunpack.c.l.b16 %v33
    %v675 = vunpack.c.h.b16 %v33
    %v676 = vunpack.c.l.b16 %v34
    %v677 = vunpack.c.h.b16 %v34
    %v678 = vunpack.c.l.b16 %v35
    %v679 = vunpack.c.h.b16 %v35
    %v680 = vunpack.c.l.b16 %v36
    %v681 = vunpack.c.h.b16 %v36
    %v682 = vunpack.c.l.b16 %v37
    %v683 = vunpack.c.h.b16 %v37
    %v684 = vunpack.c.l.b16 %v38
    %v685 = vunpack.c.h.b16 %v38
    %v686 = vunpack.c.l.b16 %v39
    %v687 = vunpack.c.h.b16 %v39
    %v688 = vunpack.c.l.b16 %v40
    %v689 = vunpack.c.h.b16 %v40
    %v690 = vunpack.c.l.b16 %v41
    %v691 = vunpack.c.h.b16 %v41
    %v692 = vunpack.c.l.b16 %v42
    %v693 = vunpack.c.h.b16 %v42
    %v694 = vunpack.c.l.b16 %v43
    %v695 = vunpack.c.h.b16 %v43
    %v696 = vunpack.c.l.b16 %v44
    %v697 = vunpack.c.h.b16 %v44
    %v698 = vunpack.c.l.b16 %v45
    %v699 = vunpack.c.h.b16 %v45
    %v700 = vunpack.c.l.b16 %v46
    %v701 = vunpack.c.h.b16 %v46
    %v702 = vunpack.c.l.b16 %v47
    %v703 = vunpack.c.h.b16 %v47
    %v704 = vunpack.c.l.b16 %v48
    %v705 = vunpack.c.h.b16 %v48
    %v706 = vunpack.c.l.b16 %v49
    %v707 = vunpack.c.h.b16 %v49
    %v708 = vunpack.c.l.b16 %v50
    %v709 = vunpack.c.h.b16 %v50
    %v710 = vunpack.c.l.b16 %v51
    %v711 = vunpack.c.h.b16 %v51
    %v712 = vunpack.c.l.b16 %v52
    %v713 = vunpack.c.h.b16 %v52
    %v714 = vunpack.c.l.b16 %v53
    %v715 = vunpack.c.h.b16 %v53
    %v716 = vunpack.c.l.b16 %v54
    %v717 = vunpack.c.h.b16 %v54
    %v718 = vunpack.c.l.b16 %v55
    %v719 = vunpack.c.h.b16 %v55
    %v720 = vunpack.c.l.b16 %v56
    %v721 = vunpack.c.h.b16 %v56
    %v722 = vunpack.c.l.b16 %v57
    %v723 = vunpack.c.h.b16 %v57
    %v724 = vunpack.c.l.b16 %v58
    %v725 = vunpack.c.h.b16 %v58
    %v726 = vunpack.c.l.b16 %v59
    %v727 = vunpack.c.h.b16 %v59
    %v728 = vunpack.c.l.b16 %v60
    %v729 = vunpack.c.h.b16 %v60
    %v730 = vunpack.c.l.b16 %v61
    %v731 = vunpack.c.h.b16 %v61
    %v732 = vunpack.c.l.b16 %v62
    %v733 = vunpack.c.h.b16 %v62
    %v734 = vunpack.c.l.b16 %v63
    %v735 = vunpack.c.h.b16 %v63
    %v736 = vunpack.c.l.b16 %v64
    %v737 = vunpack.c.h.b16 %v64
    %v738 = vunpack.c.l.b16 %v65
    %v739 = vunpack.c.h.b16 %v65
    %v740 = vunpack.c.l.b16 %v66
    %v741 = vunpack.c.h.b16 %v66
    %v742 = vunpack.c.l.b16 %v67
    %v743 = vunpack.c.h.b16 %v67
    %v744 = vunpack.c.l.b16 %v68
    %v745 = vunpack.c.h.b16 %v68
    %v746 = vunpack.c.l.b16 %v69
    %v747 = vunpack.c.h.b16 %v69
    %v748 = vunpack.c.l.b16 %v70
    %v749 = vunpack.c.h.b16 %v70
    %v750 = vunpack.c.l.b16 %v71
    %v751 = vunpack.c.h.b16 %v71
    %v752 = vunpack.c.l.b16 %v72
    %v753 = vunpack.c.h.b16 %v72
    %v754 = vunpack.c.l.b16 %v73
    %v755 = vunpack.c.h.b16 %v73
    %v756 = vunpack.c.l.b16 %v74
    %v757 = vunpack.c.h.b16 %v74
    %v758 = vunpack.c.l.b16 %v75
    %v759 = vunpack.c.h.b16 %v75
    %v760 = vunpack.c.l.b16 %v76
    %v761 = vunpack.c.h.b16 %v76
    %v762 = vunpack.c.l.b16 %v77
    %v763 = vunpack.c.h.b16 %v77
    %v764 = vunpack.c.l.b16 %v78
    %v765 = vunpack.c.h.b16 %v78
    %v766 = vunpack.c.l.b16 %v79
    %v767 = vunpack.c.h.b16 %v79
    %v768 = vunpack.c.l.b16 %v80
    %v769 = vunpack.c.h.b16 %v80
    %v770 = vunpack.c.l.b16 %v81
    %v771 = vunpack.c.h.b16 %v81
    %v772 = vunpack.c.l.b16 %v82
    %v773 = vunpack.c.h.b16 %v82
    %v774 = vunpack.c.l.b16 %v83
    %v775 = vunpack.c.h.b16 %v83
    %v776 = vunpack.c.l.b16 %v84
    %v777 = vunpack.c.h.b16 %v84
    %v778 = vunpack.c.l.b16 %v85
    %v779 = vunpack.c.h.b16 %v85
    %v780 = vunpack.c.l.b16 %v86
    %v781 = vunpack.c.h.b16 %v86
    %v782 = vunpack.c.l.b16 %v87
    %v783 = vunpack.c.h.b16 %v87
    %v784 = vunpack.c.l.b16 %v88
    %v785 = vunpack.c.h.b16 %v88
    %v786 = vunpack.c.l.b16 %v89
    %v787 = vunpack.c.h.b16 %v89
    %v788 = vunpack.c.l.b16 %v90
    %v789 = vunpack.c.h.b16 %v90
    %v790 = vunpack.c.l.b16 %v91
    %v791 = vunpack.c.h.b16 %v91
    %v792 = vunpack.c.l.b16 %v92
    %v793 = vunpack.c.h.b16 %v92
    %v794 = vunpack.c.l.b16 %v93
    %v795 = vunpack.c.h.b16 %v93
    %v796 = vunpack.c.l.b16 %v94
    %v797 = vunpack.c.h.b16 %v94
    %v798 = vunpack.c.l.b16 %v95
    %v799 = vunpack.c.h.b16 %v95
    %v800 = vunpack.c.l.b16 %v96
    %v801 = vunpack.c.h.b16 %v96
    %v802 = vunpack.c.l.b16 %v97
    %v803 = vunpack.c.h.b16 %v97
    %v804 = vunpack.c.l.b16 %v98
    %v805 = vunpack.c.h.b16 %v98
    %v806 = vunpack.c.l.b16 %v99
    %v807 = vunpack.c.h.b16 %v99
    %v808 = vunpack.c.l.b16 %v100
    %v809 = vunpack.c.h.b16 %v100
    %v810 = vunpack.c.l.b16 %v101
    %v811 = vunpack.c.h.b16 %v101
    %v812 = vunpack.c.l.b16 %v102
    %v813 = vunpack.c.h.b16 %v102
    %v814 = vunpack.c.l.b16 %v103
    %v815 = vunpack.c.h.b16 %v103
    %v816 = vunpack.c.l.b16 %v104
    %v817 = vunpack.c.h.b16 %v104
    %v818 = vunpack.c.l.b16 %v105
    %v819 = vunpack.c.h.b16 %v105
    %v820 = vunpack.c.l.b16 %v106
    %v821 = vunpack.c.h.b16 %v106
    %v822 = vunpack.c.l.b16 %v107
    %v823 = vunpack.c.h.b16 %v107
    %v824 = vunpack.c.l.b16 %v108
    %v825 = vunpack.c.h.b16 %v108
    %v826 = vunpack.c.l.b16 %v109
    %v827 = vunpack.c.h.b16 %v109
    %v828 = vunpack.c.l.b16 %v110
    %v829 = vunpack.c.h.b16 %v110
    %v830 = vunpack.c.l.b16 %v111
    %v831 = vunpack.c.h.b16 %v111
    %v832 = vunpack.c.l.b16 %v112
    %v833 = vunpack.c.h.b16 %v112
    %v834 = vunpack.c.l.b16 %v113
    %v835 = vunpack.c.h.b16 %v113
    %v836 = vunpack.c.l.b16 %v114
    %v837 = vunpack.c.h.b16 %v114
    %v838 = vunpack.c.l.b16 %v115
    %v839 = vunpack.c.h.b16 %v115
    %v840 = vunpack.c.l.b16 %v116
    %v841 = vunpack.c.h.b16 %v116
    %v842 = vunpack.c.l.b16 %v117
    %v843 = vunpack.c.h.b16 %v117
    %v844 = vunpack.c.l.b16 %v118
    %v845 = vunpack.c.h.b16 %v118
    %v846 = vunpack.c.l.b16 %v119
    %v847 = vunpack.c.h.b16 %v119
    %v848 = vunpack.c.l.b16 %v120
    %v849 = vunpack.c.h.b16 %v120
    %v850 = vunpack.c.l.b16 %v121
    %v851 = vunpack.c.h.b16 %v121
    %v852 = vunpack.c.l.b16 %v122
    %v853 = vunpack.c.h.b16 %v122
    %v854 = vunpack.c.l.b16 %v123
    %v855 = vunpack.c.h.b16 %v123
    %v856 = vunpack.c.l.b16 %v124
    %v857 = vunpack.c.h.b16 %v124
    %v858 = vunpack.c.l.b16 %v125
    %v859 = vunpack.c.h.b16 %v125
    %v860 = vunpack.c.l.b16 %v126
    %v861 = vunpack.c.h.b16 %v126
    %v862 = vunpack.c.l.b16 %v127
    %v863 = vunpack.c.h.b16 %v127
    %v864 = vunpack.c.l.b16 %v128
    %v865 = vunpack.c.h.b16 %v128
    %v866 = vunpack.c.l.b16 %v129
    %v867 = vunpack.c.h.b16 %v129
    %v868 = vunpack.c.l.b16 %v130
    %v869 = vunpack.c.h.b16 %v130
    %v870 = vunpack.c.l.b16 %v131
    %v871 = vunpack.c.h.b16 %v131
    %v872 = vunpack.c.l.b16 %v132
    %v873 = vunpack.c.h.b16 %v132
    %v874 = vunpack.c.l.b16 %v133
    %v875 = vunpack.c.h.b16 %v133
    %v876 = vunpack.c.l.b16 %v134
    %v877 = vunpack.c.h.b16 %v134
    %v878 = vunpack.c.l.b16 %v135
    %v879 = vunpack.c.h.b16 %v135
    %v880 = vunpack.c.l.b16 %v136
    %v881 = vunpack.c.h.b16 %v136
    %v882 = vunpack.c.l.b16 %v137
    %v883 = vunpack.c.h.b16 %v137
    %v884 = vunpack.c.l.b16 %v138
    %v885 = vunpack.c.h.b16 %v138
    %v886 = vunpack.c.l.b16 %v139
    %v887 = vunpack.c.h.b16 %v139
    %v888 = vunpack.c.l.b16 %v140
    %v889 = vunpack.c.h.b16 %v140
    %v890 = vunpack.c.l.b16 %v141
    %v891 = vunpack.c.h.b16 %v141
    %v892 = vunpack.c.l.b16 %v142
    %v893 = vunpack.c.h.b16 %v142
    %v894 = vunpack.c.l.b16 %v143
    %v895 = vunpack.c.h.b16 %v143
    %v896 = vunpack.c.l.b16 %v144
    %v897 = vunpack.c.h.b16 %v144
    %v898 = vunpack.c.l.b16 %v145
    %v899 = vunpack.c.h.b16 %v145
    %v900 = vunpack.c.l.b16 %v146
    %v901 = vunpack.c.h.b16 %v146
    %v902 = vunpack.c.l.b16 %v147
    %v903 = vunpack.c.h.b16 %v147
    %v904 = vunpack.c.l.b16 %v148
    %v905 = vunpack.c.h.b16 %v148
    %v906 = vunpack.c.l.b16 %v149
    %v907 = vunpack.c.h.b16 %v149
    %v908 = vunpack.c.l.b16 %v150
    %v909 = vunpack.c.h.b16 %v150
    %v910 = vunpack.c.l.b16 %v151
    %v911 = vunpack.c.h.b16 %v151
    %v912 = vunpack.c.l.b16 %v152
    %v913 = vunpack.c.h.b16 %v152
    %v914 = vunpack.c.l.b16 %v153
    %v915 = vunpack.c.h.b16 %v153
    %v916 = vunpack.c.l.b16 %v154
    %v917 = vunpack.c.h.b16 %v154
    %v918 = vunpack.c.l.b16 %v155
    %v919 = vunpack.c.h.b16 %v155
    %v920 = vunpack.c.l.b16 %v156
    %v921 = vunpack.c.h.b16 %v156
    %v922 = vunpack.c.l.b16 %v157
    %v923 = vunpack.c.h.b16 %v157
    %v924 = vunpack.c.l.b16 %v158
    %v925 = vunpack.c.h.b16 %v158
    %v926 = vunpack.c.l.b16 %v159
    %v927 = vunpack.c.h.b16 %v159
    %v928 = vunpack.c.l.b16 %v160
    %v929 = vunpack.c.h.b16 %v160
    %v930 = vunpack.c.l.b16 %v161
    %v931 = vunpack.c.h.b16 %v161
    %v932 = vunpack.c.l.b16 %v162
    %v933 = vunpack.c.h.b16 %v162
    %v934 = vunpack.c.l.b16 %v163
    %v935 = vunpack.c.h.b16 %v163
    %v936 = vunpack.c.l.b16 %v164
    %v937 = vunpack.c.h.b16 %v164
    %v938 = vunpack.c.l.b16 %v165
    %v939 = vunpack.c.h.b16 %v165
    %v940 = vunpack.c.l.b16 %v166
    %v941 = vunpack.c.h.b16 %v166
    %v942 = vunpack.c.l.b16 %v167
    %v943 = vunpack.c.h.b16 %v167
    %v944 = vunpack.c.l.b16 %v168
    %v945 = vunpack.c.h.b16 %v168
    %v946 = vunpack.c.l.b16 %v169
    %v947 = vunpack.c.h.b16 %v169
    %v948 = vunpack.c.l.b16 %v170
    %v949 = vunpack.c.h.b16 %v170
    %v950 = vunpack.c.l.b16 %v171
    %v951 = vunpack.c.h.b16 %v171
    %v952 = vunpack.c.l.b16 %v172
    %v953 = vunpack.c.h.b16 %v172
    %v954 = vunpack.c.l.b16 %v173
    %v955 = vunpack.c.h.b16 %v173
    %v956 = vunpack.c.l.b16 %v174
    %v957 = vunpack.c.h.b16 %v174
    %v958 = vunpack.c.l.b16 %v175
    %v959 = vunpack.c.h.b16 %v175
    %v960 = vunpack.c.l.b16 %v176
    %v961 = vunpack.c.h.b16 %v176
    %v962 = vunpack.c.l.b16 %v177
    %v963 = vunpack.c.h.b16 %v177
    %v964 = vunpack.c.l.b16 %v178
    %v965 = vunpack.c.h.b16 %v178
    %v966 = vunpack.c.l.b16 %v179
    %v967 = vunpack.c.h.b16 %v179
    %v968 = vunpack.c.l.b16 %v180
    %v969 = vunpack.c.h.b16 %v180
    %v970 = vunpack.c.l.b16 %v181
    %v971 = vunpack.c.h.b16 %v181
    %v972 = vunpack.c.l.b16 %v182
    %v973 = vunpack.c.h.b16 %v182
    %v974 = vunpack.c.l.b16 %v183
    %v975 = vunpack.c.h.b16 %v183
    %v976 = vunpack.c.l.b16 %v184
    %v977 = vunpack.c.h.b16 %v184
    %v978 = vunpack.c.l.b16 %v185
    %v979 = vunpack.c.h.b16 %v185
    %v980 = vunpack.c.l.b16 %v186
    %v981 = vunpack.c.h.b16 %v186
    %v982 = vunpack.c.l.b16 %v187
    %v983 = vunpack.c.h.b16 %v187
    %v984 = vunpack.c.l.b16 %v188
    %v985 = vunpack.c.h.b16 %v188
    %v986 = vunpack.c.l.b16 %v189
    %v987 = vunpack.c.h.b16 %v189
    %v988 = vunpack.c.l.b16 %v190
    %v989 = vunpack.c.h.b16 %v190
    %v990 = vunpack.c.l.b16 %v191
    %v991 = vunpack.c.h.b16 %v191
    %v992 = vunpack.c.l.b16 %v192
    %v993 = vunpack.c.h.b16 %v192
    %v994 = vunpack.c.l.b16 %v193
    %v995 = vunpack.c.h.b16 %v193
    %v996 = vunpack.c.l.b16 %v194
    %v997 = vunpack.c.h.b16 %v194
    %v998 = vunpack.c.l.b16 %v195
    %v999 = vunpack.c.h.b16 %v195
    %v1000 = vunpack.c.l.b16 %v196
    %v1001 = vunpack.c.h.b16 %v196
    %v1002 = vunpack.c.l.b16 %v197
    %v1003 = vunpack.c.h.b16 %v197
    %v1004 = vunpack.c.l.b16 %v198
    %v1005 = vunpack.c.h.b16 %v198
    %v1006 = vunpack.c.l.b16 %v199
    %v1007 = vunpack.c.h.b16 %v199
    %v1008 = vunpack.c.l.b16 %v200
    %v1009 = vunpack.c.h.b16 %v200
    %v1010 = vunpack.c.l.b16 %v201
    %v1011 = vunpack.c.h.b16 %v201
    %v1012 = vunpack.c.l.b16 %v202
    %v1013 = vunpack.c.h.b16 %v202
    %v1014 = vunpack.c.l.b16 %v203
    %v1015 = vunpack.c.h.b16 %v203
    %v1016 = vunpack.c.l.b16 %v204
    %v1017 = vunpack.c.h.b16 %v204
    %v1018 = vunpack.c.l.b16 %v205
    %v1019 = vunpack.c.h.b16 %v205
    %v1020 = vunpack.c.l.b16 %v206
    %v1021 = vunpack.c.h.b16 %v206
    %v1022 = vunpack.c.l.b16 %v207
    %v1023 = vunpack.c.h.b16 %v207
    %v1024 = vunpack.c.l.b16 %v208
    %v1025 = vunpack.c.h.b16 %v208
    %v1026 = vunpack.c.l.b16 %v209
    %v1027 = vunpack.c.h.b16 %v209
    %v1028 = vunpack.c.l.b16 %v210
    %v1029 = vunpack.c.h.b16 %v210
    %v1030 = vunpack.c.l.b16 %v211
    %v1031 = vunpack.c.h.b16 %v211
    %v1032 = vunpack.c.l.b16 %v212
    %v1033 = vunpack.c.h.b16 %v212
    %v1034 = vunpack.c.l.b16 %v213
    %v1035 = vunpack.c.h.b16 %v213
    %v1036 = vunpack.c.l.b16 %v214
    %v1037 = vunpack.c.h.b16 %v214
    %v1038 = vunpack.c.l.b16 %v215
    %v1039 = vunpack.c.h.b16 %v215
    %v1040 = vunpack.c.l.b16 %v216
    %v1041 = vunpack.c.h.b16 %v216
    %v1042 = vunpack.c.l.b16 %v217
    %v1043 = vunpack.c.h.b16 %v217
    %v1044 = vunpack.c.l.b16 %v218
    %v1045 = vunpack.c.h.b16 %v218
    %v1046 = vunpack.c.l.b16 %v219
    %v1047 = vunpack.c.h.b16 %v219
    %v1048 = vunpack.c.l.b16 %v220
    %v1049 = vunpack.c.h.b16 %v220
    %v1050 = vunpack.c.l.b16 %v221
    %v1051 = vunpack.c.h.b16 %v221
    %v1052 = vunpack.c.l.b16 %v222
    %v1053 = vunpack.c.h.b16 %v222
    %v1054 = vunpack.c.l.b16 %v223
    %v1055 = vunpack.c.h.b16 %v223
    %v1056 = vunpack.c.l.b16 %v224
    %v1057 = vunpack.c.h.b16 %v224
    %v1058 = vunpack.c.l.b16 %v225
    %v1059 = vunpack.c.h.b16 %v225
    %v1060 = vunpack.c.l.b16 %v226
    %v1061 = vunpack.c.h.b16 %v226
    %v1062 = vunpack.c.l.b16 %v227
    %v1063 = vunpack.c.h.b16 %v227
    %v1064 = vunpack.c.l.b16 %v228
    %v1065 = vunpack.c.h.b16 %v228
    %v1066 = vunpack.c.l.b16 %v229
    %v1067 = vunpack.c.h.b16 %v229
    %v1068 = vunpack.c.l.b16 %v230
    %v1069 = vunpack.c.h.b16 %v230
    %v1070 = vunpack.c.l.b16 %v231
    %v1071 = vunpack.c.h.b16 %v231
    %v1072 = vunpack.c.l.b16 %v232
    %v1073 = vunpack.c.h.b16 %v232
    %v1074 = vunpack.c.l.b16 %v233
    %v1075 = vunpack.c.h.b16 %v233
    %v1076 = vunpack.c.l.b16 %v234
    %v1077 = vunpack.c.h.b16 %v234
    %v1078 = vunpack.c.l.b16 %v235
    %v1079 = vunpack.c.h.b16 %v235
    %v1080 = vunpack.c.l.b16 %v236
    %v1081 = vunpack.c.h.b16 %v236
    %v1082 = vunpack.c.l.b16 %v237
    %v1083 = vunpack.c.h.b16 %v237
    %v1084 = vunpack.c.l.b16 %v238
    %v1085 = vunpack.c.h.b16 %v238
    %v1086 = vunpack.c.l.b16 %v239
    %v1087 = vunpack.c.h.b16 %v239
    %v1088 = vunpack.c.l.b16 %v240
    %v1089 = vunpack.c.h.b16 %v240
    %v1090 = vunpack.c.l.b16 %v241
    %v1091 = vunpack.c.h.b16 %v241
    %v1092 = vunpack.c.l.b16 %v242
    %v1093 = vunpack.c.h.b16 %v242
    %v1094 = vunpack.c.l.b16 %v243
    %v1095 = vunpack.c.h.b16 %v243
    %v1096 = vunpack.c.l.b16 %v244
    %v1097 = vunpack.c.h.b16 %v244
    %v1098 = vunpack.c.l.b16 %v245
    %v1099 = vunpack.c.h.b16 %v245
    %v1100 = vunpack.c.l.b16 %v246
    %v1101 = vunpack.c.h.b16 %v246
    %v1102 = vunpack.c.l.b16 %v247
    %v1103 = vunpack.c.h.b16 %v247
    %v1104 = vunpack.c.l.b16 %v248
    %v1105 = vunpack.c.h.b16 %v248
    %v1106 = vunpack.c.l.b16 %v249
    %v1107 = vunpack.c.h.b16 %v249
    %v1108 = vunpack.c.l.b16 %v250
    %v1109 = vunpack.c.h.b16 %v250
    %v1110 = vunpack.c.l.b16 %v251
    %v1111 = vunpack.c.h.b16 %v251
    %v1112 = vunpack.c.l.b16 %v252
    %v1113 = vunpack.c.h.b16 %v252
    %v1114 = vunpack.c.l.b16 %v253
    %v1115 = vunpack.c.h.b16 %v253
    %v1116 = vunpack.c.l.b16 %v254
    %v1117 = vunpack.c.h.b16 %v254
    %v1118 = vunpack.c.l.b16 %v255
    %v1119 = vunpack.c.h.b16 %v255
    %v1120 = vunpack.c.l.b16 %v256
    %v1121 = vunpack.c.h.b16 %v256
    %v1122 = vunpack.c.l.b16 %v257
    %v1123 = vunpack.c.h.b16 %v257
    %v1124 = vunpack.c.l.b16 %v258
    %v1125 = vunpack.c.h.b16 %v258
    %v1126 = vunpack.c.l.b16 %v259
    %v1127 = vunpack.c.h.b16 %v259
    %v1128 = vunpack.c.l.b16 %v260
    %v1129 = vunpack.c.h.b16 %v260
    %v1130 = vunpack.c.l.b16 %v261
    %v1131 = vunpack.c.h.b16 %v261
    %v1132 = vunpack.c.l.b16 %v262
    %v1133 = vunpack.c.h.b16 %v262
    %v1134 = vunpack.c.l.b16 %v263
    %v1135 = vunpack.c.h.b16 %v263
    %v1136 = vunpack.c.l.b16 %v264
    %v1137 = vunpack.c.h.b16 %v264
    %v1138 = vunpack.c.l.b16 %v265
    %v1139 = vunpack.c.h.b16 %v265
    %v1140 = vunpack.c.l.b16 %v266
    %v1141 = vunpack.c.h.b16 %v266
    %v1142 = vunpack.c.l.b16 %v267
    %v1143 = vunpack.c.h.b16 %v267
    %v1144 = vunpack.c.l.b16 %v268
    %v1145 = vunpack.c.h.b16 %v268
    %v1146 = vunpack.c.l.b16 %v269
    %v1147 = vunpack.c.h.b16 %v269
    %v1148 = vunpack.c.l.b16 %v270
    %v1149 = vunpack.c.h.b16 %v270
    %v1150 = vunpack.c.l.b16 %v271
    %v1151 = vunpack.c.h.b16 %v271
    %v1152 = vunpack.c.l.b16 %v272
    %v1153 = vunpack.c.h.b16 %v272
    %v1154 = vunpack.c.l.b16 %v273
    %v1155 = vunpack.c.h.b16 %v273
    %v1156 = vunpack.c.l.b16 %v274
    %v1157 = vunpack.c.h.b16 %v274
    %v1158 = vunpack.c.l.b16 %v275
    %v1159 = vunpack.c.h.b16 %v275
    %v1160 = vunpack.c.l.b16 %v276
    %v1161 = vunpack.c.h.b16 %v276
    %v1162 = vunpack.c.l.b16 %v277
    %v1163 = vunpack.c.h.b16 %v277
    %v1164 = vunpack.c.l.b16 %v278
    %v1165 = vunpack.c.h.b16 %v278
    %v1166 = vunpack.c.l.b16 %v279
    %v1167 = vunpack.c.h.b16 %v279
    %v1168 = vunpack.c.l.b16 %v280
    %v1169 = vunpack.c.h.b16 %v280
    %v1170 = vunpack.c.l.b16 %v281
    %v1171 = vunpack.c.h.b16 %v281
    %v1172 = vunpack.c.l.b16 %v282
    %v1173 = vunpack.c.h.b16 %v282
    %v1174 = vunpack.c.l.b16 %v283
    %v1175 = vunpack.c.h.b16 %v283
    %v1176 = vunpack.c.l.b16 %v284
    %v1177 = vunpack.c.h.b16 %v284
    %v1178 = vunpack.c.l.b16 %v285
    %v1179 = vunpack.c.h.b16 %v285
    %v1180 = vunpack.c.l.b16 %v286
    %v1181 = vunpack.c.h.b16 %v286
    %v1182 = vunpack.c.l.b16 %v287
    %v1183 = vunpack.c.h.b16 %v287
    %v1184 = vunpack.c.l.b16 %v288
    %v1185 = vunpack.c.h.b16 %v288
    %v1186 = vunpack.c.l.b16 %v289
    %v1187 = vunpack.c.h.b16 %v289
    %v1188 = vunpack.c.l.b16 %v290
    %v1189 = vunpack.c.h.b16 %v290
    %v1190 = vunpack.c.l.b16 %v291
    %v1191 = vunpack.c.h.b16 %v291
    %v1192 = vunpack.c.l.b16 %v292
    %v1193 = vunpack.c.h.b16 %v292
    %v1194 = vunpack.c.l.b16 %v293
    %v1195 = vunpack.c.h.b16 %v293
    %v1196 = vunpack.c.l.b16 %v294
    %v1197 = vunpack.c.h.b16 %v294
    %v1198 = vunpack.c.l.b16 %v295
    %v1199 = vunpack.c.h.b16 %v295
    %v1200 = vunpack.c.l.b16 %v296
    %v1201 = vunpack.c.h.b16 %v296
    %v1202 = vunpack.c.l.b16 %v297
    %v1203 = vunpack.c.h.b16 %v297
    %v1204 = vunpack.c.l.b16 %v298
    %v1205 = vunpack.c.h.b16 %v298
    %v1206 = vunpack.c.l.b16 %v299
    %v1207 = vunpack.c.h.b16 %v299
    %v1208 = vunpack.c.l.b16 %v300
    %v1209 = vunpack.c.h.b16 %v300
    %v1210 = vunpack.c.l.b16 %v301
    %v1211 = vunpack.c.h.b16 %v301
    %v1212 = vunpack.c.l.b16 %v302
    %v1213 = vunpack.c.h.b16 %v302
    %v1214 = vunpack.c.l.b16 %v303
    %v1215 = vunpack.c.h.b16 %v303
    %v1216 = vunpack.c.l.b16 %v304
    %v1217 = vunpack.c.h.b16 %v304
    %v1218 = vunpack.c.l.b16 %v305
    %v1219 = vunpack.c.h.b16 %v305
    %v1220 = vunpack.c.l.b16 %v306
    %v1221 = vunpack.c.h.b16 %v306
    %v1222 = vunpack.c.l.b16 %v307
    %v1223 = vunpack.c.h.b16 %v307
    %v1224 = vunpack.c.l.b16 %v308
    %v1225 = vunpack.c.h.b16 %v308
    %v1226 = vunpack.c.l.b16 %v309
    %v1227 = vunpack.c.h.b16 %v309
    %v1228 = vunpack.c.l.b16 %v310
    %v1229 = vunpack.c.h.b16 %v310
    %v1230 = vunpack.c.l.b16 %v311
    %v1231 = vunpack.c.h.b16 %v311
    %v1232 = vunpack.c.l.b16 %v312
    %v1233 = vunpack.c.h.b16 %v312
    %v1234 = vunpack.c.l.b16 %v313
    %v1235 = vunpack.c.h.b16 %v313
    %v1236 = vunpack.c.l.b16 %v314
    %v1237 = vunpack.c.h.b16 %v314
    %v1238 = vunpack.c.l.b16 %v315
    %v1239 = vunpack.c.h.b16 %v315
    %v1240 = vunpack.c.l.b16 %v316
    %v1241 = vunpack.c.h.b16 %v316
    %v1242 = vunpack.c.l.b16 %v317
    %v1243 = vunpack.c.h.b16 %v317
    %v1244 = vpack.c.b16 %v674, %v668
    %v1245 = vpack.c.b16 %v675, %v669
    %v1246 = vpack.c.b16 %v676, %v670
    %v1247 = vpack.c.b16 %v677, %v671
    %v1248 = vpack.c.b16 %v678, %v672
    %v1249 = vpack.c.b16 %v679, %v673
    %v1250 = vpack.c.b16 %v686, %v680
    %v1251 = vpack.c.b16 %v687, %v681
    %v1252 = vpack.c.b16 %v688, %v682
    %v1253 = vpack.c.b16 %v689, %v683
    %v1254 = vpack.c.b16 %v690, %v684
    %v1255 = vpack.c.b16 %v691, %v685
    %v1256 = vpack.c.b16 %v698, %v692
    %v1257 = vpack.c.b16 %v699, %v693
    %v1258 = vpack.c.b16 %v700, %v694
    %v1259 = vpack.c.b16 %v701, %v695
    %v1260 = vpack.c.b16 %v702, %v696
    %v1261 = vpack.c.b16 %v703, %v697
    %v1262 = vpack.c.b16 %v710, %v704
    %v1263 = vpack.c.b16 %v711, %v705
    %v1264 = vpack.c.b16 %v712, %v706
    %v1265 = vpack.c.b16 %v713, %v707
    %v1266 = vpack.c.b16 %v714, %v708
    %v1267 = vpack.c.b16 %v715, %v709
    %v1268 = vpack.c.b16 %v722, %v716
    %v1269 = vpack.c.b16 %v723, %v717
    %v1270 = vpack.c.b16 %v724, %v718
    %v1271 = vpack.c.b16 %v725, %v719
    %v1272 = vpack.c.b16 %v726, %v720
    %v1273 = vpack.c.b16 %v727, %v721
    %v1274 = vpack.c.b16 %v734, %v728
    %v1275 = vpack.c.b16 %v735, %v729
    %v1276 = vpack.c.b16 %v736, %v730
    %v1277 = vpack.c.b16 %v737, %v731
    %v1278 = vpack.c.b16 %v738, %v732
    %v1279 = vpack.c.b16 %v739, %v733
    %v1280 = vpack.c.b16 %v746, %v740
    %v1281 = vpack.c.b16 %v747, %v741
    %v1282 = vpack.c.b16 %v748, %v742
    %v1283 = vpack.c.b16 %v749, %v743
    %v1284 = vpack.c.b16 %v750, %v744
    %v1285 = vpack.c.b16 %v751, %v745
    %v1286 = vpack.c.b16 %v758, %v752
    %v1287 = vpack.c.b16 %v759, %v753
    %v1288 = vpack.c.b16 %v760, %v754
    %v1289 = vpack.c.b16 %v761, %v755
    %v1290 = vpack.c.b16 %v762, %v756
    %v1291 = vpack.c.b16 %v763, %v757
    %v1292 = vpack.c.b16 %v770, %v764
    %v1293 = vpack.c.b16 %v771, %v765
    %v1294 = vpack.c.b16 %v772, %v766
    %v1295 = vpack.c.b16 %v773, %v767
    %v1296 = vpack.c.b16 %v774, %v768
    %v1297 = vpack.c.b16 %v775, %v769
    %v1298 = vpack.c.b16 %v782, %v776
    %v1299 = vpack.c.b16 %v783, %v777
    %v1300 = vpack.c.b16 %v784, %v778
    %v1301 = vpack.c.b16 %v785, %v779
    %v1302 = vpack.c.b16 %v786, %v780
    %v1303 = vpack.c.b16 %v787, %v781
    %v1304 = vpack.c.b16 %v794, %v788
    %v1305 = vpack.c.b16 %v795, %v789
    %v1306 = vpack.c.b16 %v796, %v790
    %v1307 = vpack.c.b16 %v797, %v791
    %v1308 = vpack.c.b16 %v798, %v792
    %v1309 = vpack.c.b16 %v799, %v793
    %v1310 = vpack.c.b16 %v806, %v800
    %v1311 = vpack.c.b16 %v807, %v801
    %v1312 = vpack.c.b16 %v808, %v802
    %v1313 = vpack.c.b16 %v809, %v803
    %v1314 = vpack.c.b16 %v810, %v804
    %v1315 = vpack.c.b16 %v811, %v805
    %v1316 = vpack.c.b16 %v818, %v812
    %v1317 = vpack.c.b16 %v819, %v813
    %v1318 = vpack.c.b16 %v820, %v814
    %v1319 = vpack.c.b16 %v821, %v815
    %v1320 = vpack.c.b16 %v822, %v816
    %v1321 = vpack.c.b16 %v823, %v817
    %v1322 = vpack.c.b16 %v830, %v824
    %v1323 = vpack.c.b16 %v831, %v825
    %v1324 = vpack.c.b16 %v832, %v826
    %v1325 = vpack.c.b16 %v833, %v827
    %v1326 = vpack.c.b16 %v834, %v828
    %v1327 = vpack.c.b16 %v835, %v829
    %v1328 = vpack.c.b16 %v842, %v836
    %v1329 = vpack.c.b16 %v843, %v837
    %v1330 = vpack.c.b16 %v844, %v838
    %v1331 = vpack.c.b16 %v845, %v839
    %v1332 = vpack.c.b16 %v846, %v840
    %v1333 = vpack.c.b16 %v847, %v841
    %v1334 = vpack.c.b16 %v854, %v848
    %v1335 = vpack.c.b16 %v855, %v849
    %v1336 = vpack.c.b16 %v856, %v850
    %v1337 = vpack.c.b16 %v857, %v851
    %v1338 = vpack.c.b16 %v858, %v852
    %v1339 = vpack.c.b16 %v859, %v853
    %v1340 = vpack.c.b16 %v866, %v860
    %v1341 = vpack.c.b16 %v867, %v861
    %v1342 = vpack.c.b16 %v868, %v862
    %v1343 = vpack.c.b16 %v869, %v863
    %v1344 = vpack.c.b16 %v870, %v864
    %v1345 = vpack.c.b16 %v871, %v865
    %v1346 = vpack.c.b16 %v878, %v872
    %v1347 = vpack.c.b16 %v879, %v873
    %v1348 = vpack.c.b16 %v880, %v874
    %v1349 = vpack.c.b16 %v881, %v875
    %v1350 = vpack.c.b16 %v882, %v876
    %v1351 = vpack.c.b16 %v883, %v877
    %v1352 = vpack.c.b16 %v890, %v884
    %v1353 = vpack.c.b16 %v891, %v885
    %v1354 = vpack.c.b16 %v892, %v886
    %v1355 = vpack.c.b16 %v893, %v887
    %v1356 = vpack.c.b16 %v894, %v888
    %v1357 = vpack.c.b16 %v895, %v889
    %v1358 = vpack.c.b16 %v902, %v896
    %v1359 = vpack.c.b16 %v903, %v897
    %v1360 = vpack.c.b16 %v904, %v898
    %v1361 = vpack.c.b16 %v905, %v899
    %v1362 = vpack.c.b16 %v906, %v900
    %v1363 = vpack.c.b16 %v907, %v901
    %v1364 = vpack.c.b16 %v914, %v908
    %v1365 = vpack.c.b16 %v915, %v909
    %v1366 = vpack.c.b16 %v916, %v910
    %v1367 = vpack.c.b16 %v917, %v911
    %v1368 = vpack.c.b16 %v918, %v912
    %v1369 = vpack.c.b16 %v919, %v913
    %v1370 = vpack.c.b16 %v926, %v920
    %v1371 = vpack.c.b16 %v927, %v921
    %v1372 = vpack.c.b16 %v928, %v922
    %v1373 = vpack.c.b16 %v929, %v923
    %v1374 = vpack.c.b16 %v930, %v924
    %v1375 = vpack.c.b16 %v931, %v925
    %v1376 = vpack.c.b16 %v938, %v932
    %v1377 = vpack.c.b16 %v939, %v933
    %v1378 = vpack.c.b16 %v940, %v934
    %v1379 = vpack.c.b16 %v941, %v935
    %v1380 = vpack.c.b16 %v942, %v936
    %v1381 = vpack.c.b16 %v943, %v937
    %v1382 = vpack.c.b16 %v950, %v944
    %v1383 = vpack.c.b16 %v951, %v945
    %v1384 = vpack.c.b16 %v952, %v946
    %v1385 = vpack.c.b16 %v953, %v947
    %v1386 = vpack.c.b16 %v954, %v948
    %v1387 = vpack.c.b16 %v955, %v949
    %v1388 = vpack.c.b16 %v962, %v956
    %v1389 = vpack.c.b16 %v963, %v957
    %v1390 = vpack.c.b16 %v964, %v958
    %v1391 = vpack.c.b16 %v965, %v959
    %v1392 = vpack.c.b16 %v966, %v960
    %v1393 = vpack.c.b16 %v967, %v961
    %v1394 = vpack.c.b16 %v974, %v968
    %v1395 = vpack.c.b16 %v975, %v969
    %v1396 = vpack.c.b16 %v976, %v970
    %v1397 = vpack.c.b16 %v977, %v971
    %v1398 = vpack.c.b16 %v978, %v972
    %v1399 = vpack.c.b16 %v979, %v973
    %v1400 = vpack.c.b16 %v986, %v980
    %v1401 = vpack.c.b16 %v987, %v981
    %v1402 = vpack.c.b16 %v988, %v982
    %v1403 = vpack.c.b16 %v989, %v983
    %v1404 = vpack.c.b16 %v990, %v984
    %v1405 = vpack.c.b16 %v991, %v985
    %v1406 = vpack.c.b16 %v998, %v992
    %v1407 = vpack.c.b16 %v999, %v993
    %v1408 = vpack.c.b16 %v1000, %v994
    %v1409 = vpack.c.b16 %v1001, %v995
    %v1410 = vpack.c.b16 %v1002, %v996
    %v1411 = vpack.c.b16 %v1003, %v997
    %v1412 = vpack.c.b16 %v1010, %v1004
    %v1413 = vpack.c.b16 %v1011, %v1005
    %v1414 = vpack.c.b16 %v1012, %v1006
    %v1415 = vpack.c.b16 %v1013, %v1007
    %v1416 = vpack.c.b16 %v1014, %v1008
    %v1417 = vpack.c.b16 %v1015, %v1009
    %v1418 = vpack.c.b16 %v1022, %v1016
    %v1419 = vpack.c.b16 %v1023, %v1017
    %v1420 = vpack.c.b16 %v1024, %v1018
    %v1421 = vpack.c.b16 %v1025, %v1019
    %v1422 = vpack.c.b16 %v1026, %v1020
    %v1423 = vpack.c.b16 %v1027, %v1021
    %v1424 = vpack.c.b16 %v1034, %v1028
    %v1425 = vpack.c.b16 %v1035, %v1029
    %v1426 = vpack.c.b16 %v1036, %v1030
    %v1427 = vpack.c.b16 %v1037, %v1031
    %v1428 = vpack.c.b16 %v1038, %v1032
    %v1429 = vpack.c.b16 %v1039, %v1033
    %v1430 = vpack.c.b16 %v1046, %v1040
    %v1431 = vpack.c.b16 %v1047, %v1041
    %v1432 = vpack.c.b16 %v1048, %v1042
    %v1433 = vpack.c.b16 %v1049, %v1043
    %v1434 = vpack.c.b16 %v1050, %v1044
    %v1435 = vpack.c.b16 %v1051, %v1045
    %v1436 = vpack.c.b16 %v1058, %v1052
    %v1437 = vpack.c.b16 %v1059, %v1053
    %v1438 = vpack.c.b16 %v1060, %v1054
    %v1439 = vpack.c.b16 %v1061, %v1055
    %v1440 = vpack.c.b16 %v1062, %v1056
    %v1441 = vpack.c.b16 %v1063, %v1057
    %v1442 = vpack.c.b16 %v1070, %v1064
    %v1443 = vpack.c.b16 %v1071, %v1065
    %v1444 = vpack.c.b16 %v1072, %v1066
    %v1445 = vpack.c.b16 %v1073, %v1067
    %v1446 = vpack.c.b16 %v1074, %v1068
    %v1447 = vpack.c.b16 %v1075, %v1069
    %v1448 = vpack.c.b16 %v1082, %v1076
    %v1449 = vpack.c.b16 %v1083, %v1077
    %v1450 = vpack.c.b16 %v1084, %v1078
    %v1451 = vpack.c.b16 %v1085, %v1079
    %v1452 = vpack.c.b16 %v1086, %v1080
    %v1453 = vpack.c.b16 %v1087, %v1081
    %v1454 = vpack.c.b16 %v1094, %v1088
    %v1455 = vpack.c.b16 %v1095, %v1089
    %v1456 = vpack.c.b16 %v1096, %v1090
    %v1457 = vpack.c.b16 %v1097, %v1091
    %v1458 = vpack.c.b16 %v1098, %v1092
    %v1459 = vpack.c.b16 %v1099, %v1093
    %v1460 = vpack.c.b16 %v1106, %v1100
    %v1461 = vpack.c.b16 %v1107, %v1101
    %v1462 = vpack.c.b16 %v1108, %v1102
    %v1463 = vpack.c.b16 %v1109, %v1103
    %v1464 = vpack.c.b16 %v1110, %v1104
    %v1465 = vpack.c.b16 %v1111, %v1105
    %v1466 = vpack.c.b16 %v1118, %v1112
    %v1467 = vpack.c.b16 %v1119, %v1113
    %v1468 = vpack.c.b16 %v1120, %v1114
    %v1469 = vpack.c.b16 %v1121, %v1115
    %v1470 = vpack.c.b16 %v1122, %v1116
    %v1471 = vpack.c.b16 %v1123, %v1117
    %v1472 = vpack.c.b16 %v1130, %v1124
    %v1473 = vpack.c.b16 %v1131, %v1125
    %v1474 = vpack.c.b16 %v1132, %v1126
    %v1475 = vpack.c.b16 %v1133, %v1127
    %v1476 = vpack.c.b16 %v1134, %v1128
    %v1477 = vpack.c.b16 %v1135, %v1129
    %v1478 = vpack.c.b16 %v1142, %v1136
    %v1479 = vpack.c.b16 %v1143, %v1137
    %v1480 = vpack.c.b16 %v1144, %v1138
    %v1481 = vpack.c.b16 %v1145, %v1139
    %v1482 = vpack.c.b16 %v1146, %v1140
    %v1483 = vpack.c.b16 %v1147, %v1141
    %v1484 = vpack.c.b16 %v1154, %v1148
    %v1485 = vpack.c.b16 %v1155, %v1149
    %v1486 = vpack.c.b16 %v1156, %v1150
    %v1487 = vpack.c.b16 %v1157, %v1151
    %v1488 = vpack.c.b16 %v1158, %v1152
    %v1489 = vpack.c.b16 %v1159, %v1153
    %v1490 = vpack.c.b16 %v1166, %v1160
    %v1491 = vpack.c.b16 %v1167, %v1161
    %v1492 = vpack.c.b16 %v1168, %v1162
    %v1493 = vpack.c.b16 %v1169, %v1163
    %v1494 = vpack.c.b16 %v1170, %v1164
    %v1495 = vpack.c.b16 %v1171, %v1165
    %v1496 = vpack.c.b16 %v1178, %v1172
    %v1497 = vpack.c.b16 %v1179, %v1173
    %v1498 = vpack.c.b16 %v1180, %v1174
    %v1499 = vpack.c.b16 %v1181, %v1175
    %v1500 = vpack.c.b16 %v1182, %v1176
    %v1501 = vpack.c.b16 %v1183, %v1177
    %v1502 = vpack.c.b16 %v1190, %v1184
    %v1503 = vpack.c.b16 %v1191, %v1185
    %v1504 = vpack.c.b16 %v1192, %v1186
    %v1505 = vpack.c.b16 %v1193, %v1187
    %v1506 = vpack.c.b16 %v1194, %v1188
    %v1507 = vpack.c.b16 %v1195, %v1189
    %v1508 = vpack.c.b16 %v1202, %v1196
    %v1509 = vpack.c.b16 %v1203, %v1197
    %v1510 = vpack.c.b16 %v1204, %v1198
    %v1511 = vpack.c.b16 %v1205, %v1199
    %v1512 = vpack.c.b16 %v1206, %v1200
    %v1513 = vpack.c.b16 %v1207, %v1201
    %v1514 = vpack.c.b16 %v1214, %v1208
    %v1515 = vpack.c.b16 %v1215, %v1209
    %v1516 = vpack.c.b16 %v1216, %v1210
    %v1517 = vpack.c.b16 %v1217, %v1211
    %v1518 = vpack.c.b16 %v1218, %v1212
    %v1519 = vpack.c.b16 %v1219, %v1213
    %v1520 = vpack.c.b16 %v1226, %v1220
    %v1521 = vpack.c.b16 %v1227, %v1221
    %v1522 = vpack.c.b16 %v1228, %v1222
    %v1523 = vpack.c.b16 %v1229, %v1223
    %v1524 = vpack.c.b16 %v1230, %v1224
    %v1525 = vpack.c.b16 %v1231, %v1225
    %v1526 = vpack.c.b16 %v1238, %v1232
    %v1527 = vpack.c.b16 %v1239, %v1233
    %v1528 = vpack.c.b16 %v1240, %v1234
    %v1529 = vpack.c.b16 %v1241, %v1235
    %v1530 = vpack.c.b16 %v1242, %v1236
    %v1531 = vpack.c.b16 %v1243, %v1237
    %1820 = vmatprep.subr.bf16.mxu0 %v1287
    %1821 = vmatpush1.bf16.msra.mxu0 %v1286
    %1822 = vmatprep.subr.bf16.mxu0 %v1281
    %1823 = vmatpush1.bf16.msra.mxu0 %v1280
    %1824 = vmatprep.subr.bf16.mxu0 %v1275
    %1825 = vmatpush1.bf16.msra.mxu0 %v1274
    %1826 = vmatprep.subr.bf16.mxu0 %v1269
    %1827 = vmatpush1.bf16.msra.mxu0 %v1268
    %1828 = vmatprep.subr.bf16.mxu0 %v1263
    %1829 = vmatpush1.bf16.msra.mxu0 %v1262
    %1830 = vmatprep.subr.bf16.mxu0 %v1257
    %1831 = vmatpush1.bf16.msra.mxu0 %v1256
    %1832 = vmatprep.subr.bf16.mxu0 %v1251
    %1833 = vmatpush1.bf16.msra.mxu0 %v1250
    %1834 = vmatprep.subr.bf16.mxu0 %v1245
    %1835 = vmatpush1.bf16.msra.mxu0 %v1244
    %1836 = vmatprep.subr.bf16.mxu0 %v1335
    %1837 = vmatpush2.bf16.msra.mxu0 %v1334
    %1838 = vmatprep.subr.bf16.mxu0 %v1329
    %1839 = vmatpush2.bf16.msra.mxu0 %v1328
    %1840 = vmatprep.subr.bf16.mxu0 %v1323
    %1841 = vmatpush2.bf16.msra.mxu0 %v1322
    %1842 = vmatprep.subr.bf16.mxu0 %v1317
    %1843 = vmatpush2.bf16.msra.mxu0 %v1316
    %1844 = vmatprep.subr.bf16.mxu0 %v1311
    %1845 = vmatpush2.bf16.msra.mxu0 %v1310
    %1846 = vmatprep.subr.bf16.mxu0 %v1305
    %1847 = vmatpush2.bf16.msra.mxu0 %v1304
    %1848 = vmatprep.subr.bf16.mxu0 %v1299
    %1849 = vmatpush2.bf16.msra.mxu0 %v1298
    %1850 = vmatprep.subr.bf16.mxu0 %v1293
    %1851 = vmatpush2.bf16.msra.mxu0 %v1292
    %1852 = vmatprep.mubr.bf16.mxu0 %v369
    %1853 = vmatmul.mubr.bf16.gmra.mxu0 %v368
    %v1854 = vpop.f32.mrf.mxu0
    %v1855 = vadd.f32 %v323, %v1854
    %v1856 = vpop.f32.mrf.mxu0
    %v1857 = vadd.f32 %v327, %v1856
    %v1858 = vpop.f32.mrf.mxu0
    %v1859 = vadd.f32 %v323, %v1858
    %v1860 = vpop.f32.mrf.mxu0
    %v1861 = vadd.f32 %v327, %v1860
    %1862 = vdwg.mxu0
    %1863 = vmatprep.subr.bf16.mxu0 %v1383
    %1864 = vmatpush1.bf16.msra.mxu0 %v1382
    %1865 = vmatprep.subr.bf16.mxu0 %v1377
    %1866 = vmatpush1.bf16.msra.mxu0 %v1376
    %1867 = vmatprep.subr.bf16.mxu0 %v1371
    %1868 = vmatpush1.bf16.msra.mxu0 %v1370
    %1869 = vmatprep.subr.bf16.mxu0 %v1365
    %1870 = vmatpush1.bf16.msra.mxu0 %v1364
    %1871 = vmatprep.subr.bf16.mxu0 %v1359
    %1872 = vmatpush1.bf16.msra.mxu0 %v1358
    %1873 = vmatprep.subr.bf16.mxu0 %v1353
    %1874 = vmatpush1.bf16.msra.mxu0 %v1352
    %1875 = vmatprep.subr.bf16.mxu0 %v1347
    %1876 = vmatpush1.bf16.msra.mxu0 %v1346
    %1877 = vmatprep.subr.bf16.mxu0 %v1341
    %1878 = vmatpush1.bf16.msra.mxu0 %v1340
    %1879 = vmatprep.subr.bf16.mxu0 %v1431
    %1880 = vmatpush2.bf16.msra.mxu0 %v1430
    %1881 = vmatprep.subr.bf16.mxu0 %v1425
    %1882 = vmatpush2.bf16.msra.mxu0 %v1424
    %1883 = vmatprep.subr.bf16.mxu0 %v1419
    %1884 = vmatpush2.bf16.msra.mxu0 %v1418
    %1885 = vmatprep.subr.bf16.mxu0 %v1413
    %1886 = vmatpush2.bf16.msra.mxu0 %v1412
    %1887 = vmatprep.subr.bf16.mxu0 %v1407
    %1888 = vmatpush2.bf16.msra.mxu0 %v1406
    %1889 = vmatprep.subr.bf16.mxu0 %v1401
    %1890 = vmatpush2.bf16.msra.mxu0 %v1400
    %1891 = vmatprep.subr.bf16.mxu0 %v1395
    %1892 = vmatpush2.bf16.msra.mxu0 %v1394
    %1893 = vmatprep.subr.bf16.mxu0 %v1389
    %1894 = vmatpush2.bf16.msra.mxu0 %v1388
    %1895 = vmatprep.mubr.bf16.mxu0 %v371
    %1896 = vmatmul.mubr.bf16.gmra.mxu0 %v370
    %v1897 = vpop.f32.mrf.mxu0
    %v1898 = vadd.f32 %v1855, %v1897
    %v1899 = vpop.f32.mrf.mxu0
    %v1900 = vadd.f32 %v1857, %v1899
    %v1901 = vpop.f32.mrf.mxu0
    %v1902 = vadd.f32 %v1859, %v1901
    %v1903 = vpop.f32.mrf.mxu0
    %v1904 = vadd.f32 %v1861, %v1903
    %1905 = vdwg.mxu0
    %1906 = vmatprep.subr.bf16.mxu0 %v1479
    %1907 = vmatpush1.bf16.msra.mxu0 %v1478
    %1908 = vmatprep.subr.bf16.mxu0 %v1473
    %1909 = vmatpush1.bf16.msra.mxu0 %v1472
    %1910 = vmatprep.subr.bf16.mxu0 %v1467
    %1911 = vmatpush1.bf16.msra.mxu0 %v1466
    %1912 = vmatprep.subr.bf16.mxu0 %v1461
    %1913 = vmatpush1.bf16.msra.mxu0 %v1460
    %1914 = vmatprep.subr.bf16.mxu0 %v1455
    %1915 = vmatpush1.bf16.msra.mxu0 %v1454
    %1916 = vmatprep.subr.bf16.mxu0 %v1449
    %1917 = vmatpush1.bf16.msra.mxu0 %v1448
    %1918 = vmatprep.subr.bf16.mxu0 %v1443
    %1919 = vmatpush1.bf16.msra.mxu0 %v1442
    %1920 = vmatprep.subr.bf16.mxu0 %v1437
    %1921 = vmatpush1.bf16.msra.mxu0 %v1436
    %1922 = vmatprep.subr.bf16.mxu0 %v1527
    %1923 = vmatpush2.bf16.msra.mxu0 %v1526
    %1924 = vmatprep.subr.bf16.mxu0 %v1521
    %1925 = vmatpush2.bf16.msra.mxu0 %v1520
    %1926 = vmatprep.subr.bf16.mxu0 %v1515
    %1927 = vmatpush2.bf16.msra.mxu0 %v1514
    %1928 = vmatprep.subr.bf16.mxu0 %v1509
    %1929 = vmatpush2.bf16.msra.mxu0 %v1508
    %1930 = vmatprep.subr.bf16.mxu0 %v1503
    %1931 = vmatpush2.bf16.msra.mxu0 %v1502
    %1932 = vmatprep.subr.bf16.mxu0 %v1497
    %1933 = vmatpush2.bf16.msra.mxu0 %v1496
    %1934 = vmatprep.subr.bf16.mxu0 %v1491
    %1935 = vmatpush2.bf16.msra.mxu0 %v1490
    %1936 = vmatprep.subr.bf16.mxu0 %v1485
    %1937 = vmatpush2.bf16.msra.mxu0 %v1484
    %1938 = vmatprep.mubr.bf16.mxu0 %v373
    %1939 = vmatmul.mubr.bf16.gmra.mxu0 %v372
    %v1940 = vpop.f32.mrf.mxu0
    %v1941 = vadd.f32 %v1898, %v1940
    %v1942 = vpop.f32.mrf.mxu0
    %v1943 = vadd.f32 %v1900, %v1942
    %v1944 = vpop.f32.mrf.mxu0
    %v1945 = vadd.f32 %v1902, %v1944
    %v1946 = vpop.f32.mrf.mxu0
    %v1947 = vadd.f32 %v1904, %v1946
    %1948 = vdwg.mxu0
    %1949 = vmatprep.subr.bf16.mxu0 %v1289
    %1950 = vmatpush1.bf16.msra.mxu0 %v1288
    %1951 = vmatprep.subr.bf16.mxu0 %v1283
    %1952 = vmatpush1.bf16.msra.mxu0 %v1282
    %1953 = vmatprep.subr.bf16.mxu0 %v1277
    %1954 = vmatpush1.bf16.msra.mxu0 %v1276
    %1955 = vmatprep.subr.bf16.mxu0 %v1271
    %1956 = vmatpush1.bf16.msra.mxu0 %v1270
    %1957 = vmatprep.subr.bf16.mxu0 %v1265
    %1958 = vmatpush1.bf16.msra.mxu0 %v1264
    %1959 = vmatprep.subr.bf16.mxu0 %v1259
    %1960 = vmatpush1.bf16.msra.mxu0 %v1258
    %1961 = vmatprep.subr.bf16.mxu0 %v1253
    %1962 = vmatpush1.bf16.msra.mxu0 %v1252
    %1963 = vmatprep.subr.bf16.mxu0 %v1247
    %1964 = vmatpush1.bf16.msra.mxu0 %v1246
    %1965 = vmatprep.subr.bf16.mxu0 %v1337
    %1966 = vmatpush2.bf16.msra.mxu0 %v1336
    %1967 = vmatprep.subr.bf16.mxu0 %v1331
    %1968 = vmatpush2.bf16.msra.mxu0 %v1330
    %1969 = vmatprep.subr.bf16.mxu0 %v1325
    %1970 = vmatpush2.bf16.msra.mxu0 %v1324
    %1971 = vmatprep.subr.bf16.mxu0 %v1319
    %1972 = vmatpush2.bf16.msra.mxu0 %v1318
    %1973 = vmatprep.subr.bf16.mxu0 %v1313
    %1974 = vmatpush2.bf16.msra.mxu0 %v1312
    %1975 = vmatprep.subr.bf16.mxu0 %v1307
    %1976 = vmatpush2.bf16.msra.mxu0 %v1306
    %1977 = vmatprep.subr.bf16.mxu0 %v1301
    %1978 = vmatpush2.bf16.msra.mxu0 %v1300
    %1979 = vmatprep.subr.bf16.mxu0 %v1295
    %1980 = vmatpush2.bf16.msra.mxu0 %v1294
    %1981 = vmatprep.mubr.bf16.mxu0 %v369
    %1982 = vmatmul.mubr.bf16.gmra.mxu0 %v368
    %v1983 = vpop.f32.mrf.mxu0
    %v1984 = vadd.f32 %v331, %v1983
    %v1985 = vpop.f32.mrf.mxu0
    %v1986 = vadd.f32 %v335, %v1985
    %v1987 = vpop.f32.mrf.mxu0
    %v1988 = vadd.f32 %v331, %v1987
    %v1989 = vpop.f32.mrf.mxu0
    %v1990 = vadd.f32 %v335, %v1989
    %1991 = vdwg.mxu0
    %1992 = vmatprep.subr.bf16.mxu0 %v1385
    %1993 = vmatpush1.bf16.msra.mxu0 %v1384
    %1994 = vmatprep.subr.bf16.mxu0 %v1379
    %1995 = vmatpush1.bf16.msra.mxu0 %v1378
    %1996 = vmatprep.subr.bf16.mxu0 %v1373
    %1997 = vmatpush1.bf16.msra.mxu0 %v1372
    %1998 = vmatprep.subr.bf16.mxu0 %v1367
    %1999 = vmatpush1.bf16.msra.mxu0 %v1366
    %2000 = vmatprep.subr.bf16.mxu0 %v1361
    %2001 = vmatpush1.bf16.msra.mxu0 %v1360
    %2002 = vmatprep.subr.bf16.mxu0 %v1355
    %2003 = vmatpush1.bf16.msra.mxu0 %v1354
    %2004 = vmatprep.subr.bf16.mxu0 %v1349
    %2005 = vmatpush1.bf16.msra.mxu0 %v1348
    %2006 = vmatprep.subr.bf16.mxu0 %v1343
    %2007 = vmatpush1.bf16.msra.mxu0 %v1342
    %2008 = vmatprep.subr.bf16.mxu0 %v1433
    %2009 = vmatpush2.bf16.msra.mxu0 %v1432
    %2010 = vmatprep.subr.bf16.mxu0 %v1427
    %2011 = vmatpush2.bf16.msra.mxu0 %v1426
    %2012 = vmatprep.subr.bf16.mxu0 %v1421
    %2013 = vmatpush2.bf16.msra.mxu0 %v1420
    %2014 = vmatprep.subr.bf16.mxu0 %v1415
    %2015 = vmatpush2.bf16.msra.mxu0 %v1414
    %2016 = vmatprep.subr.bf16.mxu0 %v1409
    %2017 = vmatpush2.bf16.msra.mxu0 %v1408
    %2018 = vmatprep.subr.bf16.mxu0 %v1403
    %2019 = vmatpush2.bf16.msra.mxu0 %v1402
    %2020 = vmatprep.subr.bf16.mxu0 %v1397
    %2021 = vmatpush2.bf16.msra.mxu0 %v1396
    %2022 = vmatprep.subr.bf16.mxu0 %v1391
    %2023 = vmatpush2.bf16.msra.mxu0 %v1390
    %2024 = vmatprep.mubr.bf16.mxu0 %v371
    %2025 = vmatmul.mubr.bf16.gmra.mxu0 %v370
    %v2026 = vpop.f32.mrf.mxu0
    %v2027 = vadd.f32 %v1984, %v2026
    %v2028 = vpop.f32.mrf.mxu0
    %v2029 = vadd.f32 %v1986, %v2028
    %v2030 = vpop.f32.mrf.mxu0
    %v2031 = vadd.f32 %v1988, %v2030
    %v2032 = vpop.f32.mrf.mxu0
    %v2033 = vadd.f32 %v1990, %v2032
    %2034 = vdwg.mxu0
    %2035 = vmatprep.subr.bf16.mxu0 %v1481
    %2036 = vmatpush1.bf16.msra.mxu0 %v1480
    %2037 = vmatprep.subr.bf16.mxu0 %v1475
    %2038 = vmatpush1.bf16.msra.mxu0 %v1474
    %2039 = vmatprep.subr.bf16.mxu0 %v1469
    %2040 = vmatpush1.bf16.msra.mxu0 %v1468
    %2041 = vmatprep.subr.bf16.mxu0 %v1463
    %2042 = vmatpush1.bf16.msra.mxu0 %v1462
    %2043 = vmatprep.subr.bf16.mxu0 %v1457
    %2044 = vmatpush1.bf16.msra.mxu0 %v1456
    %2045 = vmatprep.subr.bf16.mxu0 %v1451
    %2046 = vmatpush1.bf16.msra.mxu0 %v1450
    %2047 = vmatprep.subr.bf16.mxu0 %v1445
    %2048 = vmatpush1.bf16.msra.mxu0 %v1444
    %2049 = vmatprep.subr.bf16.mxu0 %v1439
    %2050 = vmatpush1.bf16.msra.mxu0 %v1438
    %2051 = vmatprep.subr.bf16.mxu0 %v1529
    %2052 = vmatpush2.bf16.msra.mxu0 %v1528
    %2053 = vmatprep.subr.bf16.mxu0 %v1523
    %2054 = vmatpush2.bf16.msra.mxu0 %v1522
    %2055 = vmatprep.subr.bf16.mxu0 %v1517
    %2056 = vmatpush2.bf16.msra.mxu0 %v1516
    %2057 = vmatprep.subr.bf16.mxu0 %v1511
    %2058 = vmatpush2.bf16.msra.mxu0 %v1510
    %2059 = vmatprep.subr.bf16.mxu0 %v1505
    %2060 = vmatpush2.bf16.msra.mxu0 %v1504
    %2061 = vmatprep.subr.bf16.mxu0 %v1499
    %2062 = vmatpush2.bf16.msra.mxu0 %v1498
    %2063 = vmatprep.subr.bf16.mxu0 %v1493
    %2064 = vmatpush2.bf16.msra.mxu0 %v1492
    %2065 = vmatprep.subr.bf16.mxu0 %v1487
    %2066 = vmatpush2.bf16.msra.mxu0 %v1486
    %2067 = vmatprep.mubr.bf16.mxu0 %v373
    %2068 = vmatmul.mubr.bf16.gmra.mxu0 %v372
    %v2069 = vpop.f32.mrf.mxu0
    %v2070 = vadd.f32 %v2027, %v2069
    %v2071 = vpop.f32.mrf.mxu0
    %v2072 = vadd.f32 %v2029, %v2071
    %v2073 = vpop.f32.mrf.mxu0
    %v2074 = vadd.f32 %v2031, %v2073
    %v2075 = vpop.f32.mrf.mxu0
    %v2076 = vadd.f32 %v2033, %v2075
    %2077 = vdwg.mxu0
    %2078 = vmatprep.subr.bf16.mxu0 %v1291
    %2079 = vmatpush1.bf16.msra.mxu0 %v1290
    %2080 = vmatprep.subr.bf16.mxu0 %v1285
    %2081 = vmatpush1.bf16.msra.mxu0 %v1284
    %2082 = vmatprep.subr.bf16.mxu0 %v1279
    %2083 = vmatpush1.bf16.msra.mxu0 %v1278
    %2084 = vmatprep.subr.bf16.mxu0 %v1273
    %2085 = vmatpush1.bf16.msra.mxu0 %v1272
    %2086 = vmatprep.subr.bf16.mxu0 %v1267
    %2087 = vmatpush1.bf16.msra.mxu0 %v1266
    %2088 = vmatprep.subr.bf16.mxu0 %v1261
    %2089 = vmatpush1.bf16.msra.mxu0 %v1260
    %2090 = vmatprep.subr.bf16.mxu0 %v1255
    %2091 = vmatpush1.bf16.msra.mxu0 %v1254
    %2092 = vmatprep.subr.bf16.mxu0 %v1249
    %2093 = vmatpush1.bf16.msra.mxu0 %v1248
    %2094 = vmatprep.subr.bf16.mxu0 %v1339
    %2095 = vmatpush2.bf16.msra.mxu0 %v1338
    %2096 = vmatprep.subr.bf16.mxu0 %v1333
    %2097 = vmatpush2.bf16.msra.mxu0 %v1332
    %2098 = vmatprep.subr.bf16.mxu0 %v1327
    %2099 = vmatpush2.bf16.msra.mxu0 %v1326
    %2100 = vmatprep.subr.bf16.mxu0 %v1321
    %2101 = vmatpush2.bf16.msra.mxu0 %v1320
    %2102 = vmatprep.subr.bf16.mxu0 %v1315
    %2103 = vmatpush2.bf16.msra.mxu0 %v1314
    %2104 = vmatprep.subr.bf16.mxu0 %v1309
    %2105 = vmatpush2.bf16.msra.mxu0 %v1308
    %2106 = vmatprep.subr.bf16.mxu0 %v1303
    %2107 = vmatpush2.bf16.msra.mxu0 %v1302
    %2108 = vmatprep.subr.bf16.mxu0 %v1297
    %2109 = vmatpush2.bf16.msra.mxu0 %v1296
    %2110 = vmatprep.mubr.bf16.mxu0 %v369
    %2111 = vmatmul.mubr.bf16.gmra.mxu0 %v368
    %v2112 = vpop.f32.mrf.mxu0
    %v2113 = vadd.f32 %v339, %v2112
    %v2114 = vpop.f32.mrf.mxu0
    %v2115 = vadd.f32 %v343, %v2114
    %v2116 = vpop.f32.mrf.mxu0
    %v2117 = vadd.f32 %v339, %v2116
    %v2118 = vpop.f32.mrf.mxu0
    %v2119 = vadd.f32 %v343, %v2118
    %2120 = vdwg.mxu0
    %2121 = vmatprep.subr.bf16.mxu0 %v1387
    %2122 = vmatpush1.bf16.msra.mxu0 %v1386
    %2123 = vmatprep.subr.bf16.mxu0 %v1381
    %2124 = vmatpush1.bf16.msra.mxu0 %v1380
    %2125 = vmatprep.subr.bf16.mxu0 %v1375
    %2126 = vmatpush1.bf16.msra.mxu0 %v1374
    %2127 = vmatprep.subr.bf16.mxu0 %v1369
    %2128 = vmatpush1.bf16.msra.mxu0 %v1368
    %2129 = vmatprep.subr.bf16.mxu0 %v1363
    %2130 = vmatpush1.bf16.msra.mxu0 %v1362
    %2131 = vmatprep.subr.bf16.mxu0 %v1357
    %2132 = vmatpush1.bf16.msra.mxu0 %v1356
    %2133 = vmatprep.subr.bf16.mxu0 %v1351
    %2134 = vmatpush1.bf16.msra.mxu0 %v1350
    %2135 = vmatprep.subr.bf16.mxu0 %v1345
    %2136 = vmatpush1.bf16.msra.mxu0 %v1344
    %2137 = vmatprep.subr.bf16.mxu0 %v1435
    %2138 = vmatpush2.bf16.msra.mxu0 %v1434
    %2139 = vmatprep.subr.bf16.mxu0 %v1429
    %2140 = vmatpush2.bf16.msra.mxu0 %v1428
    %2141 = vmatprep.subr.bf16.mxu0 %v1423
    %2142 = vmatpush2.bf16.msra.mxu0 %v1422
    %2143 = vmatprep.subr.bf16.mxu0 %v1417
    %2144 = vmatpush2.bf16.msra.mxu0 %v1416
    %2145 = vmatprep.subr.bf16.mxu0 %v1411
    %2146 = vmatpush2.bf16.msra.mxu0 %v1410
    %2147 = vmatprep.subr.bf16.mxu0 %v1405
    %2148 = vmatpush2.bf16.msra.mxu0 %v1404
    %2149 = vmatprep.subr.bf16.mxu0 %v1399
    %2150 = vmatpush2.bf16.msra.mxu0 %v1398
    %2151 = vmatprep.subr.bf16.mxu0 %v1393
    %2152 = vmatpush2.bf16.msra.mxu0 %v1392
    %2153 = vmatprep.mubr.bf16.mxu0 %v371
    %2154 = vmatmul.mubr.bf16.gmra.mxu0 %v370
    %v2155 = vpop.f32.mrf.mxu0
    %v2156 = vadd.f32 %v2113, %v2155
    %v2157 = vpop.f32.mrf.mxu0
    %v2158 = vadd.f32 %v2115, %v2157
    %v2159 = vpop.f32.mrf.mxu0
    %v2160 = vadd.f32 %v2117, %v2159
    %v2161 = vpop.f32.mrf.mxu0
    %v2162 = vadd.f32 %v2119, %v2161
    %2163 = vdwg.mxu0
    %2164 = vmatprep.subr.bf16.mxu0 %v1483
    %2165 = vmatpush1.bf16.msra.mxu0 %v1482
    %2166 = vmatprep.subr.bf16.mxu0 %v1477
    %2167 = vmatpush1.bf16.msra.mxu0 %v1476
    %2168 = vmatprep.subr.bf16.mxu0 %v1471
    %2169 = vmatpush1.bf16.msra.mxu0 %v1470
    %2170 = vmatprep.subr.bf16.mxu0 %v1465
    %2171 = vmatpush1.bf16.msra.mxu0 %v1464
    %2172 = vmatprep.subr.bf16.mxu0 %v1459
    %2173 = vmatpush1.bf16.msra.mxu0 %v1458
    %2174 = vmatprep.subr.bf16.mxu0 %v1453
    %2175 = vmatpush1.bf16.msra.mxu0 %v1452
    %2176 = vmatprep.subr.bf16.mxu0 %v1447
    %2177 = vmatpush1.bf16.msra.mxu0 %v1446
    %2178 = vmatprep.subr.bf16.mxu0 %v1441
    %2179 = vmatpush1.bf16.msra.mxu0 %v1440
    %2180 = vmatprep.subr.bf16.mxu0 %v1531
    %2181 = vmatpush2.bf16.msra.mxu0 %v1530
    %2182 = vmatprep.subr.bf16.mxu0 %v1525
    %2183 = vmatpush2.bf16.msra.mxu0 %v1524
    %2184 = vmatprep.subr.bf16.mxu0 %v1519
    %2185 = vmatpush2.bf16.msra.mxu0 %v1518
    %2186 = vmatprep.subr.bf16.mxu0 %v1513
    %2187 = vmatpush2.bf16.msra.mxu0 %v1512
    %2188 = vmatprep.subr.bf16.mxu0 %v1507
    %2189 = vmatpush2.bf16.msra.mxu0 %v1506
    %2190 = vmatprep.subr.bf16.mxu0 %v1501
    %2191 = vmatpush2.bf16.msra.mxu0 %v1500
    %2192 = vmatprep.subr.bf16.mxu0 %v1495
    %2193 = vmatpush2.bf16.msra.mxu0 %v1494
    %2194 = vmatprep.subr.bf16.mxu0 %v1489
    %2195 = vmatpush2.bf16.msra.mxu0 %v1488
    %2196 = vmatprep.mubr.bf16.mxu0 %v373
    %2197 = vmatmul.mubr.bf16.gmra.mxu0 %v372
    %v2198 = vpop.f32.mrf.mxu0
    %v2199 = vadd.f32 %v2156, %v2198
    %v2200 = vpop.f32.mrf.mxu0
    %v2201 = vadd.f32 %v2158, %v2200
    %v2202 = vpop.f32.mrf.mxu0
    %v2203 = vadd.f32 %v2160, %v2202
    %v2204 = vpop.f32.mrf.mxu0
    %v2205 = vadd.f32 %v2162, %v2204
    %2206 = vdwg.mxu0
    %v2207 = vld [vmem:[%s3] sm:$0xff]
    %v2208 = vld [vmem:[%s3 + $0x8] sm:$0xff]
    %v2209 = vld [vmem:[%s3 + $0x10] sm:$0xff]
    %v2210 = vld [vmem:[%s3 + $0x18] sm:$0xff]
    %v2211 = vld [vmem:[%s3 + $0x20] sm:$0xff]
    %v2212 = vld [vmem:[%s3 + $0x28] sm:$0xff]
    %v2213 = vld [vmem:[%s3 + $0x30] sm:$0xff]
    %v2214 = vld [vmem:[%s3 + $0x38] sm:$0xff]
    %v2215 = vld [vmem:[%s3 + $0x40] sm:$0xff]
    %v2216 = vld [vmem:[%s3 + $0x48] sm:$0xff]
    %v2217 = vld [vmem:[%s3 + $0x50] sm:$0xff]
    %v2218 = vld [vmem:[%s3 + $0x58] sm:$0xff]
    %v2219 = vadd.f32 %v1941, %v2207
    %v2220 = vadd.f32 %v1943, %v2208
    %v2221 = vadd.f32 %v2070, %v2209
    %v2222 = vadd.f32 %v2072, %v2210
    %v2223 = vadd.f32 %v2199, %v2211
    %v2224 = vadd.f32 %v2201, %v2212
    %v2225 = vadd.f32 %v1945, %v2213
    %v2226 = vadd.f32 %v1947, %v2214
    %v2227 = vadd.f32 %v2074, %v2215
    %v2228 = vadd.f32 %v2076, %v2216
    %v2229 = vadd.f32 %v2203, %v2217
    %v2230 = vadd.f32 %v2205, %v2218
    %v2231 = vadd.f32 %v2219, %v2220
    %v2232 = vadd.f32 %v2231, %v2221
    %v2233 = vadd.f32 %v2232, %v2222
    %v2234 = vadd.f32 %v2233, %v2223
    %v2235 = vadd.f32 %v2234, %v2224
    %2236 = vadd.xlane.f32.xlu0 %v2235
    %v2237 = vpop.xlane.xlu0 %2236
    %v2238 = vadd.f32 %v2225, %v2226
    %v2239 = vadd.f32 %v2238, %v2227
    %v2240 = vadd.f32 %v2239, %v2228
    %v2241 = vadd.f32 %v2240, %v2229
    %v2242 = vadd.f32 %v2241, %v2230
    %2243 = vadd.xlane.f32.xlu0 %v2242
    %v2244 = vpop.xlane.xlu0 %2243
    %v2245 = vrcp.pop 768.0
    %v2246 = vmul.f32 %v2237, %v2245
    %v2247 = vmul.f32 %v2244, %v2245
    %v2248 = vsub.f32 %v2219, %v2246
    %v2249 = vsub.f32 %v2220, %v2246
    %v2250 = vsub.f32 %v2221, %v2246
    %v2251 = vsub.f32 %v2222, %v2246
    %v2252 = vsub.f32 %v2223, %v2246
    %v2253 = vsub.f32 %v2224, %v2246
    %v2254 = vsub.f32 %v2225, %v2247
    %v2255 = vsub.f32 %v2226, %v2247
    %v2256 = vsub.f32 %v2227, %v2247
    %v2257 = vsub.f32 %v2228, %v2247
    %v2258 = vsub.f32 %v2229, %v2247
    %v2259 = vsub.f32 %v2230, %v2247
    %v2260 = vmul.f32 %v2248, %v2248
    %v2261 = vmul.f32 %v2249, %v2249
    %v2262 = vmul.f32 %v2250, %v2250
    %v2263 = vmul.f32 %v2251, %v2251
    %v2264 = vmul.f32 %v2252, %v2252
    %v2265 = vmul.f32 %v2253, %v2253
    %v2266 = vmul.f32 %v2254, %v2254
    %v2267 = vmul.f32 %v2255, %v2255
    %v2268 = vmul.f32 %v2256, %v2256
    %v2269 = vmul.f32 %v2257, %v2257
    %v2270 = vmul.f32 %v2258, %v2258
    %v2271 = vmul.f32 %v2259, %v2259
    %v2272 = vadd.f32 %v2260, %v2261
    %v2273 = vadd.f32 %v2272, %v2262
    %v2274 = vadd.f32 %v2273, %v2263
    %v2275 = vadd.f32 %v2274, %v2264
    %v2276 = vadd.f32 %v2275, %v2265
    %2277 = vadd.xlane.f32.xlu0 %v2276
    %v2278 = vpop.xlane.xlu0 %2277
    %v2279 = vadd.f32 %v2266, %v2267
    %v2280 = vadd.f32 %v2279, %v2268
    %v2281 = vadd.f32 %v2280, %v2269
    %v2282 = vadd.f32 %v2281, %v2270
    %v2283 = vadd.f32 %v2282, %v2271
    %2284 = vadd.xlane.f32.xlu0 %v2283
    %v2285 = vpop.xlane.xlu0 %2284
    %v2286 = vmul.f32 %v2278, %v2245
    %v2287 = vmul.f32 %v2285, %v2245
    %v2288 = vadd.f32 %v2286, 1e-05
    %v2289 = vadd.f32 %v2287, 1e-05
    %v2290 = vrsqrt.pop %v2288
    %v2291 = vrsqrt.pop %v2289
    %v2292 = vmul.f32 %v2248, %v2290
    %v2293 = vmul.f32 %v2249, %v2290
    %v2294 = vmul.f32 %v2250, %v2290
    %v2295 = vmul.f32 %v2251, %v2290
    %v2296 = vmul.f32 %v2252, %v2290
    %v2297 = vmul.f32 %v2253, %v2290
    %v2298 = vmul.f32 %v2254, %v2291
    %v2299 = vmul.f32 %v2255, %v2291
    %v2300 = vmul.f32 %v2256, %v2291
    %v2301 = vmul.f32 %v2257, %v2291
    %v2302 = vmul.f32 %v2258, %v2291
    %v2303 = vmul.f32 %v2259, %v2291
    %v2304 = vld [vmem:[%s4] sm:$0x3f]
    %v2306 = vlaneseq
    %v2307 = vshrl.u32 %v2306, 7
    %v2308 = vsub.s32 0, %v2307
    %v2309 = vrot.slane %v2304, %v2308
    %v2310 = vlaneseq
    %v2311 = vshrl.u32 %v2310, 7
    %v2312 = vsub.s32 1, %v2311
    %v2313 = vrot.slane %v2304, %v2312
    %v2314 = vlaneseq
    %v2315 = vshrl.u32 %v2314, 7
    %v2316 = vsub.s32 2, %v2315
    %v2317 = vrot.slane %v2304, %v2316
    %v2318 = vlaneseq
    %v2319 = vshrl.u32 %v2318, 7
    %v2320 = vsub.s32 3, %v2319
    %v2321 = vrot.slane %v2304, %v2320
    %v2322 = vlaneseq
    %v2323 = vshrl.u32 %v2322, 7
    %v2324 = vsub.s32 4, %v2323
    %v2325 = vrot.slane %v2304, %v2324
    %v2326 = vlaneseq
    %v2327 = vshrl.u32 %v2326, 7
    %v2328 = vsub.s32 5, %v2327
    %v2329 = vrot.slane %v2304, %v2328
    %v2336 = vmul.f32 %v2292, %v2309
    %v2337 = vmul.f32 %v2293, %v2313
    %v2338 = vmul.f32 %v2294, %v2317
    %v2339 = vmul.f32 %v2295, %v2321
    %v2340 = vmul.f32 %v2296, %v2325
    %v2341 = vmul.f32 %v2297, %v2329
    %v2342 = vmul.f32 %v2298, %v2309
    %v2343 = vmul.f32 %v2299, %v2313
    %v2344 = vmul.f32 %v2300, %v2317
    %v2345 = vmul.f32 %v2301, %v2321
    %v2346 = vmul.f32 %v2302, %v2325
    %v2347 = vmul.f32 %v2303, %v2329
    %v2348 = vld [vmem:[%s5] sm:$0x3f]
    %v2350 = vlaneseq
    %v2351 = vshrl.u32 %v2350, 7
    %v2352 = vsub.s32 0, %v2351
    %v2353 = vrot.slane %v2348, %v2352
    %v2354 = vlaneseq
    %v2355 = vshrl.u32 %v2354, 7
    %v2356 = vsub.s32 1, %v2355
    %v2357 = vrot.slane %v2348, %v2356
    %v2358 = vlaneseq
    %v2359 = vshrl.u32 %v2358, 7
    %v2360 = vsub.s32 2, %v2359
    %v2361 = vrot.slane %v2348, %v2360
    %v2362 = vlaneseq
    %v2363 = vshrl.u32 %v2362, 7
    %v2364 = vsub.s32 3, %v2363
    %v2365 = vrot.slane %v2348, %v2364
    %v2366 = vlaneseq
    %v2367 = vshrl.u32 %v2366, 7
    %v2368 = vsub.s32 4, %v2367
    %v2369 = vrot.slane %v2348, %v2368
    %v2370 = vlaneseq
    %v2371 = vshrl.u32 %v2370, 7
    %v2372 = vsub.s32 5, %v2371
    %v2373 = vrot.slane %v2348, %v2372
    %v2380 = vadd.f32 %v2336, %v2353
    %v2381 = vadd.f32 %v2337, %v2357
    %v2382 = vadd.f32 %v2338, %v2361
    %v2383 = vadd.f32 %v2339, %v2365
    %v2384 = vadd.f32 %v2340, %v2369
    %v2385 = vadd.f32 %v2341, %v2373
    %v2386 = vadd.f32 %v2342, %v2353
    %v2387 = vadd.f32 %v2343, %v2357
    %v2388 = vadd.f32 %v2344, %v2361
    %v2389 = vadd.f32 %v2345, %v2365
    %v2390 = vadd.f32 %v2346, %v2369
    %v2391 = vadd.f32 %v2347, %v2373
    %2392 = vst [vmem:[#allocation2] sm:$0xff] %v2380
    %2393 = vst [vmem:[#allocation2 + $0x8] sm:$0xff] %v2381
    %2394 = vst [vmem:[#allocation2 + $0x10] sm:$0xff] %v2382
    %2395 = vst [vmem:[#allocation2 + $0x18] sm:$0xff] %v2383
    %2396 = vst [vmem:[#allocation2 + $0x20] sm:$0xff] %v2384
    %2397 = vst [vmem:[#allocation2 + $0x28] sm:$0xff] %v2385
    %2398 = vst [vmem:[#allocation2 + $0x30] sm:$0xff] %v2386
    %2399 = vst [vmem:[#allocation2 + $0x38] sm:$0xff] %v2387
    %2400 = vst [vmem:[#allocation2 + $0x40] sm:$0xff] %v2388
    %2401 = vst [vmem:[#allocation2 + $0x48] sm:$0xff] %v2389
    %2402 = vst [vmem:[#allocation2 + $0x50] sm:$0xff] %v2390
    %2403 = vst [vmem:[#allocation2 + $0x58] sm:$0xff] %v2391
    // Predicated region
    $region26: #{multi_head_attention.5} parent=1 // pred_check
      _
    $region27: #{multi_head_attention.5} parent=1 // pred_check_branch
      %2405 = sbr.rel (0) target = $region29
    $region28: #{multi_head_attention.5} parent=1 // pred_region
      %s2407 = ssub.s32 1536, 1536
      %2408 = vsyncadd [#allocation3], %s2407
      %s2409 = sshll.u32 [#allocation2], 4
      %s2410 = int_to_ptr.vmem [resolvable:$true] %s2409
      %2415 = dma.vmem_to_hbm [thread:$0]  %s2410, 1536, %s6, [#allocation3], 768, 768, 48
    $region29: #{multi_head_attention.5} parent=1 // pred_fallthru
      _
    // Predicated region
    $region30: #{multi_head_attention.5} parent=1 // pred_check
      _
    $region31: #{multi_head_attention.5} parent=1 // pred_check_branch
      %2417 = sbr.rel (0) target = $region33
    $region32: #{multi_head_attention.5} parent=1 // pred_region
      %2418 = dma.done [#allocation3], 1536
    $region33: #{multi_head_attention.5} parent=1 // pred_fallthru
      _
    %2419 = vsyncpa [#allocation3], 1

// kernel: multi_head_attention.3
$region0: #{multi_head_attention.3}
  #allocation0 [shape = 'u32[]', space=smem, size = 0x4, offset = 0x4, fixed_abs, tag = 'smem constant byte address 0x4 - core index']
  #allocation1 [shape = 'u32[144,128]{1,0:T(1,128)}', space=vmem, size = 0x12000, scoped, tag = 'internal scratch']
  %s0 = inlined_call_operand.vmem [shape: f32[16,768], index: 0, kind: input, shape index: {}]
  %s1 = inlined_call_operand.vmem [shape: f32[16,768], index: 1, kind: input, shape index: {}]
  %s2 = inlined_call_operand.vmem [shape: f32[16,768], index: 2, kind: input, shape index: {}]
  %s3 = inlined_call_operand.vmem [shape: bf16[3,768,768], index: 3, kind: input, shape index: {}]
  %s4 = inlined_call_operand.vmem [shape: f32[3,1,768], index: 4, kind: input, shape index: {}]
  %s5 = inlined_call_operand.vmem [shape: bf16[16,768], index: 5, kind: output, shape index: {0}]
  %s6 = inlined_call_operand.vmem [shape: bf16[16,768], index: 6, kind: output, shape index: {1}]
  %s7 = inlined_call_operand.vmem [shape: bf16[16,768], index: 7, kind: output, shape index: {2}]
  %8 = xla_tuple %s5, %s6, %s7
  %s9 = sld [smem:[#allocation0]]
  $region46: #{multi_head_attention.3} parent=0
    _
  %s11 = ssub.s32 1, %s9
  %s12 = scalar_select 0, %s11, %s9
  // Predicated region
  $region2: #{multi_head_attention.3} parent=0 // pred_check
    _
  $region3: #{multi_head_attention.3} parent=0 // pred_check_branch
    %14 = sbr.rel (0) target = $region5
  $region4: #{multi_head_attention.3} parent=0 // pred_region
    _
  $region5: #{multi_head_attention.3} parent=0 // pred_fallthru
    _
  // Predicated region
  $region6: #{multi_head_attention.3} parent=0 // pred_check
    _
  $region7: #{multi_head_attention.3} parent=0 // pred_check_branch
    %16 = sbr.rel (0) target = $region9
  $region8: #{multi_head_attention.3} parent=0 // pred_region
    _
  $region9: #{multi_head_attention.3} parent=0 // pred_fallthru
    _
  // Predicated region
  $region10: #{multi_head_attention.3} parent=0 // pred_check
    _
  $region11: #{multi_head_attention.3} parent=0 // pred_check_branch
    %18 = sbr.rel (0) target = $region13
  $region12: #{multi_head_attention.3} parent=0 // pred_region
    _
  $region13: #{multi_head_attention.3} parent=0 // pred_fallthru
    _
  // Predicated region
  $region14: #{multi_head_attention.3} parent=0 // pred_check
    _
  $region15: #{multi_head_attention.3} parent=0 // pred_check_branch
    %20 = sbr.rel (0) target = $region17
  $region16: #{multi_head_attention.3} parent=0 // pred_region
    _
  $region17: #{multi_head_attention.3} parent=0 // pred_fallthru
    _
  // Predicated region
  $region18: #{multi_head_attention.3} parent=0 // pred_check
    _
  $region19: #{multi_head_attention.3} parent=0 // pred_check_branch
    %22 = sbr.rel (0) target = $region21
  $region20: #{multi_head_attention.3} parent=0 // pred_region
    _
  $region21: #{multi_head_attention.3} parent=0 // pred_fallthru
    _
  %v23 = vld [vmem:[%s0] sm:$0xff]
  %v24 = vld [vmem:[%s0 + $0x8] sm:$0xff]
  %v25 = vld [vmem:[%s0 + $0x10] sm:$0xff]
  %v26 = vld [vmem:[%s0 + $0x18] sm:$0xff]
  %v27 = vld [vmem:[%s0 + $0x20] sm:$0xff]
  %v28 = vld [vmem:[%s0 + $0x28] sm:$0xff]
  %v29 = vld [vmem:[%s0 + $0x30] sm:$0xff]
  %v30 = vld [vmem:[%s0 + $0x38] sm:$0xff]
  %v31 = vld [vmem:[%s0 + $0x40] sm:$0xff]
  %v32 = vld [vmem:[%s0 + $0x48] sm:$0xff]
  %v33 = vld [vmem:[%s0 + $0x50] sm:$0xff]
  %v34 = vld [vmem:[%s0 + $0x58] sm:$0xff]
  %v35 = vpack.c.bf16 %v29, %v23
  %v36 = vpack.c.bf16 %v30, %v24
  %v37 = vpack.c.bf16 %v31, %v25
  %v38 = vpack.c.bf16 %v32, %v26
  %v39 = vpack.c.bf16 %v33, %v27
  %v40 = vpack.c.bf16 %v34, %v28
  %v41 = vld [vmem:[%s1] sm:$0xff]
  %v42 = vld [vmem:[%s1 + $0x8] sm:$0xff]
  %v43 = vld [vmem:[%s1 + $0x10] sm:$0xff]
  %v44 = vld [vmem:[%s1 + $0x18] sm:$0xff]
  %v45 = vld [vmem:[%s1 + $0x20] sm:$0xff]
  %v46 = vld [vmem:[%s1 + $0x28] sm:$0xff]
  %v47 = vld [vmem:[%s1 + $0x30] sm:$0xff]
  %v48 = vld [vmem:[%s1 + $0x38] sm:$0xff]
  %v49 = vld [vmem:[%s1 + $0x40] sm:$0xff]
  %v50 = vld [vmem:[%s1 + $0x48] sm:$0xff]
  %v51 = vld [vmem:[%s1 + $0x50] sm:$0xff]
  %v52 = vld [vmem:[%s1 + $0x58] sm:$0xff]
  %v53 = vpack.c.bf16 %v47, %v41
  %v54 = vpack.c.bf16 %v48, %v42
  %v55 = vpack.c.bf16 %v49, %v43
  %v56 = vpack.c.bf16 %v50, %v44
  %v57 = vpack.c.bf16 %v51, %v45
  %v58 = vpack.c.bf16 %v52, %v46
  %v59 = vld [vmem:[%s2] sm:$0xff]
  %v60 = vld [vmem:[%s2 + $0x8] sm:$0xff]
  %v61 = vld [vmem:[%s2 + $0x10] sm:$0xff]
  %v62 = vld [vmem:[%s2 + $0x18] sm:$0xff]
  %v63 = vld [vmem:[%s2 + $0x20] sm:$0xff]
  %v64 = vld [vmem:[%s2 + $0x28] sm:$0xff]
  %v65 = vld [vmem:[%s2 + $0x30] sm:$0xff]
  %v66 = vld [vmem:[%s2 + $0x38] sm:$0xff]
  %v67 = vld [vmem:[%s2 + $0x40] sm:$0xff]
  %v68 = vld [vmem:[%s2 + $0x48] sm:$0xff]
  %v69 = vld [vmem:[%s2 + $0x50] sm:$0xff]
  %v70 = vld [vmem:[%s2 + $0x58] sm:$0xff]
  %v71 = vpack.c.bf16 %v65, %v59
  %v72 = vpack.c.bf16 %v66, %v60
  %v73 = vpack.c.bf16 %v67, %v61
  %v74 = vpack.c.bf16 %v68, %v62
  %v75 = vpack.c.bf16 %v69, %v63
  %v76 = vpack.c.bf16 %v70, %v64
  %v77 = vld [vmem:[%s3] sm:$0xff]
  %v78 = vld [vmem:[%s3 + $0x8] sm:$0xff]
  %v79 = vld [vmem:[%s3 + $0x10] sm:$0xff]
  %v80 = vld [vmem:[%s3 + $0x18] sm:$0xff]
  %v81 = vld [vmem:[%s3 + $0x20] sm:$0xff]
  %v82 = vld [vmem:[%s3 + $0x28] sm:$0xff]
  %v83 = vld [vmem:[%s3 + $0x30] sm:$0xff]
  %v84 = vld [vmem:[%s3 + $0x38] sm:$0xff]
  %v85 = vld [vmem:[%s3 + $0x40] sm:$0xff]
  %v86 = vld [vmem:[%s3 + $0x48] sm:$0xff]
  %v87 = vld [vmem:[%s3 + $0x50] sm:$0xff]
  %v88 = vld [vmem:[%s3 + $0x58] sm:$0xff]
  %v89 = vld [vmem:[%s3 + $0x60] sm:$0xff]
  %v90 = vld [vmem:[%s3 + $0x68] sm:$0xff]
  %v91 = vld [vmem:[%s3 + $0x70] sm:$0xff]
  %v92 = vld [vmem:[%s3 + $0x78] sm:$0xff]
  %v93 = vld [vmem:[%s3 + $0x80] sm:$0xff]
  %v94 = vld [vmem:[%s3 + $0x88] sm:$0xff]
  %v95 = vld [vmem:[%s3 + $0x90] sm:$0xff]
  %v96 = vld [vmem:[%s3 + $0x98] sm:$0xff]
  %v97 = vld [vmem:[%s3 + $0xa0] sm:$0xff]
  %v98 = vld [vmem:[%s3 + $0xa8] sm:$0xff]
  %v99 = vld [vmem:[%s3 + $0xb0] sm:$0xff]
  %v100 = vld [vmem:[%s3 + $0xb8] sm:$0xff]
  %v101 = vld [vmem:[%s3 + $0xc0] sm:$0xff]
  %v102 = vld [vmem:[%s3 + $0xc8] sm:$0xff]
  %v103 = vld [vmem:[%s3 + $0xd0] sm:$0xff]
  %v104 = vld [vmem:[%s3 + $0xd8] sm:$0xff]
  %v105 = vld [vmem:[%s3 + $0xe0] sm:$0xff]
  %v106 = vld [vmem:[%s3 + $0xe8] sm:$0xff]
  %v107 = vld [vmem:[%s3 + $0xf0] sm:$0xff]
  %v108 = vld [vmem:[%s3 + $0xf8] sm:$0xff]
  %v109 = vld [vmem:[%s3 + $0x100] sm:$0xff]
  %v110 = vld [vmem:[%s3 + $0x108] sm:$0xff]
  %v111 = vld [vmem:[%s3 + $0x110] sm:$0xff]
  %v112 = vld [vmem:[%s3 + $0x118] sm:$0xff]
  %v113 = vld [vmem:[%s3 + $0x120] sm:$0xff]
  %v114 = vld [vmem:[%s3 + $0x128] sm:$0xff]
  %v115 = vld [vmem:[%s3 + $0x130] sm:$0xff]
  %v116 = vld [vmem:[%s3 + $0x138] sm:$0xff]
  %v117 = vld [vmem:[%s3 + $0x140] sm:$0xff]
  %v118 = vld [vmem:[%s3 + $0x148] sm:$0xff]
  %v119 = vld [vmem:[%s3 + $0x150] sm:$0xff]
  %v120 = vld [vmem:[%s3 + $0x158] sm:$0xff]
  %v121 = vld [vmem:[%s3 + $0x160] sm:$0xff]
  %v122 = vld [vmem:[%s3 + $0x168] sm:$0xff]
  %v123 = vld [vmem:[%s3 + $0x170] sm:$0xff]
  %v124 = vld [vmem:[%s3 + $0x178] sm:$0xff]
  %v125 = vld [vmem:[%s3 + $0x180] sm:$0xff]
  %v126 = vld [vmem:[%s3 + $0x188] sm:$0xff]
  %v127 = vld [vmem:[%s3 + $0x190] sm:$0xff]
  %v128 = vld [vmem:[%s3 + $0x198] sm:$0xff]
  %v129 = vld [vmem:[%s3 + $0x1a0] sm:$0xff]
  %v130 = vld [vmem:[%s3 + $0x1a8] sm:$0xff]
  %v131 = vld [vmem:[%s3 + $0x1b0] sm:$0xff]
  %v132 = vld [vmem:[%s3 + $0x1b8] sm:$0xff]
  %v133 = vld [vmem:[%s3 + $0x1c0] sm:$0xff]
  %v134 = vld [vmem:[%s3 + $0x1c8] sm:$0xff]
  %v135 = vld [vmem:[%s3 + $0x1d0] sm:$0xff]
  %v136 = vld [vmem:[%s3 + $0x1d8] sm:$0xff]
  %v137 = vld [vmem:[%s3 + $0x1e0] sm:$0xff]
  %v138 = vld [vmem:[%s3 + $0x1e8] sm:$0xff]
  %v139 = vld [vmem:[%s3 + $0x1f0] sm:$0xff]
  %v140 = vld [vmem:[%s3 + $0x1f8] sm:$0xff]
  %v141 = vld [vmem:[%s3 + $0x200] sm:$0xff]
  %v142 = vld [vmem:[%s3 + $0x208] sm:$0xff]
  %v143 = vld [vmem:[%s3 + $0x210] sm:$0xff]
  %v144 = vld [vmem:[%s3 + $0x218] sm:$0xff]
  %v145 = vld [vmem:[%s3 + $0x220] sm:$0xff]
  %v146 = vld [vmem:[%s3 + $0x228] sm:$0xff]
  %v147 = vld [vmem:[%s3 + $0x230] sm:$0xff]
  %v148 = vld [vmem:[%s3 + $0x238] sm:$0xff]
  %v149 = vld [vmem:[%s3 + $0x240] sm:$0xff]
  %v150 = vld [vmem:[%s3 + $0x248] sm:$0xff]
  %v151 = vld [vmem:[%s3 + $0x250] sm:$0xff]
  %v152 = vld [vmem:[%s3 + $0x258] sm:$0xff]
  %v153 = vld [vmem:[%s3 + $0x260] sm:$0xff]
  %v154 = vld [vmem:[%s3 + $0x268] sm:$0xff]
  %v155 = vld [vmem:[%s3 + $0x270] sm:$0xff]
  %v156 = vld [vmem:[%s3 + $0x278] sm:$0xff]
  %v157 = vld [vmem:[%s3 + $0x280] sm:$0xff]
  %v158 = vld [vmem:[%s3 + $0x288] sm:$0xff]
  %v159 = vld [vmem:[%s3 + $0x290] sm:$0xff]
  %v160 = vld [vmem:[%s3 + $0x298] sm:$0xff]
  %v161 = vld [vmem:[%s3 + $0x2a0] sm:$0xff]
  %v162 = vld [vmem:[%s3 + $0x2a8] sm:$0xff]
  %v163 = vld [vmem:[%s3 + $0x2b0] sm:$0xff]
  %v164 = vld [vmem:[%s3 + $0x2b8] sm:$0xff]
  %v165 = vld [vmem:[%s3 + $0x2c0] sm:$0xff]
  %v166 = vld [vmem:[%s3 + $0x2c8] sm:$0xff]
  %v167 = vld [vmem:[%s3 + $0x2d0] sm:$0xff]
  %v168 = vld [vmem:[%s3 + $0x2d8] sm:$0xff]
  %v169 = vld [vmem:[%s3 + $0x2e0] sm:$0xff]
  %v170 = vld [vmem:[%s3 + $0x2e8] sm:$0xff]
  %v171 = vld [vmem:[%s3 + $0x2f0] sm:$0xff]
  %v172 = vld [vmem:[%s3 + $0x2f8] sm:$0xff]
  %v173 = vld [vmem:[%s3 + $0x300] sm:$0xff]
  %v174 = vld [vmem:[%s3 + $0x308] sm:$0xff]
  %v175 = vld [vmem:[%s3 + $0x310] sm:$0xff]
  %v176 = vld [vmem:[%s3 + $0x318] sm:$0xff]
  %v177 = vld [vmem:[%s3 + $0x320] sm:$0xff]
  %v178 = vld [vmem:[%s3 + $0x328] sm:$0xff]
  %v179 = vld [vmem:[%s3 + $0x330] sm:$0xff]
  %v180 = vld [vmem:[%s3 + $0x338] sm:$0xff]
  %v181 = vld [vmem:[%s3 + $0x340] sm:$0xff]
  %v182 = vld [vmem:[%s3 + $0x348] sm:$0xff]
  %v183 = vld [vmem:[%s3 + $0x350] sm:$0xff]
  %v184 = vld [vmem:[%s3 + $0x358] sm:$0xff]
  %v185 = vld [vmem:[%s3 + $0x360] sm:$0xff]
  %v186 = vld [vmem:[%s3 + $0x368] sm:$0xff]
  %v187 = vld [vmem:[%s3 + $0x370] sm:$0xff]
  %v188 = vld [vmem:[%s3 + $0x378] sm:$0xff]
  %v189 = vld [vmem:[%s3 + $0x380] sm:$0xff]
  %v190 = vld [vmem:[%s3 + $0x388] sm:$0xff]
  %v191 = vld [vmem:[%s3 + $0x390] sm:$0xff]
  %v192 = vld [vmem:[%s3 + $0x398] sm:$0xff]
  %v193 = vld [vmem:[%s3 + $0x3a0] sm:$0xff]
  %v194 = vld [vmem:[%s3 + $0x3a8] sm:$0xff]
  %v195 = vld [vmem:[%s3 + $0x3b0] sm:$0xff]
  %v196 = vld [vmem:[%s3 + $0x3b8] sm:$0xff]
  %v197 = vld [vmem:[%s3 + $0x3c0] sm:$0xff]
  %v198 = vld [vmem:[%s3 + $0x3c8] sm:$0xff]
  %v199 = vld [vmem:[%s3 + $0x3d0] sm:$0xff]
  %v200 = vld [vmem:[%s3 + $0x3d8] sm:$0xff]
  %v201 = vld [vmem:[%s3 + $0x3e0] sm:$0xff]
  %v202 = vld [vmem:[%s3 + $0x3e8] sm:$0xff]
  %v203 = vld [vmem:[%s3 + $0x3f0] sm:$0xff]
  %v204 = vld [vmem:[%s3 + $0x3f8] sm:$0xff]
  %v205 = vld [vmem:[%s3 + $0x400] sm:$0xff]
  %v206 = vld [vmem:[%s3 + $0x408] sm:$0xff]
  %v207 = vld [vmem:[%s3 + $0x410] sm:$0xff]
  %v208 = vld [vmem:[%s3 + $0x418] sm:$0xff]
  %v209 = vld [vmem:[%s3 + $0x420] sm:$0xff]
  %v210 = vld [vmem:[%s3 + $0x428] sm:$0xff]
  %v211 = vld [vmem:[%s3 + $0x430] sm:$0xff]
  %v212 = vld [vmem:[%s3 + $0x438] sm:$0xff]
  %v213 = vld [vmem:[%s3 + $0x440] sm:$0xff]
  %v214 = vld [vmem:[%s3 + $0x448] sm:$0xff]
  %v215 = vld [vmem:[%s3 + $0x450] sm:$0xff]
  %v216 = vld [vmem:[%s3 + $0x458] sm:$0xff]
  %v217 = vld [vmem:[%s3 + $0x460] sm:$0xff]
  %v218 = vld [vmem:[%s3 + $0x468] sm:$0xff]
  %v219 = vld [vmem:[%s3 + $0x470] sm:$0xff]
  %v220 = vld [vmem:[%s3 + $0x478] sm:$0xff]
  %v221 = vld [vmem:[%s3 + $0x480] sm:$0xff]
  %v222 = vld [vmem:[%s3 + $0x488] sm:$0xff]
  %v223 = vld [vmem:[%s3 + $0x490] sm:$0xff]
  %v224 = vld [vmem:[%s3 + $0x498] sm:$0xff]
  %v225 = vld [vmem:[%s3 + $0x4a0] sm:$0xff]
  %v226 = vld [vmem:[%s3 + $0x4a8] sm:$0xff]
  %v227 = vld [vmem:[%s3 + $0x4b0] sm:$0xff]
  %v228 = vld [vmem:[%s3 + $0x4b8] sm:$0xff]
  %v229 = vld [vmem:[%s3 + $0x4c0] sm:$0xff]
  %v230 = vld [vmem:[%s3 + $0x4c8] sm:$0xff]
  %v231 = vld [vmem:[%s3 + $0x4d0] sm:$0xff]
  %v232 = vld [vmem:[%s3 + $0x4d8] sm:$0xff]
  %v233 = vld [vmem:[%s3 + $0x4e0] sm:$0xff]
  %v234 = vld [vmem:[%s3 + $0x4e8] sm:$0xff]
  %v235 = vld [vmem:[%s3 + $0x4f0] sm:$0xff]
  %v236 = vld [vmem:[%s3 + $0x4f8] sm:$0xff]
  %v237 = vld [vmem:[%s3 + $0x500] sm:$0xff]
  %v238 = vld [vmem:[%s3 + $0x508] sm:$0xff]
  %v239 = vld [vmem:[%s3 + $0x510] sm:$0xff]
  %v240 = vld [vmem:[%s3 + $0x518] sm:$0xff]
  %v241 = vld [vmem:[%s3 + $0x520] sm:$0xff]
  %v242 = vld [vmem:[%s3 + $0x528] sm:$0xff]
  %v243 = vld [vmem:[%s3 + $0x530] sm:$0xff]
  %v244 = vld [vmem:[%s3 + $0x538] sm:$0xff]
  %v245 = vld [vmem:[%s3 + $0x540] sm:$0xff]
  %v246 = vld [vmem:[%s3 + $0x548] sm:$0xff]
  %v247 = vld [vmem:[%s3 + $0x550] sm:$0xff]
  %v248 = vld [vmem:[%s3 + $0x558] sm:$0xff]
  %v249 = vld [vmem:[%s3 + $0x560] sm:$0xff]
  %v250 = vld [vmem:[%s3 + $0x568] sm:$0xff]
  %v251 = vld [vmem:[%s3 + $0x570] sm:$0xff]
  %v252 = vld [vmem:[%s3 + $0x578] sm:$0xff]
  %v253 = vld [vmem:[%s3 + $0x580] sm:$0xff]
  %v254 = vld [vmem:[%s3 + $0x588] sm:$0xff]
  %v255 = vld [vmem:[%s3 + $0x590] sm:$0xff]
  %v256 = vld [vmem:[%s3 + $0x598] sm:$0xff]
  %v257 = vld [vmem:[%s3 + $0x5a0] sm:$0xff]
  %v258 = vld [vmem:[%s3 + $0x5a8] sm:$0xff]
  %v259 = vld [vmem:[%s3 + $0x5b0] sm:$0xff]
  %v260 = vld [vmem:[%s3 + $0x5b8] sm:$0xff]
  %v261 = vld [vmem:[%s3 + $0x5c0] sm:$0xff]
  %v262 = vld [vmem:[%s3 + $0x5c8] sm:$0xff]
  %v263 = vld [vmem:[%s3 + $0x5d0] sm:$0xff]
  %v264 = vld [vmem:[%s3 + $0x5d8] sm:$0xff]
  %v265 = vld [vmem:[%s3 + $0x5e0] sm:$0xff]
  %v266 = vld [vmem:[%s3 + $0x5e8] sm:$0xff]
  %v267 = vld [vmem:[%s3 + $0x5f0] sm:$0xff]
  %v268 = vld [vmem:[%s3 + $0x5f8] sm:$0xff]
  %v269 = vld [vmem:[%s3 + $0x600] sm:$0xff]
  %v270 = vld [vmem:[%s3 + $0x608] sm:$0xff]
  %v271 = vld [vmem:[%s3 + $0x610] sm:$0xff]
  %v272 = vld [vmem:[%s3 + $0x618] sm:$0xff]
  %v273 = vld [vmem:[%s3 + $0x620] sm:$0xff]
  %v274 = vld [vmem:[%s3 + $0x628] sm:$0xff]
  %v275 = vld [vmem:[%s3 + $0x630] sm:$0xff]
  %v276 = vld [vmem:[%s3 + $0x638] sm:$0xff]
  %v277 = vld [vmem:[%s3 + $0x640] sm:$0xff]
  %v278 = vld [vmem:[%s3 + $0x648] sm:$0xff]
  %v279 = vld [vmem:[%s3 + $0x650] sm:$0xff]
  %v280 = vld [vmem:[%s3 + $0x658] sm:$0xff]
  %v281 = vld [vmem:[%s3 + $0x660] sm:$0xff]
  %v282 = vld [vmem:[%s3 + $0x668] sm:$0xff]
  %v283 = vld [vmem:[%s3 + $0x670] sm:$0xff]
  %v284 = vld [vmem:[%s3 + $0x678] sm:$0xff]
  %v285 = vld [vmem:[%s3 + $0x680] sm:$0xff]
  %v286 = vld [vmem:[%s3 + $0x688] sm:$0xff]
  %v287 = vld [vmem:[%s3 + $0x690] sm:$0xff]
  %v288 = vld [vmem:[%s3 + $0x698] sm:$0xff]
  %v289 = vld [vmem:[%s3 + $0x6a0] sm:$0xff]
  %v290 = vld [vmem:[%s3 + $0x6a8] sm:$0xff]
  %v291 = vld [vmem:[%s3 + $0x6b0] sm:$0xff]
  %v292 = vld [vmem:[%s3 + $0x6b8] sm:$0xff]
  %v293 = vld [vmem:[%s3 + $0x6c0] sm:$0xff]
  %v294 = vld [vmem:[%s3 + $0x6c8] sm:$0xff]
  %v295 = vld [vmem:[%s3 + $0x6d0] sm:$0xff]
  %v296 = vld [vmem:[%s3 + $0x6d8] sm:$0xff]
  %v297 = vld [vmem:[%s3 + $0x6e0] sm:$0xff]
  %v298 = vld [vmem:[%s3 + $0x6e8] sm:$0xff]
  %v299 = vld [vmem:[%s3 + $0x6f0] sm:$0xff]
  %v300 = vld [vmem:[%s3 + $0x6f8] sm:$0xff]
  %v301 = vld [vmem:[%s3 + $0x700] sm:$0xff]
  %v302 = vld [vmem:[%s3 + $0x708] sm:$0xff]
  %v303 = vld [vmem:[%s3 + $0x710] sm:$0xff]
  %v304 = vld [vmem:[%s3 + $0x718] sm:$0xff]
  %v305 = vld [vmem:[%s3 + $0x720] sm:$0xff]
  %v306 = vld [vmem:[%s3 + $0x728] sm:$0xff]
  %v307 = vld [vmem:[%s3 + $0x730] sm:$0xff]
  %v308 = vld [vmem:[%s3 + $0x738] sm:$0xff]
  %v309 = vld [vmem:[%s3 + $0x740] sm:$0xff]
  %v310 = vld [vmem:[%s3 + $0x748] sm:$0xff]
  %v311 = vld [vmem:[%s3 + $0x750] sm:$0xff]
  %v312 = vld [vmem:[%s3 + $0x758] sm:$0xff]
  %v313 = vld [vmem:[%s3 + $0x760] sm:$0xff]
  %v314 = vld [vmem:[%s3 + $0x768] sm:$0xff]
  %v315 = vld [vmem:[%s3 + $0x770] sm:$0xff]
  %v316 = vld [vmem:[%s3 + $0x778] sm:$0xff]
  %v317 = vld [vmem:[%s3 + $0x780] sm:$0xff]
  %v318 = vld [vmem:[%s3 + $0x788] sm:$0xff]
  %v319 = vld [vmem:[%s3 + $0x790] sm:$0xff]
  %v320 = vld [vmem:[%s3 + $0x798] sm:$0xff]
  %v321 = vld [vmem:[%s3 + $0x7a0] sm:$0xff]
  %v322 = vld [vmem:[%s3 + $0x7a8] sm:$0xff]
  %v323 = vld [vmem:[%s3 + $0x7b0] sm:$0xff]
  %v324 = vld [vmem:[%s3 + $0x7b8] sm:$0xff]
  %v325 = vld [vmem:[%s3 + $0x7c0] sm:$0xff]
  %v326 = vld [vmem:[%s3 + $0x7c8] sm:$0xff]
  %v327 = vld [vmem:[%s3 + $0x7d0] sm:$0xff]
  %v328 = vld [vmem:[%s3 + $0x7d8] sm:$0xff]
  %v329 = vld [vmem:[%s3 + $0x7e0] sm:$0xff]
  %v330 = vld [vmem:[%s3 + $0x7e8] sm:$0xff]
  %v331 = vld [vmem:[%s3 + $0x7f0] sm:$0xff]
  %v332 = vld [vmem:[%s3 + $0x7f8] sm:$0xff]
  %v333 = vld [vmem:[%s3 + $0x800] sm:$0xff]
  %v334 = vld [vmem:[%s3 + $0x808] sm:$0xff]
  %v335 = vld [vmem:[%s3 + $0x810] sm:$0xff]
  %v336 = vld [vmem:[%s3 + $0x818] sm:$0xff]
  %v337 = vld [vmem:[%s3 + $0x820] sm:$0xff]
  %v338 = vld [vmem:[%s3 + $0x828] sm:$0xff]
  %v339 = vld [vmem:[%s3 + $0x830] sm:$0xff]
  %v340 = vld [vmem:[%s3 + $0x838] sm:$0xff]
  %v341 = vld [vmem:[%s3 + $0x840] sm:$0xff]
  %v342 = vld [vmem:[%s3 + $0x848] sm:$0xff]
  %v343 = vld [vmem:[%s3 + $0x850] sm:$0xff]
  %v344 = vld [vmem:[%s3 + $0x858] sm:$0xff]
  %v345 = vld [vmem:[%s3 + $0x860] sm:$0xff]
  %v346 = vld [vmem:[%s3 + $0x868] sm:$0xff]
  %v347 = vld [vmem:[%s3 + $0x870] sm:$0xff]
  %v348 = vld [vmem:[%s3 + $0x878] sm:$0xff]
  %v349 = vld [vmem:[%s3 + $0x880] sm:$0xff]
  %v350 = vld [vmem:[%s3 + $0x888] sm:$0xff]
  %v351 = vld [vmem:[%s3 + $0x890] sm:$0xff]
  %v352 = vld [vmem:[%s3 + $0x898] sm:$0xff]
  %v353 = vld [vmem:[%s3 + $0x8a0] sm:$0xff]
  %v354 = vld [vmem:[%s3 + $0x8a8] sm:$0xff]
  %v355 = vld [vmem:[%s3 + $0x8b0] sm:$0xff]
  %v356 = vld [vmem:[%s3 + $0x8b8] sm:$0xff]
  %v357 = vld [vmem:[%s3 + $0x8c0] sm:$0xff]
  %v358 = vld [vmem:[%s3 + $0x8c8] sm:$0xff]
  %v359 = vld [vmem:[%s3 + $0x8d0] sm:$0xff]
  %v360 = vld [vmem:[%s3 + $0x8d8] sm:$0xff]
  %v361 = vld [vmem:[%s3 + $0x8e0] sm:$0xff]
  %v362 = vld [vmem:[%s3 + $0x8e8] sm:$0xff]
  %v363 = vld [vmem:[%s3 + $0x8f0] sm:$0xff]
  %v364 = vld [vmem:[%s3 + $0x8f8] sm:$0xff]
  %v365 = vld [vmem:[%s4] sm:$0x3f]
  %v367 = vlaneseq
  %v368 = vshrl.u32 %v367, 7
  %v369 = vsub.s32 0, %v368
  %v370 = vrot.slane %v365, %v369
  %v371 = vlaneseq
  %v372 = vshrl.u32 %v371, 7
  %v373 = vsub.s32 1, %v372
  %v374 = vrot.slane %v365, %v373
  %v375 = vlaneseq
  %v376 = vshrl.u32 %v375, 7
  %v377 = vsub.s32 2, %v376
  %v378 = vrot.slane %v365, %v377
  %v379 = vlaneseq
  %v380 = vshrl.u32 %v379, 7
  %v381 = vsub.s32 3, %v380
  %v382 = vrot.slane %v365, %v381
  %v383 = vlaneseq
  %v384 = vshrl.u32 %v383, 7
  %v385 = vsub.s32 4, %v384
  %v386 = vrot.slane %v365, %v385
  %v387 = vlaneseq
  %v388 = vshrl.u32 %v387, 7
  %v389 = vsub.s32 5, %v388
  %v390 = vrot.slane %v365, %v389
  %v685 = vunpack.c.l.b16 %v77
  %v686 = vunpack.c.h.b16 %v77
  %v687 = vunpack.c.l.b16 %v78
  %v688 = vunpack.c.h.b16 %v78
  %v689 = vunpack.c.l.b16 %v79
  %v690 = vunpack.c.h.b16 %v79
  %v691 = vunpack.c.l.b16 %v80
  %v692 = vunpack.c.h.b16 %v80
  %v693 = vunpack.c.l.b16 %v81
  %v694 = vunpack.c.h.b16 %v81
  %v695 = vunpack.c.l.b16 %v82
  %v696 = vunpack.c.h.b16 %v82
  %v697 = vunpack.c.l.b16 %v83
  %v698 = vunpack.c.h.b16 %v83
  %v699 = vunpack.c.l.b16 %v84
  %v700 = vunpack.c.h.b16 %v84
  %v701 = vunpack.c.l.b16 %v85
  %v702 = vunpack.c.h.b16 %v85
  %v703 = vunpack.c.l.b16 %v86
  %v704 = vunpack.c.h.b16 %v86
  %v705 = vunpack.c.l.b16 %v87
  %v706 = vunpack.c.h.b16 %v87
  %v707 = vunpack.c.l.b16 %v88
  %v708 = vunpack.c.h.b16 %v88
  %v709 = vunpack.c.l.b16 %v89
  %v710 = vunpack.c.h.b16 %v89
  %v711 = vunpack.c.l.b16 %v90
  %v712 = vunpack.c.h.b16 %v90
  %v713 = vunpack.c.l.b16 %v91
  %v714 = vunpack.c.h.b16 %v91
  %v715 = vunpack.c.l.b16 %v92
  %v716 = vunpack.c.h.b16 %v92
  %v717 = vunpack.c.l.b16 %v93
  %v718 = vunpack.c.h.b16 %v93
  %v719 = vunpack.c.l.b16 %v94
  %v720 = vunpack.c.h.b16 %v94
  %v721 = vunpack.c.l.b16 %v95
  %v722 = vunpack.c.h.b16 %v95
  %v723 = vunpack.c.l.b16 %v96
  %v724 = vunpack.c.h.b16 %v96
  %v725 = vunpack.c.l.b16 %v97
  %v726 = vunpack.c.h.b16 %v97
  %v727 = vunpack.c.l.b16 %v98
  %v728 = vunpack.c.h.b16 %v98
  %v729 = vunpack.c.l.b16 %v99
  %v730 = vunpack.c.h.b16 %v99
  %v731 = vunpack.c.l.b16 %v100
  %v732 = vunpack.c.h.b16 %v100
  %v733 = vunpack.c.l.b16 %v101
  %v734 = vunpack.c.h.b16 %v101
  %v735 = vunpack.c.l.b16 %v102
  %v736 = vunpack.c.h.b16 %v102
  %v737 = vunpack.c.l.b16 %v103
  %v738 = vunpack.c.h.b16 %v103
  %v739 = vunpack.c.l.b16 %v104
  %v740 = vunpack.c.h.b16 %v104
  %v741 = vunpack.c.l.b16 %v105
  %v742 = vunpack.c.h.b16 %v105
  %v743 = vunpack.c.l.b16 %v106
  %v744 = vunpack.c.h.b16 %v106
  %v745 = vunpack.c.l.b16 %v107
  %v746 = vunpack.c.h.b16 %v107
  %v747 = vunpack.c.l.b16 %v108
  %v748 = vunpack.c.h.b16 %v108
  %v749 = vunpack.c.l.b16 %v109
  %v750 = vunpack.c.h.b16 %v109
  %v751 = vunpack.c.l.b16 %v110
  %v752 = vunpack.c.h.b16 %v110
  %v753 = vunpack.c.l.b16 %v111
  %v754 = vunpack.c.h.b16 %v111
  %v755 = vunpack.c.l.b16 %v112
  %v756 = vunpack.c.h.b16 %v112
  %v757 = vunpack.c.l.b16 %v113
  %v758 = vunpack.c.h.b16 %v113
  %v759 = vunpack.c.l.b16 %v114
  %v760 = vunpack.c.h.b16 %v114
  %v761 = vunpack.c.l.b16 %v115
  %v762 = vunpack.c.h.b16 %v115
  %v763 = vunpack.c.l.b16 %v116
  %v764 = vunpack.c.h.b16 %v116
  %v765 = vunpack.c.l.b16 %v117
  %v766 = vunpack.c.h.b16 %v117
  %v767 = vunpack.c.l.b16 %v118
  %v768 = vunpack.c.h.b16 %v118
  %v769 = vunpack.c.l.b16 %v119
  %v770 = vunpack.c.h.b16 %v119
  %v771 = vunpack.c.l.b16 %v120
  %v772 = vunpack.c.h.b16 %v120
  %v773 = vunpack.c.l.b16 %v121
  %v774 = vunpack.c.h.b16 %v121
  %v775 = vunpack.c.l.b16 %v122
  %v776 = vunpack.c.h.b16 %v122
  %v777 = vunpack.c.l.b16 %v123
  %v778 = vunpack.c.h.b16 %v123
  %v779 = vunpack.c.l.b16 %v124
  %v780 = vunpack.c.h.b16 %v124
  %v781 = vunpack.c.l.b16 %v125
  %v782 = vunpack.c.h.b16 %v125
  %v783 = vunpack.c.l.b16 %v126
  %v784 = vunpack.c.h.b16 %v126
  %v785 = vunpack.c.l.b16 %v127
  %v786 = vunpack.c.h.b16 %v127
  %v787 = vunpack.c.l.b16 %v128
  %v788 = vunpack.c.h.b16 %v128
  %v789 = vunpack.c.l.b16 %v129
  %v790 = vunpack.c.h.b16 %v129
  %v791 = vunpack.c.l.b16 %v130
  %v792 = vunpack.c.h.b16 %v130
  %v793 = vunpack.c.l.b16 %v131
  %v794 = vunpack.c.h.b16 %v131
  %v795 = vunpack.c.l.b16 %v132
  %v796 = vunpack.c.h.b16 %v132
  %v797 = vunpack.c.l.b16 %v133
  %v798 = vunpack.c.h.b16 %v133
  %v799 = vunpack.c.l.b16 %v134
  %v800 = vunpack.c.h.b16 %v134
  %v801 = vunpack.c.l.b16 %v135
  %v802 = vunpack.c.h.b16 %v135
  %v803 = vunpack.c.l.b16 %v136
  %v804 = vunpack.c.h.b16 %v136
  %v805 = vunpack.c.l.b16 %v137
  %v806 = vunpack.c.h.b16 %v137
  %v807 = vunpack.c.l.b16 %v138
  %v808 = vunpack.c.h.b16 %v138
  %v809 = vunpack.c.l.b16 %v139
  %v810 = vunpack.c.h.b16 %v139
  %v811 = vunpack.c.l.b16 %v140
  %v812 = vunpack.c.h.b16 %v140
  %v813 = vunpack.c.l.b16 %v141
  %v814 = vunpack.c.h.b16 %v141
  %v815 = vunpack.c.l.b16 %v142
  %v816 = vunpack.c.h.b16 %v142
  %v817 = vunpack.c.l.b16 %v143
  %v818 = vunpack.c.h.b16 %v143
  %v819 = vunpack.c.l.b16 %v144
  %v820 = vunpack.c.h.b16 %v144
  %v821 = vunpack.c.l.b16 %v145
  %v822 = vunpack.c.h.b16 %v145
  %v823 = vunpack.c.l.b16 %v146
  %v824 = vunpack.c.h.b16 %v146
  %v825 = vunpack.c.l.b16 %v147
  %v826 = vunpack.c.h.b16 %v147
  %v827 = vunpack.c.l.b16 %v148
  %v828 = vunpack.c.h.b16 %v148
  %v829 = vunpack.c.l.b16 %v149
  %v830 = vunpack.c.h.b16 %v149
  %v831 = vunpack.c.l.b16 %v150
  %v832 = vunpack.c.h.b16 %v150
  %v833 = vunpack.c.l.b16 %v151
  %v834 = vunpack.c.h.b16 %v151
  %v835 = vunpack.c.l.b16 %v152
  %v836 = vunpack.c.h.b16 %v152
  %v837 = vunpack.c.l.b16 %v153
  %v838 = vunpack.c.h.b16 %v153
  %v839 = vunpack.c.l.b16 %v154
  %v840 = vunpack.c.h.b16 %v154
  %v841 = vunpack.c.l.b16 %v155
  %v842 = vunpack.c.h.b16 %v155
  %v843 = vunpack.c.l.b16 %v156
  %v844 = vunpack.c.h.b16 %v156
  %v845 = vunpack.c.l.b16 %v157
  %v846 = vunpack.c.h.b16 %v157
  %v847 = vunpack.c.l.b16 %v158
  %v848 = vunpack.c.h.b16 %v158
  %v849 = vunpack.c.l.b16 %v159
  %v850 = vunpack.c.h.b16 %v159
  %v851 = vunpack.c.l.b16 %v160
  %v852 = vunpack.c.h.b16 %v160
  %v853 = vunpack.c.l.b16 %v161
  %v854 = vunpack.c.h.b16 %v161
  %v855 = vunpack.c.l.b16 %v162
  %v856 = vunpack.c.h.b16 %v162
  %v857 = vunpack.c.l.b16 %v163
  %v858 = vunpack.c.h.b16 %v163
  %v859 = vunpack.c.l.b16 %v164
  %v860 = vunpack.c.h.b16 %v164
  %v861 = vunpack.c.l.b16 %v165
  %v862 = vunpack.c.h.b16 %v165
  %v863 = vunpack.c.l.b16 %v166
  %v864 = vunpack.c.h.b16 %v166
  %v865 = vunpack.c.l.b16 %v167
  %v866 = vunpack.c.h.b16 %v167
  %v867 = vunpack.c.l.b16 %v168
  %v868 = vunpack.c.h.b16 %v168
  %v869 = vunpack.c.l.b16 %v169
  %v870 = vunpack.c.h.b16 %v169
  %v871 = vunpack.c.l.b16 %v170
  %v872 = vunpack.c.h.b16 %v170
  %v873 = vunpack.c.l.b16 %v171
  %v874 = vunpack.c.h.b16 %v171
  %v875 = vunpack.c.l.b16 %v172
  %v876 = vunpack.c.h.b16 %v172
  %v877 = vunpack.c.l.b16 %v173
  %v878 = vunpack.c.h.b16 %v173
  %v879 = vunpack.c.l.b16 %v174
  %v880 = vunpack.c.h.b16 %v174
  %v881 = vunpack.c.l.b16 %v175
  %v882 = vunpack.c.h.b16 %v175
  %v883 = vunpack.c.l.b16 %v176
  %v884 = vunpack.c.h.b16 %v176
  %v885 = vunpack.c.l.b16 %v177
  %v886 = vunpack.c.h.b16 %v177
  %v887 = vunpack.c.l.b16 %v178
  %v888 = vunpack.c.h.b16 %v178
  %v889 = vunpack.c.l.b16 %v179
  %v890 = vunpack.c.h.b16 %v179
  %v891 = vunpack.c.l.b16 %v180
  %v892 = vunpack.c.h.b16 %v180
  %v893 = vunpack.c.l.b16 %v181
  %v894 = vunpack.c.h.b16 %v181
  %v895 = vunpack.c.l.b16 %v182
  %v896 = vunpack.c.h.b16 %v182
  %v897 = vunpack.c.l.b16 %v183
  %v898 = vunpack.c.h.b16 %v183
  %v899 = vunpack.c.l.b16 %v184
  %v900 = vunpack.c.h.b16 %v184
  %v901 = vunpack.c.l.b16 %v185
  %v902 = vunpack.c.h.b16 %v185
  %v903 = vunpack.c.l.b16 %v186
  %v904 = vunpack.c.h.b16 %v186
  %v905 = vunpack.c.l.b16 %v187
  %v906 = vunpack.c.h.b16 %v187
  %v907 = vunpack.c.l.b16 %v188
  %v908 = vunpack.c.h.b16 %v188
  %v909 = vunpack.c.l.b16 %v189
  %v910 = vunpack.c.h.b16 %v189
  %v911 = vunpack.c.l.b16 %v190
  %v912 = vunpack.c.h.b16 %v190
  %v913 = vunpack.c.l.b16 %v191
  %v914 = vunpack.c.h.b16 %v191
  %v915 = vunpack.c.l.b16 %v192
  %v916 = vunpack.c.h.b16 %v192
  %v917 = vunpack.c.l.b16 %v193
  %v918 = vunpack.c.h.b16 %v193
  %v919 = vunpack.c.l.b16 %v194
  %v920 = vunpack.c.h.b16 %v194
  %v921 = vunpack.c.l.b16 %v195
  %v922 = vunpack.c.h.b16 %v195
  %v923 = vunpack.c.l.b16 %v196
  %v924 = vunpack.c.h.b16 %v196
  %v925 = vunpack.c.l.b16 %v197
  %v926 = vunpack.c.h.b16 %v197
  %v927 = vunpack.c.l.b16 %v198
  %v928 = vunpack.c.h.b16 %v198
  %v929 = vunpack.c.l.b16 %v199
  %v930 = vunpack.c.h.b16 %v199
  %v931 = vunpack.c.l.b16 %v200
  %v932 = vunpack.c.h.b16 %v200
  %v933 = vunpack.c.l.b16 %v201
  %v934 = vunpack.c.h.b16 %v201
  %v935 = vunpack.c.l.b16 %v202
  %v936 = vunpack.c.h.b16 %v202
  %v937 = vunpack.c.l.b16 %v203
  %v938 = vunpack.c.h.b16 %v203
  %v939 = vunpack.c.l.b16 %v204
  %v940 = vunpack.c.h.b16 %v204
  %v941 = vunpack.c.l.b16 %v205
  %v942 = vunpack.c.h.b16 %v205
  %v943 = vunpack.c.l.b16 %v206
  %v944 = vunpack.c.h.b16 %v206
  %v945 = vunpack.c.l.b16 %v207
  %v946 = vunpack.c.h.b16 %v207
  %v947 = vunpack.c.l.b16 %v208
  %v948 = vunpack.c.h.b16 %v208
  %v949 = vunpack.c.l.b16 %v209
  %v950 = vunpack.c.h.b16 %v209
  %v951 = vunpack.c.l.b16 %v210
  %v952 = vunpack.c.h.b16 %v210
  %v953 = vunpack.c.l.b16 %v211
  %v954 = vunpack.c.h.b16 %v211
  %v955 = vunpack.c.l.b16 %v212
  %v956 = vunpack.c.h.b16 %v212
  %v957 = vunpack.c.l.b16 %v213
  %v958 = vunpack.c.h.b16 %v213
  %v959 = vunpack.c.l.b16 %v214
  %v960 = vunpack.c.h.b16 %v214
  %v961 = vunpack.c.l.b16 %v215
  %v962 = vunpack.c.h.b16 %v215
  %v963 = vunpack.c.l.b16 %v216
  %v964 = vunpack.c.h.b16 %v216
  %v965 = vunpack.c.l.b16 %v217
  %v966 = vunpack.c.h.b16 %v217
  %v967 = vunpack.c.l.b16 %v218
  %v968 = vunpack.c.h.b16 %v218
  %v969 = vunpack.c.l.b16 %v219
  %v970 = vunpack.c.h.b16 %v219
  %v971 = vunpack.c.l.b16 %v220
  %v972 = vunpack.c.h.b16 %v220
  %v973 = vunpack.c.l.b16 %v221
  %v974 = vunpack.c.h.b16 %v221
  %v975 = vunpack.c.l.b16 %v222
  %v976 = vunpack.c.h.b16 %v222
  %v977 = vunpack.c.l.b16 %v223
  %v978 = vunpack.c.h.b16 %v223
  %v979 = vunpack.c.l.b16 %v224
  %v980 = vunpack.c.h.b16 %v224
  %v981 = vunpack.c.l.b16 %v225
  %v982 = vunpack.c.h.b16 %v225
  %v983 = vunpack.c.l.b16 %v226
  %v984 = vunpack.c.h.b16 %v226
  %v985 = vunpack.c.l.b16 %v227
  %v986 = vunpack.c.h.b16 %v227
  %v987 = vunpack.c.l.b16 %v228
  %v988 = vunpack.c.h.b16 %v228
  %v989 = vunpack.c.l.b16 %v229
  %v990 = vunpack.c.h.b16 %v229
  %v991 = vunpack.c.l.b16 %v230
  %v992 = vunpack.c.h.b16 %v230
  %v993 = vunpack.c.l.b16 %v231
  %v994 = vunpack.c.h.b16 %v231
  %v995 = vunpack.c.l.b16 %v232
  %v996 = vunpack.c.h.b16 %v232
  %v997 = vunpack.c.l.b16 %v233
  %v998 = vunpack.c.h.b16 %v233
  %v999 = vunpack.c.l.b16 %v234
  %v1000 = vunpack.c.h.b16 %v234
  %v1001 = vunpack.c.l.b16 %v235
  %v1002 = vunpack.c.h.b16 %v235
  %v1003 = vunpack.c.l.b16 %v236
  %v1004 = vunpack.c.h.b16 %v236
  %v1005 = vunpack.c.l.b16 %v237
  %v1006 = vunpack.c.h.b16 %v237
  %v1007 = vunpack.c.l.b16 %v238
  %v1008 = vunpack.c.h.b16 %v238
  %v1009 = vunpack.c.l.b16 %v239
  %v1010 = vunpack.c.h.b16 %v239
  %v1011 = vunpack.c.l.b16 %v240
  %v1012 = vunpack.c.h.b16 %v240
  %v1013 = vunpack.c.l.b16 %v241
  %v1014 = vunpack.c.h.b16 %v241
  %v1015 = vunpack.c.l.b16 %v242
  %v1016 = vunpack.c.h.b16 %v242
  %v1017 = vunpack.c.l.b16 %v243
  %v1018 = vunpack.c.h.b16 %v243
  %v1019 = vunpack.c.l.b16 %v244
  %v1020 = vunpack.c.h.b16 %v244
  %v1021 = vunpack.c.l.b16 %v245
  %v1022 = vunpack.c.h.b16 %v245
  %v1023 = vunpack.c.l.b16 %v246
  %v1024 = vunpack.c.h.b16 %v246
  %v1025 = vunpack.c.l.b16 %v247
  %v1026 = vunpack.c.h.b16 %v247
  %v1027 = vunpack.c.l.b16 %v248
  %v1028 = vunpack.c.h.b16 %v248
  %v1029 = vunpack.c.l.b16 %v249
  %v1030 = vunpack.c.h.b16 %v249
  %v1031 = vunpack.c.l.b16 %v250
  %v1032 = vunpack.c.h.b16 %v250
  %v1033 = vunpack.c.l.b16 %v251
  %v1034 = vunpack.c.h.b16 %v251
  %v1035 = vunpack.c.l.b16 %v252
  %v1036 = vunpack.c.h.b16 %v252
  %v1037 = vunpack.c.l.b16 %v253
  %v1038 = vunpack.c.h.b16 %v253
  %v1039 = vunpack.c.l.b16 %v254
  %v1040 = vunpack.c.h.b16 %v254
  %v1041 = vunpack.c.l.b16 %v255
  %v1042 = vunpack.c.h.b16 %v255
  %v1043 = vunpack.c.l.b16 %v256
  %v1044 = vunpack.c.h.b16 %v256
  %v1045 = vunpack.c.l.b16 %v257
  %v1046 = vunpack.c.h.b16 %v257
  %v1047 = vunpack.c.l.b16 %v258
  %v1048 = vunpack.c.h.b16 %v258
  %v1049 = vunpack.c.l.b16 %v259
  %v1050 = vunpack.c.h.b16 %v259
  %v1051 = vunpack.c.l.b16 %v260
  %v1052 = vunpack.c.h.b16 %v260
  %v1053 = vunpack.c.l.b16 %v261
  %v1054 = vunpack.c.h.b16 %v261
  %v1055 = vunpack.c.l.b16 %v262
  %v1056 = vunpack.c.h.b16 %v262
  %v1057 = vunpack.c.l.b16 %v263
  %v1058 = vunpack.c.h.b16 %v263
  %v1059 = vunpack.c.l.b16 %v264
  %v1060 = vunpack.c.h.b16 %v264
  %v1061 = vunpack.c.l.b16 %v265
  %v1062 = vunpack.c.h.b16 %v265
  %v1063 = vunpack.c.l.b16 %v266
  %v1064 = vunpack.c.h.b16 %v266
  %v1065 = vunpack.c.l.b16 %v267
  %v1066 = vunpack.c.h.b16 %v267
  %v1067 = vunpack.c.l.b16 %v268
  %v1068 = vunpack.c.h.b16 %v268
  %v1069 = vunpack.c.l.b16 %v269
  %v1070 = vunpack.c.h.b16 %v269
  %v1071 = vunpack.c.l.b16 %v270
  %v1072 = vunpack.c.h.b16 %v270
  %v1073 = vunpack.c.l.b16 %v271
  %v1074 = vunpack.c.h.b16 %v271
  %v1075 = vunpack.c.l.b16 %v272
  %v1076 = vunpack.c.h.b16 %v272
  %v1077 = vunpack.c.l.b16 %v273
  %v1078 = vunpack.c.h.b16 %v273
  %v1079 = vunpack.c.l.b16 %v274
  %v1080 = vunpack.c.h.b16 %v274
  %v1081 = vunpack.c.l.b16 %v275
  %v1082 = vunpack.c.h.b16 %v275
  %v1083 = vunpack.c.l.b16 %v276
  %v1084 = vunpack.c.h.b16 %v276
  %v1085 = vunpack.c.l.b16 %v277
  %v1086 = vunpack.c.h.b16 %v277
  %v1087 = vunpack.c.l.b16 %v278
  %v1088 = vunpack.c.h.b16 %v278
  %v1089 = vunpack.c.l.b16 %v279
  %v1090 = vunpack.c.h.b16 %v279
  %v1091 = vunpack.c.l.b16 %v280
  %v1092 = vunpack.c.h.b16 %v280
  %v1093 = vunpack.c.l.b16 %v281
  %v1094 = vunpack.c.h.b16 %v281
  %v1095 = vunpack.c.l.b16 %v282
  %v1096 = vunpack.c.h.b16 %v282
  %v1097 = vunpack.c.l.b16 %v283
  %v1098 = vunpack.c.h.b16 %v283
  %v1099 = vunpack.c.l.b16 %v284
  %v1100 = vunpack.c.h.b16 %v284
  %v1101 = vunpack.c.l.b16 %v285
  %v1102 = vunpack.c.h.b16 %v285
  %v1103 = vunpack.c.l.b16 %v286
  %v1104 = vunpack.c.h.b16 %v286
  %v1105 = vunpack.c.l.b16 %v287
  %v1106 = vunpack.c.h.b16 %v287
  %v1107 = vunpack.c.l.b16 %v288
  %v1108 = vunpack.c.h.b16 %v288
  %v1109 = vunpack.c.l.b16 %v289
  %v1110 = vunpack.c.h.b16 %v289
  %v1111 = vunpack.c.l.b16 %v290
  %v1112 = vunpack.c.h.b16 %v290
  %v1113 = vunpack.c.l.b16 %v291
  %v1114 = vunpack.c.h.b16 %v291
  %v1115 = vunpack.c.l.b16 %v292
  %v1116 = vunpack.c.h.b16 %v292
  %v1117 = vunpack.c.l.b16 %v293
  %v1118 = vunpack.c.h.b16 %v293
  %v1119 = vunpack.c.l.b16 %v294
  %v1120 = vunpack.c.h.b16 %v294
  %v1121 = vunpack.c.l.b16 %v295
  %v1122 = vunpack.c.h.b16 %v295
  %v1123 = vunpack.c.l.b16 %v296
  %v1124 = vunpack.c.h.b16 %v296
  %v1125 = vunpack.c.l.b16 %v297
  %v1126 = vunpack.c.h.b16 %v297
  %v1127 = vunpack.c.l.b16 %v298
  %v1128 = vunpack.c.h.b16 %v298
  %v1129 = vunpack.c.l.b16 %v299
  %v1130 = vunpack.c.h.b16 %v299
  %v1131 = vunpack.c.l.b16 %v300
  %v1132 = vunpack.c.h.b16 %v300
  %v1133 = vunpack.c.l.b16 %v301
  %v1134 = vunpack.c.h.b16 %v301
  %v1135 = vunpack.c.l.b16 %v302
  %v1136 = vunpack.c.h.b16 %v302
  %v1137 = vunpack.c.l.b16 %v303
  %v1138 = vunpack.c.h.b16 %v303
  %v1139 = vunpack.c.l.b16 %v304
  %v1140 = vunpack.c.h.b16 %v304
  %v1141 = vunpack.c.l.b16 %v305
  %v1142 = vunpack.c.h.b16 %v305
  %v1143 = vunpack.c.l.b16 %v306
  %v1144 = vunpack.c.h.b16 %v306
  %v1145 = vunpack.c.l.b16 %v307
  %v1146 = vunpack.c.h.b16 %v307
  %v1147 = vunpack.c.l.b16 %v308
  %v1148 = vunpack.c.h.b16 %v308
  %v1149 = vunpack.c.l.b16 %v309
  %v1150 = vunpack.c.h.b16 %v309
  %v1151 = vunpack.c.l.b16 %v310
  %v1152 = vunpack.c.h.b16 %v310
  %v1153 = vunpack.c.l.b16 %v311
  %v1154 = vunpack.c.h.b16 %v311
  %v1155 = vunpack.c.l.b16 %v312
  %v1156 = vunpack.c.h.b16 %v312
  %v1157 = vunpack.c.l.b16 %v313
  %v1158 = vunpack.c.h.b16 %v313
  %v1159 = vunpack.c.l.b16 %v314
  %v1160 = vunpack.c.h.b16 %v314
  %v1161 = vunpack.c.l.b16 %v315
  %v1162 = vunpack.c.h.b16 %v315
  %v1163 = vunpack.c.l.b16 %v316
  %v1164 = vunpack.c.h.b16 %v316
  %v1165 = vunpack.c.l.b16 %v317
  %v1166 = vunpack.c.h.b16 %v317
  %v1167 = vunpack.c.l.b16 %v318
  %v1168 = vunpack.c.h.b16 %v318
  %v1169 = vunpack.c.l.b16 %v319
  %v1170 = vunpack.c.h.b16 %v319
  %v1171 = vunpack.c.l.b16 %v320
  %v1172 = vunpack.c.h.b16 %v320
  %v1173 = vunpack.c.l.b16 %v321
  %v1174 = vunpack.c.h.b16 %v321
  %v1175 = vunpack.c.l.b16 %v322
  %v1176 = vunpack.c.h.b16 %v322
  %v1177 = vunpack.c.l.b16 %v323
  %v1178 = vunpack.c.h.b16 %v323
  %v1179 = vunpack.c.l.b16 %v324
  %v1180 = vunpack.c.h.b16 %v324
  %v1181 = vunpack.c.l.b16 %v325
  %v1182 = vunpack.c.h.b16 %v325
  %v1183 = vunpack.c.l.b16 %v326
  %v1184 = vunpack.c.h.b16 %v326
  %v1185 = vunpack.c.l.b16 %v327
  %v1186 = vunpack.c.h.b16 %v327
  %v1187 = vunpack.c.l.b16 %v328
  %v1188 = vunpack.c.h.b16 %v328
  %v1189 = vunpack.c.l.b16 %v329
  %v1190 = vunpack.c.h.b16 %v329
  %v1191 = vunpack.c.l.b16 %v330
  %v1192 = vunpack.c.h.b16 %v330
  %v1193 = vunpack.c.l.b16 %v331
  %v1194 = vunpack.c.h.b16 %v331
  %v1195 = vunpack.c.l.b16 %v332
  %v1196 = vunpack.c.h.b16 %v332
  %v1197 = vunpack.c.l.b16 %v333
  %v1198 = vunpack.c.h.b16 %v333
  %v1199 = vunpack.c.l.b16 %v334
  %v1200 = vunpack.c.h.b16 %v334
  %v1201 = vunpack.c.l.b16 %v335
  %v1202 = vunpack.c.h.b16 %v335
  %v1203 = vunpack.c.l.b16 %v336
  %v1204 = vunpack.c.h.b16 %v336
  %v1205 = vunpack.c.l.b16 %v337
  %v1206 = vunpack.c.h.b16 %v337
  %v1207 = vunpack.c.l.b16 %v338
  %v1208 = vunpack.c.h.b16 %v338
  %v1209 = vunpack.c.l.b16 %v339
  %v1210 = vunpack.c.h.b16 %v339
  %v1211 = vunpack.c.l.b16 %v340
  %v1212 = vunpack.c.h.b16 %v340
  %v1213 = vunpack.c.l.b16 %v341
  %v1214 = vunpack.c.h.b16 %v341
  %v1215 = vunpack.c.l.b16 %v342
  %v1216 = vunpack.c.h.b16 %v342
  %v1217 = vunpack.c.l.b16 %v343
  %v1218 = vunpack.c.h.b16 %v343
  %v1219 = vunpack.c.l.b16 %v344
  %v1220 = vunpack.c.h.b16 %v344
  %v1221 = vunpack.c.l.b16 %v345
  %v1222 = vunpack.c.h.b16 %v345
  %v1223 = vunpack.c.l.b16 %v346
  %v1224 = vunpack.c.h.b16 %v346
  %v1225 = vunpack.c.l.b16 %v347
  %v1226 = vunpack.c.h.b16 %v347
  %v1227 = vunpack.c.l.b16 %v348
  %v1228 = vunpack.c.h.b16 %v348
  %v1229 = vunpack.c.l.b16 %v349
  %v1230 = vunpack.c.h.b16 %v349
  %v1231 = vunpack.c.l.b16 %v350
  %v1232 = vunpack.c.h.b16 %v350
  %v1233 = vunpack.c.l.b16 %v351
  %v1234 = vunpack.c.h.b16 %v351
  %v1235 = vunpack.c.l.b16 %v352
  %v1236 = vunpack.c.h.b16 %v352
  %v1237 = vunpack.c.l.b16 %v353
  %v1238 = vunpack.c.h.b16 %v353
  %v1239 = vunpack.c.l.b16 %v354
  %v1240 = vunpack.c.h.b16 %v354
  %v1241 = vunpack.c.l.b16 %v355
  %v1242 = vunpack.c.h.b16 %v355
  %v1243 = vunpack.c.l.b16 %v356
  %v1244 = vunpack.c.h.b16 %v356
  %v1245 = vunpack.c.l.b16 %v357
  %v1246 = vunpack.c.h.b16 %v357
  %v1247 = vunpack.c.l.b16 %v358
  %v1248 = vunpack.c.h.b16 %v358
  %v1249 = vunpack.c.l.b16 %v359
  %v1250 = vunpack.c.h.b16 %v359
  %v1251 = vunpack.c.l.b16 %v360
  %v1252 = vunpack.c.h.b16 %v360
  %v1253 = vunpack.c.l.b16 %v361
  %v1254 = vunpack.c.h.b16 %v361
  %v1255 = vunpack.c.l.b16 %v362
  %v1256 = vunpack.c.h.b16 %v362
  %v1257 = vunpack.c.l.b16 %v363
  %v1258 = vunpack.c.h.b16 %v363
  %v1259 = vunpack.c.l.b16 %v364
  %v1260 = vunpack.c.h.b16 %v364
  %v1261 = vpack.c.b16 %v691, %v685
  %v1262 = vpack.c.b16 %v692, %v686
  %v1263 = vpack.c.b16 %v693, %v687
  %v1264 = vpack.c.b16 %v694, %v688
  %v1265 = vpack.c.b16 %v695, %v689
  %v1266 = vpack.c.b16 %v696, %v690
  %v1267 = vpack.c.b16 %v703, %v697
  %v1268 = vpack.c.b16 %v704, %v698
  %v1269 = vpack.c.b16 %v705, %v699
  %v1270 = vpack.c.b16 %v706, %v700
  %v1271 = vpack.c.b16 %v707, %v701
  %v1272 = vpack.c.b16 %v708, %v702
  %v1273 = vpack.c.b16 %v715, %v709
  %v1274 = vpack.c.b16 %v716, %v710
  %v1275 = vpack.c.b16 %v717, %v711
  %v1276 = vpack.c.b16 %v718, %v712
  %v1277 = vpack.c.b16 %v719, %v713
  %v1278 = vpack.c.b16 %v720, %v714
  %v1279 = vpack.c.b16 %v727, %v721
  %v1280 = vpack.c.b16 %v728, %v722
  %v1281 = vpack.c.b16 %v729, %v723
  %v1282 = vpack.c.b16 %v730, %v724
  %v1283 = vpack.c.b16 %v731, %v725
  %v1284 = vpack.c.b16 %v732, %v726
  %v1285 = vpack.c.b16 %v739, %v733
  %v1286 = vpack.c.b16 %v740, %v734
  %v1287 = vpack.c.b16 %v741, %v735
  %v1288 = vpack.c.b16 %v742, %v736
  %v1289 = vpack.c.b16 %v743, %v737
  %v1290 = vpack.c.b16 %v744, %v738
  %v1291 = vpack.c.b16 %v751, %v745
  %v1292 = vpack.c.b16 %v752, %v746
  %v1293 = vpack.c.b16 %v753, %v747
  %v1294 = vpack.c.b16 %v754, %v748
  %v1295 = vpack.c.b16 %v755, %v749
  %v1296 = vpack.c.b16 %v756, %v750
  %v1297 = vpack.c.b16 %v763, %v757
  %v1298 = vpack.c.b16 %v764, %v758
  %v1299 = vpack.c.b16 %v765, %v759
  %v1300 = vpack.c.b16 %v766, %v760
  %v1301 = vpack.c.b16 %v767, %v761
  %v1302 = vpack.c.b16 %v768, %v762
  %v1303 = vpack.c.b16 %v775, %v769
  %v1304 = vpack.c.b16 %v776, %v770
  %v1305 = vpack.c.b16 %v777, %v771
  %v1306 = vpack.c.b16 %v778, %v772
  %v1307 = vpack.c.b16 %v779, %v773
  %v1308 = vpack.c.b16 %v780, %v774
  %v1309 = vpack.c.b16 %v787, %v781
  %v1310 = vpack.c.b16 %v788, %v782
  %v1311 = vpack.c.b16 %v789, %v783
  %v1312 = vpack.c.b16 %v790, %v784
  %v1313 = vpack.c.b16 %v791, %v785
  %v1314 = vpack.c.b16 %v792, %v786
  %v1315 = vpack.c.b16 %v799, %v793
  %v1316 = vpack.c.b16 %v800, %v794
  %v1317 = vpack.c.b16 %v801, %v795
  %v1318 = vpack.c.b16 %v802, %v796
  %v1319 = vpack.c.b16 %v803, %v797
  %v1320 = vpack.c.b16 %v804, %v798
  %v1321 = vpack.c.b16 %v811, %v805
  %v1322 = vpack.c.b16 %v812, %v806
  %v1323 = vpack.c.b16 %v813, %v807
  %v1324 = vpack.c.b16 %v814, %v808
  %v1325 = vpack.c.b16 %v815, %v809
  %v1326 = vpack.c.b16 %v816, %v810
  %v1327 = vpack.c.b16 %v823, %v817
  %v1328 = vpack.c.b16 %v824, %v818
  %v1329 = vpack.c.b16 %v825, %v819
  %v1330 = vpack.c.b16 %v826, %v820
  %v1331 = vpack.c.b16 %v827, %v821
  %v1332 = vpack.c.b16 %v828, %v822
  %v1333 = vpack.c.b16 %v835, %v829
  %v1334 = vpack.c.b16 %v836, %v830
  %v1335 = vpack.c.b16 %v837, %v831
  %v1336 = vpack.c.b16 %v838, %v832
  %v1337 = vpack.c.b16 %v839, %v833
  %v1338 = vpack.c.b16 %v840, %v834
  %v1339 = vpack.c.b16 %v847, %v841
  %v1340 = vpack.c.b16 %v848, %v842
  %v1341 = vpack.c.b16 %v849, %v843
  %v1342 = vpack.c.b16 %v850, %v844
  %v1343 = vpack.c.b16 %v851, %v845
  %v1344 = vpack.c.b16 %v852, %v846
  %v1345 = vpack.c.b16 %v859, %v853
  %v1346 = vpack.c.b16 %v860, %v854
  %v1347 = vpack.c.b16 %v861, %v855
  %v1348 = vpack.c.b16 %v862, %v856
  %v1349 = vpack.c.b16 %v863, %v857
  %v1350 = vpack.c.b16 %v864, %v858
  %v1351 = vpack.c.b16 %v871, %v865
  %v1352 = vpack.c.b16 %v872, %v866
  %v1353 = vpack.c.b16 %v873, %v867
  %v1354 = vpack.c.b16 %v874, %v868
  %v1355 = vpack.c.b16 %v875, %v869
  %v1356 = vpack.c.b16 %v876, %v870
  %v1357 = vpack.c.b16 %v883, %v877
  %v1358 = vpack.c.b16 %v884, %v878
  %v1359 = vpack.c.b16 %v885, %v879
  %v1360 = vpack.c.b16 %v886, %v880
  %v1361 = vpack.c.b16 %v887, %v881
  %v1362 = vpack.c.b16 %v888, %v882
  %v1363 = vpack.c.b16 %v895, %v889
  %v1364 = vpack.c.b16 %v896, %v890
  %v1365 = vpack.c.b16 %v897, %v891
  %v1366 = vpack.c.b16 %v898, %v892
  %v1367 = vpack.c.b16 %v899, %v893
  %v1368 = vpack.c.b16 %v900, %v894
  %v1369 = vpack.c.b16 %v907, %v901
  %v1370 = vpack.c.b16 %v908, %v902
  %v1371 = vpack.c.b16 %v909, %v903
  %v1372 = vpack.c.b16 %v910, %v904
  %v1373 = vpack.c.b16 %v911, %v905
  %v1374 = vpack.c.b16 %v912, %v906
  %v1375 = vpack.c.b16 %v919, %v913
  %v1376 = vpack.c.b16 %v920, %v914
  %v1377 = vpack.c.b16 %v921, %v915
  %v1378 = vpack.c.b16 %v922, %v916
  %v1379 = vpack.c.b16 %v923, %v917
  %v1380 = vpack.c.b16 %v924, %v918
  %v1381 = vpack.c.b16 %v931, %v925
  %v1382 = vpack.c.b16 %v932, %v926
  %v1383 = vpack.c.b16 %v933, %v927
  %v1384 = vpack.c.b16 %v934, %v928
  %v1385 = vpack.c.b16 %v935, %v929
  %v1386 = vpack.c.b16 %v936, %v930
  %v1387 = vpack.c.b16 %v943, %v937
  %v1388 = vpack.c.b16 %v944, %v938
  %v1389 = vpack.c.b16 %v945, %v939
  %v1390 = vpack.c.b16 %v946, %v940
  %v1391 = vpack.c.b16 %v947, %v941
  %v1392 = vpack.c.b16 %v948, %v942
  %v1393 = vpack.c.b16 %v955, %v949
  %v1394 = vpack.c.b16 %v956, %v950
  %v1395 = vpack.c.b16 %v957, %v951
  %v1396 = vpack.c.b16 %v958, %v952
  %v1397 = vpack.c.b16 %v959, %v953
  %v1398 = vpack.c.b16 %v960, %v954
  %v1399 = vpack.c.b16 %v967, %v961
  %v1400 = vpack.c.b16 %v968, %v962
  %v1401 = vpack.c.b16 %v969, %v963
  %v1402 = vpack.c.b16 %v970, %v964
  %v1403 = vpack.c.b16 %v971, %v965
  %v1404 = vpack.c.b16 %v972, %v966
  %v1405 = vpack.c.b16 %v979, %v973
  %v1406 = vpack.c.b16 %v980, %v974
  %v1407 = vpack.c.b16 %v981, %v975
  %v1408 = vpack.c.b16 %v982, %v976
  %v1409 = vpack.c.b16 %v983, %v977
  %v1410 = vpack.c.b16 %v984, %v978
  %v1411 = vpack.c.b16 %v991, %v985
  %v1412 = vpack.c.b16 %v992, %v986
  %v1413 = vpack.c.b16 %v993, %v987
  %v1414 = vpack.c.b16 %v994, %v988
  %v1415 = vpack.c.b16 %v995, %v989
  %v1416 = vpack.c.b16 %v996, %v990
  %v1417 = vpack.c.b16 %v1003, %v997
  %v1418 = vpack.c.b16 %v1004, %v998
  %v1419 = vpack.c.b16 %v1005, %v999
  %v1420 = vpack.c.b16 %v1006, %v1000
  %v1421 = vpack.c.b16 %v1007, %v1001
  %v1422 = vpack.c.b16 %v1008, %v1002
  %v1423 = vpack.c.b16 %v1015, %v1009
  %v1424 = vpack.c.b16 %v1016, %v1010
  %v1425 = vpack.c.b16 %v1017, %v1011
  %v1426 = vpack.c.b16 %v1018, %v1012
  %v1427 = vpack.c.b16 %v1019, %v1013
  %v1428 = vpack.c.b16 %v1020, %v1014
  %v1429 = vpack.c.b16 %v1027, %v1021
  %v1430 = vpack.c.b16 %v1028, %v1022
  %v1431 = vpack.c.b16 %v1029, %v1023
  %v1432 = vpack.c.b16 %v1030, %v1024
  %v1433 = vpack.c.b16 %v1031, %v1025
  %v1434 = vpack.c.b16 %v1032, %v1026
  %v1435 = vpack.c.b16 %v1039, %v1033
  %v1436 = vpack.c.b16 %v1040, %v1034
  %v1437 = vpack.c.b16 %v1041, %v1035
  %v1438 = vpack.c.b16 %v1042, %v1036
  %v1439 = vpack.c.b16 %v1043, %v1037
  %v1440 = vpack.c.b16 %v1044, %v1038
  %v1441 = vpack.c.b16 %v1051, %v1045
  %v1442 = vpack.c.b16 %v1052, %v1046
  %v1443 = vpack.c.b16 %v1053, %v1047
  %v1444 = vpack.c.b16 %v1054, %v1048
  %v1445 = vpack.c.b16 %v1055, %v1049
  %v1446 = vpack.c.b16 %v1056, %v1050
  %v1447 = vpack.c.b16 %v1063, %v1057
  %v1448 = vpack.c.b16 %v1064, %v1058
  %v1449 = vpack.c.b16 %v1065, %v1059
  %v1450 = vpack.c.b16 %v1066, %v1060
  %v1451 = vpack.c.b16 %v1067, %v1061
  %v1452 = vpack.c.b16 %v1068, %v1062
  %v1453 = vpack.c.b16 %v1075, %v1069
  %v1454 = vpack.c.b16 %v1076, %v1070
  %v1455 = vpack.c.b16 %v1077, %v1071
  %v1456 = vpack.c.b16 %v1078, %v1072
  %v1457 = vpack.c.b16 %v1079, %v1073
  %v1458 = vpack.c.b16 %v1080, %v1074
  %v1459 = vpack.c.b16 %v1087, %v1081
  %v1460 = vpack.c.b16 %v1088, %v1082
  %v1461 = vpack.c.b16 %v1089, %v1083
  %v1462 = vpack.c.b16 %v1090, %v1084
  %v1463 = vpack.c.b16 %v1091, %v1085
  %v1464 = vpack.c.b16 %v1092, %v1086
  %v1465 = vpack.c.b16 %v1099, %v1093
  %v1466 = vpack.c.b16 %v1100, %v1094
  %v1467 = vpack.c.b16 %v1101, %v1095
  %v1468 = vpack.c.b16 %v1102, %v1096
  %v1469 = vpack.c.b16 %v1103, %v1097
  %v1470 = vpack.c.b16 %v1104, %v1098
  %v1471 = vpack.c.b16 %v1111, %v1105
  %v1472 = vpack.c.b16 %v1112, %v1106
  %v1473 = vpack.c.b16 %v1113, %v1107
  %v1474 = vpack.c.b16 %v1114, %v1108
  %v1475 = vpack.c.b16 %v1115, %v1109
  %v1476 = vpack.c.b16 %v1116, %v1110
  %v1477 = vpack.c.b16 %v1123, %v1117
  %v1478 = vpack.c.b16 %v1124, %v1118
  %v1479 = vpack.c.b16 %v1125, %v1119
  %v1480 = vpack.c.b16 %v1126, %v1120
  %v1481 = vpack.c.b16 %v1127, %v1121
  %v1482 = vpack.c.b16 %v1128, %v1122
  %v1483 = vpack.c.b16 %v1135, %v1129
  %v1484 = vpack.c.b16 %v1136, %v1130
  %v1485 = vpack.c.b16 %v1137, %v1131
  %v1486 = vpack.c.b16 %v1138, %v1132
  %v1487 = vpack.c.b16 %v1139, %v1133
  %v1488 = vpack.c.b16 %v1140, %v1134
  %v1489 = vpack.c.b16 %v1147, %v1141
  %v1490 = vpack.c.b16 %v1148, %v1142
  %v1491 = vpack.c.b16 %v1149, %v1143
  %v1492 = vpack.c.b16 %v1150, %v1144
  %v1493 = vpack.c.b16 %v1151, %v1145
  %v1494 = vpack.c.b16 %v1152, %v1146
  %v1495 = vpack.c.b16 %v1159, %v1153
  %v1496 = vpack.c.b16 %v1160, %v1154
  %v1497 = vpack.c.b16 %v1161, %v1155
  %v1498 = vpack.c.b16 %v1162, %v1156
  %v1499 = vpack.c.b16 %v1163, %v1157
  %v1500 = vpack.c.b16 %v1164, %v1158
  %v1501 = vpack.c.b16 %v1171, %v1165
  %v1502 = vpack.c.b16 %v1172, %v1166
  %v1503 = vpack.c.b16 %v1173, %v1167
  %v1504 = vpack.c.b16 %v1174, %v1168
  %v1505 = vpack.c.b16 %v1175, %v1169
  %v1506 = vpack.c.b16 %v1176, %v1170
  %v1507 = vpack.c.b16 %v1183, %v1177
  %v1508 = vpack.c.b16 %v1184, %v1178
  %v1509 = vpack.c.b16 %v1185, %v1179
  %v1510 = vpack.c.b16 %v1186, %v1180
  %v1511 = vpack.c.b16 %v1187, %v1181
  %v1512 = vpack.c.b16 %v1188, %v1182
  %v1513 = vpack.c.b16 %v1195, %v1189
  %v1514 = vpack.c.b16 %v1196, %v1190
  %v1515 = vpack.c.b16 %v1197, %v1191
  %v1516 = vpack.c.b16 %v1198, %v1192
  %v1517 = vpack.c.b16 %v1199, %v1193
  %v1518 = vpack.c.b16 %v1200, %v1194
  %v1519 = vpack.c.b16 %v1207, %v1201
  %v1520 = vpack.c.b16 %v1208, %v1202
  %v1521 = vpack.c.b16 %v1209, %v1203
  %v1522 = vpack.c.b16 %v1210, %v1204
  %v1523 = vpack.c.b16 %v1211, %v1205
  %v1524 = vpack.c.b16 %v1212, %v1206
  %v1525 = vpack.c.b16 %v1219, %v1213
  %v1526 = vpack.c.b16 %v1220, %v1214
  %v1527 = vpack.c.b16 %v1221, %v1215
  %v1528 = vpack.c.b16 %v1222, %v1216
  %v1529 = vpack.c.b16 %v1223, %v1217
  %v1530 = vpack.c.b16 %v1224, %v1218
  %v1531 = vpack.c.b16 %v1231, %v1225
  %v1532 = vpack.c.b16 %v1232, %v1226
  %v1533 = vpack.c.b16 %v1233, %v1227
  %v1534 = vpack.c.b16 %v1234, %v1228
  %v1535 = vpack.c.b16 %v1235, %v1229
  %v1536 = vpack.c.b16 %v1236, %v1230
  %v1537 = vpack.c.b16 %v1243, %v1237
  %v1538 = vpack.c.b16 %v1244, %v1238
  %v1539 = vpack.c.b16 %v1245, %v1239
  %v1540 = vpack.c.b16 %v1246, %v1240
  %v1541 = vpack.c.b16 %v1247, %v1241
  %v1542 = vpack.c.b16 %v1248, %v1242
  %v1543 = vpack.c.b16 %v1255, %v1249
  %v1544 = vpack.c.b16 %v1256, %v1250
  %v1545 = vpack.c.b16 %v1257, %v1251
  %v1546 = vpack.c.b16 %v1258, %v1252
  %v1547 = vpack.c.b16 %v1259, %v1253
  %v1548 = vpack.c.b16 %v1260, %v1254
  %1837 = vmatprep.subr.bf16.mxu0 %v1304
  %1838 = vmatpush1.bf16.msra.mxu0 %v1303
  %1839 = vmatprep.subr.bf16.mxu0 %v1298
  %1840 = vmatpush1.bf16.msra.mxu0 %v1297
  %1841 = vmatprep.subr.bf16.mxu0 %v1292
  %1842 = vmatpush1.bf16.msra.mxu0 %v1291
  %1843 = vmatprep.subr.bf16.mxu0 %v1286
  %1844 = vmatpush1.bf16.msra.mxu0 %v1285
  %1845 = vmatprep.subr.bf16.mxu0 %v1280
  %1846 = vmatpush1.bf16.msra.mxu0 %v1279
  %1847 = vmatprep.subr.bf16.mxu0 %v1274
  %1848 = vmatpush1.bf16.msra.mxu0 %v1273
  %1849 = vmatprep.subr.bf16.mxu0 %v1268
  %1850 = vmatpush1.bf16.msra.mxu0 %v1267
  %1851 = vmatprep.subr.bf16.mxu0 %v1262
  %1852 = vmatpush1.bf16.msra.mxu0 %v1261
  %1853 = vmatprep.subr.bf16.mxu0 %v1352
  %1854 = vmatpush2.bf16.msra.mxu0 %v1351
  %1855 = vmatprep.subr.bf16.mxu0 %v1346
  %1856 = vmatpush2.bf16.msra.mxu0 %v1345
  %1857 = vmatprep.subr.bf16.mxu0 %v1340
  %1858 = vmatpush2.bf16.msra.mxu0 %v1339
  %1859 = vmatprep.subr.bf16.mxu0 %v1334
  %1860 = vmatpush2.bf16.msra.mxu0 %v1333
  %1861 = vmatprep.subr.bf16.mxu0 %v1328
  %1862 = vmatpush2.bf16.msra.mxu0 %v1327
  %1863 = vmatprep.subr.bf16.mxu0 %v1322
  %1864 = vmatpush2.bf16.msra.mxu0 %v1321
  %1865 = vmatprep.subr.bf16.mxu0 %v1316
  %1866 = vmatpush2.bf16.msra.mxu0 %v1315
  %1867 = vmatprep.subr.bf16.mxu0 %v1310
  %1868 = vmatpush2.bf16.msra.mxu0 %v1309
  %1869 = vmatprep.mubr.bf16.mxu0 %v36
  %1870 = vmatmul.mubr.bf16.gmra.mxu0 %v35
  %v1871 = vpop.f32.mrf.mxu0
  %v1872 = vadd.f32 %v370, %v1871
  %v1873 = vpop.f32.mrf.mxu0
  %v1874 = vadd.f32 %v374, %v1873
  %v1875 = vpop.f32.mrf.mxu0
  %v1876 = vadd.f32 %v370, %v1875
  %v1877 = vpop.f32.mrf.mxu0
  %v1878 = vadd.f32 %v374, %v1877
  %1879 = vdwg.mxu0
  %1880 = vmatprep.subr.bf16.mxu0 %v1400
  %1881 = vmatpush1.bf16.msra.mxu0 %v1399
  %1882 = vmatprep.subr.bf16.mxu0 %v1394
  %1883 = vmatpush1.bf16.msra.mxu0 %v1393
  %1884 = vmatprep.subr.bf16.mxu0 %v1388
  %1885 = vmatpush1.bf16.msra.mxu0 %v1387
  %1886 = vmatprep.subr.bf16.mxu0 %v1382
  %1887 = vmatpush1.bf16.msra.mxu0 %v1381
  %1888 = vmatprep.subr.bf16.mxu0 %v1376
  %1889 = vmatpush1.bf16.msra.mxu0 %v1375
  %1890 = vmatprep.subr.bf16.mxu0 %v1370
  %1891 = vmatpush1.bf16.msra.mxu0 %v1369
  %1892 = vmatprep.subr.bf16.mxu0 %v1364
  %1893 = vmatpush1.bf16.msra.mxu0 %v1363
  %1894 = vmatprep.subr.bf16.mxu0 %v1358
  %1895 = vmatpush1.bf16.msra.mxu0 %v1357
  %1896 = vmatprep.subr.bf16.mxu0 %v1448
  %1897 = vmatpush2.bf16.msra.mxu0 %v1447
  %1898 = vmatprep.subr.bf16.mxu0 %v1442
  %1899 = vmatpush2.bf16.msra.mxu0 %v1441
  %1900 = vmatprep.subr.bf16.mxu0 %v1436
  %1901 = vmatpush2.bf16.msra.mxu0 %v1435
  %1902 = vmatprep.subr.bf16.mxu0 %v1430
  %1903 = vmatpush2.bf16.msra.mxu0 %v1429
  %1904 = vmatprep.subr.bf16.mxu0 %v1424
  %1905 = vmatpush2.bf16.msra.mxu0 %v1423
  %1906 = vmatprep.subr.bf16.mxu0 %v1418
  %1907 = vmatpush2.bf16.msra.mxu0 %v1417
  %1908 = vmatprep.subr.bf16.mxu0 %v1412
  %1909 = vmatpush2.bf16.msra.mxu0 %v1411
  %1910 = vmatprep.subr.bf16.mxu0 %v1406
  %1911 = vmatpush2.bf16.msra.mxu0 %v1405
  %1912 = vmatprep.mubr.bf16.mxu0 %v38
  %1913 = vmatmul.mubr.bf16.gmra.mxu0 %v37
  %v1914 = vpop.f32.mrf.mxu0
  %v1915 = vadd.f32 %v1872, %v1914
  %v1916 = vpop.f32.mrf.mxu0
  %v1917 = vadd.f32 %v1874, %v1916
  %v1918 = vpop.f32.mrf.mxu0
  %v1919 = vadd.f32 %v1876, %v1918
  %v1920 = vpop.f32.mrf.mxu0
  %v1921 = vadd.f32 %v1878, %v1920
  %1922 = vdwg.mxu0
  %1923 = vmatprep.subr.bf16.mxu0 %v1496
  %1924 = vmatpush1.bf16.msra.mxu0 %v1495
  %1925 = vmatprep.subr.bf16.mxu0 %v1490
  %1926 = vmatpush1.bf16.msra.mxu0 %v1489
  %1927 = vmatprep.subr.bf16.mxu0 %v1484
  %1928 = vmatpush1.bf16.msra.mxu0 %v1483
  %1929 = vmatprep.subr.bf16.mxu0 %v1478
  %1930 = vmatpush1.bf16.msra.mxu0 %v1477
  %1931 = vmatprep.subr.bf16.mxu0 %v1472
  %1932 = vmatpush1.bf16.msra.mxu0 %v1471
  %1933 = vmatprep.subr.bf16.mxu0 %v1466
  %1934 = vmatpush1.bf16.msra.mxu0 %v1465
  %1935 = vmatprep.subr.bf16.mxu0 %v1460
  %1936 = vmatpush1.bf16.msra.mxu0 %v1459
  %1937 = vmatprep.subr.bf16.mxu0 %v1454
  %1938 = vmatpush1.bf16.msra.mxu0 %v1453
  %1939 = vmatprep.subr.bf16.mxu0 %v1544
  %1940 = vmatpush2.bf16.msra.mxu0 %v1543
  %1941 = vmatprep.subr.bf16.mxu0 %v1538
  %1942 = vmatpush2.bf16.msra.mxu0 %v1537
  %1943 = vmatprep.subr.bf16.mxu0 %v1532
  %1944 = vmatpush2.bf16.msra.mxu0 %v1531
  %1945 = vmatprep.subr.bf16.mxu0 %v1526
  %1946 = vmatpush2.bf16.msra.mxu0 %v1525
  %1947 = vmatprep.subr.bf16.mxu0 %v1520
  %1948 = vmatpush2.bf16.msra.mxu0 %v1519
  %1949 = vmatprep.subr.bf16.mxu0 %v1514
  %1950 = vmatpush2.bf16.msra.mxu0 %v1513
  %1951 = vmatprep.subr.bf16.mxu0 %v1508
  %1952 = vmatpush2.bf16.msra.mxu0 %v1507
  %1953 = vmatprep.subr.bf16.mxu0 %v1502
  %1954 = vmatpush2.bf16.msra.mxu0 %v1501
  %1955 = vmatprep.mubr.bf16.mxu0 %v40
  %1956 = vmatmul.mubr.bf16.gmra.mxu0 %v39
  %v1957 = vpop.f32.mrf.mxu0
  %v1958 = vadd.f32 %v1915, %v1957
  %v1959 = vpop.f32.mrf.mxu0
  %v1960 = vadd.f32 %v1917, %v1959
  %v1961 = vpop.f32.mrf.mxu0
  %v1962 = vadd.f32 %v1919, %v1961
  %v1963 = vpop.f32.mrf.mxu0
  %v1964 = vadd.f32 %v1921, %v1963
  %1965 = vdwg.mxu0
  %1966 = vmatprep.subr.bf16.mxu0 %v1306
  %1967 = vmatpush1.bf16.msra.mxu0 %v1305
  %1968 = vmatprep.subr.bf16.mxu0 %v1300
  %1969 = vmatpush1.bf16.msra.mxu0 %v1299
  %1970 = vmatprep.subr.bf16.mxu0 %v1294
  %1971 = vmatpush1.bf16.msra.mxu0 %v1293
  %1972 = vmatprep.subr.bf16.mxu0 %v1288
  %1973 = vmatpush1.bf16.msra.mxu0 %v1287
  %1974 = vmatprep.subr.bf16.mxu0 %v1282
  %1975 = vmatpush1.bf16.msra.mxu0 %v1281
  %1976 = vmatprep.subr.bf16.mxu0 %v1276
  %1977 = vmatpush1.bf16.msra.mxu0 %v1275
  %1978 = vmatprep.subr.bf16.mxu0 %v1270
  %1979 = vmatpush1.bf16.msra.mxu0 %v1269
  %1980 = vmatprep.subr.bf16.mxu0 %v1264
  %1981 = vmatpush1.bf16.msra.mxu0 %v1263
  %1982 = vmatprep.subr.bf16.mxu0 %v1354
  %1983 = vmatpush2.bf16.msra.mxu0 %v1353
  %1984 = vmatprep.subr.bf16.mxu0 %v1348
  %1985 = vmatpush2.bf16.msra.mxu0 %v1347
  %1986 = vmatprep.subr.bf16.mxu0 %v1342
  %1987 = vmatpush2.bf16.msra.mxu0 %v1341
  %1988 = vmatprep.subr.bf16.mxu0 %v1336
  %1989 = vmatpush2.bf16.msra.mxu0 %v1335
  %1990 = vmatprep.subr.bf16.mxu0 %v1330
  %1991 = vmatpush2.bf16.msra.mxu0 %v1329
  %1992 = vmatprep.subr.bf16.mxu0 %v1324
  %1993 = vmatpush2.bf16.msra.mxu0 %v1323
  %1994 = vmatprep.subr.bf16.mxu0 %v1318
  %1995 = vmatpush2.bf16.msra.mxu0 %v1317
  %1996 = vmatprep.subr.bf16.mxu0 %v1312
  %1997 = vmatpush2.bf16.msra.mxu0 %v1311
  %1998 = vmatprep.mubr.bf16.mxu0 %v36
  %1999 = vmatmul.mubr.bf16.gmra.mxu0 %v35
  %v2000 = vpop.f32.mrf.mxu0
  %v2001 = vadd.f32 %v378, %v2000
  %v2002 = vpop.f32.mrf.mxu0
  %v2003 = vadd.f32 %v382, %v2002
  %v2004 = vpop.f32.mrf.mxu0
  %v2005 = vadd.f32 %v378, %v2004
  %v2006 = vpop.f32.mrf.mxu0
  %v2007 = vadd.f32 %v382, %v2006
  %2008 = vdwg.mxu0
  %2009 = vmatprep.subr.bf16.mxu0 %v1402
  %2010 = vmatpush1.bf16.msra.mxu0 %v1401
  %2011 = vmatprep.subr.bf16.mxu0 %v1396
  %2012 = vmatpush1.bf16.msra.mxu0 %v1395
  %2013 = vmatprep.subr.bf16.mxu0 %v1390
  %2014 = vmatpush1.bf16.msra.mxu0 %v1389
  %2015 = vmatprep.subr.bf16.mxu0 %v1384
  %2016 = vmatpush1.bf16.msra.mxu0 %v1383
  %2017 = vmatprep.subr.bf16.mxu0 %v1378
  %2018 = vmatpush1.bf16.msra.mxu0 %v1377
  %2019 = vmatprep.subr.bf16.mxu0 %v1372
  %2020 = vmatpush1.bf16.msra.mxu0 %v1371
  %2021 = vmatprep.subr.bf16.mxu0 %v1366
  %2022 = vmatpush1.bf16.msra.mxu0 %v1365
  %2023 = vmatprep.subr.bf16.mxu0 %v1360
  %2024 = vmatpush1.bf16.msra.mxu0 %v1359
  %2025 = vmatprep.subr.bf16.mxu0 %v1450
  %2026 = vmatpush2.bf16.msra.mxu0 %v1449
  %2027 = vmatprep.subr.bf16.mxu0 %v1444
  %2028 = vmatpush2.bf16.msra.mxu0 %v1443
  %2029 = vmatprep.subr.bf16.mxu0 %v1438
  %2030 = vmatpush2.bf16.msra.mxu0 %v1437
  %2031 = vmatprep.subr.bf16.mxu0 %v1432
  %2032 = vmatpush2.bf16.msra.mxu0 %v1431
  %2033 = vmatprep.subr.bf16.mxu0 %v1426
  %2034 = vmatpush2.bf16.msra.mxu0 %v1425
  %2035 = vmatprep.subr.bf16.mxu0 %v1420
  %2036 = vmatpush2.bf16.msra.mxu0 %v1419
  %2037 = vmatprep.subr.bf16.mxu0 %v1414
  %2038 = vmatpush2.bf16.msra.mxu0 %v1413
  %2039 = vmatprep.subr.bf16.mxu0 %v1408
  %2040 = vmatpush2.bf16.msra.mxu0 %v1407
  %2041 = vmatprep.mubr.bf16.mxu0 %v38
  %2042 = vmatmul.mubr.bf16.gmra.mxu0 %v37
  %v2043 = vpop.f32.mrf.mxu0
  %v2044 = vadd.f32 %v2001, %v2043
  %v2045 = vpop.f32.mrf.mxu0
  %v2046 = vadd.f32 %v2003, %v2045
  %v2047 = vpop.f32.mrf.mxu0
  %v2048 = vadd.f32 %v2005, %v2047
  %v2049 = vpop.f32.mrf.mxu0
  %v2050 = vadd.f32 %v2007, %v2049
  %2051 = vdwg.mxu0
  %2052 = vmatprep.subr.bf16.mxu0 %v1498
  %2053 = vmatpush1.bf16.msra.mxu0 %v1497
  %2054 = vmatprep.subr.bf16.mxu0 %v1492
  %2055 = vmatpush1.bf16.msra.mxu0 %v1491
  %2056 = vmatprep.subr.bf16.mxu0 %v1486
  %2057 = vmatpush1.bf16.msra.mxu0 %v1485
  %2058 = vmatprep.subr.bf16.mxu0 %v1480
  %2059 = vmatpush1.bf16.msra.mxu0 %v1479
  %2060 = vmatprep.subr.bf16.mxu0 %v1474
  %2061 = vmatpush1.bf16.msra.mxu0 %v1473
  %2062 = vmatprep.subr.bf16.mxu0 %v1468
  %2063 = vmatpush1.bf16.msra.mxu0 %v1467
  %2064 = vmatprep.subr.bf16.mxu0 %v1462
  %2065 = vmatpush1.bf16.msra.mxu0 %v1461
  %2066 = vmatprep.subr.bf16.mxu0 %v1456
  %2067 = vmatpush1.bf16.msra.mxu0 %v1455
  %2068 = vmatprep.subr.bf16.mxu0 %v1546
  %2069 = vmatpush2.bf16.msra.mxu0 %v1545
  %2070 = vmatprep.subr.bf16.mxu0 %v1540
  %2071 = vmatpush2.bf16.msra.mxu0 %v1539
  %2072 = vmatprep.subr.bf16.mxu0 %v1534
  %2073 = vmatpush2.bf16.msra.mxu0 %v1533
  %2074 = vmatprep.subr.bf16.mxu0 %v1528
  %2075 = vmatpush2.bf16.msra.mxu0 %v1527
  %2076 = vmatprep.subr.bf16.mxu0 %v1522
  %2077 = vmatpush2.bf16.msra.mxu0 %v1521
  %2078 = vmatprep.subr.bf16.mxu0 %v1516
  %2079 = vmatpush2.bf16.msra.mxu0 %v1515
  %2080 = vmatprep.subr.bf16.mxu0 %v1510
  %2081 = vmatpush2.bf16.msra.mxu0 %v1509
  %2082 = vmatprep.subr.bf16.mxu0 %v1504
  %2083 = vmatpush2.bf16.msra.mxu0 %v1503
  %2084 = vmatprep.mubr.bf16.mxu0 %v40
  %2085 = vmatmul.mubr.bf16.gmra.mxu0 %v39
  %v2086 = vpop.f32.mrf.mxu0
  %v2087 = vadd.f32 %v2044, %v2086
  %v2088 = vpop.f32.mrf.mxu0
  %v2089 = vadd.f32 %v2046, %v2088
  %v2090 = vpop.f32.mrf.mxu0
  %v2091 = vadd.f32 %v2048, %v2090
  %v2092 = vpop.f32.mrf.mxu0
  %v2093 = vadd.f32 %v2050, %v2092
  %2094 = vdwg.mxu0
  %2095 = vmatprep.subr.bf16.mxu0 %v1308
  %2096 = vmatpush1.bf16.msra.mxu0 %v1307
  %2097 = vmatprep.subr.bf16.mxu0 %v1302
  %2098 = vmatpush1.bf16.msra.mxu0 %v1301
  %2099 = vmatprep.subr.bf16.mxu0 %v1296
  %2100 = vmatpush1.bf16.msra.mxu0 %v1295
  %2101 = vmatprep.subr.bf16.mxu0 %v1290
  %2102 = vmatpush1.bf16.msra.mxu0 %v1289
  %2103 = vmatprep.subr.bf16.mxu0 %v1284
  %2104 = vmatpush1.bf16.msra.mxu0 %v1283
  %2105 = vmatprep.subr.bf16.mxu0 %v1278
  %2106 = vmatpush1.bf16.msra.mxu0 %v1277
  %2107 = vmatprep.subr.bf16.mxu0 %v1272
  %2108 = vmatpush1.bf16.msra.mxu0 %v1271
  %2109 = vmatprep.subr.bf16.mxu0 %v1266
  %2110 = vmatpush1.bf16.msra.mxu0 %v1265
  %2111 = vmatprep.subr.bf16.mxu0 %v1356
  %2112 = vmatpush2.bf16.msra.mxu0 %v1355
  %2113 = vmatprep.subr.bf16.mxu0 %v1350
  %2114 = vmatpush2.bf16.msra.mxu0 %v1349
  %2115 = vmatprep.subr.bf16.mxu0 %v1344
  %2116 = vmatpush2.bf16.msra.mxu0 %v1343
  %2117 = vmatprep.subr.bf16.mxu0 %v1338
  %2118 = vmatpush2.bf16.msra.mxu0 %v1337
  %2119 = vmatprep.subr.bf16.mxu0 %v1332
  %2120 = vmatpush2.bf16.msra.mxu0 %v1331
  %2121 = vmatprep.subr.bf16.mxu0 %v1326
  %2122 = vmatpush2.bf16.msra.mxu0 %v1325
  %2123 = vmatprep.subr.bf16.mxu0 %v1320
  %2124 = vmatpush2.bf16.msra.mxu0 %v1319
  %2125 = vmatprep.subr.bf16.mxu0 %v1314
  %2126 = vmatpush2.bf16.msra.mxu0 %v1313
  %2127 = vmatprep.mubr.bf16.mxu0 %v36
  %2128 = vmatmul.mubr.bf16.gmra.mxu0 %v35
  %v2129 = vpop.f32.mrf.mxu0
  %v2130 = vadd.f32 %v386, %v2129
  %v2131 = vpop.f32.mrf.mxu0
  %v2132 = vadd.f32 %v390, %v2131
  %v2133 = vpop.f32.mrf.mxu0
  %v2134 = vadd.f32 %v386, %v2133
  %v2135 = vpop.f32.mrf.mxu0
  %v2136 = vadd.f32 %v390, %v2135
  %2137 = vdwg.mxu0
  %2138 = vmatprep.subr.bf16.mxu0 %v1404
  %2139 = vmatpush1.bf16.msra.mxu0 %v1403
  %2140 = vmatprep.subr.bf16.mxu0 %v1398
  %2141 = vmatpush1.bf16.msra.mxu0 %v1397
  %2142 = vmatprep.subr.bf16.mxu0 %v1392
  %2143 = vmatpush1.bf16.msra.mxu0 %v1391
  %2144 = vmatprep.subr.bf16.mxu0 %v1386
  %2145 = vmatpush1.bf16.msra.mxu0 %v1385
  %2146 = vmatprep.subr.bf16.mxu0 %v1380
  %2147 = vmatpush1.bf16.msra.mxu0 %v1379
  %2148 = vmatprep.subr.bf16.mxu0 %v1374
  %2149 = vmatpush1.bf16.msra.mxu0 %v1373
  %2150 = vmatprep.subr.bf16.mxu0 %v1368
  %2151 = vmatpush1.bf16.msra.mxu0 %v1367
  %2152 = vmatprep.subr.bf16.mxu0 %v1362
  %2153 = vmatpush1.bf16.msra.mxu0 %v1361
  %2154 = vmatprep.subr.bf16.mxu0 %v1452
  %2155 = vmatpush2.bf16.msra.mxu0 %v1451
  %2156 = vmatprep.subr.bf16.mxu0 %v1446
  %2157 = vmatpush2.bf16.msra.mxu0 %v1445
  %2158 = vmatprep.subr.bf16.mxu0 %v1440
  %2159 = vmatpush2.bf16.msra.mxu0 %v1439
  %2160 = vmatprep.subr.bf16.mxu0 %v1434
  %2161 = vmatpush2.bf16.msra.mxu0 %v1433
  %2162 = vmatprep.subr.bf16.mxu0 %v1428
  %2163 = vmatpush2.bf16.msra.mxu0 %v1427
  %2164 = vmatprep.subr.bf16.mxu0 %v1422
  %2165 = vmatpush2.bf16.msra.mxu0 %v1421
  %2166 = vmatprep.subr.bf16.mxu0 %v1416
  %2167 = vmatpush2.bf16.msra.mxu0 %v1415
  %2168 = vmatprep.subr.bf16.mxu0 %v1410
  %2169 = vmatpush2.bf16.msra.mxu0 %v1409
  %2170 = vmatprep.mubr.bf16.mxu0 %v38
  %2171 = vmatmul.mubr.bf16.gmra.mxu0 %v37
  %v2172 = vpop.f32.mrf.mxu0
  %v2173 = vadd.f32 %v2130, %v2172
  %v2174 = vpop.f32.mrf.mxu0
  %v2175 = vadd.f32 %v2132, %v2174
  %v2176 = vpop.f32.mrf.mxu0
  %v2177 = vadd.f32 %v2134, %v2176
  %v2178 = vpop.f32.mrf.mxu0
  %v2179 = vadd.f32 %v2136, %v2178
  %2180 = vdwg.mxu0
  %2181 = vmatprep.subr.bf16.mxu0 %v1500
  %2182 = vmatpush1.bf16.msra.mxu0 %v1499
  %2183 = vmatprep.subr.bf16.mxu0 %v1494
  %2184 = vmatpush1.bf16.msra.mxu0 %v1493
  %2185 = vmatprep.subr.bf16.mxu0 %v1488
  %2186 = vmatpush1.bf16.msra.mxu0 %v1487
  %2187 = vmatprep.subr.bf16.mxu0 %v1482
  %2188 = vmatpush1.bf16.msra.mxu0 %v1481
  %2189 = vmatprep.subr.bf16.mxu0 %v1476
  %2190 = vmatpush1.bf16.msra.mxu0 %v1475
  %2191 = vmatprep.subr.bf16.mxu0 %v1470
  %2192 = vmatpush1.bf16.msra.mxu0 %v1469
  %2193 = vmatprep.subr.bf16.mxu0 %v1464
  %2194 = vmatpush1.bf16.msra.mxu0 %v1463
  %2195 = vmatprep.subr.bf16.mxu0 %v1458
  %2196 = vmatpush1.bf16.msra.mxu0 %v1457
  %2197 = vmatprep.subr.bf16.mxu0 %v1548
  %2198 = vmatpush2.bf16.msra.mxu0 %v1547
  %2199 = vmatprep.subr.bf16.mxu0 %v1542
  %2200 = vmatpush2.bf16.msra.mxu0 %v1541
  %2201 = vmatprep.subr.bf16.mxu0 %v1536
  %2202 = vmatpush2.bf16.msra.mxu0 %v1535
  %2203 = vmatprep.subr.bf16.mxu0 %v1530
  %2204 = vmatpush2.bf16.msra.mxu0 %v1529
  %2205 = vmatprep.subr.bf16.mxu0 %v1524
  %2206 = vmatpush2.bf16.msra.mxu0 %v1523
  %2207 = vmatprep.subr.bf16.mxu0 %v1518
  %2208 = vmatpush2.bf16.msra.mxu0 %v1517
  %2209 = vmatprep.subr.bf16.mxu0 %v1512
  %2210 = vmatpush2.bf16.msra.mxu0 %v1511
  %2211 = vmatprep.subr.bf16.mxu0 %v1506
  %2212 = vmatpush2.bf16.msra.mxu0 %v1505
  %2213 = vmatprep.mubr.bf16.mxu0 %v40
  %2214 = vmatmul.mubr.bf16.gmra.mxu0 %v39
  %v2215 = vpop.f32.mrf.mxu0
  %v2216 = vadd.f32 %v2173, %v2215
  %v2217 = vpop.f32.mrf.mxu0
  %v2218 = vadd.f32 %v2175, %v2217
  %v2219 = vpop.f32.mrf.mxu0
  %v2220 = vadd.f32 %v2177, %v2219
  %v2221 = vpop.f32.mrf.mxu0
  %v2222 = vadd.f32 %v2179, %v2221
  %2223 = vdwg.mxu0
  %v2224 = vpack.c.bf16 %v1962, %v1958
  %v2225 = vpack.c.bf16 %v1964, %v1960
  %v2226 = vpack.c.bf16 %v2091, %v2087
  %v2227 = vpack.c.bf16 %v2093, %v2089
  %v2228 = vpack.c.bf16 %v2220, %v2216
  %v2229 = vpack.c.bf16 %v2222, %v2218
  %v2236 = vunpack.c.l.b16 %v2224
  %v2237 = vunpack.c.l.b16 %v2225
  %v2238 = vunpack.c.l.b16 %v2226
  %v2239 = vunpack.c.l.b16 %v2227
  %v2240 = vunpack.c.l.b16 %v2228
  %v2241 = vunpack.c.l.b16 %v2229
  %v2242 = vunpack.c.h.b16 %v2224
  %v2243 = vunpack.c.h.b16 %v2225
  %v2244 = vunpack.c.h.b16 %v2226
  %v2245 = vunpack.c.h.b16 %v2227
  %v2246 = vunpack.c.h.b16 %v2228
  %v2247 = vunpack.c.h.b16 %v2229
  %v2248 = vpack.c.b16 %v2237, %v2236
  %v2249 = vpack.c.b16 %v2239, %v2238
  %v2250 = vpack.c.b16 %v2241, %v2240
  %v2251 = vpack.c.b16 %v2243, %v2242
  %v2252 = vpack.c.b16 %v2245, %v2244
  %v2253 = vpack.c.b16 %v2247, %v2246
  %2260 = vst [vmem:[%s5] sm:$0xff] %v2248
  %2261 = vst [vmem:[%s5 + $0x8] sm:$0xff] %v2249
  %2262 = vst [vmem:[%s5 + $0x10] sm:$0xff] %v2250
  %2263 = vst [vmem:[%s5 + $0x18] sm:$0xff] %v2251
  %2264 = vst [vmem:[%s5 + $0x20] sm:$0xff] %v2252
  %2265 = vst [vmem:[%s5 + $0x28] sm:$0xff] %v2253
  %s2266 = scalar_lea.vmem %s3, 2304
  %v2267 = vld [vmem:[%s2266] sm:$0xff]
  %v2268 = vld [vmem:[%s2266 + $0x8] sm:$0xff]
  %v2269 = vld [vmem:[%s2266 + $0x10] sm:$0xff]
  %v2270 = vld [vmem:[%s2266 + $0x18] sm:$0xff]
  %v2271 = vld [vmem:[%s2266 + $0x20] sm:$0xff]
  %v2272 = vld [vmem:[%s2266 + $0x28] sm:$0xff]
  %v2273 = vld [vmem:[%s2266 + $0x30] sm:$0xff]
  %v2274 = vld [vmem:[%s2266 + $0x38] sm:$0xff]
  %v2275 = vld [vmem:[%s2266 + $0x40] sm:$0xff]
  %v2276 = vld [vmem:[%s2266 + $0x48] sm:$0xff]
  %v2277 = vld [vmem:[%s2266 + $0x50] sm:$0xff]
  %v2278 = vld [vmem:[%s2266 + $0x58] sm:$0xff]
  %v2279 = vld [vmem:[%s2266 + $0x60] sm:$0xff]
  %v2280 = vld [vmem:[%s2266 + $0x68] sm:$0xff]
  %v2281 = vld [vmem:[%s2266 + $0x70] sm:$0xff]
  %v2282 = vld [vmem:[%s2266 + $0x78] sm:$0xff]
  %v2283 = vld [vmem:[%s2266 + $0x80] sm:$0xff]
  %v2284 = vld [vmem:[%s2266 + $0x88] sm:$0xff]
  %v2285 = vld [vmem:[%s2266 + $0x90] sm:$0xff]
  %v2286 = vld [vmem:[%s2266 + $0x98] sm:$0xff]
  %v2287 = vld [vmem:[%s2266 + $0xa0] sm:$0xff]
  %v2288 = vld [vmem:[%s2266 + $0xa8] sm:$0xff]
  %v2289 = vld [vmem:[%s2266 + $0xb0] sm:$0xff]
  %v2290 = vld [vmem:[%s2266 + $0xb8] sm:$0xff]
  %v2291 = vld [vmem:[%s2266 + $0xc0] sm:$0xff]
  %v2292 = vld [vmem:[%s2266 + $0xc8] sm:$0xff]
  %v2293 = vld [vmem:[%s2266 + $0xd0] sm:$0xff]
  %v2294 = vld [vmem:[%s2266 + $0xd8] sm:$0xff]
  %v2295 = vld [vmem:[%s2266 + $0xe0] sm:$0xff]
  %v2296 = vld [vmem:[%s2266 + $0xe8] sm:$0xff]
  %v2297 = vld [vmem:[%s2266 + $0xf0] sm:$0xff]
  %v2298 = vld [vmem:[%s2266 + $0xf8] sm:$0xff]
  %v2299 = vld [vmem:[%s2266 + $0x100] sm:$0xff]
  %v2300 = vld [vmem:[%s2266 + $0x108] sm:$0xff]
  %v2301 = vld [vmem:[%s2266 + $0x110] sm:$0xff]
  %v2302 = vld [vmem:[%s2266 + $0x118] sm:$0xff]
  %v2303 = vld [vmem:[%s2266 + $0x120] sm:$0xff]
  %v2304 = vld [vmem:[%s2266 + $0x128] sm:$0xff]
  %v2305 = vld [vmem:[%s2266 + $0x130] sm:$0xff]
  %v2306 = vld [vmem:[%s2266 + $0x138] sm:$0xff]
  %v2307 = vld [vmem:[%s2266 + $0x140] sm:$0xff]
  %v2308 = vld [vmem:[%s2266 + $0x148] sm:$0xff]
  %v2309 = vld [vmem:[%s2266 + $0x150] sm:$0xff]
  %v2310 = vld [vmem:[%s2266 + $0x158] sm:$0xff]
  %v2311 = vld [vmem:[%s2266 + $0x160] sm:$0xff]
  %v2312 = vld [vmem:[%s2266 + $0x168] sm:$0xff]
  %v2313 = vld [vmem:[%s2266 + $0x170] sm:$0xff]
  %v2314 = vld [vmem:[%s2266 + $0x178] sm:$0xff]
  %v2315 = vld [vmem:[%s2266 + $0x180] sm:$0xff]
  %v2316 = vld [vmem:[%s2266 + $0x188] sm:$0xff]
  %v2317 = vld [vmem:[%s2266 + $0x190] sm:$0xff]
  %v2318 = vld [vmem:[%s2266 + $0x198] sm:$0xff]
  %v2319 = vld [vmem:[%s2266 + $0x1a0] sm:$0xff]
  %v2320 = vld [vmem:[%s2266 + $0x1a8] sm:$0xff]
  %v2321 = vld [vmem:[%s2266 + $0x1b0] sm:$0xff]
  %v2322 = vld [vmem:[%s2266 + $0x1b8] sm:$0xff]
  %v2323 = vld [vmem:[%s2266 + $0x1c0] sm:$0xff]
  %v2324 = vld [vmem:[%s2266 + $0x1c8] sm:$0xff]
  %v2325 = vld [vmem:[%s2266 + $0x1d0] sm:$0xff]
  %v2326 = vld [vmem:[%s2266 + $0x1d8] sm:$0xff]
  %v2327 = vld [vmem:[%s2266 + $0x1e0] sm:$0xff]
  %v2328 = vld [vmem:[%s2266 + $0x1e8] sm:$0xff]
  %v2329 = vld [vmem:[%s2266 + $0x1f0] sm:$0xff]
  %v2330 = vld [vmem:[%s2266 + $0x1f8] sm:$0xff]
  %v2331 = vld [vmem:[%s2266 + $0x200] sm:$0xff]
  %v2332 = vld [vmem:[%s2266 + $0x208] sm:$0xff]
  %v2333 = vld [vmem:[%s2266 + $0x210] sm:$0xff]
  %v2334 = vld [vmem:[%s2266 + $0x218] sm:$0xff]
  %v2335 = vld [vmem:[%s2266 + $0x220] sm:$0xff]
  %v2336 = vld [vmem:[%s2266 + $0x228] sm:$0xff]
  %v2337 = vld [vmem:[%s2266 + $0x230] sm:$0xff]
  %v2338 = vld [vmem:[%s2266 + $0x238] sm:$0xff]
  %v2339 = vld [vmem:[%s2266 + $0x240] sm:$0xff]
  %v2340 = vld [vmem:[%s2266 + $0x248] sm:$0xff]
  %v2341 = vld [vmem:[%s2266 + $0x250] sm:$0xff]
  %v2342 = vld [vmem:[%s2266 + $0x258] sm:$0xff]
  %v2343 = vld [vmem:[%s2266 + $0x260] sm:$0xff]
  %v2344 = vld [vmem:[%s2266 + $0x268] sm:$0xff]
  %v2345 = vld [vmem:[%s2266 + $0x270] sm:$0xff]
  %v2346 = vld [vmem:[%s2266 + $0x278] sm:$0xff]
  %v2347 = vld [vmem:[%s2266 + $0x280] sm:$0xff]
  %v2348 = vld [vmem:[%s2266 + $0x288] sm:$0xff]
  %v2349 = vld [vmem:[%s2266 + $0x290] sm:$0xff]
  %v2350 = vld [vmem:[%s2266 + $0x298] sm:$0xff]
  %v2351 = vld [vmem:[%s2266 + $0x2a0] sm:$0xff]
  %v2352 = vld [vmem:[%s2266 + $0x2a8] sm:$0xff]
  %v2353 = vld [vmem:[%s2266 + $0x2b0] sm:$0xff]
  %v2354 = vld [vmem:[%s2266 + $0x2b8] sm:$0xff]
  %v2355 = vld [vmem:[%s2266 + $0x2c0] sm:$0xff]
  %v2356 = vld [vmem:[%s2266 + $0x2c8] sm:$0xff]
  %v2357 = vld [vmem:[%s2266 + $0x2d0] sm:$0xff]
  %v2358 = vld [vmem:[%s2266 + $0x2d8] sm:$0xff]
  %v2359 = vld [vmem:[%s2266 + $0x2e0] sm:$0xff]
  %v2360 = vld [vmem:[%s2266 + $0x2e8] sm:$0xff]
  %v2361 = vld [vmem:[%s2266 + $0x2f0] sm:$0xff]
  %v2362 = vld [vmem:[%s2266 + $0x2f8] sm:$0xff]
  %v2363 = vld [vmem:[%s2266 + $0x300] sm:$0xff]
  %v2364 = vld [vmem:[%s2266 + $0x308] sm:$0xff]
  %v2365 = vld [vmem:[%s2266 + $0x310] sm:$0xff]
  %v2366 = vld [vmem:[%s2266 + $0x318] sm:$0xff]
  %v2367 = vld [vmem:[%s2266 + $0x320] sm:$0xff]
  %v2368 = vld [vmem:[%s2266 + $0x328] sm:$0xff]
  %v2369 = vld [vmem:[%s2266 + $0x330] sm:$0xff]
  %v2370 = vld [vmem:[%s2266 + $0x338] sm:$0xff]
  %v2371 = vld [vmem:[%s2266 + $0x340] sm:$0xff]
  %v2372 = vld [vmem:[%s2266 + $0x348] sm:$0xff]
  %v2373 = vld [vmem:[%s2266 + $0x350] sm:$0xff]
  %v2374 = vld [vmem:[%s2266 + $0x358] sm:$0xff]
  %v2375 = vld [vmem:[%s2266 + $0x360] sm:$0xff]
  %v2376 = vld [vmem:[%s2266 + $0x368] sm:$0xff]
  %v2377 = vld [vmem:[%s2266 + $0x370] sm:$0xff]
  %v2378 = vld [vmem:[%s2266 + $0x378] sm:$0xff]
  %v2379 = vld [vmem:[%s2266 + $0x380] sm:$0xff]
  %v2380 = vld [vmem:[%s2266 + $0x388] sm:$0xff]
  %v2381 = vld [vmem:[%s2266 + $0x390] sm:$0xff]
  %v2382 = vld [vmem:[%s2266 + $0x398] sm:$0xff]
  %v2383 = vld [vmem:[%s2266 + $0x3a0] sm:$0xff]
  %v2384 = vld [vmem:[%s2266 + $0x3a8] sm:$0xff]
  %v2385 = vld [vmem:[%s2266 + $0x3b0] sm:$0xff]
  %v2386 = vld [vmem:[%s2266 + $0x3b8] sm:$0xff]
  %v2387 = vld [vmem:[%s2266 + $0x3c0] sm:$0xff]
  %v2388 = vld [vmem:[%s2266 + $0x3c8] sm:$0xff]
  %v2389 = vld [vmem:[%s2266 + $0x3d0] sm:$0xff]
  %v2390 = vld [vmem:[%s2266 + $0x3d8] sm:$0xff]
  %v2391 = vld [vmem:[%s2266 + $0x3e0] sm:$0xff]
  %v2392 = vld [vmem:[%s2266 + $0x3e8] sm:$0xff]
  %v2393 = vld [vmem:[%s2266 + $0x3f0] sm:$0xff]
  %v2394 = vld [vmem:[%s2266 + $0x3f8] sm:$0xff]
  %v2395 = vld [vmem:[%s2266 + $0x400] sm:$0xff]
  %v2396 = vld [vmem:[%s2266 + $0x408] sm:$0xff]
  %v2397 = vld [vmem:[%s2266 + $0x410] sm:$0xff]
  %v2398 = vld [vmem:[%s2266 + $0x418] sm:$0xff]
  %v2399 = vld [vmem:[%s2266 + $0x420] sm:$0xff]
  %v2400 = vld [vmem:[%s2266 + $0x428] sm:$0xff]
  %v2401 = vld [vmem:[%s2266 + $0x430] sm:$0xff]
  %v2402 = vld [vmem:[%s2266 + $0x438] sm:$0xff]
  %v2403 = vld [vmem:[%s2266 + $0x440] sm:$0xff]
  %v2404 = vld [vmem:[%s2266 + $0x448] sm:$0xff]
  %v2405 = vld [vmem:[%s2266 + $0x450] sm:$0xff]
  %v2406 = vld [vmem:[%s2266 + $0x458] sm:$0xff]
  %v2407 = vld [vmem:[%s2266 + $0x460] sm:$0xff]
  %v2408 = vld [vmem:[%s2266 + $0x468] sm:$0xff]
  %v2409 = vld [vmem:[%s2266 + $0x470] sm:$0xff]
  %v2410 = vld [vmem:[%s2266 + $0x478] sm:$0xff]
  %v2411 = vld [vmem:[%s2266 + $0x480] sm:$0xff]
  %v2412 = vld [vmem:[%s2266 + $0x488] sm:$0xff]
  %v2413 = vld [vmem:[%s2266 + $0x490] sm:$0xff]
  %v2414 = vld [vmem:[%s2266 + $0x498] sm:$0xff]
  %v2415 = vld [vmem:[%s2266 + $0x4a0] sm:$0xff]
  %v2416 = vld [vmem:[%s2266 + $0x4a8] sm:$0xff]
  %v2417 = vld [vmem:[%s2266 + $0x4b0] sm:$0xff]
  %v2418 = vld [vmem:[%s2266 + $0x4b8] sm:$0xff]
  %v2419 = vld [vmem:[%s2266 + $0x4c0] sm:$0xff]
  %v2420 = vld [vmem:[%s2266 + $0x4c8] sm:$0xff]
  %v2421 = vld [vmem:[%s2266 + $0x4d0] sm:$0xff]
  %v2422 = vld [vmem:[%s2266 + $0x4d8] sm:$0xff]
  %v2423 = vld [vmem:[%s2266 + $0x4e0] sm:$0xff]
  %v2424 = vld [vmem:[%s2266 + $0x4e8] sm:$0xff]
  %v2425 = vld [vmem:[%s2266 + $0x4f0] sm:$0xff]
  %v2426 = vld [vmem:[%s2266 + $0x4f8] sm:$0xff]
  %v2427 = vld [vmem:[%s2266 + $0x500] sm:$0xff]
  %v2428 = vld [vmem:[%s2266 + $0x508] sm:$0xff]
  %v2429 = vld [vmem:[%s2266 + $0x510] sm:$0xff]
  %v2430 = vld [vmem:[%s2266 + $0x518] sm:$0xff]
  %v2431 = vld [vmem:[%s2266 + $0x520] sm:$0xff]
  %v2432 = vld [vmem:[%s2266 + $0x528] sm:$0xff]
  %v2433 = vld [vmem:[%s2266 + $0x530] sm:$0xff]
  %v2434 = vld [vmem:[%s2266 + $0x538] sm:$0xff]
  %v2435 = vld [vmem:[%s2266 + $0x540] sm:$0xff]
  %v2436 = vld [vmem:[%s2266 + $0x548] sm:$0xff]
  %v2437 = vld [vmem:[%s2266 + $0x550] sm:$0xff]
  %v2438 = vld [vmem:[%s2266 + $0x558] sm:$0xff]
  %v2439 = vld [vmem:[%s2266 + $0x560] sm:$0xff]
  %v2440 = vld [vmem:[%s2266 + $0x568] sm:$0xff]
  %v2441 = vld [vmem:[%s2266 + $0x570] sm:$0xff]
  %v2442 = vld [vmem:[%s2266 + $0x578] sm:$0xff]
  %v2443 = vld [vmem:[%s2266 + $0x580] sm:$0xff]
  %v2444 = vld [vmem:[%s2266 + $0x588] sm:$0xff]
  %v2445 = vld [vmem:[%s2266 + $0x590] sm:$0xff]
  %v2446 = vld [vmem:[%s2266 + $0x598] sm:$0xff]
  %v2447 = vld [vmem:[%s2266 + $0x5a0] sm:$0xff]
  %v2448 = vld [vmem:[%s2266 + $0x5a8] sm:$0xff]
  %v2449 = vld [vmem:[%s2266 + $0x5b0] sm:$0xff]
  %v2450 = vld [vmem:[%s2266 + $0x5b8] sm:$0xff]
  %v2451 = vld [vmem:[%s2266 + $0x5c0] sm:$0xff]
  %v2452 = vld [vmem:[%s2266 + $0x5c8] sm:$0xff]
  %v2453 = vld [vmem:[%s2266 + $0x5d0] sm:$0xff]
  %v2454 = vld [vmem:[%s2266 + $0x5d8] sm:$0xff]
  %v2455 = vld [vmem:[%s2266 + $0x5e0] sm:$0xff]
  %v2456 = vld [vmem:[%s2266 + $0x5e8] sm:$0xff]
  %v2457 = vld [vmem:[%s2266 + $0x5f0] sm:$0xff]
  %v2458 = vld [vmem:[%s2266 + $0x5f8] sm:$0xff]
  %v2459 = vld [vmem:[%s2266 + $0x600] sm:$0xff]
  %v2460 = vld [vmem:[%s2266 + $0x608] sm:$0xff]
  %v2461 = vld [vmem:[%s2266 + $0x610] sm:$0xff]
  %v2462 = vld [vmem:[%s2266 + $0x618] sm:$0xff]
  %v2463 = vld [vmem:[%s2266 + $0x620] sm:$0xff]
  %v2464 = vld [vmem:[%s2266 + $0x628] sm:$0xff]
  %v2465 = vld [vmem:[%s2266 + $0x630] sm:$0xff]
  %v2466 = vld [vmem:[%s2266 + $0x638] sm:$0xff]
  %v2467 = vld [vmem:[%s2266 + $0x640] sm:$0xff]
  %v2468 = vld [vmem:[%s2266 + $0x648] sm:$0xff]
  %v2469 = vld [vmem:[%s2266 + $0x650] sm:$0xff]
  %v2470 = vld [vmem:[%s2266 + $0x658] sm:$0xff]
  %v2471 = vld [vmem:[%s2266 + $0x660] sm:$0xff]
  %v2472 = vld [vmem:[%s2266 + $0x668] sm:$0xff]
  %v2473 = vld [vmem:[%s2266 + $0x670] sm:$0xff]
  %v2474 = vld [vmem:[%s2266 + $0x678] sm:$0xff]
  %v2475 = vld [vmem:[%s2266 + $0x680] sm:$0xff]
  %v2476 = vld [vmem:[%s2266 + $0x688] sm:$0xff]
  %v2477 = vld [vmem:[%s2266 + $0x690] sm:$0xff]
  %v2478 = vld [vmem:[%s2266 + $0x698] sm:$0xff]
  %v2479 = vld [vmem:[%s2266 + $0x6a0] sm:$0xff]
  %v2480 = vld [vmem:[%s2266 + $0x6a8] sm:$0xff]
  %v2481 = vld [vmem:[%s2266 + $0x6b0] sm:$0xff]
  %v2482 = vld [vmem:[%s2266 + $0x6b8] sm:$0xff]
  %v2483 = vld [vmem:[%s2266 + $0x6c0] sm:$0xff]
  %v2484 = vld [vmem:[%s2266 + $0x6c8] sm:$0xff]
  %v2485 = vld [vmem:[%s2266 + $0x6d0] sm:$0xff]
  %v2486 = vld [vmem:[%s2266 + $0x6d8] sm:$0xff]
  %v2487 = vld [vmem:[%s2266 + $0x6e0] sm:$0xff]
  %v2488 = vld [vmem:[%s2266 + $0x6e8] sm:$0xff]
  %v2489 = vld [vmem:[%s2266 + $0x6f0] sm:$0xff]
  %v2490 = vld [vmem:[%s2266 + $0x6f8] sm:$0xff]
  %v2491 = vld [vmem:[%s2266 + $0x700] sm:$0xff]
  %v2492 = vld [vmem:[%s2266 + $0x708] sm:$0xff]
  %v2493 = vld [vmem:[%s2266 + $0x710] sm:$0xff]
  %v2494 = vld [vmem:[%s2266 + $0x718] sm:$0xff]
  %v2495 = vld [vmem:[%s2266 + $0x720] sm:$0xff]
  %v2496 = vld [vmem:[%s2266 + $0x728] sm:$0xff]
  %v2497 = vld [vmem:[%s2266 + $0x730] sm:$0xff]
  %v2498 = vld [vmem:[%s2266 + $0x738] sm:$0xff]
  %v2499 = vld [vmem:[%s2266 + $0x740] sm:$0xff]
  %v2500 = vld [vmem:[%s2266 + $0x748] sm:$0xff]
  %v2501 = vld [vmem:[%s2266 + $0x750] sm:$0xff]
  %v2502 = vld [vmem:[%s2266 + $0x758] sm:$0xff]
  %v2503 = vld [vmem:[%s2266 + $0x760] sm:$0xff]
  %v2504 = vld [vmem:[%s2266 + $0x768] sm:$0xff]
  %v2505 = vld [vmem:[%s2266 + $0x770] sm:$0xff]
  %v2506 = vld [vmem:[%s2266 + $0x778] sm:$0xff]
  %v2507 = vld [vmem:[%s2266 + $0x780] sm:$0xff]
  %v2508 = vld [vmem:[%s2266 + $0x788] sm:$0xff]
  %v2509 = vld [vmem:[%s2266 + $0x790] sm:$0xff]
  %v2510 = vld [vmem:[%s2266 + $0x798] sm:$0xff]
  %v2511 = vld [vmem:[%s2266 + $0x7a0] sm:$0xff]
  %v2512 = vld [vmem:[%s2266 + $0x7a8] sm:$0xff]
  %v2513 = vld [vmem:[%s2266 + $0x7b0] sm:$0xff]
  %v2514 = vld [vmem:[%s2266 + $0x7b8] sm:$0xff]
  %v2515 = vld [vmem:[%s2266 + $0x7c0] sm:$0xff]
  %v2516 = vld [vmem:[%s2266 + $0x7c8] sm:$0xff]
  %v2517 = vld [vmem:[%s2266 + $0x7d0] sm:$0xff]
  %v2518 = vld [vmem:[%s2266 + $0x7d8] sm:$0xff]
  %v2519 = vld [vmem:[%s2266 + $0x7e0] sm:$0xff]
  %v2520 = vld [vmem:[%s2266 + $0x7e8] sm:$0xff]
  %v2521 = vld [vmem:[%s2266 + $0x7f0] sm:$0xff]
  %v2522 = vld [vmem:[%s2266 + $0x7f8] sm:$0xff]
  %v2523 = vld [vmem:[%s2266 + $0x800] sm:$0xff]
  %v2524 = vld [vmem:[%s2266 + $0x808] sm:$0xff]
  %v2525 = vld [vmem:[%s2266 + $0x810] sm:$0xff]
  %v2526 = vld [vmem:[%s2266 + $0x818] sm:$0xff]
  %v2527 = vld [vmem:[%s2266 + $0x820] sm:$0xff]
  %v2528 = vld [vmem:[%s2266 + $0x828] sm:$0xff]
  %v2529 = vld [vmem:[%s2266 + $0x830] sm:$0xff]
  %v2530 = vld [vmem:[%s2266 + $0x838] sm:$0xff]
  %v2531 = vld [vmem:[%s2266 + $0x840] sm:$0xff]
  %v2532 = vld [vmem:[%s2266 + $0x848] sm:$0xff]
  %v2533 = vld [vmem:[%s2266 + $0x850] sm:$0xff]
  %v2534 = vld [vmem:[%s2266 + $0x858] sm:$0xff]
  %v2535 = vld [vmem:[%s2266 + $0x860] sm:$0xff]
  %v2536 = vld [vmem:[%s2266 + $0x868] sm:$0xff]
  %v2537 = vld [vmem:[%s2266 + $0x870] sm:$0xff]
  %v2538 = vld [vmem:[%s2266 + $0x878] sm:$0xff]
  %v2539 = vld [vmem:[%s2266 + $0x880] sm:$0xff]
  %v2540 = vld [vmem:[%s2266 + $0x888] sm:$0xff]
  %v2541 = vld [vmem:[%s2266 + $0x890] sm:$0xff]
  %v2542 = vld [vmem:[%s2266 + $0x898] sm:$0xff]
  %v2543 = vld [vmem:[%s2266 + $0x8a0] sm:$0xff]
  %v2544 = vld [vmem:[%s2266 + $0x8a8] sm:$0xff]
  %v2545 = vld [vmem:[%s2266 + $0x8b0] sm:$0xff]
  %v2546 = vld [vmem:[%s2266 + $0x8b8] sm:$0xff]
  %v2547 = vld [vmem:[%s2266 + $0x8c0] sm:$0xff]
  %v2548 = vld [vmem:[%s2266 + $0x8c8] sm:$0xff]
  %v2549 = vld [vmem:[%s2266 + $0x8d0] sm:$0xff]
  %v2550 = vld [vmem:[%s2266 + $0x8d8] sm:$0xff]
  %v2551 = vld [vmem:[%s2266 + $0x8e0] sm:$0xff]
  %v2552 = vld [vmem:[%s2266 + $0x8e8] sm:$0xff]
  %v2553 = vld [vmem:[%s2266 + $0x8f0] sm:$0xff]
  %v2554 = vld [vmem:[%s2266 + $0x8f8] sm:$0xff]
  %s2555 = scalar_lea.vmem %s4, 6
  %v2556 = vld [vmem:[%s2555] sm:$0x3f]
  %v2558 = vlaneseq
  %v2559 = vshrl.u32 %v2558, 7
  %v2560 = vsub.s32 0, %v2559
  %v2561 = vrot.slane %v2556, %v2560
  %v2562 = vlaneseq
  %v2563 = vshrl.u32 %v2562, 7
  %v2564 = vsub.s32 1, %v2563
  %v2565 = vrot.slane %v2556, %v2564
  %v2566 = vlaneseq
  %v2567 = vshrl.u32 %v2566, 7
  %v2568 = vsub.s32 2, %v2567
  %v2569 = vrot.slane %v2556, %v2568
  %v2570 = vlaneseq
  %v2571 = vshrl.u32 %v2570, 7
  %v2572 = vsub.s32 3, %v2571
  %v2573 = vrot.slane %v2556, %v2572
  %v2574 = vlaneseq
  %v2575 = vshrl.u32 %v2574, 7
  %v2576 = vsub.s32 4, %v2575
  %v2577 = vrot.slane %v2556, %v2576
  %v2578 = vlaneseq
  %v2579 = vshrl.u32 %v2578, 7
  %v2580 = vsub.s32 5, %v2579
  %v2581 = vrot.slane %v2556, %v2580
  %v2876 = vunpack.c.l.b16 %v2267
  %v2877 = vunpack.c.h.b16 %v2267
  %v2878 = vunpack.c.l.b16 %v2268
  %v2879 = vunpack.c.h.b16 %v2268
  %v2880 = vunpack.c.l.b16 %v2269
  %v2881 = vunpack.c.h.b16 %v2269
  %v2882 = vunpack.c.l.b16 %v2270
  %v2883 = vunpack.c.h.b16 %v2270
  %v2884 = vunpack.c.l.b16 %v2271
  %v2885 = vunpack.c.h.b16 %v2271
  %v2886 = vunpack.c.l.b16 %v2272
  %v2887 = vunpack.c.h.b16 %v2272
  %v2888 = vunpack.c.l.b16 %v2273
  %v2889 = vunpack.c.h.b16 %v2273
  %v2890 = vunpack.c.l.b16 %v2274
  %v2891 = vunpack.c.h.b16 %v2274
  %v2892 = vunpack.c.l.b16 %v2275
  %v2893 = vunpack.c.h.b16 %v2275
  %v2894 = vunpack.c.l.b16 %v2276
  %v2895 = vunpack.c.h.b16 %v2276
  %v2896 = vunpack.c.l.b16 %v2277
  %v2897 = vunpack.c.h.b16 %v2277
  %v2898 = vunpack.c.l.b16 %v2278
  %v2899 = vunpack.c.h.b16 %v2278
  %v2900 = vunpack.c.l.b16 %v2279
  %v2901 = vunpack.c.h.b16 %v2279
  %v2902 = vunpack.c.l.b16 %v2280
  %v2903 = vunpack.c.h.b16 %v2280
  %v2904 = vunpack.c.l.b16 %v2281
  %v2905 = vunpack.c.h.b16 %v2281
  %v2906 = vunpack.c.l.b16 %v2282
  %v2907 = vunpack.c.h.b16 %v2282
  %v2908 = vunpack.c.l.b16 %v2283
  %v2909 = vunpack.c.h.b16 %v2283
  %v2910 = vunpack.c.l.b16 %v2284
  %v2911 = vunpack.c.h.b16 %v2284
  %v2912 = vunpack.c.l.b16 %v2285
  %v2913 = vunpack.c.h.b16 %v2285
  %v2914 = vunpack.c.l.b16 %v2286
  %v2915 = vunpack.c.h.b16 %v2286
  %v2916 = vunpack.c.l.b16 %v2287
  %v2917 = vunpack.c.h.b16 %v2287
  %v2918 = vunpack.c.l.b16 %v2288
  %v2919 = vunpack.c.h.b16 %v2288
  %v2920 = vunpack.c.l.b16 %v2289
  %v2921 = vunpack.c.h.b16 %v2289
  %v2922 = vunpack.c.l.b16 %v2290
  %v2923 = vunpack.c.h.b16 %v2290
  %v2924 = vunpack.c.l.b16 %v2291
  %v2925 = vunpack.c.h.b16 %v2291
  %v2926 = vunpack.c.l.b16 %v2292
  %v2927 = vunpack.c.h.b16 %v2292
  %v2928 = vunpack.c.l.b16 %v2293
  %v2929 = vunpack.c.h.b16 %v2293
  %v2930 = vunpack.c.l.b16 %v2294
  %v2931 = vunpack.c.h.b16 %v2294
  %v2932 = vunpack.c.l.b16 %v2295
  %v2933 = vunpack.c.h.b16 %v2295
  %v2934 = vunpack.c.l.b16 %v2296
  %v2935 = vunpack.c.h.b16 %v2296
  %v2936 = vunpack.c.l.b16 %v2297
  %v2937 = vunpack.c.h.b16 %v2297
  %v2938 = vunpack.c.l.b16 %v2298
  %v2939 = vunpack.c.h.b16 %v2298
  %v2940 = vunpack.c.l.b16 %v2299
  %v2941 = vunpack.c.h.b16 %v2299
  %v2942 = vunpack.c.l.b16 %v2300
  %v2943 = vunpack.c.h.b16 %v2300
  %v2944 = vunpack.c.l.b16 %v2301
  %v2945 = vunpack.c.h.b16 %v2301
  %v2946 = vunpack.c.l.b16 %v2302
  %v2947 = vunpack.c.h.b16 %v2302
  %v2948 = vunpack.c.l.b16 %v2303
  %v2949 = vunpack.c.h.b16 %v2303
  %v2950 = vunpack.c.l.b16 %v2304
  %v2951 = vunpack.c.h.b16 %v2304
  %v2952 = vunpack.c.l.b16 %v2305
  %v2953 = vunpack.c.h.b16 %v2305
  %v2954 = vunpack.c.l.b16 %v2306
  %v2955 = vunpack.c.h.b16 %v2306
  %v2956 = vunpack.c.l.b16 %v2307
  %v2957 = vunpack.c.h.b16 %v2307
  %v2958 = vunpack.c.l.b16 %v2308
  %v2959 = vunpack.c.h.b16 %v2308
  %v2960 = vunpack.c.l.b16 %v2309
  %v2961 = vunpack.c.h.b16 %v2309
  %v2962 = vunpack.c.l.b16 %v2310
  %v2963 = vunpack.c.h.b16 %v2310
  %v2964 = vunpack.c.l.b16 %v2311
  %v2965 = vunpack.c.h.b16 %v2311
  %v2966 = vunpack.c.l.b16 %v2312
  %v2967 = vunpack.c.h.b16 %v2312
  %v2968 = vunpack.c.l.b16 %v2313
  %v2969 = vunpack.c.h.b16 %v2313
  %v2970 = vunpack.c.l.b16 %v2314
  %v2971 = vunpack.c.h.b16 %v2314
  %v2972 = vunpack.c.l.b16 %v2315
  %v2973 = vunpack.c.h.b16 %v2315
  %v2974 = vunpack.c.l.b16 %v2316
  %v2975 = vunpack.c.h.b16 %v2316
  %v2976 = vunpack.c.l.b16 %v2317
  %v2977 = vunpack.c.h.b16 %v2317
  %v2978 = vunpack.c.l.b16 %v2318
  %v2979 = vunpack.c.h.b16 %v2318
  %v2980 = vunpack.c.l.b16 %v2319
  %v2981 = vunpack.c.h.b16 %v2319
  %v2982 = vunpack.c.l.b16 %v2320
  %v2983 = vunpack.c.h.b16 %v2320
  %v2984 = vunpack.c.l.b16 %v2321
  %v2985 = vunpack.c.h.b16 %v2321
  %v2986 = vunpack.c.l.b16 %v2322
  %v2987 = vunpack.c.h.b16 %v2322
  %v2988 = vunpack.c.l.b16 %v2323
  %v2989 = vunpack.c.h.b16 %v2323
  %v2990 = vunpack.c.l.b16 %v2324
  %v2991 = vunpack.c.h.b16 %v2324
  %v2992 = vunpack.c.l.b16 %v2325
  %v2993 = vunpack.c.h.b16 %v2325
  %v2994 = vunpack.c.l.b16 %v2326
  %v2995 = vunpack.c.h.b16 %v2326
  %v2996 = vunpack.c.l.b16 %v2327
  %v2997 = vunpack.c.h.b16 %v2327
  %v2998 = vunpack.c.l.b16 %v2328
  %v2999 = vunpack.c.h.b16 %v2328
  %v3000 = vunpack.c.l.b16 %v2329
  %v3001 = vunpack.c.h.b16 %v2329
  %v3002 = vunpack.c.l.b16 %v2330
  %v3003 = vunpack.c.h.b16 %v2330
  %v3004 = vunpack.c.l.b16 %v2331
  %v3005 = vunpack.c.h.b16 %v2331
  %v3006 = vunpack.c.l.b16 %v2332
  %v3007 = vunpack.c.h.b16 %v2332
  %v3008 = vunpack.c.l.b16 %v2333
  %v3009 = vunpack.c.h.b16 %v2333
  %v3010 = vunpack.c.l.b16 %v2334
  %v3011 = vunpack.c.h.b16 %v2334
  %v3012 = vunpack.c.l.b16 %v2335
  %v3013 = vunpack.c.h.b16 %v2335
  %v3014 = vunpack.c.l.b16 %v2336
  %v3015 = vunpack.c.h.b16 %v2336
  %v3016 = vunpack.c.l.b16 %v2337
  %v3017 = vunpack.c.h.b16 %v2337
  %v3018 = vunpack.c.l.b16 %v2338
  %v3019 = vunpack.c.h.b16 %v2338
  %v3020 = vunpack.c.l.b16 %v2339
  %v3021 = vunpack.c.h.b16 %v2339
  %v3022 = vunpack.c.l.b16 %v2340
  %v3023 = vunpack.c.h.b16 %v2340
  %v3024 = vunpack.c.l.b16 %v2341
  %v3025 = vunpack.c.h.b16 %v2341
  %v3026 = vunpack.c.l.b16 %v2342
  %v3027 = vunpack.c.h.b16 %v2342
  %v3028 = vunpack.c.l.b16 %v2343
  %v3029 = vunpack.c.h.b16 %v2343
  %v3030 = vunpack.c.l.b16 %v2344
  %v3031 = vunpack.c.h.b16 %v2344
  %v3032 = vunpack.c.l.b16 %v2345
  %v3033 = vunpack.c.h.b16 %v2345
  %v3034 = vunpack.c.l.b16 %v2346
  %v3035 = vunpack.c.h.b16 %v2346
  %v3036 = vunpack.c.l.b16 %v2347
  %v3037 = vunpack.c.h.b16 %v2347
  %v3038 = vunpack.c.l.b16 %v2348
  %v3039 = vunpack.c.h.b16 %v2348
  %v3040 = vunpack.c.l.b16 %v2349
  %v3041 = vunpack.c.h.b16 %v2349
  %v3042 = vunpack.c.l.b16 %v2350
  %v3043 = vunpack.c.h.b16 %v2350
  %v3044 = vunpack.c.l.b16 %v2351
  %v3045 = vunpack.c.h.b16 %v2351
  %v3046 = vunpack.c.l.b16 %v2352
  %v3047 = vunpack.c.h.b16 %v2352
  %v3048 = vunpack.c.l.b16 %v2353
  %v3049 = vunpack.c.h.b16 %v2353
  %v3050 = vunpack.c.l.b16 %v2354
  %v3051 = vunpack.c.h.b16 %v2354
  %v3052 = vunpack.c.l.b16 %v2355
  %v3053 = vunpack.c.h.b16 %v2355
  %v3054 = vunpack.c.l.b16 %v2356
  %v3055 = vunpack.c.h.b16 %v2356
  %v3056 = vunpack.c.l.b16 %v2357
  %v3057 = vunpack.c.h.b16 %v2357
  %v3058 = vunpack.c.l.b16 %v2358
  %v3059 = vunpack.c.h.b16 %v2358
  %v3060 = vunpack.c.l.b16 %v2359
  %v3061 = vunpack.c.h.b16 %v2359
  %v3062 = vunpack.c.l.b16 %v2360
  %v3063 = vunpack.c.h.b16 %v2360
  %v3064 = vunpack.c.l.b16 %v2361
  %v3065 = vunpack.c.h.b16 %v2361
  %v3066 = vunpack.c.l.b16 %v2362
  %v3067 = vunpack.c.h.b16 %v2362
  %v3068 = vunpack.c.l.b16 %v2363
  %v3069 = vunpack.c.h.b16 %v2363
  %v3070 = vunpack.c.l.b16 %v2364
  %v3071 = vunpack.c.h.b16 %v2364
  %v3072 = vunpack.c.l.b16 %v2365
  %v3073 = vunpack.c.h.b16 %v2365
  %v3074 = vunpack.c.l.b16 %v2366
  %v3075 = vunpack.c.h.b16 %v2366
  %v3076 = vunpack.c.l.b16 %v2367
  %v3077 = vunpack.c.h.b16 %v2367
  %v3078 = vunpack.c.l.b16 %v2368
  %v3079 = vunpack.c.h.b16 %v2368
  %v3080 = vunpack.c.l.b16 %v2369
  %v3081 = vunpack.c.h.b16 %v2369
  %v3082 = vunpack.c.l.b16 %v2370
  %v3083 = vunpack.c.h.b16 %v2370
  %v3084 = vunpack.c.l.b16 %v2371
  %v3085 = vunpack.c.h.b16 %v2371
  %v3086 = vunpack.c.l.b16 %v2372
  %v3087 = vunpack.c.h.b16 %v2372
  %v3088 = vunpack.c.l.b16 %v2373
  %v3089 = vunpack.c.h.b16 %v2373
  %v3090 = vunpack.c.l.b16 %v2374
  %v3091 = vunpack.c.h.b16 %v2374
  %v3092 = vunpack.c.l.b16 %v2375
  %v3093 = vunpack.c.h.b16 %v2375
  %v3094 = vunpack.c.l.b16 %v2376
  %v3095 = vunpack.c.h.b16 %v2376
  %v3096 = vunpack.c.l.b16 %v2377
  %v3097 = vunpack.c.h.b16 %v2377
  %v3098 = vunpack.c.l.b16 %v2378
  %v3099 = vunpack.c.h.b16 %v2378
  %v3100 = vunpack.c.l.b16 %v2379
  %v3101 = vunpack.c.h.b16 %v2379
  %v3102 = vunpack.c.l.b16 %v2380
  %v3103 = vunpack.c.h.b16 %v2380
  %v3104 = vunpack.c.l.b16 %v2381
  %v3105 = vunpack.c.h.b16 %v2381
  %v3106 = vunpack.c.l.b16 %v2382
  %v3107 = vunpack.c.h.b16 %v2382
  %v3108 = vunpack.c.l.b16 %v2383
  %v3109 = vunpack.c.h.b16 %v2383
  %v3110 = vunpack.c.l.b16 %v2384
  %v3111 = vunpack.c.h.b16 %v2384
  %v3112 = vunpack.c.l.b16 %v2385
  %v3113 = vunpack.c.h.b16 %v2385
  %v3114 = vunpack.c.l.b16 %v2386
  %v3115 = vunpack.c.h.b16 %v2386
  %v3116 = vunpack.c.l.b16 %v2387
  %v3117 = vunpack.c.h.b16 %v2387
  %v3118 = vunpack.c.l.b16 %v2388
  %v3119 = vunpack.c.h.b16 %v2388
  %v3120 = vunpack.c.l.b16 %v2389
  %v3121 = vunpack.c.h.b16 %v2389
  %v3122 = vunpack.c.l.b16 %v2390
  %v3123 = vunpack.c.h.b16 %v2390
  %v3124 = vunpack.c.l.b16 %v2391
  %v3125 = vunpack.c.h.b16 %v2391
  %v3126 = vunpack.c.l.b16 %v2392
  %v3127 = vunpack.c.h.b16 %v2392
  %v3128 = vunpack.c.l.b16 %v2393
  %v3129 = vunpack.c.h.b16 %v2393
  %v3130 = vunpack.c.l.b16 %v2394
  %v3131 = vunpack.c.h.b16 %v2394
  %v3132 = vunpack.c.l.b16 %v2395
  %v3133 = vunpack.c.h.b16 %v2395
  %v3134 = vunpack.c.l.b16 %v2396
  %v3135 = vunpack.c.h.b16 %v2396
  %v3136 = vunpack.c.l.b16 %v2397
  %v3137 = vunpack.c.h.b16 %v2397
  %v3138 = vunpack.c.l.b16 %v2398
  %v3139 = vunpack.c.h.b16 %v2398
  %v3140 = vunpack.c.l.b16 %v2399
  %v3141 = vunpack.c.h.b16 %v2399
  %v3142 = vunpack.c.l.b16 %v2400
  %v3143 = vunpack.c.h.b16 %v2400
  %v3144 = vunpack.c.l.b16 %v2401
  %v3145 = vunpack.c.h.b16 %v2401
  %v3146 = vunpack.c.l.b16 %v2402
  %v3147 = vunpack.c.h.b16 %v2402
  %v3148 = vunpack.c.l.b16 %v2403
  %v3149 = vunpack.c.h.b16 %v2403
  %v3150 = vunpack.c.l.b16 %v2404
  %v3151 = vunpack.c.h.b16 %v2404
  %v3152 = vunpack.c.l.b16 %v2405
  %v3153 = vunpack.c.h.b16 %v2405
  %v3154 = vunpack.c.l.b16 %v2406
  %v3155 = vunpack.c.h.b16 %v2406
  %v3156 = vunpack.c.l.b16 %v2407
  %v3157 = vunpack.c.h.b16 %v2407
  %v3158 = vunpack.c.l.b16 %v2408
  %v3159 = vunpack.c.h.b16 %v2408
  %v3160 = vunpack.c.l.b16 %v2409
  %v3161 = vunpack.c.h.b16 %v2409
  %v3162 = vunpack.c.l.b16 %v2410
  %v3163 = vunpack.c.h.b16 %v2410
  %v3164 = vunpack.c.l.b16 %v2411
  %v3165 = vunpack.c.h.b16 %v2411
  %v3166 = vunpack.c.l.b16 %v2412
  %v3167 = vunpack.c.h.b16 %v2412
  %v3168 = vunpack.c.l.b16 %v2413
  %v3169 = vunpack.c.h.b16 %v2413
  %v3170 = vunpack.c.l.b16 %v2414
  %v3171 = vunpack.c.h.b16 %v2414
  %v3172 = vunpack.c.l.b16 %v2415
  %v3173 = vunpack.c.h.b16 %v2415
  %v3174 = vunpack.c.l.b16 %v2416
  %v3175 = vunpack.c.h.b16 %v2416
  %v3176 = vunpack.c.l.b16 %v2417
  %v3177 = vunpack.c.h.b16 %v2417
  %v3178 = vunpack.c.l.b16 %v2418
  %v3179 = vunpack.c.h.b16 %v2418
  %v3180 = vunpack.c.l.b16 %v2419
  %v3181 = vunpack.c.h.b16 %v2419
  %v3182 = vunpack.c.l.b16 %v2420
  %v3183 = vunpack.c.h.b16 %v2420
  %v3184 = vunpack.c.l.b16 %v2421
  %v3185 = vunpack.c.h.b16 %v2421
  %v3186 = vunpack.c.l.b16 %v2422
  %v3187 = vunpack.c.h.b16 %v2422
  %v3188 = vunpack.c.l.b16 %v2423
  %v3189 = vunpack.c.h.b16 %v2423
  %v3190 = vunpack.c.l.b16 %v2424
  %v3191 = vunpack.c.h.b16 %v2424
  %v3192 = vunpack.c.l.b16 %v2425
  %v3193 = vunpack.c.h.b16 %v2425
  %v3194 = vunpack.c.l.b16 %v2426
  %v3195 = vunpack.c.h.b16 %v2426
  %v3196 = vunpack.c.l.b16 %v2427
  %v3197 = vunpack.c.h.b16 %v2427
  %v3198 = vunpack.c.l.b16 %v2428
  %v3199 = vunpack.c.h.b16 %v2428
  %v3200 = vunpack.c.l.b16 %v2429
  %v3201 = vunpack.c.h.b16 %v2429
  %v3202 = vunpack.c.l.b16 %v2430
  %v3203 = vunpack.c.h.b16 %v2430
  %v3204 = vunpack.c.l.b16 %v2431
  %v3205 = vunpack.c.h.b16 %v2431
  %v3206 = vunpack.c.l.b16 %v2432
  %v3207 = vunpack.c.h.b16 %v2432
  %v3208 = vunpack.c.l.b16 %v2433
  %v3209 = vunpack.c.h.b16 %v2433
  %v3210 = vunpack.c.l.b16 %v2434
  %v3211 = vunpack.c.h.b16 %v2434
  %v3212 = vunpack.c.l.b16 %v2435
  %v3213 = vunpack.c.h.b16 %v2435
  %v3214 = vunpack.c.l.b16 %v2436
  %v3215 = vunpack.c.h.b16 %v2436
  %v3216 = vunpack.c.l.b16 %v2437
  %v3217 = vunpack.c.h.b16 %v2437
  %v3218 = vunpack.c.l.b16 %v2438
  %v3219 = vunpack.c.h.b16 %v2438
  %v3220 = vunpack.c.l.b16 %v2439
  %v3221 = vunpack.c.h.b16 %v2439
  %v3222 = vunpack.c.l.b16 %v2440
  %v3223 = vunpack.c.h.b16 %v2440
  %v3224 = vunpack.c.l.b16 %v2441
  %v3225 = vunpack.c.h.b16 %v2441
  %v3226 = vunpack.c.l.b16 %v2442
  %v3227 = vunpack.c.h.b16 %v2442
  %v3228 = vunpack.c.l.b16 %v2443
  %v3229 = vunpack.c.h.b16 %v2443
  %v3230 = vunpack.c.l.b16 %v2444
  %v3231 = vunpack.c.h.b16 %v2444
  %v3232 = vunpack.c.l.b16 %v2445
  %v3233 = vunpack.c.h.b16 %v2445
  %v3234 = vunpack.c.l.b16 %v2446
  %v3235 = vunpack.c.h.b16 %v2446
  %v3236 = vunpack.c.l.b16 %v2447
  %v3237 = vunpack.c.h.b16 %v2447
  %v3238 = vunpack.c.l.b16 %v2448
  %v3239 = vunpack.c.h.b16 %v2448
  %v3240 = vunpack.c.l.b16 %v2449
  %v3241 = vunpack.c.h.b16 %v2449
  %v3242 = vunpack.c.l.b16 %v2450
  %v3243 = vunpack.c.h.b16 %v2450
  %v3244 = vunpack.c.l.b16 %v2451
  %v3245 = vunpack.c.h.b16 %v2451
  %v3246 = vunpack.c.l.b16 %v2452
  %v3247 = vunpack.c.h.b16 %v2452
  %v3248 = vunpack.c.l.b16 %v2453
  %v3249 = vunpack.c.h.b16 %v2453
  %v3250 = vunpack.c.l.b16 %v2454
  %v3251 = vunpack.c.h.b16 %v2454
  %v3252 = vunpack.c.l.b16 %v2455
  %v3253 = vunpack.c.h.b16 %v2455
  %v3254 = vunpack.c.l.b16 %v2456
  %v3255 = vunpack.c.h.b16 %v2456
  %v3256 = vunpack.c.l.b16 %v2457
  %v3257 = vunpack.c.h.b16 %v2457
  %v3258 = vunpack.c.l.b16 %v2458
  %v3259 = vunpack.c.h.b16 %v2458
  %v3260 = vunpack.c.l.b16 %v2459
  %v3261 = vunpack.c.h.b16 %v2459
  %v3262 = vunpack.c.l.b16 %v2460
  %v3263 = vunpack.c.h.b16 %v2460
  %v3264 = vunpack.c.l.b16 %v2461
  %v3265 = vunpack.c.h.b16 %v2461
  %v3266 = vunpack.c.l.b16 %v2462
  %v3267 = vunpack.c.h.b16 %v2462
  %v3268 = vunpack.c.l.b16 %v2463
  %v3269 = vunpack.c.h.b16 %v2463
  %v3270 = vunpack.c.l.b16 %v2464
  %v3271 = vunpack.c.h.b16 %v2464
  %v3272 = vunpack.c.l.b16 %v2465
  %v3273 = vunpack.c.h.b16 %v2465
  %v3274 = vunpack.c.l.b16 %v2466
  %v3275 = vunpack.c.h.b16 %v2466
  %v3276 = vunpack.c.l.b16 %v2467
  %v3277 = vunpack.c.h.b16 %v2467
  %v3278 = vunpack.c.l.b16 %v2468
  %v3279 = vunpack.c.h.b16 %v2468
  %v3280 = vunpack.c.l.b16 %v2469
  %v3281 = vunpack.c.h.b16 %v2469
  %v3282 = vunpack.c.l.b16 %v2470
  %v3283 = vunpack.c.h.b16 %v2470
  %v3284 = vunpack.c.l.b16 %v2471
  %v3285 = vunpack.c.h.b16 %v2471
  %v3286 = vunpack.c.l.b16 %v2472
  %v3287 = vunpack.c.h.b16 %v2472
  %v3288 = vunpack.c.l.b16 %v2473
  %v3289 = vunpack.c.h.b16 %v2473
  %v3290 = vunpack.c.l.b16 %v2474
  %v3291 = vunpack.c.h.b16 %v2474
  %v3292 = vunpack.c.l.b16 %v2475
  %v3293 = vunpack.c.h.b16 %v2475
  %v3294 = vunpack.c.l.b16 %v2476
  %v3295 = vunpack.c.h.b16 %v2476
  %v3296 = vunpack.c.l.b16 %v2477
  %v3297 = vunpack.c.h.b16 %v2477
  %v3298 = vunpack.c.l.b16 %v2478
  %v3299 = vunpack.c.h.b16 %v2478
  %v3300 = vunpack.c.l.b16 %v2479
  %v3301 = vunpack.c.h.b16 %v2479
  %v3302 = vunpack.c.l.b16 %v2480
  %v3303 = vunpack.c.h.b16 %v2480
  %v3304 = vunpack.c.l.b16 %v2481
  %v3305 = vunpack.c.h.b16 %v2481
  %v3306 = vunpack.c.l.b16 %v2482
  %v3307 = vunpack.c.h.b16 %v2482
  %v3308 = vunpack.c.l.b16 %v2483
  %v3309 = vunpack.c.h.b16 %v2483
  %v3310 = vunpack.c.l.b16 %v2484
  %v3311 = vunpack.c.h.b16 %v2484
  %v3312 = vunpack.c.l.b16 %v2485
  %v3313 = vunpack.c.h.b16 %v2485
  %v3314 = vunpack.c.l.b16 %v2486
  %v3315 = vunpack.c.h.b16 %v2486
  %v3316 = vunpack.c.l.b16 %v2487
  %v3317 = vunpack.c.h.b16 %v2487
  %v3318 = vunpack.c.l.b16 %v2488
  %v3319 = vunpack.c.h.b16 %v2488
  %v3320 = vunpack.c.l.b16 %v2489
  %v3321 = vunpack.c.h.b16 %v2489
  %v3322 = vunpack.c.l.b16 %v2490
  %v3323 = vunpack.c.h.b16 %v2490
  %v3324 = vunpack.c.l.b16 %v2491
  %v3325 = vunpack.c.h.b16 %v2491
  %v3326 = vunpack.c.l.b16 %v2492
  %v3327 = vunpack.c.h.b16 %v2492
  %v3328 = vunpack.c.l.b16 %v2493
  %v3329 = vunpack.c.h.b16 %v2493
  %v3330 = vunpack.c.l.b16 %v2494
  %v3331 = vunpack.c.h.b16 %v2494
  %v3332 = vunpack.c.l.b16 %v2495
  %v3333 = vunpack.c.h.b16 %v2495
  %v3334 = vunpack.c.l.b16 %v2496
  %v3335 = vunpack.c.h.b16 %v2496
  %v3336 = vunpack.c.l.b16 %v2497
  %v3337 = vunpack.c.h.b16 %v2497
  %v3338 = vunpack.c.l.b16 %v2498
  %v3339 = vunpack.c.h.b16 %v2498
  %v3340 = vunpack.c.l.b16 %v2499
  %v3341 = vunpack.c.h.b16 %v2499
  %v3342 = vunpack.c.l.b16 %v2500
  %v3343 = vunpack.c.h.b16 %v2500
  %v3344 = vunpack.c.l.b16 %v2501
  %v3345 = vunpack.c.h.b16 %v2501
  %v3346 = vunpack.c.l.b16 %v2502
  %v3347 = vunpack.c.h.b16 %v2502
  %v3348 = vunpack.c.l.b16 %v2503
  %v3349 = vunpack.c.h.b16 %v2503
  %v3350 = vunpack.c.l.b16 %v2504
  %v3351 = vunpack.c.h.b16 %v2504
  %v3352 = vunpack.c.l.b16 %v2505
  %v3353 = vunpack.c.h.b16 %v2505
  %v3354 = vunpack.c.l.b16 %v2506
  %v3355 = vunpack.c.h.b16 %v2506
  %v3356 = vunpack.c.l.b16 %v2507
  %v3357 = vunpack.c.h.b16 %v2507
  %v3358 = vunpack.c.l.b16 %v2508
  %v3359 = vunpack.c.h.b16 %v2508
  %v3360 = vunpack.c.l.b16 %v2509
  %v3361 = vunpack.c.h.b16 %v2509
  %v3362 = vunpack.c.l.b16 %v2510
  %v3363 = vunpack.c.h.b16 %v2510
  %v3364 = vunpack.c.l.b16 %v2511
  %v3365 = vunpack.c.h.b16 %v2511
  %v3366 = vunpack.c.l.b16 %v2512
  %v3367 = vunpack.c.h.b16 %v2512
  %v3368 = vunpack.c.l.b16 %v2513
  %v3369 = vunpack.c.h.b16 %v2513
  %v3370 = vunpack.c.l.b16 %v2514
  %v3371 = vunpack.c.h.b16 %v2514
  %v3372 = vunpack.c.l.b16 %v2515
  %v3373 = vunpack.c.h.b16 %v2515
  %v3374 = vunpack.c.l.b16 %v2516
  %v3375 = vunpack.c.h.b16 %v2516
  %v3376 = vunpack.c.l.b16 %v2517
  %v3377 = vunpack.c.h.b16 %v2517
  %v3378 = vunpack.c.l.b16 %v2518
  %v3379 = vunpack.c.h.b16 %v2518
  %v3380 = vunpack.c.l.b16 %v2519
  %v3381 = vunpack.c.h.b16 %v2519
  %v3382 = vunpack.c.l.b16 %v2520
  %v3383 = vunpack.c.h.b16 %v2520
  %v3384 = vunpack.c.l.b16 %v2521
  %v3385 = vunpack.c.h.b16 %v2521
  %v3386 = vunpack.c.l.b16 %v2522
  %v3387 = vunpack.c.h.b16 %v2522
  %v3388 = vunpack.c.l.b16 %v2523
  %v3389 = vunpack.c.h.b16 %v2523
  %v3390 = vunpack.c.l.b16 %v2524
  %v3391 = vunpack.c.h.b16 %v2524
  %v3392 = vunpack.c.l.b16 %v2525
  %v3393 = vunpack.c.h.b16 %v2525
  %v3394 = vunpack.c.l.b16 %v2526
  %v3395 = vunpack.c.h.b16 %v2526
  %v3396 = vunpack.c.l.b16 %v2527
  %v3397 = vunpack.c.h.b16 %v2527
  %v3398 = vunpack.c.l.b16 %v2528
  %v3399 = vunpack.c.h.b16 %v2528
  %v3400 = vunpack.c.l.b16 %v2529
  %v3401 = vunpack.c.h.b16 %v2529
  %v3402 = vunpack.c.l.b16 %v2530
  %v3403 = vunpack.c.h.b16 %v2530
  %v3404 = vunpack.c.l.b16 %v2531
  %v3405 = vunpack.c.h.b16 %v2531
  %v3406 = vunpack.c.l.b16 %v2532
  %v3407 = vunpack.c.h.b16 %v2532
  %v3408 = vunpack.c.l.b16 %v2533
  %v3409 = vunpack.c.h.b16 %v2533
  %v3410 = vunpack.c.l.b16 %v2534
  %v3411 = vunpack.c.h.b16 %v2534
  %v3412 = vunpack.c.l.b16 %v2535
  %v3413 = vunpack.c.h.b16 %v2535
  %v3414 = vunpack.c.l.b16 %v2536
  %v3415 = vunpack.c.h.b16 %v2536
  %v3416 = vunpack.c.l.b16 %v2537
  %v3417 = vunpack.c.h.b16 %v2537
  %v3418 = vunpack.c.l.b16 %v2538
  %v3419 = vunpack.c.h.b16 %v2538
  %v3420 = vunpack.c.l.b16 %v2539
  %v3421 = vunpack.c.h.b16 %v2539
  %v3422 = vunpack.c.l.b16 %v2540
  %v3423 = vunpack.c.h.b16 %v2540
  %v3424 = vunpack.c.l.b16 %v2541
  %v3425 = vunpack.c.h.b16 %v2541
  %v3426 = vunpack.c.l.b16 %v2542
  %v3427 = vunpack.c.h.b16 %v2542
  %v3428 = vunpack.c.l.b16 %v2543
  %v3429 = vunpack.c.h.b16 %v2543
  %v3430 = vunpack.c.l.b16 %v2544
  %v3431 = vunpack.c.h.b16 %v2544
  %v3432 = vunpack.c.l.b16 %v2545
  %v3433 = vunpack.c.h.b16 %v2545
  %v3434 = vunpack.c.l.b16 %v2546
  %v3435 = vunpack.c.h.b16 %v2546
  %v3436 = vunpack.c.l.b16 %v2547
  %v3437 = vunpack.c.h.b16 %v2547
  %v3438 = vunpack.c.l.b16 %v2548
  %v3439 = vunpack.c.h.b16 %v2548
  %v3440 = vunpack.c.l.b16 %v2549
  %v3441 = vunpack.c.h.b16 %v2549
  %v3442 = vunpack.c.l.b16 %v2550
  %v3443 = vunpack.c.h.b16 %v2550
  %v3444 = vunpack.c.l.b16 %v2551
  %v3445 = vunpack.c.h.b16 %v2551
  %v3446 = vunpack.c.l.b16 %v2552
  %v3447 = vunpack.c.h.b16 %v2552
  %v3448 = vunpack.c.l.b16 %v2553
  %v3449 = vunpack.c.h.b16 %v2553
  %v3450 = vunpack.c.l.b16 %v2554
  %v3451 = vunpack.c.h.b16 %v2554
  %v3452 = vpack.c.b16 %v2882, %v2876
  %v3453 = vpack.c.b16 %v2883, %v2877
  %v3454 = vpack.c.b16 %v2884, %v2878
  %v3455 = vpack.c.b16 %v2885, %v2879
  %v3456 = vpack.c.b16 %v2886, %v2880
  %v3457 = vpack.c.b16 %v2887, %v2881
  %v3458 = vpack.c.b16 %v2894, %v2888
  %v3459 = vpack.c.b16 %v2895, %v2889
  %v3460 = vpack.c.b16 %v2896, %v2890
  %v3461 = vpack.c.b16 %v2897, %v2891
  %v3462 = vpack.c.b16 %v2898, %v2892
  %v3463 = vpack.c.b16 %v2899, %v2893
  %v3464 = vpack.c.b16 %v2906, %v2900
  %v3465 = vpack.c.b16 %v2907, %v2901
  %v3466 = vpack.c.b16 %v2908, %v2902
  %v3467 = vpack.c.b16 %v2909, %v2903
  %v3468 = vpack.c.b16 %v2910, %v2904
  %v3469 = vpack.c.b16 %v2911, %v2905
  %v3470 = vpack.c.b16 %v2918, %v2912
  %v3471 = vpack.c.b16 %v2919, %v2913
  %v3472 = vpack.c.b16 %v2920, %v2914
  %v3473 = vpack.c.b16 %v2921, %v2915
  %v3474 = vpack.c.b16 %v2922, %v2916
  %v3475 = vpack.c.b16 %v2923, %v2917
  %v3476 = vpack.c.b16 %v2930, %v2924
  %v3477 = vpack.c.b16 %v2931, %v2925
  %v3478 = vpack.c.b16 %v2932, %v2926
  %v3479 = vpack.c.b16 %v2933, %v2927
  %v3480 = vpack.c.b16 %v2934, %v2928
  %v3481 = vpack.c.b16 %v2935, %v2929
  %v3482 = vpack.c.b16 %v2942, %v2936
  %v3483 = vpack.c.b16 %v2943, %v2937
  %v3484 = vpack.c.b16 %v2944, %v2938
  %v3485 = vpack.c.b16 %v2945, %v2939
  %v3486 = vpack.c.b16 %v2946, %v2940
  %v3487 = vpack.c.b16 %v2947, %v2941
  %v3488 = vpack.c.b16 %v2954, %v2948
  %v3489 = vpack.c.b16 %v2955, %v2949
  %v3490 = vpack.c.b16 %v2956, %v2950
  %v3491 = vpack.c.b16 %v2957, %v2951
  %v3492 = vpack.c.b16 %v2958, %v2952
  %v3493 = vpack.c.b16 %v2959, %v2953
  %v3494 = vpack.c.b16 %v2966, %v2960
  %v3495 = vpack.c.b16 %v2967, %v2961
  %v3496 = vpack.c.b16 %v2968, %v2962
  %v3497 = vpack.c.b16 %v2969, %v2963
  %v3498 = vpack.c.b16 %v2970, %v2964
  %v3499 = vpack.c.b16 %v2971, %v2965
  %v3500 = vpack.c.b16 %v2978, %v2972
  %v3501 = vpack.c.b16 %v2979, %v2973
  %v3502 = vpack.c.b16 %v2980, %v2974
  %v3503 = vpack.c.b16 %v2981, %v2975
  %v3504 = vpack.c.b16 %v2982, %v2976
  %v3505 = vpack.c.b16 %v2983, %v2977
  %v3506 = vpack.c.b16 %v2990, %v2984
  %v3507 = vpack.c.b16 %v2991, %v2985
  %v3508 = vpack.c.b16 %v2992, %v2986
  %v3509 = vpack.c.b16 %v2993, %v2987
  %v3510 = vpack.c.b16 %v2994, %v2988
  %v3511 = vpack.c.b16 %v2995, %v2989
  %v3512 = vpack.c.b16 %v3002, %v2996
  %v3513 = vpack.c.b16 %v3003, %v2997
  %v3514 = vpack.c.b16 %v3004, %v2998
  %v3515 = vpack.c.b16 %v3005, %v2999
  %v3516 = vpack.c.b16 %v3006, %v3000
  %v3517 = vpack.c.b16 %v3007, %v3001
  %v3518 = vpack.c.b16 %v3014, %v3008
  %v3519 = vpack.c.b16 %v3015, %v3009
  %v3520 = vpack.c.b16 %v3016, %v3010
  %v3521 = vpack.c.b16 %v3017, %v3011
  %v3522 = vpack.c.b16 %v3018, %v3012
  %v3523 = vpack.c.b16 %v3019, %v3013
  %v3524 = vpack.c.b16 %v3026, %v3020
  %v3525 = vpack.c.b16 %v3027, %v3021
  %v3526 = vpack.c.b16 %v3028, %v3022
  %v3527 = vpack.c.b16 %v3029, %v3023
  %v3528 = vpack.c.b16 %v3030, %v3024
  %v3529 = vpack.c.b16 %v3031, %v3025
  %v3530 = vpack.c.b16 %v3038, %v3032
  %v3531 = vpack.c.b16 %v3039, %v3033
  %v3532 = vpack.c.b16 %v3040, %v3034
  %v3533 = vpack.c.b16 %v3041, %v3035
  %v3534 = vpack.c.b16 %v3042, %v3036
  %v3535 = vpack.c.b16 %v3043, %v3037
  %v3536 = vpack.c.b16 %v3050, %v3044
  %v3537 = vpack.c.b16 %v3051, %v3045
  %v3538 = vpack.c.b16 %v3052, %v3046
  %v3539 = vpack.c.b16 %v3053, %v3047
  %v3540 = vpack.c.b16 %v3054, %v3048
  %v3541 = vpack.c.b16 %v3055, %v3049
  %v3542 = vpack.c.b16 %v3062, %v3056
  %v3543 = vpack.c.b16 %v3063, %v3057
  %v3544 = vpack.c.b16 %v3064, %v3058
  %v3545 = vpack.c.b16 %v3065, %v3059
  %v3546 = vpack.c.b16 %v3066, %v3060
  %v3547 = vpack.c.b16 %v3067, %v3061
  %v3548 = vpack.c.b16 %v3074, %v3068
  %v3549 = vpack.c.b16 %v3075, %v3069
  %v3550 = vpack.c.b16 %v3076, %v3070
  %v3551 = vpack.c.b16 %v3077, %v3071
  %v3552 = vpack.c.b16 %v3078, %v3072
  %v3553 = vpack.c.b16 %v3079, %v3073
  %v3554 = vpack.c.b16 %v3086, %v3080
  %v3555 = vpack.c.b16 %v3087, %v3081
  %v3556 = vpack.c.b16 %v3088, %v3082
  %v3557 = vpack.c.b16 %v3089, %v3083
  %v3558 = vpack.c.b16 %v3090, %v3084
  %v3559 = vpack.c.b16 %v3091, %v3085
  %v3560 = vpack.c.b16 %v3098, %v3092
  %v3561 = vpack.c.b16 %v3099, %v3093
  %v3562 = vpack.c.b16 %v3100, %v3094
  %v3563 = vpack.c.b16 %v3101, %v3095
  %v3564 = vpack.c.b16 %v3102, %v3096
  %v3565 = vpack.c.b16 %v3103, %v3097
  %v3566 = vpack.c.b16 %v3110, %v3104
  %v3567 = vpack.c.b16 %v3111, %v3105
  %v3568 = vpack.c.b16 %v3112, %v3106
  %v3569 = vpack.c.b16 %v3113, %v3107
  %v3570 = vpack.c.b16 %v3114, %v3108
  %v3571 = vpack.c.b16 %v3115, %v3109
  %v3572 = vpack.c.b16 %v3122, %v3116
  %v3573 = vpack.c.b16 %v3123, %v3117
  %v3574 = vpack.c.b16 %v3124, %v3118
  %v3575 = vpack.c.b16 %v3125, %v3119
  %v3576 = vpack.c.b16 %v3126, %v3120
  %v3577 = vpack.c.b16 %v3127, %v3121
  %v3578 = vpack.c.b16 %v3134, %v3128
  %v3579 = vpack.c.b16 %v3135, %v3129
  %v3580 = vpack.c.b16 %v3136, %v3130
  %v3581 = vpack.c.b16 %v3137, %v3131
  %v3582 = vpack.c.b16 %v3138, %v3132
  %v3583 = vpack.c.b16 %v3139, %v3133
  %v3584 = vpack.c.b16 %v3146, %v3140
  %v3585 = vpack.c.b16 %v3147, %v3141
  %v3586 = vpack.c.b16 %v3148, %v3142
  %v3587 = vpack.c.b16 %v3149, %v3143
  %v3588 = vpack.c.b16 %v3150, %v3144
  %v3589 = vpack.c.b16 %v3151, %v3145
  %v3590 = vpack.c.b16 %v3158, %v3152
  %v3591 = vpack.c.b16 %v3159, %v3153
  %v3592 = vpack.c.b16 %v3160, %v3154
  %v3593 = vpack.c.b16 %v3161, %v3155
  %v3594 = vpack.c.b16 %v3162, %v3156
  %v3595 = vpack.c.b16 %v3163, %v3157
  %v3596 = vpack.c.b16 %v3170, %v3164
  %v3597 = vpack.c.b16 %v3171, %v3165
  %v3598 = vpack.c.b16 %v3172, %v3166
  %v3599 = vpack.c.b16 %v3173, %v3167
  %v3600 = vpack.c.b16 %v3174, %v3168
  %v3601 = vpack.c.b16 %v3175, %v3169
  %v3602 = vpack.c.b16 %v3182, %v3176
  %v3603 = vpack.c.b16 %v3183, %v3177
  %v3604 = vpack.c.b16 %v3184, %v3178
  %v3605 = vpack.c.b16 %v3185, %v3179
  %v3606 = vpack.c.b16 %v3186, %v3180
  %v3607 = vpack.c.b16 %v3187, %v3181
  %v3608 = vpack.c.b16 %v3194, %v3188
  %v3609 = vpack.c.b16 %v3195, %v3189
  %v3610 = vpack.c.b16 %v3196, %v3190
  %v3611 = vpack.c.b16 %v3197, %v3191
  %v3612 = vpack.c.b16 %v3198, %v3192
  %v3613 = vpack.c.b16 %v3199, %v3193
  %v3614 = vpack.c.b16 %v3206, %v3200
  %v3615 = vpack.c.b16 %v3207, %v3201
  %v3616 = vpack.c.b16 %v3208, %v3202
  %v3617 = vpack.c.b16 %v3209, %v3203
  %v3618 = vpack.c.b16 %v3210, %v3204
  %v3619 = vpack.c.b16 %v3211, %v3205
  %v3620 = vpack.c.b16 %v3218, %v3212
  %v3621 = vpack.c.b16 %v3219, %v3213
  %v3622 = vpack.c.b16 %v3220, %v3214
  %v3623 = vpack.c.b16 %v3221, %v3215
  %v3624 = vpack.c.b16 %v3222, %v3216
  %v3625 = vpack.c.b16 %v3223, %v3217
  %v3626 = vpack.c.b16 %v3230, %v3224
  %v3627 = vpack.c.b16 %v3231, %v3225
  %v3628 = vpack.c.b16 %v3232, %v3226
  %v3629 = vpack.c.b16 %v3233, %v3227
  %v3630 = vpack.c.b16 %v3234, %v3228
  %v3631 = vpack.c.b16 %v3235, %v3229
  %v3632 = vpack.c.b16 %v3242, %v3236
  %v3633 = vpack.c.b16 %v3243, %v3237
  %v3634 = vpack.c.b16 %v3244, %v3238
  %v3635 = vpack.c.b16 %v3245, %v3239
  %v3636 = vpack.c.b16 %v3246, %v3240
  %v3637 = vpack.c.b16 %v3247, %v3241
  %v3638 = vpack.c.b16 %v3254, %v3248
  %v3639 = vpack.c.b16 %v3255, %v3249
  %v3640 = vpack.c.b16 %v3256, %v3250
  %v3641 = vpack.c.b16 %v3257, %v3251
  %v3642 = vpack.c.b16 %v3258, %v3252
  %v3643 = vpack.c.b16 %v3259, %v3253
  %v3644 = vpack.c.b16 %v3266, %v3260
  %v3645 = vpack.c.b16 %v3267, %v3261
  %v3646 = vpack.c.b16 %v3268, %v3262
  %v3647 = vpack.c.b16 %v3269, %v3263
  %v3648 = vpack.c.b16 %v3270, %v3264
  %v3649 = vpack.c.b16 %v3271, %v3265
  %v3650 = vpack.c.b16 %v3278, %v3272
  %v3651 = vpack.c.b16 %v3279, %v3273
  %v3652 = vpack.c.b16 %v3280, %v3274
  %v3653 = vpack.c.b16 %v3281, %v3275
  %v3654 = vpack.c.b16 %v3282, %v3276
  %v3655 = vpack.c.b16 %v3283, %v3277
  %v3656 = vpack.c.b16 %v3290, %v3284
  %v3657 = vpack.c.b16 %v3291, %v3285
  %v3658 = vpack.c.b16 %v3292, %v3286
  %v3659 = vpack.c.b16 %v3293, %v3287
  %v3660 = vpack.c.b16 %v3294, %v3288
  %v3661 = vpack.c.b16 %v3295, %v3289
  %v3662 = vpack.c.b16 %v3302, %v3296
  %v3663 = vpack.c.b16 %v3303, %v3297
  %v3664 = vpack.c.b16 %v3304, %v3298
  %v3665 = vpack.c.b16 %v3305, %v3299
  %v3666 = vpack.c.b16 %v3306, %v3300
  %v3667 = vpack.c.b16 %v3307, %v3301
  %v3668 = vpack.c.b16 %v3314, %v3308
  %v3669 = vpack.c.b16 %v3315, %v3309
  %v3670 = vpack.c.b16 %v3316, %v3310
  %v3671 = vpack.c.b16 %v3317, %v3311
  %v3672 = vpack.c.b16 %v3318, %v3312
  %v3673 = vpack.c.b16 %v3319, %v3313
  %v3674 = vpack.c.b16 %v3326, %v3320
  %v3675 = vpack.c.b16 %v3327, %v3321
  %v3676 = vpack.c.b16 %v3328, %v3322
  %v3677 = vpack.c.b16 %v3329, %v3323
  %v3678 = vpack.c.b16 %v3330, %v3324
  %v3679 = vpack.c.b16 %v3331, %v3325
  %v3680 = vpack.c.b16 %v3338, %v3332
  %v3681 = vpack.c.b16 %v3339, %v3333
  %v3682 = vpack.c.b16 %v3340, %v3334
  %v3683 = vpack.c.b16 %v3341, %v3335
  %v3684 = vpack.c.b16 %v3342, %v3336
  %v3685 = vpack.c.b16 %v3343, %v3337
  %v3686 = vpack.c.b16 %v3350, %v3344
  %v3687 = vpack.c.b16 %v3351, %v3345
  %v3688 = vpack.c.b16 %v3352, %v3346
  %v3689 = vpack.c.b16 %v3353, %v3347
  %v3690 = vpack.c.b16 %v3354, %v3348
  %v3691 = vpack.c.b16 %v3355, %v3349
  %v3692 = vpack.c.b16 %v3362, %v3356
  %v3693 = vpack.c.b16 %v3363, %v3357
  %v3694 = vpack.c.b16 %v3364, %v3358
  %v3695 = vpack.c.b16 %v3365, %v3359
  %v3696 = vpack.c.b16 %v3366, %v3360
  %v3697 = vpack.c.b16 %v3367, %v3361
  %v3698 = vpack.c.b16 %v3374, %v3368
  %v3699 = vpack.c.b16 %v3375, %v3369
  %v3700 = vpack.c.b16 %v3376, %v3370
  %v3701 = vpack.c.b16 %v3377, %v3371
  %v3702 = vpack.c.b16 %v3378, %v3372
  %v3703 = vpack.c.b16 %v3379, %v3373
  %v3704 = vpack.c.b16 %v3386, %v3380
  %v3705 = vpack.c.b16 %v3387, %v3381
  %v3706 = vpack.c.b16 %v3388, %v3382
  %v3707 = vpack.c.b16 %v3389, %v3383
  %v3708 = vpack.c.b16 %v3390, %v3384
  %v3709 = vpack.c.b16 %v3391, %v3385
  %v3710 = vpack.c.b16 %v3398, %v3392
  %v3711 = vpack.c.b16 %v3399, %v3393
  %v3712 = vpack.c.b16 %v3400, %v3394
  %v3713 = vpack.c.b16 %v3401, %v3395
  %v3714 = vpack.c.b16 %v3402, %v3396
  %v3715 = vpack.c.b16 %v3403, %v3397
  %v3716 = vpack.c.b16 %v3410, %v3404
  %v3717 = vpack.c.b16 %v3411, %v3405
  %v3718 = vpack.c.b16 %v3412, %v3406
  %v3719 = vpack.c.b16 %v3413, %v3407
  %v3720 = vpack.c.b16 %v3414, %v3408
  %v3721 = vpack.c.b16 %v3415, %v3409
  %v3722 = vpack.c.b16 %v3422, %v3416
  %v3723 = vpack.c.b16 %v3423, %v3417
  %v3724 = vpack.c.b16 %v3424, %v3418
  %v3725 = vpack.c.b16 %v3425, %v3419
  %v3726 = vpack.c.b16 %v3426, %v3420
  %v3727 = vpack.c.b16 %v3427, %v3421
  %v3728 = vpack.c.b16 %v3434, %v3428
  %v3729 = vpack.c.b16 %v3435, %v3429
  %v3730 = vpack.c.b16 %v3436, %v3430
  %v3731 = vpack.c.b16 %v3437, %v3431
  %v3732 = vpack.c.b16 %v3438, %v3432
  %v3733 = vpack.c.b16 %v3439, %v3433
  %v3734 = vpack.c.b16 %v3446, %v3440
  %v3735 = vpack.c.b16 %v3447, %v3441
  %v3736 = vpack.c.b16 %v3448, %v3442
  %v3737 = vpack.c.b16 %v3449, %v3443
  %v3738 = vpack.c.b16 %v3450, %v3444
  %v3739 = vpack.c.b16 %v3451, %v3445
  %4028 = vmatprep.subr.bf16.mxu0 %v3495
  %4029 = vmatpush1.bf16.msra.mxu0 %v3494
  %4030 = vmatprep.subr.bf16.mxu0 %v3489
  %4031 = vmatpush1.bf16.msra.mxu0 %v3488
  %4032 = vmatprep.subr.bf16.mxu0 %v3483
  %4033 = vmatpush1.bf16.msra.mxu0 %v3482
  %4034 = vmatprep.subr.bf16.mxu0 %v3477
  %4035 = vmatpush1.bf16.msra.mxu0 %v3476
  %4036 = vmatprep.subr.bf16.mxu0 %v3471
  %4037 = vmatpush1.bf16.msra.mxu0 %v3470
  %4038 = vmatprep.subr.bf16.mxu0 %v3465
  %4039 = vmatpush1.bf16.msra.mxu0 %v3464
  %4040 = vmatprep.subr.bf16.mxu0 %v3459
  %4041 = vmatpush1.bf16.msra.mxu0 %v3458
  %4042 = vmatprep.subr.bf16.mxu0 %v3453
  %4043 = vmatpush1.bf16.msra.mxu0 %v3452
  %4044 = vmatprep.subr.bf16.mxu0 %v3543
  %4045 = vmatpush2.bf16.msra.mxu0 %v3542
  %4046 = vmatprep.subr.bf16.mxu0 %v3537
  %4047 = vmatpush2.bf16.msra.mxu0 %v3536
  %4048 = vmatprep.subr.bf16.mxu0 %v3531
  %4049 = vmatpush2.bf16.msra.mxu0 %v3530
  %4050 = vmatprep.subr.bf16.mxu0 %v3525
  %4051 = vmatpush2.bf16.msra.mxu0 %v3524
  %4052 = vmatprep.subr.bf16.mxu0 %v3519
  %4053 = vmatpush2.bf16.msra.mxu0 %v3518
  %4054 = vmatprep.subr.bf16.mxu0 %v3513
  %4055 = vmatpush2.bf16.msra.mxu0 %v3512
  %4056 = vmatprep.subr.bf16.mxu0 %v3507
  %4057 = vmatpush2.bf16.msra.mxu0 %v3506
  %4058 = vmatprep.subr.bf16.mxu0 %v3501
  %4059 = vmatpush2.bf16.msra.mxu0 %v3500
  %4060 = vmatprep.mubr.bf16.mxu0 %v54
  %4061 = vmatmul.mubr.bf16.gmra.mxu0 %v53
  %v4062 = vpop.f32.mrf.mxu0
  %v4063 = vadd.f32 %v2561, %v4062
  %v4064 = vpop.f32.mrf.mxu0
  %v4065 = vadd.f32 %v2565, %v4064
  %v4066 = vpop.f32.mrf.mxu0
  %v4067 = vadd.f32 %v2561, %v4066
  %v4068 = vpop.f32.mrf.mxu0
  %v4069 = vadd.f32 %v2565, %v4068
  %4070 = vdwg.mxu0
  %4071 = vmatprep.subr.bf16.mxu0 %v3591
  %4072 = vmatpush1.bf16.msra.mxu0 %v3590
  %4073 = vmatprep.subr.bf16.mxu0 %v3585
  %4074 = vmatpush1.bf16.msra.mxu0 %v3584
  %4075 = vmatprep.subr.bf16.mxu0 %v3579
  %4076 = vmatpush1.bf16.msra.mxu0 %v3578
  %4077 = vmatprep.subr.bf16.mxu0 %v3573
  %4078 = vmatpush1.bf16.msra.mxu0 %v3572
  %4079 = vmatprep.subr.bf16.mxu0 %v3567
  %4080 = vmatpush1.bf16.msra.mxu0 %v3566
  %4081 = vmatprep.subr.bf16.mxu0 %v3561
  %4082 = vmatpush1.bf16.msra.mxu0 %v3560
  %4083 = vmatprep.subr.bf16.mxu0 %v3555
  %4084 = vmatpush1.bf16.msra.mxu0 %v3554
  %4085 = vmatprep.subr.bf16.mxu0 %v3549
  %4086 = vmatpush1.bf16.msra.mxu0 %v3548
  %4087 = vmatprep.subr.bf16.mxu0 %v3639
  %4088 = vmatpush2.bf16.msra.mxu0 %v3638
  %4089 = vmatprep.subr.bf16.mxu0 %v3633
  %4090 = vmatpush2.bf16.msra.mxu0 %v3632
  %4091 = vmatprep.subr.bf16.mxu0 %v3627
  %4092 = vmatpush2.bf16.msra.mxu0 %v3626
  %4093 = vmatprep.subr.bf16.mxu0 %v3621
  %4094 = vmatpush2.bf16.msra.mxu0 %v3620
  %4095 = vmatprep.subr.bf16.mxu0 %v3615
  %4096 = vmatpush2.bf16.msra.mxu0 %v3614
  %4097 = vmatprep.subr.bf16.mxu0 %v3609
  %4098 = vmatpush2.bf16.msra.mxu0 %v3608
  %4099 = vmatprep.subr.bf16.mxu0 %v3603
  %4100 = vmatpush2.bf16.msra.mxu0 %v3602
  %4101 = vmatprep.subr.bf16.mxu0 %v3597
  %4102 = vmatpush2.bf16.msra.mxu0 %v3596
  %4103 = vmatprep.mubr.bf16.mxu0 %v56
  %4104 = vmatmul.mubr.bf16.gmra.mxu0 %v55
  %v4105 = vpop.f32.mrf.mxu0
  %v4106 = vadd.f32 %v4063, %v4105
  %v4107 = vpop.f32.mrf.mxu0
  %v4108 = vadd.f32 %v4065, %v4107
  %v4109 = vpop.f32.mrf.mxu0
  %v4110 = vadd.f32 %v4067, %v4109
  %v4111 = vpop.f32.mrf.mxu0
  %v4112 = vadd.f32 %v4069, %v4111
  %4113 = vdwg.mxu0
  %4114 = vmatprep.subr.bf16.mxu0 %v3687
  %4115 = vmatpush1.bf16.msra.mxu0 %v3686
  %4116 = vmatprep.subr.bf16.mxu0 %v3681
  %4117 = vmatpush1.bf16.msra.mxu0 %v3680
  %4118 = vmatprep.subr.bf16.mxu0 %v3675
  %4119 = vmatpush1.bf16.msra.mxu0 %v3674
  %4120 = vmatprep.subr.bf16.mxu0 %v3669
  %4121 = vmatpush1.bf16.msra.mxu0 %v3668
  %4122 = vmatprep.subr.bf16.mxu0 %v3663
  %4123 = vmatpush1.bf16.msra.mxu0 %v3662
  %4124 = vmatprep.subr.bf16.mxu0 %v3657
  %4125 = vmatpush1.bf16.msra.mxu0 %v3656
  %4126 = vmatprep.subr.bf16.mxu0 %v3651
  %4127 = vmatpush1.bf16.msra.mxu0 %v3650
  %4128 = vmatprep.subr.bf16.mxu0 %v3645
  %4129 = vmatpush1.bf16.msra.mxu0 %v3644
  %4130 = vmatprep.subr.bf16.mxu0 %v3735
  %4131 = vmatpush2.bf16.msra.mxu0 %v3734
  %4132 = vmatprep.subr.bf16.mxu0 %v3729
  %4133 = vmatpush2.bf16.msra.mxu0 %v3728
  %4134 = vmatprep.subr.bf16.mxu0 %v3723
  %4135 = vmatpush2.bf16.msra.mxu0 %v3722
  %4136 = vmatprep.subr.bf16.mxu0 %v3717
  %4137 = vmatpush2.bf16.msra.mxu0 %v3716
  %4138 = vmatprep.subr.bf16.mxu0 %v3711
  %4139 = vmatpush2.bf16.msra.mxu0 %v3710
  %4140 = vmatprep.subr.bf16.mxu0 %v3705
  %4141 = vmatpush2.bf16.msra.mxu0 %v3704
  %4142 = vmatprep.subr.bf16.mxu0 %v3699
  %4143 = vmatpush2.bf16.msra.mxu0 %v3698
  %4144 = vmatprep.subr.bf16.mxu0 %v3693
  %4145 = vmatpush2.bf16.msra.mxu0 %v3692
  %4146 = vmatprep.mubr.bf16.mxu0 %v58
  %4147 = vmatmul.mubr.bf16.gmra.mxu0 %v57
  %v4148 = vpop.f32.mrf.mxu0
  %v4149 = vadd.f32 %v4106, %v4148
  %v4150 = vpop.f32.mrf.mxu0
  %v4151 = vadd.f32 %v4108, %v4150
  %v4152 = vpop.f32.mrf.mxu0
  %v4153 = vadd.f32 %v4110, %v4152
  %v4154 = vpop.f32.mrf.mxu0
  %v4155 = vadd.f32 %v4112, %v4154
  %4156 = vdwg.mxu0
  %4157 = vmatprep.subr.bf16.mxu0 %v3497
  %4158 = vmatpush1.bf16.msra.mxu0 %v3496
  %4159 = vmatprep.subr.bf16.mxu0 %v3491
  %4160 = vmatpush1.bf16.msra.mxu0 %v3490
  %4161 = vmatprep.subr.bf16.mxu0 %v3485
  %4162 = vmatpush1.bf16.msra.mxu0 %v3484
  %4163 = vmatprep.subr.bf16.mxu0 %v3479
  %4164 = vmatpush1.bf16.msra.mxu0 %v3478
  %4165 = vmatprep.subr.bf16.mxu0 %v3473
  %4166 = vmatpush1.bf16.msra.mxu0 %v3472
  %4167 = vmatprep.subr.bf16.mxu0 %v3467
  %4168 = vmatpush1.bf16.msra.mxu0 %v3466
  %4169 = vmatprep.subr.bf16.mxu0 %v3461
  %4170 = vmatpush1.bf16.msra.mxu0 %v3460
  %4171 = vmatprep.subr.bf16.mxu0 %v3455
  %4172 = vmatpush1.bf16.msra.mxu0 %v3454
  %4173 = vmatprep.subr.bf16.mxu0 %v3545
  %4174 = vmatpush2.bf16.msra.mxu0 %v3544
  %4175 = vmatprep.subr.bf16.mxu0 %v3539
  %4176 = vmatpush2.bf16.msra.mxu0 %v3538
  %4177 = vmatprep.subr.bf16.mxu0 %v3533
  %4178 = vmatpush2.bf16.msra.mxu0 %v3532
  %4179 = vmatprep.subr.bf16.mxu0 %v3527
  %4180 = vmatpush2.bf16.msra.mxu0 %v3526
  %4181 = vmatprep.subr.bf16.mxu0 %v3521
  %4182 = vmatpush2.bf16.msra.mxu0 %v3520
  %4183 = vmatprep.subr.bf16.mxu0 %v3515
  %4184 = vmatpush2.bf16.msra.mxu0 %v3514
  %4185 = vmatprep.subr.bf16.mxu0 %v3509
  %4186 = vmatpush2.bf16.msra.mxu0 %v3508
  %4187 = vmatprep.subr.bf16.mxu0 %v3503
  %4188 = vmatpush2.bf16.msra.mxu0 %v3502
  %4189 = vmatprep.mubr.bf16.mxu0 %v54
  %4190 = vmatmul.mubr.bf16.gmra.mxu0 %v53
  %v4191 = vpop.f32.mrf.mxu0
  %v4192 = vadd.f32 %v2569, %v4191
  %v4193 = vpop.f32.mrf.mxu0
  %v4194 = vadd.f32 %v2573, %v4193
  %v4195 = vpop.f32.mrf.mxu0
  %v4196 = vadd.f32 %v2569, %v4195
  %v4197 = vpop.f32.mrf.mxu0
  %v4198 = vadd.f32 %v2573, %v4197
  %4199 = vdwg.mxu0
  %4200 = vmatprep.subr.bf16.mxu0 %v3593
  %4201 = vmatpush1.bf16.msra.mxu0 %v3592
  %4202 = vmatprep.subr.bf16.mxu0 %v3587
  %4203 = vmatpush1.bf16.msra.mxu0 %v3586
  %4204 = vmatprep.subr.bf16.mxu0 %v3581
  %4205 = vmatpush1.bf16.msra.mxu0 %v3580
  %4206 = vmatprep.subr.bf16.mxu0 %v3575
  %4207 = vmatpush1.bf16.msra.mxu0 %v3574
  %4208 = vmatprep.subr.bf16.mxu0 %v3569
  %4209 = vmatpush1.bf16.msra.mxu0 %v3568
  %4210 = vmatprep.subr.bf16.mxu0 %v3563
  %4211 = vmatpush1.bf16.msra.mxu0 %v3562
  %4212 = vmatprep.subr.bf16.mxu0 %v3557
  %4213 = vmatpush1.bf16.msra.mxu0 %v3556
  %4214 = vmatprep.subr.bf16.mxu0 %v3551
  %4215 = vmatpush1.bf16.msra.mxu0 %v3550
  %4216 = vmatprep.subr.bf16.mxu0 %v3641
  %4217 = vmatpush2.bf16.msra.mxu0 %v3640
  %4218 = vmatprep.subr.bf16.mxu0 %v3635
  %4219 = vmatpush2.bf16.msra.mxu0 %v3634
  %4220 = vmatprep.subr.bf16.mxu0 %v3629
  %4221 = vmatpush2.bf16.msra.mxu0 %v3628
  %4222 = vmatprep.subr.bf16.mxu0 %v3623
  %4223 = vmatpush2.bf16.msra.mxu0 %v3622
  %4224 = vmatprep.subr.bf16.mxu0 %v3617
  %4225 = vmatpush2.bf16.msra.mxu0 %v3616
  %4226 = vmatprep.subr.bf16.mxu0 %v3611
  %4227 = vmatpush2.bf16.msra.mxu0 %v3610
  %4228 = vmatprep.subr.bf16.mxu0 %v3605
  %4229 = vmatpush2.bf16.msra.mxu0 %v3604
  %4230 = vmatprep.subr.bf16.mxu0 %v3599
  %4231 = vmatpush2.bf16.msra.mxu0 %v3598
  %4232 = vmatprep.mubr.bf16.mxu0 %v56
  %4233 = vmatmul.mubr.bf16.gmra.mxu0 %v55
  %v4234 = vpop.f32.mrf.mxu0
  %v4235 = vadd.f32 %v4192, %v4234
  %v4236 = vpop.f32.mrf.mxu0
  %v4237 = vadd.f32 %v4194, %v4236
  %v4238 = vpop.f32.mrf.mxu0
  %v4239 = vadd.f32 %v4196, %v4238
  %v4240 = vpop.f32.mrf.mxu0
  %v4241 = vadd.f32 %v4198, %v4240
  %4242 = vdwg.mxu0
  %4243 = vmatprep.subr.bf16.mxu0 %v3689
  %4244 = vmatpush1.bf16.msra.mxu0 %v3688
  %4245 = vmatprep.subr.bf16.mxu0 %v3683
  %4246 = vmatpush1.bf16.msra.mxu0 %v3682
  %4247 = vmatprep.subr.bf16.mxu0 %v3677
  %4248 = vmatpush1.bf16.msra.mxu0 %v3676
  %4249 = vmatprep.subr.bf16.mxu0 %v3671
  %4250 = vmatpush1.bf16.msra.mxu0 %v3670
  %4251 = vmatprep.subr.bf16.mxu0 %v3665
  %4252 = vmatpush1.bf16.msra.mxu0 %v3664
  %4253 = vmatprep.subr.bf16.mxu0 %v3659
  %4254 = vmatpush1.bf16.msra.mxu0 %v3658
  %4255 = vmatprep.subr.bf16.mxu0 %v3653
  %4256 = vmatpush1.bf16.msra.mxu0 %v3652
  %4257 = vmatprep.subr.bf16.mxu0 %v3647
  %4258 = vmatpush1.bf16.msra.mxu0 %v3646
  %4259 = vmatprep.subr.bf16.mxu0 %v3737
  %4260 = vmatpush2.bf16.msra.mxu0 %v3736
  %4261 = vmatprep.subr.bf16.mxu0 %v3731
  %4262 = vmatpush2.bf16.msra.mxu0 %v3730
  %4263 = vmatprep.subr.bf16.mxu0 %v3725
  %4264 = vmatpush2.bf16.msra.mxu0 %v3724
  %4265 = vmatprep.subr.bf16.mxu0 %v3719
  %4266 = vmatpush2.bf16.msra.mxu0 %v3718
  %4267 = vmatprep.subr.bf16.mxu0 %v3713
  %4268 = vmatpush2.bf16.msra.mxu0 %v3712
  %4269 = vmatprep.subr.bf16.mxu0 %v3707
  %4270 = vmatpush2.bf16.msra.mxu0 %v3706
  %4271 = vmatprep.subr.bf16.mxu0 %v3701
  %4272 = vmatpush2.bf16.msra.mxu0 %v3700
  %4273 = vmatprep.subr.bf16.mxu0 %v3695
  %4274 = vmatpush2.bf16.msra.mxu0 %v3694
  %4275 = vmatprep.mubr.bf16.mxu0 %v58
  %4276 = vmatmul.mubr.bf16.gmra.mxu0 %v57
  %v4277 = vpop.f32.mrf.mxu0
  %v4278 = vadd.f32 %v4235, %v4277
  %v4279 = vpop.f32.mrf.mxu0
  %v4280 = vadd.f32 %v4237, %v4279
  %v4281 = vpop.f32.mrf.mxu0
  %v4282 = vadd.f32 %v4239, %v4281
  %v4283 = vpop.f32.mrf.mxu0
  %v4284 = vadd.f32 %v4241, %v4283
  %4285 = vdwg.mxu0
  %4286 = vmatprep.subr.bf16.mxu0 %v3499
  %4287 = vmatpush1.bf16.msra.mxu0 %v3498
  %4288 = vmatprep.subr.bf16.mxu0 %v3493
  %4289 = vmatpush1.bf16.msra.mxu0 %v3492
  %4290 = vmatprep.subr.bf16.mxu0 %v3487
  %4291 = vmatpush1.bf16.msra.mxu0 %v3486
  %4292 = vmatprep.subr.bf16.mxu0 %v3481
  %4293 = vmatpush1.bf16.msra.mxu0 %v3480
  %4294 = vmatprep.subr.bf16.mxu0 %v3475
  %4295 = vmatpush1.bf16.msra.mxu0 %v3474
  %4296 = vmatprep.subr.bf16.mxu0 %v3469
  %4297 = vmatpush1.bf16.msra.mxu0 %v3468
  %4298 = vmatprep.subr.bf16.mxu0 %v3463
  %4299 = vmatpush1.bf16.msra.mxu0 %v3462
  %4300 = vmatprep.subr.bf16.mxu0 %v3457
  %4301 = vmatpush1.bf16.msra.mxu0 %v3456
  %4302 = vmatprep.subr.bf16.mxu0 %v3547
  %4303 = vmatpush2.bf16.msra.mxu0 %v3546
  %4304 = vmatprep.subr.bf16.mxu0 %v3541
  %4305 = vmatpush2.bf16.msra.mxu0 %v3540
  %4306 = vmatprep.subr.bf16.mxu0 %v3535
  %4307 = vmatpush2.bf16.msra.mxu0 %v3534
  %4308 = vmatprep.subr.bf16.mxu0 %v3529
  %4309 = vmatpush2.bf16.msra.mxu0 %v3528
  %4310 = vmatprep.subr.bf16.mxu0 %v3523
  %4311 = vmatpush2.bf16.msra.mxu0 %v3522
  %4312 = vmatprep.subr.bf16.mxu0 %v3517
  %4313 = vmatpush2.bf16.msra.mxu0 %v3516
  %4314 = vmatprep.subr.bf16.mxu0 %v3511
  %4315 = vmatpush2.bf16.msra.mxu0 %v3510
  %4316 = vmatprep.subr.bf16.mxu0 %v3505
  %4317 = vmatpush2.bf16.msra.mxu0 %v3504
  %4318 = vmatprep.mubr.bf16.mxu0 %v54
  %4319 = vmatmul.mubr.bf16.gmra.mxu0 %v53
  %v4320 = vpop.f32.mrf.mxu0
  %v4321 = vadd.f32 %v2577, %v4320
  %v4322 = vpop.f32.mrf.mxu0
  %v4323 = vadd.f32 %v2581, %v4322
  %v4324 = vpop.f32.mrf.mxu0
  %v4325 = vadd.f32 %v2577, %v4324
  %v4326 = vpop.f32.mrf.mxu0
  %v4327 = vadd.f32 %v2581, %v4326
  %4328 = vdwg.mxu0
  %4329 = vmatprep.subr.bf16.mxu0 %v3595
  %4330 = vmatpush1.bf16.msra.mxu0 %v3594
  %4331 = vmatprep.subr.bf16.mxu0 %v3589
  %4332 = vmatpush1.bf16.msra.mxu0 %v3588
  %4333 = vmatprep.subr.bf16.mxu0 %v3583
  %4334 = vmatpush1.bf16.msra.mxu0 %v3582
  %4335 = vmatprep.subr.bf16.mxu0 %v3577
  %4336 = vmatpush1.bf16.msra.mxu0 %v3576
  %4337 = vmatprep.subr.bf16.mxu0 %v3571
  %4338 = vmatpush1.bf16.msra.mxu0 %v3570
  %4339 = vmatprep.subr.bf16.mxu0 %v3565
  %4340 = vmatpush1.bf16.msra.mxu0 %v3564
  %4341 = vmatprep.subr.bf16.mxu0 %v3559
  %4342 = vmatpush1.bf16.msra.mxu0 %v3558
  %4343 = vmatprep.subr.bf16.mxu0 %v3553
  %4344 = vmatpush1.bf16.msra.mxu0 %v3552
  %4345 = vmatprep.subr.bf16.mxu0 %v3643
  %4346 = vmatpush2.bf16.msra.mxu0 %v3642
  %4347 = vmatprep.subr.bf16.mxu0 %v3637
  %4348 = vmatpush2.bf16.msra.mxu0 %v3636
  %4349 = vmatprep.subr.bf16.mxu0 %v3631
  %4350 = vmatpush2.bf16.msra.mxu0 %v3630
  %4351 = vmatprep.subr.bf16.mxu0 %v3625
  %4352 = vmatpush2.bf16.msra.mxu0 %v3624
  %4353 = vmatprep.subr.bf16.mxu0 %v3619
  %4354 = vmatpush2.bf16.msra.mxu0 %v3618
  %4355 = vmatprep.subr.bf16.mxu0 %v3613
  %4356 = vmatpush2.bf16.msra.mxu0 %v3612
  %4357 = vmatprep.subr.bf16.mxu0 %v3607
  %4358 = vmatpush2.bf16.msra.mxu0 %v3606
  %4359 = vmatprep.subr.bf16.mxu0 %v3601
  %4360 = vmatpush2.bf16.msra.mxu0 %v3600
  %4361 = vmatprep.mubr.bf16.mxu0 %v56
  %4362 = vmatmul.mubr.bf16.gmra.mxu0 %v55
  %v4363 = vpop.f32.mrf.mxu0
  %v4364 = vadd.f32 %v4321, %v4363
  %v4365 = vpop.f32.mrf.mxu0
  %v4366 = vadd.f32 %v4323, %v4365
  %v4367 = vpop.f32.mrf.mxu0
  %v4368 = vadd.f32 %v4325, %v4367
  %v4369 = vpop.f32.mrf.mxu0
  %v4370 = vadd.f32 %v4327, %v4369
  %4371 = vdwg.mxu0
  %4372 = vmatprep.subr.bf16.mxu0 %v3691
  %4373 = vmatpush1.bf16.msra.mxu0 %v3690
  %4374 = vmatprep.subr.bf16.mxu0 %v3685
  %4375 = vmatpush1.bf16.msra.mxu0 %v3684
  %4376 = vmatprep.subr.bf16.mxu0 %v3679
  %4377 = vmatpush1.bf16.msra.mxu0 %v3678
  %4378 = vmatprep.subr.bf16.mxu0 %v3673
  %4379 = vmatpush1.bf16.msra.mxu0 %v3672
  %4380 = vmatprep.subr.bf16.mxu0 %v3667
  %4381 = vmatpush1.bf16.msra.mxu0 %v3666
  %4382 = vmatprep.subr.bf16.mxu0 %v3661
  %4383 = vmatpush1.bf16.msra.mxu0 %v3660
  %4384 = vmatprep.subr.bf16.mxu0 %v3655
  %4385 = vmatpush1.bf16.msra.mxu0 %v3654
  %4386 = vmatprep.subr.bf16.mxu0 %v3649
  %4387 = vmatpush1.bf16.msra.mxu0 %v3648
  %4388 = vmatprep.subr.bf16.mxu0 %v3739
  %4389 = vmatpush2.bf16.msra.mxu0 %v3738
  %4390 = vmatprep.subr.bf16.mxu0 %v3733
  %4391 = vmatpush2.bf16.msra.mxu0 %v3732
  %4392 = vmatprep.subr.bf16.mxu0 %v3727
  %4393 = vmatpush2.bf16.msra.mxu0 %v3726
  %4394 = vmatprep.subr.bf16.mxu0 %v3721
  %4395 = vmatpush2.bf16.msra.mxu0 %v3720
  %4396 = vmatprep.subr.bf16.mxu0 %v3715
  %4397 = vmatpush2.bf16.msra.mxu0 %v3714
  %4398 = vmatprep.subr.bf16.mxu0 %v3709
  %4399 = vmatpush2.bf16.msra.mxu0 %v3708
  %4400 = vmatprep.subr.bf16.mxu0 %v3703
  %4401 = vmatpush2.bf16.msra.mxu0 %v3702
  %4402 = vmatprep.subr.bf16.mxu0 %v3697
  %4403 = vmatpush2.bf16.msra.mxu0 %v3696
  %4404 = vmatprep.mubr.bf16.mxu0 %v58
  %4405 = vmatmul.mubr.bf16.gmra.mxu0 %v57
  %v4406 = vpop.f32.mrf.mxu0
  %v4407 = vadd.f32 %v4364, %v4406
  %v4408 = vpop.f32.mrf.mxu0
  %v4409 = vadd.f32 %v4366, %v4408
  %v4410 = vpop.f32.mrf.mxu0
  %v4411 = vadd.f32 %v4368, %v4410
  %v4412 = vpop.f32.mrf.mxu0
  %v4413 = vadd.f32 %v4370, %v4412
  %4414 = vdwg.mxu0
  %v4415 = vpack.c.bf16 %v4153, %v4149
  %v4416 = vpack.c.bf16 %v4155, %v4151
  %v4417 = vpack.c.bf16 %v4282, %v4278
  %v4418 = vpack.c.bf16 %v4284, %v4280
  %v4419 = vpack.c.bf16 %v4411, %v4407
  %v4420 = vpack.c.bf16 %v4413, %v4409
  %v4427 = vunpack.c.l.b16 %v4415
  %v4428 = vunpack.c.l.b16 %v4416
  %v4429 = vunpack.c.l.b16 %v4417
  %v4430 = vunpack.c.l.b16 %v4418
  %v4431 = vunpack.c.l.b16 %v4419
  %v4432 = vunpack.c.l.b16 %v4420
  %v4433 = vunpack.c.h.b16 %v4415
  %v4434 = vunpack.c.h.b16 %v4416
  %v4435 = vunpack.c.h.b16 %v4417
  %v4436 = vunpack.c.h.b16 %v4418
  %v4437 = vunpack.c.h.b16 %v4419
  %v4438 = vunpack.c.h.b16 %v4420
  %v4439 = vpack.c.b16 %v4428, %v4427
  %v4440 = vpack.c.b16 %v4430, %v4429
  %v4441 = vpack.c.b16 %v4432, %v4431
  %v4442 = vpack.c.b16 %v4434, %v4433
  %v4443 = vpack.c.b16 %v4436, %v4435
  %v4444 = vpack.c.b16 %v4438, %v4437
  %4451 = vst [vmem:[%s6] sm:$0xff] %v4439
  %4452 = vst [vmem:[%s6 + $0x8] sm:$0xff] %v4440
  %4453 = vst [vmem:[%s6 + $0x10] sm:$0xff] %v4441
  %4454 = vst [vmem:[%s6 + $0x18] sm:$0xff] %v4442
  %4455 = vst [vmem:[%s6 + $0x20] sm:$0xff] %v4443
  %4456 = vst [vmem:[%s6 + $0x28] sm:$0xff] %v4444
  %s4457 = scalar_lea.vmem %s3, 4608
  %v4458 = vld [vmem:[%s4457] sm:$0xff]
  %v4459 = vld [vmem:[%s4457 + $0x8] sm:$0xff]
  %v4460 = vld [vmem:[%s4457 + $0x10] sm:$0xff]
  %v4461 = vld [vmem:[%s4457 + $0x18] sm:$0xff]
  %v4462 = vld [vmem:[%s4457 + $0x20] sm:$0xff]
  %v4463 = vld [vmem:[%s4457 + $0x28] sm:$0xff]
  %v4464 = vld [vmem:[%s4457 + $0x30] sm:$0xff]
  %v4465 = vld [vmem:[%s4457 + $0x38] sm:$0xff]
  %v4466 = vld [vmem:[%s4457 + $0x40] sm:$0xff]
  %v4467 = vld [vmem:[%s4457 + $0x48] sm:$0xff]
  %v4468 = vld [vmem:[%s4457 + $0x50] sm:$0xff]
  %v4469 = vld [vmem:[%s4457 + $0x58] sm:$0xff]
  %v4470 = vld [vmem:[%s4457 + $0x60] sm:$0xff]
  %v4471 = vld [vmem:[%s4457 + $0x68] sm:$0xff]
  %v4472 = vld [vmem:[%s4457 + $0x70] sm:$0xff]
  %v4473 = vld [vmem:[%s4457 + $0x78] sm:$0xff]
  %v4474 = vld [vmem:[%s4457 + $0x80] sm:$0xff]
  %v4475 = vld [vmem:[%s4457 + $0x88] sm:$0xff]
  %v4476 = vld [vmem:[%s4457 + $0x90] sm:$0xff]
  %v4477 = vld [vmem:[%s4457 + $0x98] sm:$0xff]
  %v4478 = vld [vmem:[%s4457 + $0xa0] sm:$0xff]
  %v4479 = vld [vmem:[%s4457 + $0xa8] sm:$0xff]
  %v4480 = vld [vmem:[%s4457 + $0xb0] sm:$0xff]
  %v4481 = vld [vmem:[%s4457 + $0xb8] sm:$0xff]
  %v4482 = vld [vmem:[%s4457 + $0xc0] sm:$0xff]
  %v4483 = vld [vmem:[%s4457 + $0xc8] sm:$0xff]
  %v4484 = vld [vmem:[%s4457 + $0xd0] sm:$0xff]
  %v4485 = vld [vmem:[%s4457 + $0xd8] sm:$0xff]
  %v4486 = vld [vmem:[%s4457 + $0xe0] sm:$0xff]
  %v4487 = vld [vmem:[%s4457 + $0xe8] sm:$0xff]
  %v4488 = vld [vmem:[%s4457 + $0xf0] sm:$0xff]
  %v4489 = vld [vmem:[%s4457 + $0xf8] sm:$0xff]
  %v4490 = vld [vmem:[%s4457 + $0x100] sm:$0xff]
  %v4491 = vld [vmem:[%s4457 + $0x108] sm:$0xff]
  %v4492 = vld [vmem:[%s4457 + $0x110] sm:$0xff]
  %v4493 = vld [vmem:[%s4457 + $0x118] sm:$0xff]
  %v4494 = vld [vmem:[%s4457 + $0x120] sm:$0xff]
  %v4495 = vld [vmem:[%s4457 + $0x128] sm:$0xff]
  %v4496 = vld [vmem:[%s4457 + $0x130] sm:$0xff]
  %v4497 = vld [vmem:[%s4457 + $0x138] sm:$0xff]
  %v4498 = vld [vmem:[%s4457 + $0x140] sm:$0xff]
  %v4499 = vld [vmem:[%s4457 + $0x148] sm:$0xff]
  %v4500 = vld [vmem:[%s4457 + $0x150] sm:$0xff]
  %v4501 = vld [vmem:[%s4457 + $0x158] sm:$0xff]
  %v4502 = vld [vmem:[%s4457 + $0x160] sm:$0xff]
  %v4503 = vld [vmem:[%s4457 + $0x168] sm:$0xff]
  %v4504 = vld [vmem:[%s4457 + $0x170] sm:$0xff]
  %v4505 = vld [vmem:[%s4457 + $0x178] sm:$0xff]
  %v4506 = vld [vmem:[%s4457 + $0x180] sm:$0xff]
  %v4507 = vld [vmem:[%s4457 + $0x188] sm:$0xff]
  %v4508 = vld [vmem:[%s4457 + $0x190] sm:$0xff]
  %v4509 = vld [vmem:[%s4457 + $0x198] sm:$0xff]
  %v4510 = vld [vmem:[%s4457 + $0x1a0] sm:$0xff]
  %v4511 = vld [vmem:[%s4457 + $0x1a8] sm:$0xff]
  %v4512 = vld [vmem:[%s4457 + $0x1b0] sm:$0xff]
  %v4513 = vld [vmem:[%s4457 + $0x1b8] sm:$0xff]
  %v4514 = vld [vmem:[%s4457 + $0x1c0] sm:$0xff]
  %v4515 = vld [vmem:[%s4457 + $0x1c8] sm:$0xff]
  %v4516 = vld [vmem:[%s4457 + $0x1d0] sm:$0xff]
  %v4517 = vld [vmem:[%s4457 + $0x1d8] sm:$0xff]
  %v4518 = vld [vmem:[%s4457 + $0x1e0] sm:$0xff]
  %v4519 = vld [vmem:[%s4457 + $0x1e8] sm:$0xff]
  %v4520 = vld [vmem:[%s4457 + $0x1f0] sm:$0xff]
  %v4521 = vld [vmem:[%s4457 + $0x1f8] sm:$0xff]
  %v4522 = vld [vmem:[%s4457 + $0x200] sm:$0xff]
  %v4523 = vld [vmem:[%s4457 + $0x208] sm:$0xff]
  %v4524 = vld [vmem:[%s4457 + $0x210] sm:$0xff]
  %v4525 = vld [vmem:[%s4457 + $0x218] sm:$0xff]
  %v4526 = vld [vmem:[%s4457 + $0x220] sm:$0xff]
  %v4527 = vld [vmem:[%s4457 + $0x228] sm:$0xff]
  %v4528 = vld [vmem:[%s4457 + $0x230] sm:$0xff]
  %v4529 = vld [vmem:[%s4457 + $0x238] sm:$0xff]
  %v4530 = vld [vmem:[%s4457 + $0x240] sm:$0xff]
  %v4531 = vld [vmem:[%s4457 + $0x248] sm:$0xff]
  %v4532 = vld [vmem:[%s4457 + $0x250] sm:$0xff]
  %v4533 = vld [vmem:[%s4457 + $0x258] sm:$0xff]
  %v4534 = vld [vmem:[%s4457 + $0x260] sm:$0xff]
  %v4535 = vld [vmem:[%s4457 + $0x268] sm:$0xff]
  %v4536 = vld [vmem:[%s4457 + $0x270] sm:$0xff]
  %v4537 = vld [vmem:[%s4457 + $0x278] sm:$0xff]
  %v4538 = vld [vmem:[%s4457 + $0x280] sm:$0xff]
  %v4539 = vld [vmem:[%s4457 + $0x288] sm:$0xff]
  %v4540 = vld [vmem:[%s4457 + $0x290] sm:$0xff]
  %v4541 = vld [vmem:[%s4457 + $0x298] sm:$0xff]
  %v4542 = vld [vmem:[%s4457 + $0x2a0] sm:$0xff]
  %v4543 = vld [vmem:[%s4457 + $0x2a8] sm:$0xff]
  %v4544 = vld [vmem:[%s4457 + $0x2b0] sm:$0xff]
  %v4545 = vld [vmem:[%s4457 + $0x2b8] sm:$0xff]
  %v4546 = vld [vmem:[%s4457 + $0x2c0] sm:$0xff]
  %v4547 = vld [vmem:[%s4457 + $0x2c8] sm:$0xff]
  %v4548 = vld [vmem:[%s4457 + $0x2d0] sm:$0xff]
  %v4549 = vld [vmem:[%s4457 + $0x2d8] sm:$0xff]
  %v4550 = vld [vmem:[%s4457 + $0x2e0] sm:$0xff]
  %v4551 = vld [vmem:[%s4457 + $0x2e8] sm:$0xff]
  %v4552 = vld [vmem:[%s4457 + $0x2f0] sm:$0xff]
  %v4553 = vld [vmem:[%s4457 + $0x2f8] sm:$0xff]
  %v4554 = vld [vmem:[%s4457 + $0x300] sm:$0xff]
  %v4555 = vld [vmem:[%s4457 + $0x308] sm:$0xff]
  %v4556 = vld [vmem:[%s4457 + $0x310] sm:$0xff]
  %v4557 = vld [vmem:[%s4457 + $0x318] sm:$0xff]
  %v4558 = vld [vmem:[%s4457 + $0x320] sm:$0xff]
  %v4559 = vld [vmem:[%s4457 + $0x328] sm:$0xff]
  %v4560 = vld [vmem:[%s4457 + $0x330] sm:$0xff]
  %v4561 = vld [vmem:[%s4457 + $0x338] sm:$0xff]
  %v4562 = vld [vmem:[%s4457 + $0x340] sm:$0xff]
  %v4563 = vld [vmem:[%s4457 + $0x348] sm:$0xff]
  %v4564 = vld [vmem:[%s4457 + $0x350] sm:$0xff]
  %v4565 = vld [vmem:[%s4457 + $0x358] sm:$0xff]
  %v4566 = vld [vmem:[%s4457 + $0x360] sm:$0xff]
  %v4567 = vld [vmem:[%s4457 + $0x368] sm:$0xff]
  %v4568 = vld [vmem:[%s4457 + $0x370] sm:$0xff]
  %v4569 = vld [vmem:[%s4457 + $0x378] sm:$0xff]
  %v4570 = vld [vmem:[%s4457 + $0x380] sm:$0xff]
  %v4571 = vld [vmem:[%s4457 + $0x388] sm:$0xff]
  %v4572 = vld [vmem:[%s4457 + $0x390] sm:$0xff]
  %v4573 = vld [vmem:[%s4457 + $0x398] sm:$0xff]
  %v4574 = vld [vmem:[%s4457 + $0x3a0] sm:$0xff]
  %v4575 = vld [vmem:[%s4457 + $0x3a8] sm:$0xff]
  %v4576 = vld [vmem:[%s4457 + $0x3b0] sm:$0xff]
  %v4577 = vld [vmem:[%s4457 + $0x3b8] sm:$0xff]
  %v4578 = vld [vmem:[%s4457 + $0x3c0] sm:$0xff]
  %v4579 = vld [vmem:[%s4457 + $0x3c8] sm:$0xff]
  %v4580 = vld [vmem:[%s4457 + $0x3d0] sm:$0xff]
  %v4581 = vld [vmem:[%s4457 + $0x3d8] sm:$0xff]
  %v4582 = vld [vmem:[%s4457 + $0x3e0] sm:$0xff]
  %v4583 = vld [vmem:[%s4457 + $0x3e8] sm:$0xff]
  %v4584 = vld [vmem:[%s4457 + $0x3f0] sm:$0xff]
  %v4585 = vld [vmem:[%s4457 + $0x3f8] sm:$0xff]
  %v4586 = vld [vmem:[%s4457 + $0x400] sm:$0xff]
  %v4587 = vld [vmem:[%s4457 + $0x408] sm:$0xff]
  %v4588 = vld [vmem:[%s4457 + $0x410] sm:$0xff]
  %v4589 = vld [vmem:[%s4457 + $0x418] sm:$0xff]
  %v4590 = vld [vmem:[%s4457 + $0x420] sm:$0xff]
  %v4591 = vld [vmem:[%s4457 + $0x428] sm:$0xff]
  %v4592 = vld [vmem:[%s4457 + $0x430] sm:$0xff]
  %v4593 = vld [vmem:[%s4457 + $0x438] sm:$0xff]
  %v4594 = vld [vmem:[%s4457 + $0x440] sm:$0xff]
  %v4595 = vld [vmem:[%s4457 + $0x448] sm:$0xff]
  %v4596 = vld [vmem:[%s4457 + $0x450] sm:$0xff]
  %v4597 = vld [vmem:[%s4457 + $0x458] sm:$0xff]
  %v4598 = vld [vmem:[%s4457 + $0x460] sm:$0xff]
  %v4599 = vld [vmem:[%s4457 + $0x468] sm:$0xff]
  %v4600 = vld [vmem:[%s4457 + $0x470] sm:$0xff]
  %v4601 = vld [vmem:[%s4457 + $0x478] sm:$0xff]
  %v4602 = vld [vmem:[%s4457 + $0x480] sm:$0xff]
  %v4603 = vld [vmem:[%s4457 + $0x488] sm:$0xff]
  %v4604 = vld [vmem:[%s4457 + $0x490] sm:$0xff]
  %v4605 = vld [vmem:[%s4457 + $0x498] sm:$0xff]
  %v4606 = vld [vmem:[%s4457 + $0x4a0] sm:$0xff]
  %v4607 = vld [vmem:[%s4457 + $0x4a8] sm:$0xff]
  %v4608 = vld [vmem:[%s4457 + $0x4b0] sm:$0xff]
  %v4609 = vld [vmem:[%s4457 + $0x4b8] sm:$0xff]
  %v4610 = vld [vmem:[%s4457 + $0x4c0] sm:$0xff]
  %v4611 = vld [vmem:[%s4457 + $0x4c8] sm:$0xff]
  %v4612 = vld [vmem:[%s4457 + $0x4d0] sm:$0xff]
  %v4613 = vld [vmem:[%s4457 + $0x4d8] sm:$0xff]
  %v4614 = vld [vmem:[%s4457 + $0x4e0] sm:$0xff]
  %v4615 = vld [vmem:[%s4457 + $0x4e8] sm:$0xff]
  %v4616 = vld [vmem:[%s4457 + $0x4f0] sm:$0xff]
  %v4617 = vld [vmem:[%s4457 + $0x4f8] sm:$0xff]
  %v4618 = vld [vmem:[%s4457 + $0x500] sm:$0xff]
  %v4619 = vld [vmem:[%s4457 + $0x508] sm:$0xff]
  %v4620 = vld [vmem:[%s4457 + $0x510] sm:$0xff]
  %v4621 = vld [vmem:[%s4457 + $0x518] sm:$0xff]
  %v4622 = vld [vmem:[%s4457 + $0x520] sm:$0xff]
  %v4623 = vld [vmem:[%s4457 + $0x528] sm:$0xff]
  %v4624 = vld [vmem:[%s4457 + $0x530] sm:$0xff]
  %v4625 = vld [vmem:[%s4457 + $0x538] sm:$0xff]
  %v4626 = vld [vmem:[%s4457 + $0x540] sm:$0xff]
  %v4627 = vld [vmem:[%s4457 + $0x548] sm:$0xff]
  %v4628 = vld [vmem:[%s4457 + $0x550] sm:$0xff]
  %v4629 = vld [vmem:[%s4457 + $0x558] sm:$0xff]
  %v4630 = vld [vmem:[%s4457 + $0x560] sm:$0xff]
  %v4631 = vld [vmem:[%s4457 + $0x568] sm:$0xff]
  %v4632 = vld [vmem:[%s4457 + $0x570] sm:$0xff]
  %v4633 = vld [vmem:[%s4457 + $0x578] sm:$0xff]
  %v4634 = vld [vmem:[%s4457 + $0x580] sm:$0xff]
  %v4635 = vld [vmem:[%s4457 + $0x588] sm:$0xff]
  %v4636 = vld [vmem:[%s4457 + $0x590] sm:$0xff]
  %v4637 = vld [vmem:[%s4457 + $0x598] sm:$0xff]
  %v4638 = vld [vmem:[%s4457 + $0x5a0] sm:$0xff]
  %v4639 = vld [vmem:[%s4457 + $0x5a8] sm:$0xff]
  %v4640 = vld [vmem:[%s4457 + $0x5b0] sm:$0xff]
  %v4641 = vld [vmem:[%s4457 + $0x5b8] sm:$0xff]
  %v4642 = vld [vmem:[%s4457 + $0x5c0] sm:$0xff]
  %v4643 = vld [vmem:[%s4457 + $0x5c8] sm:$0xff]
  %v4644 = vld [vmem:[%s4457 + $0x5d0] sm:$0xff]
  %v4645 = vld [vmem:[%s4457 + $0x5d8] sm:$0xff]
  %v4646 = vld [vmem:[%s4457 + $0x5e0] sm:$0xff]
  %v4647 = vld [vmem:[%s4457 + $0x5e8] sm:$0xff]
  %v4648 = vld [vmem:[%s4457 + $0x5f0] sm:$0xff]
  %v4649 = vld [vmem:[%s4457 + $0x5f8] sm:$0xff]
  %v4650 = vld [vmem:[%s4457 + $0x600] sm:$0xff]
  %v4651 = vld [vmem:[%s4457 + $0x608] sm:$0xff]
  %v4652 = vld [vmem:[%s4457 + $0x610] sm:$0xff]
  %v4653 = vld [vmem:[%s4457 + $0x618] sm:$0xff]
  %v4654 = vld [vmem:[%s4457 + $0x620] sm:$0xff]
  %v4655 = vld [vmem:[%s4457 + $0x628] sm:$0xff]
  %v4656 = vld [vmem:[%s4457 + $0x630] sm:$0xff]
  %v4657 = vld [vmem:[%s4457 + $0x638] sm:$0xff]
  %v4658 = vld [vmem:[%s4457 + $0x640] sm:$0xff]
  %v4659 = vld [vmem:[%s4457 + $0x648] sm:$0xff]
  %v4660 = vld [vmem:[%s4457 + $0x650] sm:$0xff]
  %v4661 = vld [vmem:[%s4457 + $0x658] sm:$0xff]
  %v4662 = vld [vmem:[%s4457 + $0x660] sm:$0xff]
  %v4663 = vld [vmem:[%s4457 + $0x668] sm:$0xff]
  %v4664 = vld [vmem:[%s4457 + $0x670] sm:$0xff]
  %v4665 = vld [vmem:[%s4457 + $0x678] sm:$0xff]
  %v4666 = vld [vmem:[%s4457 + $0x680] sm:$0xff]
  %v4667 = vld [vmem:[%s4457 + $0x688] sm:$0xff]
  %v4668 = vld [vmem:[%s4457 + $0x690] sm:$0xff]
  %v4669 = vld [vmem:[%s4457 + $0x698] sm:$0xff]
  %v4670 = vld [vmem:[%s4457 + $0x6a0] sm:$0xff]
  %v4671 = vld [vmem:[%s4457 + $0x6a8] sm:$0xff]
  %v4672 = vld [vmem:[%s4457 + $0x6b0] sm:$0xff]
  %v4673 = vld [vmem:[%s4457 + $0x6b8] sm:$0xff]
  %v4674 = vld [vmem:[%s4457 + $0x6c0] sm:$0xff]
  %v4675 = vld [vmem:[%s4457 + $0x6c8] sm:$0xff]
  %v4676 = vld [vmem:[%s4457 + $0x6d0] sm:$0xff]
  %v4677 = vld [vmem:[%s4457 + $0x6d8] sm:$0xff]
  %v4678 = vld [vmem:[%s4457 + $0x6e0] sm:$0xff]
  %v4679 = vld [vmem:[%s4457 + $0x6e8] sm:$0xff]
  %v4680 = vld [vmem:[%s4457 + $0x6f0] sm:$0xff]
  %v4681 = vld [vmem:[%s4457 + $0x6f8] sm:$0xff]
  %v4682 = vld [vmem:[%s4457 + $0x700] sm:$0xff]
  %v4683 = vld [vmem:[%s4457 + $0x708] sm:$0xff]
  %v4684 = vld [vmem:[%s4457 + $0x710] sm:$0xff]
  %v4685 = vld [vmem:[%s4457 + $0x718] sm:$0xff]
  %v4686 = vld [vmem:[%s4457 + $0x720] sm:$0xff]
  %v4687 = vld [vmem:[%s4457 + $0x728] sm:$0xff]
  %v4688 = vld [vmem:[%s4457 + $0x730] sm:$0xff]
  %v4689 = vld [vmem:[%s4457 + $0x738] sm:$0xff]
  %v4690 = vld [vmem:[%s4457 + $0x740] sm:$0xff]
  %v4691 = vld [vmem:[%s4457 + $0x748] sm:$0xff]
  %v4692 = vld [vmem:[%s4457 + $0x750] sm:$0xff]
  %v4693 = vld [vmem:[%s4457 + $0x758] sm:$0xff]
  %v4694 = vld [vmem:[%s4457 + $0x760] sm:$0xff]
  %v4695 = vld [vmem:[%s4457 + $0x768] sm:$0xff]
  %v4696 = vld [vmem:[%s4457 + $0x770] sm:$0xff]
  %v4697 = vld [vmem:[%s4457 + $0x778] sm:$0xff]
  %v4698 = vld [vmem:[%s4457 + $0x780] sm:$0xff]
  %v4699 = vld [vmem:[%s4457 + $0x788] sm:$0xff]
  %v4700 = vld [vmem:[%s4457 + $0x790] sm:$0xff]
  %v4701 = vld [vmem:[%s4457 + $0x798] sm:$0xff]
  %v4702 = vld [vmem:[%s4457 + $0x7a0] sm:$0xff]
  %v4703 = vld [vmem:[%s4457 + $0x7a8] sm:$0xff]
  %v4704 = vld [vmem:[%s4457 + $0x7b0] sm:$0xff]
  %v4705 = vld [vmem:[%s4457 + $0x7b8] sm:$0xff]
  %v4706 = vld [vmem:[%s4457 + $0x7c0] sm:$0xff]
  %v4707 = vld [vmem:[%s4457 + $0x7c8] sm:$0xff]
  %v4708 = vld [vmem:[%s4457 + $0x7d0] sm:$0xff]
  %v4709 = vld [vmem:[%s4457 + $0x7d8] sm:$0xff]
  %v4710 = vld [vmem:[%s4457 + $0x7e0] sm:$0xff]
  %v4711 = vld [vmem:[%s4457 + $0x7e8] sm:$0xff]
  %v4712 = vld [vmem:[%s4457 + $0x7f0] sm:$0xff]
  %v4713 = vld [vmem:[%s4457 + $0x7f8] sm:$0xff]
  %v4714 = vld [vmem:[%s4457 + $0x800] sm:$0xff]
  %v4715 = vld [vmem:[%s4457 + $0x808] sm:$0xff]
  %v4716 = vld [vmem:[%s4457 + $0x810] sm:$0xff]
  %v4717 = vld [vmem:[%s4457 + $0x818] sm:$0xff]
  %v4718 = vld [vmem:[%s4457 + $0x820] sm:$0xff]
  %v4719 = vld [vmem:[%s4457 + $0x828] sm:$0xff]
  %v4720 = vld [vmem:[%s4457 + $0x830] sm:$0xff]
  %v4721 = vld [vmem:[%s4457 + $0x838] sm:$0xff]
  %v4722 = vld [vmem:[%s4457 + $0x840] sm:$0xff]
  %v4723 = vld [vmem:[%s4457 + $0x848] sm:$0xff]
  %v4724 = vld [vmem:[%s4457 + $0x850] sm:$0xff]
  %v4725 = vld [vmem:[%s4457 + $0x858] sm:$0xff]
  %v4726 = vld [vmem:[%s4457 + $0x860] sm:$0xff]
  %v4727 = vld [vmem:[%s4457 + $0x868] sm:$0xff]
  %v4728 = vld [vmem:[%s4457 + $0x870] sm:$0xff]
  %v4729 = vld [vmem:[%s4457 + $0x878] sm:$0xff]
  %v4730 = vld [vmem:[%s4457 + $0x880] sm:$0xff]
  %v4731 = vld [vmem:[%s4457 + $0x888] sm:$0xff]
  %v4732 = vld [vmem:[%s4457 + $0x890] sm:$0xff]
  %v4733 = vld [vmem:[%s4457 + $0x898] sm:$0xff]
  %v4734 = vld [vmem:[%s4457 + $0x8a0] sm:$0xff]
  %v4735 = vld [vmem:[%s4457 + $0x8a8] sm:$0xff]
  %v4736 = vld [vmem:[%s4457 + $0x8b0] sm:$0xff]
  %v4737 = vld [vmem:[%s4457 + $0x8b8] sm:$0xff]
  %v4738 = vld [vmem:[%s4457 + $0x8c0] sm:$0xff]
  %v4739 = vld [vmem:[%s4457 + $0x8c8] sm:$0xff]
  %v4740 = vld [vmem:[%s4457 + $0x8d0] sm:$0xff]
  %v4741 = vld [vmem:[%s4457 + $0x8d8] sm:$0xff]
  %v4742 = vld [vmem:[%s4457 + $0x8e0] sm:$0xff]
  %v4743 = vld [vmem:[%s4457 + $0x8e8] sm:$0xff]
  %v4744 = vld [vmem:[%s4457 + $0x8f0] sm:$0xff]
  %v4745 = vld [vmem:[%s4457 + $0x8f8] sm:$0xff]
  %s4746 = scalar_lea.vmem %s4, 12
  %v4747 = vld [vmem:[%s4746] sm:$0x3f]
  %v4749 = vlaneseq
  %v4750 = vshrl.u32 %v4749, 7
  %v4751 = vsub.s32 0, %v4750
  %v4752 = vrot.slane %v4747, %v4751
  %v4753 = vlaneseq
  %v4754 = vshrl.u32 %v4753, 7
  %v4755 = vsub.s32 1, %v4754
  %v4756 = vrot.slane %v4747, %v4755
  %v4757 = vlaneseq
  %v4758 = vshrl.u32 %v4757, 7
  %v4759 = vsub.s32 2, %v4758
  %v4760 = vrot.slane %v4747, %v4759
  %v4761 = vlaneseq
  %v4762 = vshrl.u32 %v4761, 7
  %v4763 = vsub.s32 3, %v4762
  %v4764 = vrot.slane %v4747, %v4763
  %v4765 = vlaneseq
  %v4766 = vshrl.u32 %v4765, 7
  %v4767 = vsub.s32 4, %v4766
  %v4768 = vrot.slane %v4747, %v4767
  %v4769 = vlaneseq
  %v4770 = vshrl.u32 %v4769, 7
  %v4771 = vsub.s32 5, %v4770
  %v4772 = vrot.slane %v4747, %v4771
  %v5067 = vunpack.c.l.b16 %v4458
  %v5068 = vunpack.c.h.b16 %v4458
  %v5069 = vunpack.c.l.b16 %v4459
  %v5070 = vunpack.c.h.b16 %v4459
  %v5071 = vunpack.c.l.b16 %v4460
  %v5072 = vunpack.c.h.b16 %v4460
  %v5073 = vunpack.c.l.b16 %v4461
  %v5074 = vunpack.c.h.b16 %v4461
  %v5075 = vunpack.c.l.b16 %v4462
  %v5076 = vunpack.c.h.b16 %v4462
  %v5077 = vunpack.c.l.b16 %v4463
  %v5078 = vunpack.c.h.b16 %v4463
  %v5079 = vunpack.c.l.b16 %v4464
  %v5080 = vunpack.c.h.b16 %v4464
  %v5081 = vunpack.c.l.b16 %v4465
  %v5082 = vunpack.c.h.b16 %v4465
  %v5083 = vunpack.c.l.b16 %v4466
  %v5084 = vunpack.c.h.b16 %v4466
  %v5085 = vunpack.c.l.b16 %v4467
  %v5086 = vunpack.c.h.b16 %v4467
  %v5087 = vunpack.c.l.b16 %v4468
  %v5088 = vunpack.c.h.b16 %v4468
  %v5089 = vunpack.c.l.b16 %v4469
  %v5090 = vunpack.c.h.b16 %v4469
  %v5091 = vunpack.c.l.b16 %v4470
  %v5092 = vunpack.c.h.b16 %v4470
  %v5093 = vunpack.c.l.b16 %v4471
  %v5094 = vunpack.c.h.b16 %v4471
  %v5095 = vunpack.c.l.b16 %v4472
  %v5096 = vunpack.c.h.b16 %v4472
  %v5097 = vunpack.c.l.b16 %v4473
  %v5098 = vunpack.c.h.b16 %v4473
  %v5099 = vunpack.c.l.b16 %v4474
  %v5100 = vunpack.c.h.b16 %v4474
  %v5101 = vunpack.c.l.b16 %v4475
  %v5102 = vunpack.c.h.b16 %v4475
  %v5103 = vunpack.c.l.b16 %v4476
  %v5104 = vunpack.c.h.b16 %v4476
  %v5105 = vunpack.c.l.b16 %v4477
  %v5106 = vunpack.c.h.b16 %v4477
  %v5107 = vunpack.c.l.b16 %v4478
  %v5108 = vunpack.c.h.b16 %v4478
  %v5109 = vunpack.c.l.b16 %v4479
  %v5110 = vunpack.c.h.b16 %v4479
  %v5111 = vunpack.c.l.b16 %v4480
  %v5112 = vunpack.c.h.b16 %v4480
  %v5113 = vunpack.c.l.b16 %v4481
  %v5114 = vunpack.c.h.b16 %v4481
  %v5115 = vunpack.c.l.b16 %v4482
  %v5116 = vunpack.c.h.b16 %v4482
  %v5117 = vunpack.c.l.b16 %v4483
  %v5118 = vunpack.c.h.b16 %v4483
  %v5119 = vunpack.c.l.b16 %v4484
  %v5120 = vunpack.c.h.b16 %v4484
  %v5121 = vunpack.c.l.b16 %v4485
  %v5122 = vunpack.c.h.b16 %v4485
  %v5123 = vunpack.c.l.b16 %v4486
  %v5124 = vunpack.c.h.b16 %v4486
  %v5125 = vunpack.c.l.b16 %v4487
  %v5126 = vunpack.c.h.b16 %v4487
  %v5127 = vunpack.c.l.b16 %v4488
  %v5128 = vunpack.c.h.b16 %v4488
  %v5129 = vunpack.c.l.b16 %v4489
  %v5130 = vunpack.c.h.b16 %v4489
  %v5131 = vunpack.c.l.b16 %v4490
  %v5132 = vunpack.c.h.b16 %v4490
  %v5133 = vunpack.c.l.b16 %v4491
  %v5134 = vunpack.c.h.b16 %v4491
  %v5135 = vunpack.c.l.b16 %v4492
  %v5136 = vunpack.c.h.b16 %v4492
  %v5137 = vunpack.c.l.b16 %v4493
  %v5138 = vunpack.c.h.b16 %v4493
  %v5139 = vunpack.c.l.b16 %v4494
  %v5140 = vunpack.c.h.b16 %v4494
  %v5141 = vunpack.c.l.b16 %v4495
  %v5142 = vunpack.c.h.b16 %v4495
  %v5143 = vunpack.c.l.b16 %v4496
  %v5144 = vunpack.c.h.b16 %v4496
  %v5145 = vunpack.c.l.b16 %v4497
  %v5146 = vunpack.c.h.b16 %v4497
  %v5147 = vunpack.c.l.b16 %v4498
  %v5148 = vunpack.c.h.b16 %v4498
  %v5149 = vunpack.c.l.b16 %v4499
  %v5150 = vunpack.c.h.b16 %v4499
  %v5151 = vunpack.c.l.b16 %v4500
  %v5152 = vunpack.c.h.b16 %v4500
  %v5153 = vunpack.c.l.b16 %v4501
  %v5154 = vunpack.c.h.b16 %v4501
  %v5155 = vunpack.c.l.b16 %v4502
  %v5156 = vunpack.c.h.b16 %v4502
  %v5157 = vunpack.c.l.b16 %v4503
  %v5158 = vunpack.c.h.b16 %v4503
  %v5159 = vunpack.c.l.b16 %v4504
  %v5160 = vunpack.c.h.b16 %v4504
  %v5161 = vunpack.c.l.b16 %v4505
  %v5162 = vunpack.c.h.b16 %v4505
  %v5163 = vunpack.c.l.b16 %v4506
  %v5164 = vunpack.c.h.b16 %v4506
  %v5165 = vunpack.c.l.b16 %v4507
  %v5166 = vunpack.c.h.b16 %v4507
  %v5167 = vunpack.c.l.b16 %v4508
  %v5168 = vunpack.c.h.b16 %v4508
  %v5169 = vunpack.c.l.b16 %v4509
  %v5170 = vunpack.c.h.b16 %v4509
  %v5171 = vunpack.c.l.b16 %v4510
  %v5172 = vunpack.c.h.b16 %v4510
  %v5173 = vunpack.c.l.b16 %v4511
  %v5174 = vunpack.c.h.b16 %v4511
  %v5175 = vunpack.c.l.b16 %v4512
  %v5176 = vunpack.c.h.b16 %v4512
  %v5177 = vunpack.c.l.b16 %v4513
  %v5178 = vunpack.c.h.b16 %v4513
  %v5179 = vunpack.c.l.b16 %v4514
  %v5180 = vunpack.c.h.b16 %v4514
  %v5181 = vunpack.c.l.b16 %v4515
  %v5182 = vunpack.c.h.b16 %v4515
  %v5183 = vunpack.c.l.b16 %v4516
  %v5184 = vunpack.c.h.b16 %v4516
  %v5185 = vunpack.c.l.b16 %v4517
  %v5186 = vunpack.c.h.b16 %v4517
  %v5187 = vunpack.c.l.b16 %v4518
  %v5188 = vunpack.c.h.b16 %v4518
  %v5189 = vunpack.c.l.b16 %v4519
  %v5190 = vunpack.c.h.b16 %v4519
  %v5191 = vunpack.c.l.b16 %v4520
  %v5192 = vunpack.c.h.b16 %v4520
  %v5193 = vunpack.c.l.b16 %v4521
  %v5194 = vunpack.c.h.b16 %v4521
  %v5195 = vunpack.c.l.b16 %v4522
  %v5196 = vunpack.c.h.b16 %v4522
  %v5197 = vunpack.c.l.b16 %v4523
  %v5198 = vunpack.c.h.b16 %v4523
  %v5199 = vunpack.c.l.b16 %v4524
  %v5200 = vunpack.c.h.b16 %v4524
  %v5201 = vunpack.c.l.b16 %v4525
  %v5202 = vunpack.c.h.b16 %v4525
  %v5203 = vunpack.c.l.b16 %v4526
  %v5204 = vunpack.c.h.b16 %v4526
  %v5205 = vunpack.c.l.b16 %v4527
  %v5206 = vunpack.c.h.b16 %v4527
  %v5207 = vunpack.c.l.b16 %v4528
  %v5208 = vunpack.c.h.b16 %v4528
  %v5209 = vunpack.c.l.b16 %v4529
  %v5210 = vunpack.c.h.b16 %v4529
  %v5211 = vunpack.c.l.b16 %v4530
  %v5212 = vunpack.c.h.b16 %v4530
  %v5213 = vunpack.c.l.b16 %v4531
  %v5214 = vunpack.c.h.b16 %v4531
  %v5215 = vunpack.c.l.b16 %v4532
  %v5216 = vunpack.c.h.b16 %v4532
  %v5217 = vunpack.c.l.b16 %v4533
  %v5218 = vunpack.c.h.b16 %v4533
  %v5219 = vunpack.c.l.b16 %v4534
  %v5220 = vunpack.c.h.b16 %v4534
  %v5221 = vunpack.c.l.b16 %v4535
  %v5222 = vunpack.c.h.b16 %v4535
  %v5223 = vunpack.c.l.b16 %v4536
  %v5224 = vunpack.c.h.b16 %v4536
  %v5225 = vunpack.c.l.b16 %v4537
  %v5226 = vunpack.c.h.b16 %v4537
  %v5227 = vunpack.c.l.b16 %v4538
  %v5228 = vunpack.c.h.b16 %v4538
  %v5229 = vunpack.c.l.b16 %v4539
  %v5230 = vunpack.c.h.b16 %v4539
  %v5231 = vunpack.c.l.b16 %v4540
  %v5232 = vunpack.c.h.b16 %v4540
  %v5233 = vunpack.c.l.b16 %v4541
  %v5234 = vunpack.c.h.b16 %v4541
  %v5235 = vunpack.c.l.b16 %v4542
  %v5236 = vunpack.c.h.b16 %v4542
  %v5237 = vunpack.c.l.b16 %v4543
  %v5238 = vunpack.c.h.b16 %v4543
  %v5239 = vunpack.c.l.b16 %v4544
  %v5240 = vunpack.c.h.b16 %v4544
  %v5241 = vunpack.c.l.b16 %v4545
  %v5242 = vunpack.c.h.b16 %v4545
  %v5243 = vunpack.c.l.b16 %v4546
  %v5244 = vunpack.c.h.b16 %v4546
  %v5245 = vunpack.c.l.b16 %v4547
  %v5246 = vunpack.c.h.b16 %v4547
  %v5247 = vunpack.c.l.b16 %v4548
  %v5248 = vunpack.c.h.b16 %v4548
  %v5249 = vunpack.c.l.b16 %v4549
  %v5250 = vunpack.c.h.b16 %v4549
  %v5251 = vunpack.c.l.b16 %v4550
  %v5252 = vunpack.c.h.b16 %v4550
  %v5253 = vunpack.c.l.b16 %v4551
  %v5254 = vunpack.c.h.b16 %v4551
  %v5255 = vunpack.c.l.b16 %v4552
  %v5256 = vunpack.c.h.b16 %v4552
  %v5257 = vunpack.c.l.b16 %v4553
  %v5258 = vunpack.c.h.b16 %v4553
  %v5259 = vunpack.c.l.b16 %v4554
  %v5260 = vunpack.c.h.b16 %v4554
  %v5261 = vunpack.c.l.b16 %v4555
  %v5262 = vunpack.c.h.b16 %v4555
  %v5263 = vunpack.c.l.b16 %v4556
  %v5264 = vunpack.c.h.b16 %v4556
  %v5265 = vunpack.c.l.b16 %v4557
  %v5266 = vunpack.c.h.b16 %v4557
  %v5267 = vunpack.c.l.b16 %v4558
  %v5268 = vunpack.c.h.b16 %v4558
  %v5269 = vunpack.c.l.b16 %v4559
  %v5270 = vunpack.c.h.b16 %v4559
  %v5271 = vunpack.c.l.b16 %v4560
  %v5272 = vunpack.c.h.b16 %v4560
  %v5273 = vunpack.c.l.b16 %v4561
  %v5274 = vunpack.c.h.b16 %v4561
  %v5275 = vunpack.c.l.b16 %v4562
  %v5276 = vunpack.c.h.b16 %v4562
  %v5277 = vunpack.c.l.b16 %v4563
  %v5278 = vunpack.c.h.b16 %v4563
  %v5279 = vunpack.c.l.b16 %v4564
  %v5280 = vunpack.c.h.b16 %v4564
  %v5281 = vunpack.c.l.b16 %v4565
  %v5282 = vunpack.c.h.b16 %v4565
  %v5283 = vunpack.c.l.b16 %v4566
  %v5284 = vunpack.c.h.b16 %v4566
  %v5285 = vunpack.c.l.b16 %v4567
  %v5286 = vunpack.c.h.b16 %v4567
  %v5287 = vunpack.c.l.b16 %v4568
  %v5288 = vunpack.c.h.b16 %v4568
  %v5289 = vunpack.c.l.b16 %v4569
  %v5290 = vunpack.c.h.b16 %v4569
  %v5291 = vunpack.c.l.b16 %v4570
  %v5292 = vunpack.c.h.b16 %v4570
  %v5293 = vunpack.c.l.b16 %v4571
  %v5294 = vunpack.c.h.b16 %v4571
  %v5295 = vunpack.c.l.b16 %v4572
  %v5296 = vunpack.c.h.b16 %v4572
  %v5297 = vunpack.c.l.b16 %v4573
  %v5298 = vunpack.c.h.b16 %v4573
  %v5299 = vunpack.c.l.b16 %v4574
  %v5300 = vunpack.c.h.b16 %v4574
  %v5301 = vunpack.c.l.b16 %v4575
  %v5302 = vunpack.c.h.b16 %v4575
  %v5303 = vunpack.c.l.b16 %v4576
  %v5304 = vunpack.c.h.b16 %v4576
  %v5305 = vunpack.c.l.b16 %v4577
  %v5306 = vunpack.c.h.b16 %v4577
  %v5307 = vunpack.c.l.b16 %v4578
  %v5308 = vunpack.c.h.b16 %v4578
  %v5309 = vunpack.c.l.b16 %v4579
  %v5310 = vunpack.c.h.b16 %v4579
  %v5311 = vunpack.c.l.b16 %v4580
  %v5312 = vunpack.c.h.b16 %v4580
  %v5313 = vunpack.c.l.b16 %v4581
  %v5314 = vunpack.c.h.b16 %v4581
  %v5315 = vunpack.c.l.b16 %v4582
  %v5316 = vunpack.c.h.b16 %v4582
  %v5317 = vunpack.c.l.b16 %v4583
  %v5318 = vunpack.c.h.b16 %v4583
  %v5319 = vunpack.c.l.b16 %v4584
  %v5320 = vunpack.c.h.b16 %v4584
  %v5321 = vunpack.c.l.b16 %v4585
  %v5322 = vunpack.c.h.b16 %v4585
  %v5323 = vunpack.c.l.b16 %v4586
  %v5324 = vunpack.c.h.b16 %v4586
  %v5325 = vunpack.c.l.b16 %v4587
  %v5326 = vunpack.c.h.b16 %v4587
  %v5327 = vunpack.c.l.b16 %v4588
  %v5328 = vunpack.c.h.b16 %v4588
  %v5329 = vunpack.c.l.b16 %v4589
  %v5330 = vunpack.c.h.b16 %v4589
  %v5331 = vunpack.c.l.b16 %v4590
  %v5332 = vunpack.c.h.b16 %v4590
  %v5333 = vunpack.c.l.b16 %v4591
  %v5334 = vunpack.c.h.b16 %v4591
  %v5335 = vunpack.c.l.b16 %v4592
  %v5336 = vunpack.c.h.b16 %v4592
  %v5337 = vunpack.c.l.b16 %v4593
  %v5338 = vunpack.c.h.b16 %v4593
  %v5339 = vunpack.c.l.b16 %v4594
  %v5340 = vunpack.c.h.b16 %v4594
  %v5341 = vunpack.c.l.b16 %v4595
  %v5342 = vunpack.c.h.b16 %v4595
  %v5343 = vunpack.c.l.b16 %v4596
  %v5344 = vunpack.c.h.b16 %v4596
  %v5345 = vunpack.c.l.b16 %v4597
  %v5346 = vunpack.c.h.b16 %v4597
  %v5347 = vunpack.c.l.b16 %v4598
  %v5348 = vunpack.c.h.b16 %v4598
  %v5349 = vunpack.c.l.b16 %v4599
  %v5350 = vunpack.c.h.b16 %v4599
  %v5351 = vunpack.c.l.b16 %v4600
  %v5352 = vunpack.c.h.b16 %v4600
  %v5353 = vunpack.c.l.b16 %v4601
  %v5354 = vunpack.c.h.b16 %v4601
  %v5355 = vunpack.c.l.b16 %v4602
  %v5356 = vunpack.c.h.b16 %v4602
  %v5357 = vunpack.c.l.b16 %v4603
  %v5358 = vunpack.c.h.b16 %v4603
  %v5359 = vunpack.c.l.b16 %v4604
  %v5360 = vunpack.c.h.b16 %v4604
  %v5361 = vunpack.c.l.b16 %v4605
  %v5362 = vunpack.c.h.b16 %v4605
  %v5363 = vunpack.c.l.b16 %v4606
  %v5364 = vunpack.c.h.b16 %v4606
  %v5365 = vunpack.c.l.b16 %v4607
  %v5366 = vunpack.c.h.b16 %v4607
  %v5367 = vunpack.c.l.b16 %v4608
  %v5368 = vunpack.c.h.b16 %v4608
  %v5369 = vunpack.c.l.b16 %v4609
  %v5370 = vunpack.c.h.b16 %v4609
  %v5371 = vunpack.c.l.b16 %v4610
  %v5372 = vunpack.c.h.b16 %v4610
  %v5373 = vunpack.c.l.b16 %v4611
  %v5374 = vunpack.c.h.b16 %v4611
  %v5375 = vunpack.c.l.b16 %v4612
  %v5376 = vunpack.c.h.b16 %v4612
  %v5377 = vunpack.c.l.b16 %v4613
  %v5378 = vunpack.c.h.b16 %v4613
  %v5379 = vunpack.c.l.b16 %v4614
  %v5380 = vunpack.c.h.b16 %v4614
  %v5381 = vunpack.c.l.b16 %v4615
  %v5382 = vunpack.c.h.b16 %v4615
  %v5383 = vunpack.c.l.b16 %v4616
  %v5384 = vunpack.c.h.b16 %v4616
  %v5385 = vunpack.c.l.b16 %v4617
  %v5386 = vunpack.c.h.b16 %v4617
  %v5387 = vunpack.c.l.b16 %v4618
  %v5388 = vunpack.c.h.b16 %v4618
  %v5389 = vunpack.c.l.b16 %v4619
  %v5390 = vunpack.c.h.b16 %v4619
  %v5391 = vunpack.c.l.b16 %v4620
  %v5392 = vunpack.c.h.b16 %v4620
  %v5393 = vunpack.c.l.b16 %v4621
  %v5394 = vunpack.c.h.b16 %v4621
  %v5395 = vunpack.c.l.b16 %v4622
  %v5396 = vunpack.c.h.b16 %v4622
  %v5397 = vunpack.c.l.b16 %v4623
  %v5398 = vunpack.c.h.b16 %v4623
  %v5399 = vunpack.c.l.b16 %v4624
  %v5400 = vunpack.c.h.b16 %v4624
  %v5401 = vunpack.c.l.b16 %v4625
  %v5402 = vunpack.c.h.b16 %v4625
  %v5403 = vunpack.c.l.b16 %v4626
  %v5404 = vunpack.c.h.b16 %v4626
  %v5405 = vunpack.c.l.b16 %v4627
  %v5406 = vunpack.c.h.b16 %v4627
  %v5407 = vunpack.c.l.b16 %v4628
  %v5408 = vunpack.c.h.b16 %v4628
  %v5409 = vunpack.c.l.b16 %v4629
  %v5410 = vunpack.c.h.b16 %v4629
  %v5411 = vunpack.c.l.b16 %v4630
  %v5412 = vunpack.c.h.b16 %v4630
  %v5413 = vunpack.c.l.b16 %v4631
  %v5414 = vunpack.c.h.b16 %v4631
  %v5415 = vunpack.c.l.b16 %v4632
  %v5416 = vunpack.c.h.b16 %v4632
  %v5417 = vunpack.c.l.b16 %v4633
  %v5418 = vunpack.c.h.b16 %v4633
  %v5419 = vunpack.c.l.b16 %v4634
  %v5420 = vunpack.c.h.b16 %v4634
  %v5421 = vunpack.c.l.b16 %v4635
  %v5422 = vunpack.c.h.b16 %v4635
  %v5423 = vunpack.c.l.b16 %v4636
  %v5424 = vunpack.c.h.b16 %v4636
  %v5425 = vunpack.c.l.b16 %v4637
  %v5426 = vunpack.c.h.b16 %v4637
  %v5427 = vunpack.c.l.b16 %v4638
  %v5428 = vunpack.c.h.b16 %v4638
  %v5429 = vunpack.c.l.b16 %v4639
  %v5430 = vunpack.c.h.b16 %v4639
  %v5431 = vunpack.c.l.b16 %v4640
  %v5432 = vunpack.c.h.b16 %v4640
  %v5433 = vunpack.c.l.b16 %v4641
  %v5434 = vunpack.c.h.b16 %v4641
  %v5435 = vunpack.c.l.b16 %v4642
  %v5436 = vunpack.c.h.b16 %v4642
  %v5437 = vunpack.c.l.b16 %v4643
  %v5438 = vunpack.c.h.b16 %v4643
  %v5439 = vunpack.c.l.b16 %v4644
  %v5440 = vunpack.c.h.b16 %v4644
  %v5441 = vunpack.c.l.b16 %v4645
  %v5442 = vunpack.c.h.b16 %v4645
  %v5443 = vunpack.c.l.b16 %v4646
  %v5444 = vunpack.c.h.b16 %v4646
  %v5445 = vunpack.c.l.b16 %v4647
  %v5446 = vunpack.c.h.b16 %v4647
  %v5447 = vunpack.c.l.b16 %v4648
  %v5448 = vunpack.c.h.b16 %v4648
  %v5449 = vunpack.c.l.b16 %v4649
  %v5450 = vunpack.c.h.b16 %v4649
  %v5451 = vunpack.c.l.b16 %v4650
  %v5452 = vunpack.c.h.b16 %v4650
  %v5453 = vunpack.c.l.b16 %v4651
  %v5454 = vunpack.c.h.b16 %v4651
  %v5455 = vunpack.c.l.b16 %v4652
  %v5456 = vunpack.c.h.b16 %v4652
  %v5457 = vunpack.c.l.b16 %v4653
  %v5458 = vunpack.c.h.b16 %v4653
  %v5459 = vunpack.c.l.b16 %v4654
  %v5460 = vunpack.c.h.b16 %v4654
  %v5461 = vunpack.c.l.b16 %v4655
  %v5462 = vunpack.c.h.b16 %v4655
  %v5463 = vunpack.c.l.b16 %v4656
  %v5464 = vunpack.c.h.b16 %v4656
  %v5465 = vunpack.c.l.b16 %v4657
  %v5466 = vunpack.c.h.b16 %v4657
  %v5467 = vunpack.c.l.b16 %v4658
  %v5468 = vunpack.c.h.b16 %v4658
  %v5469 = vunpack.c.l.b16 %v4659
  %v5470 = vunpack.c.h.b16 %v4659
  %v5471 = vunpack.c.l.b16 %v4660
  %v5472 = vunpack.c.h.b16 %v4660
  %v5473 = vunpack.c.l.b16 %v4661
  %v5474 = vunpack.c.h.b16 %v4661
  %v5475 = vunpack.c.l.b16 %v4662
  %v5476 = vunpack.c.h.b16 %v4662
  %v5477 = vunpack.c.l.b16 %v4663
  %v5478 = vunpack.c.h.b16 %v4663
  %v5479 = vunpack.c.l.b16 %v4664
  %v5480 = vunpack.c.h.b16 %v4664
  %v5481 = vunpack.c.l.b16 %v4665
  %v5482 = vunpack.c.h.b16 %v4665
  %v5483 = vunpack.c.l.b16 %v4666
  %v5484 = vunpack.c.h.b16 %v4666
  %v5485 = vunpack.c.l.b16 %v4667
  %v5486 = vunpack.c.h.b16 %v4667
  %v5487 = vunpack.c.l.b16 %v4668
  %v5488 = vunpack.c.h.b16 %v4668
  %v5489 = vunpack.c.l.b16 %v4669
  %v5490 = vunpack.c.h.b16 %v4669
  %v5491 = vunpack.c.l.b16 %v4670
  %v5492 = vunpack.c.h.b16 %v4670
  %v5493 = vunpack.c.l.b16 %v4671
  %v5494 = vunpack.c.h.b16 %v4671
  %v5495 = vunpack.c.l.b16 %v4672
  %v5496 = vunpack.c.h.b16 %v4672
  %v5497 = vunpack.c.l.b16 %v4673
  %v5498 = vunpack.c.h.b16 %v4673
  %v5499 = vunpack.c.l.b16 %v4674
  %v5500 = vunpack.c.h.b16 %v4674
  %v5501 = vunpack.c.l.b16 %v4675
  %v5502 = vunpack.c.h.b16 %v4675
  %v5503 = vunpack.c.l.b16 %v4676
  %v5504 = vunpack.c.h.b16 %v4676
  %v5505 = vunpack.c.l.b16 %v4677
  %v5506 = vunpack.c.h.b16 %v4677
  %v5507 = vunpack.c.l.b16 %v4678
  %v5508 = vunpack.c.h.b16 %v4678
  %v5509 = vunpack.c.l.b16 %v4679
  %v5510 = vunpack.c.h.b16 %v4679
  %v5511 = vunpack.c.l.b16 %v4680
  %v5512 = vunpack.c.h.b16 %v4680
  %v5513 = vunpack.c.l.b16 %v4681
  %v5514 = vunpack.c.h.b16 %v4681
  %v5515 = vunpack.c.l.b16 %v4682
  %v5516 = vunpack.c.h.b16 %v4682
  %v5517 = vunpack.c.l.b16 %v4683
  %v5518 = vunpack.c.h.b16 %v4683
  %v5519 = vunpack.c.l.b16 %v4684
  %v5520 = vunpack.c.h.b16 %v4684
  %v5521 = vunpack.c.l.b16 %v4685
  %v5522 = vunpack.c.h.b16 %v4685
  %v5523 = vunpack.c.l.b16 %v4686
  %v5524 = vunpack.c.h.b16 %v4686
  %v5525 = vunpack.c.l.b16 %v4687
  %v5526 = vunpack.c.h.b16 %v4687
  %v5527 = vunpack.c.l.b16 %v4688
  %v5528 = vunpack.c.h.b16 %v4688
  %v5529 = vunpack.c.l.b16 %v4689
  %v5530 = vunpack.c.h.b16 %v4689
  %v5531 = vunpack.c.l.b16 %v4690
  %v5532 = vunpack.c.h.b16 %v4690
  %v5533 = vunpack.c.l.b16 %v4691
  %v5534 = vunpack.c.h.b16 %v4691
  %v5535 = vunpack.c.l.b16 %v4692
  %v5536 = vunpack.c.h.b16 %v4692
  %v5537 = vunpack.c.l.b16 %v4693
  %v5538 = vunpack.c.h.b16 %v4693
  %v5539 = vunpack.c.l.b16 %v4694
  %v5540 = vunpack.c.h.b16 %v4694
  %v5541 = vunpack.c.l.b16 %v4695
  %v5542 = vunpack.c.h.b16 %v4695
  %v5543 = vunpack.c.l.b16 %v4696
  %v5544 = vunpack.c.h.b16 %v4696
  %v5545 = vunpack.c.l.b16 %v4697
  %v5546 = vunpack.c.h.b16 %v4697
  %v5547 = vunpack.c.l.b16 %v4698
  %v5548 = vunpack.c.h.b16 %v4698
  %v5549 = vunpack.c.l.b16 %v4699
  %v5550 = vunpack.c.h.b16 %v4699
  %v5551 = vunpack.c.l.b16 %v4700
  %v5552 = vunpack.c.h.b16 %v4700
  %v5553 = vunpack.c.l.b16 %v4701
  %v5554 = vunpack.c.h.b16 %v4701
  %v5555 = vunpack.c.l.b16 %v4702
  %v5556 = vunpack.c.h.b16 %v4702
  %v5557 = vunpack.c.l.b16 %v4703
  %v5558 = vunpack.c.h.b16 %v4703
  %v5559 = vunpack.c.l.b16 %v4704
  %v5560 = vunpack.c.h.b16 %v4704
  %v5561 = vunpack.c.l.b16 %v4705
  %v5562 = vunpack.c.h.b16 %v4705
  %v5563 = vunpack.c.l.b16 %v4706
  %v5564 = vunpack.c.h.b16 %v4706
  %v5565 = vunpack.c.l.b16 %v4707
  %v5566 = vunpack.c.h.b16 %v4707
  %v5567 = vunpack.c.l.b16 %v4708
  %v5568 = vunpack.c.h.b16 %v4708
  %v5569 = vunpack.c.l.b16 %v4709
  %v5570 = vunpack.c.h.b16 %v4709
  %v5571 = vunpack.c.l.b16 %v4710
  %v5572 = vunpack.c.h.b16 %v4710
  %v5573 = vunpack.c.l.b16 %v4711
  %v5574 = vunpack.c.h.b16 %v4711
  %v5575 = vunpack.c.l.b16 %v4712
  %v5576 = vunpack.c.h.b16 %v4712
  %v5577 = vunpack.c.l.b16 %v4713
  %v5578 = vunpack.c.h.b16 %v4713
  %v5579 = vunpack.c.l.b16 %v4714
  %v5580 = vunpack.c.h.b16 %v4714
  %v5581 = vunpack.c.l.b16 %v4715
  %v5582 = vunpack.c.h.b16 %v4715
  %v5583 = vunpack.c.l.b16 %v4716
  %v5584 = vunpack.c.h.b16 %v4716
  %v5585 = vunpack.c.l.b16 %v4717
  %v5586 = vunpack.c.h.b16 %v4717
  %v5587 = vunpack.c.l.b16 %v4718
  %v5588 = vunpack.c.h.b16 %v4718
  %v5589 = vunpack.c.l.b16 %v4719
  %v5590 = vunpack.c.h.b16 %v4719
  %v5591 = vunpack.c.l.b16 %v4720
  %v5592 = vunpack.c.h.b16 %v4720
  %v5593 = vunpack.c.l.b16 %v4721
  %v5594 = vunpack.c.h.b16 %v4721
  %v5595 = vunpack.c.l.b16 %v4722
  %v5596 = vunpack.c.h.b16 %v4722
  %v5597 = vunpack.c.l.b16 %v4723
  %v5598 = vunpack.c.h.b16 %v4723
  %v5599 = vunpack.c.l.b16 %v4724
  %v5600 = vunpack.c.h.b16 %v4724
  %v5601 = vunpack.c.l.b16 %v4725
  %v5602 = vunpack.c.h.b16 %v4725
  %v5603 = vunpack.c.l.b16 %v4726
  %v5604 = vunpack.c.h.b16 %v4726
  %v5605 = vunpack.c.l.b16 %v4727
  %v5606 = vunpack.c.h.b16 %v4727
  %v5607 = vunpack.c.l.b16 %v4728
  %v5608 = vunpack.c.h.b16 %v4728
  %v5609 = vunpack.c.l.b16 %v4729
  %v5610 = vunpack.c.h.b16 %v4729
  %v5611 = vunpack.c.l.b16 %v4730
  %v5612 = vunpack.c.h.b16 %v4730
  %v5613 = vunpack.c.l.b16 %v4731
  %v5614 = vunpack.c.h.b16 %v4731
  %v5615 = vunpack.c.l.b16 %v4732
  %v5616 = vunpack.c.h.b16 %v4732
  %v5617 = vunpack.c.l.b16 %v4733
  %v5618 = vunpack.c.h.b16 %v4733
  %v5619 = vunpack.c.l.b16 %v4734
  %v5620 = vunpack.c.h.b16 %v4734
  %v5621 = vunpack.c.l.b16 %v4735
  %v5622 = vunpack.c.h.b16 %v4735
  %v5623 = vunpack.c.l.b16 %v4736
  %v5624 = vunpack.c.h.b16 %v4736
  %v5625 = vunpack.c.l.b16 %v4737
  %v5626 = vunpack.c.h.b16 %v4737
  %v5627 = vunpack.c.l.b16 %v4738
  %v5628 = vunpack.c.h.b16 %v4738
  %v5629 = vunpack.c.l.b16 %v4739
  %v5630 = vunpack.c.h.b16 %v4739
  %v5631 = vunpack.c.l.b16 %v4740
  %v5632 = vunpack.c.h.b16 %v4740
  %v5633 = vunpack.c.l.b16 %v4741
  %v5634 = vunpack.c.h.b16 %v4741
  %v5635 = vunpack.c.l.b16 %v4742
  %v5636 = vunpack.c.h.b16 %v4742
  %v5637 = vunpack.c.l.b16 %v4743
  %v5638 = vunpack.c.h.b16 %v4743
  %v5639 = vunpack.c.l.b16 %v4744
  %v5640 = vunpack.c.h.b16 %v4744
  %v5641 = vunpack.c.l.b16 %v4745
  %v5642 = vunpack.c.h.b16 %v4745
  %v5643 = vpack.c.b16 %v5073, %v5067
  %v5644 = vpack.c.b16 %v5074, %v5068
  %v5645 = vpack.c.b16 %v5075, %v5069
  %v5646 = vpack.c.b16 %v5076, %v5070
  %v5647 = vpack.c.b16 %v5077, %v5071
  %v5648 = vpack.c.b16 %v5078, %v5072
  %v5649 = vpack.c.b16 %v5085, %v5079
  %v5650 = vpack.c.b16 %v5086, %v5080
  %v5651 = vpack.c.b16 %v5087, %v5081
  %v5652 = vpack.c.b16 %v5088, %v5082
  %v5653 = vpack.c.b16 %v5089, %v5083
  %v5654 = vpack.c.b16 %v5090, %v5084
  %v5655 = vpack.c.b16 %v5097, %v5091
  %v5656 = vpack.c.b16 %v5098, %v5092
  %v5657 = vpack.c.b16 %v5099, %v5093
  %v5658 = vpack.c.b16 %v5100, %v5094
  %v5659 = vpack.c.b16 %v5101, %v5095
  %v5660 = vpack.c.b16 %v5102, %v5096
  %v5661 = vpack.c.b16 %v5109, %v5103
  %v5662 = vpack.c.b16 %v5110, %v5104
  %v5663 = vpack.c.b16 %v5111, %v5105
  %v5664 = vpack.c.b16 %v5112, %v5106
  %v5665 = vpack.c.b16 %v5113, %v5107
  %v5666 = vpack.c.b16 %v5114, %v5108
  %v5667 = vpack.c.b16 %v5121, %v5115
  %v5668 = vpack.c.b16 %v5122, %v5116
  %v5669 = vpack.c.b16 %v5123, %v5117
  %v5670 = vpack.c.b16 %v5124, %v5118
  %v5671 = vpack.c.b16 %v5125, %v5119
  %v5672 = vpack.c.b16 %v5126, %v5120
  %v5673 = vpack.c.b16 %v5133, %v5127
  %v5674 = vpack.c.b16 %v5134, %v5128
  %v5675 = vpack.c.b16 %v5135, %v5129
  %v5676 = vpack.c.b16 %v5136, %v5130
  %v5677 = vpack.c.b16 %v5137, %v5131
  %v5678 = vpack.c.b16 %v5138, %v5132
  %v5679 = vpack.c.b16 %v5145, %v5139
  %v5680 = vpack.c.b16 %v5146, %v5140
  %v5681 = vpack.c.b16 %v5147, %v5141
  %v5682 = vpack.c.b16 %v5148, %v5142
  %v5683 = vpack.c.b16 %v5149, %v5143
  %v5684 = vpack.c.b16 %v5150, %v5144
  %v5685 = vpack.c.b16 %v5157, %v5151
  %v5686 = vpack.c.b16 %v5158, %v5152
  %v5687 = vpack.c.b16 %v5159, %v5153
  %v5688 = vpack.c.b16 %v5160, %v5154
  %v5689 = vpack.c.b16 %v5161, %v5155
  %v5690 = vpack.c.b16 %v5162, %v5156
  %v5691 = vpack.c.b16 %v5169, %v5163
  %v5692 = vpack.c.b16 %v5170, %v5164
  %v5693 = vpack.c.b16 %v5171, %v5165
  %v5694 = vpack.c.b16 %v5172, %v5166
  %v5695 = vpack.c.b16 %v5173, %v5167
  %v5696 = vpack.c.b16 %v5174, %v5168
  %v5697 = vpack.c.b16 %v5181, %v5175
  %v5698 = vpack.c.b16 %v5182, %v5176
  %v5699 = vpack.c.b16 %v5183, %v5177
  %v5700 = vpack.c.b16 %v5184, %v5178
  %v5701 = vpack.c.b16 %v5185, %v5179
  %v5702 = vpack.c.b16 %v5186, %v5180
  %v5703 = vpack.c.b16 %v5193, %v5187
  %v5704 = vpack.c.b16 %v5194, %v5188
  %v5705 = vpack.c.b16 %v5195, %v5189
  %v5706 = vpack.c.b16 %v5196, %v5190
  %v5707 = vpack.c.b16 %v5197, %v5191
  %v5708 = vpack.c.b16 %v5198, %v5192
  %v5709 = vpack.c.b16 %v5205, %v5199
  %v5710 = vpack.c.b16 %v5206, %v5200
  %v5711 = vpack.c.b16 %v5207, %v5201
  %v5712 = vpack.c.b16 %v5208, %v5202
  %v5713 = vpack.c.b16 %v5209, %v5203
  %v5714 = vpack.c.b16 %v5210, %v5204
  %v5715 = vpack.c.b16 %v5217, %v5211
  %v5716 = vpack.c.b16 %v5218, %v5212
  %v5717 = vpack.c.b16 %v5219, %v5213
  %v5718 = vpack.c.b16 %v5220, %v5214
  %v5719 = vpack.c.b16 %v5221, %v5215
  %v5720 = vpack.c.b16 %v5222, %v5216
  %v5721 = vpack.c.b16 %v5229, %v5223
  %v5722 = vpack.c.b16 %v5230, %v5224
  %v5723 = vpack.c.b16 %v5231, %v5225
  %v5724 = vpack.c.b16 %v5232, %v5226
  %v5725 = vpack.c.b16 %v5233, %v5227
  %v5726 = vpack.c.b16 %v5234, %v5228
  %v5727 = vpack.c.b16 %v5241, %v5235
  %v5728 = vpack.c.b16 %v5242, %v5236
  %v5729 = vpack.c.b16 %v5243, %v5237
  %v5730 = vpack.c.b16 %v5244, %v5238
  %v5731 = vpack.c.b16 %v5245, %v5239
  %v5732 = vpack.c.b16 %v5246, %v5240
  %v5733 = vpack.c.b16 %v5253, %v5247
  %v5734 = vpack.c.b16 %v5254, %v5248
  %v5735 = vpack.c.b16 %v5255, %v5249
  %v5736 = vpack.c.b16 %v5256, %v5250
  %v5737 = vpack.c.b16 %v5257, %v5251
  %v5738 = vpack.c.b16 %v5258, %v5252
  %v5739 = vpack.c.b16 %v5265, %v5259
  %v5740 = vpack.c.b16 %v5266, %v5260
  %v5741 = vpack.c.b16 %v5267, %v5261
  %v5742 = vpack.c.b16 %v5268, %v5262
  %v5743 = vpack.c.b16 %v5269, %v5263
  %v5744 = vpack.c.b16 %v5270, %v5264
  %v5745 = vpack.c.b16 %v5277, %v5271
  %v5746 = vpack.c.b16 %v5278, %v5272
  %v5747 = vpack.c.b16 %v5279, %v5273
  %v5748 = vpack.c.b16 %v5280, %v5274
  %v5749 = vpack.c.b16 %v5281, %v5275
  %v5750 = vpack.c.b16 %v5282, %v5276
  %v5751 = vpack.c.b16 %v5289, %v5283
  %v5752 = vpack.c.b16 %v5290, %v5284
  %v5753 = vpack.c.b16 %v5291, %v5285
  %v5754 = vpack.c.b16 %v5292, %v5286
  %v5755 = vpack.c.b16 %v5293, %v5287
  %v5756 = vpack.c.b16 %v5294, %v5288
  %v5757 = vpack.c.b16 %v5301, %v5295
  %v5758 = vpack.c.b16 %v5302, %v5296
  %v5759 = vpack.c.b16 %v5303, %v5297
  %v5760 = vpack.c.b16 %v5304, %v5298
  %v5761 = vpack.c.b16 %v5305, %v5299
  %v5762 = vpack.c.b16 %v5306, %v5300
  %v5763 = vpack.c.b16 %v5313, %v5307
  %v5764 = vpack.c.b16 %v5314, %v5308
  %v5765 = vpack.c.b16 %v5315, %v5309
  %v5766 = vpack.c.b16 %v5316, %v5310
  %v5767 = vpack.c.b16 %v5317, %v5311
  %v5768 = vpack.c.b16 %v5318, %v5312
  %v5769 = vpack.c.b16 %v5325, %v5319
  %v5770 = vpack.c.b16 %v5326, %v5320
  %v5771 = vpack.c.b16 %v5327, %v5321
  %v5772 = vpack.c.b16 %v5328, %v5322
  %v5773 = vpack.c.b16 %v5329, %v5323
  %v5774 = vpack.c.b16 %v5330, %v5324
  %v5775 = vpack.c.b16 %v5337, %v5331
  %v5776 = vpack.c.b16 %v5338, %v5332
  %v5777 = vpack.c.b16 %v5339, %v5333
  %v5778 = vpack.c.b16 %v5340, %v5334
  %v5779 = vpack.c.b16 %v5341, %v5335
  %v5780 = vpack.c.b16 %v5342, %v5336
  %v5781 = vpack.c.b16 %v5349, %v5343
  %v5782 = vpack.c.b16 %v5350, %v5344
  %v5783 = vpack.c.b16 %v5351, %v5345
  %v5784 = vpack.c.b16 %v5352, %v5346
  %v5785 = vpack.c.b16 %v5353, %v5347
  %v5786 = vpack.c.b16 %v5354, %v5348
  %v5787 = vpack.c.b16 %v5361, %v5355
  %v5788 = vpack.c.b16 %v5362, %v5356
  %v5789 = vpack.c.b16 %v5363, %v5357
  %v5790 = vpack.c.b16 %v5364, %v5358
  %v5791 = vpack.c.b16 %v5365, %v5359
  %v5792 = vpack.c.b16 %v5366, %v5360
  %v5793 = vpack.c.b16 %v5373, %v5367
  %v5794 = vpack.c.b16 %v5374, %v5368
  %v5795 = vpack.c.b16 %v5375, %v5369
  %v5796 = vpack.c.b16 %v5376, %v5370
  %v5797 = vpack.c.b16 %v5377, %v5371
  %v5798 = vpack.c.b16 %v5378, %v5372
  %v5799 = vpack.c.b16 %v5385, %v5379
  %v5800 = vpack.c.b16 %v5386, %v5380
  %v5801 = vpack.c.b16 %v5387, %v5381
  %v5802 = vpack.c.b16 %v5388, %v5382
  %v5803 = vpack.c.b16 %v5389, %v5383
  %v5804 = vpack.c.b16 %v5390, %v5384
  %v5805 = vpack.c.b16 %v5397, %v5391
  %v5806 = vpack.c.b16 %v5398, %v5392
  %v5807 = vpack.c.b16 %v5399, %v5393
  %v5808 = vpack.c.b16 %v5400, %v5394
  %v5809 = vpack.c.b16 %v5401, %v5395
  %v5810 = vpack.c.b16 %v5402, %v5396
  %v5811 = vpack.c.b16 %v5409, %v5403
  %v5812 = vpack.c.b16 %v5410, %v5404
  %v5813 = vpack.c.b16 %v5411, %v5405
  %v5814 = vpack.c.b16 %v5412, %v5406
  %v5815 = vpack.c.b16 %v5413, %v5407
  %v5816 = vpack.c.b16 %v5414, %v5408
  %v5817 = vpack.c.b16 %v5421, %v5415
  %v5818 = vpack.c.b16 %v5422, %v5416
  %v5819 = vpack.c.b16 %v5423, %v5417
  %v5820 = vpack.c.b16 %v5424, %v5418
  %v5821 = vpack.c.b16 %v5425, %v5419
  %v5822 = vpack.c.b16 %v5426, %v5420
  %v5823 = vpack.c.b16 %v5433, %v5427
  %v5824 = vpack.c.b16 %v5434, %v5428
  %v5825 = vpack.c.b16 %v5435, %v5429
  %v5826 = vpack.c.b16 %v5436, %v5430
  %v5827 = vpack.c.b16 %v5437, %v5431
  %v5828 = vpack.c.b16 %v5438, %v5432
  %v5829 = vpack.c.b16 %v5445, %v5439
  %v5830 = vpack.c.b16 %v5446, %v5440
  %v5831 = vpack.c.b16 %v5447, %v5441
  %v5832 = vpack.c.b16 %v5448, %v5442
  %v5833 = vpack.c.b16 %v5449, %v5443
  %v5834 = vpack.c.b16 %v5450, %v5444
  %v5835 = vpack.c.b16 %v5457, %v5451
  %v5836 = vpack.c.b16 %v5458, %v5452
  %v5837 = vpack.c.b16 %v5459, %v5453
  %v5838 = vpack.c.b16 %v5460, %v5454
  %v5839 = vpack.c.b16 %v5461, %v5455
  %v5840 = vpack.c.b16 %v5462, %v5456
  %v5841 = vpack.c.b16 %v5469, %v5463
  %v5842 = vpack.c.b16 %v5470, %v5464
  %v5843 = vpack.c.b16 %v5471, %v5465
  %v5844 = vpack.c.b16 %v5472, %v5466
  %v5845 = vpack.c.b16 %v5473, %v5467
  %v5846 = vpack.c.b16 %v5474, %v5468
  %v5847 = vpack.c.b16 %v5481, %v5475
  %v5848 = vpack.c.b16 %v5482, %v5476
  %v5849 = vpack.c.b16 %v5483, %v5477
  %v5850 = vpack.c.b16 %v5484, %v5478
  %v5851 = vpack.c.b16 %v5485, %v5479
  %v5852 = vpack.c.b16 %v5486, %v5480
  %v5853 = vpack.c.b16 %v5493, %v5487
  %v5854 = vpack.c.b16 %v5494, %v5488
  %v5855 = vpack.c.b16 %v5495, %v5489
  %v5856 = vpack.c.b16 %v5496, %v5490
  %v5857 = vpack.c.b16 %v5497, %v5491
  %v5858 = vpack.c.b16 %v5498, %v5492
  %v5859 = vpack.c.b16 %v5505, %v5499
  %v5860 = vpack.c.b16 %v5506, %v5500
  %v5861 = vpack.c.b16 %v5507, %v5501
  %v5862 = vpack.c.b16 %v5508, %v5502
  %v5863 = vpack.c.b16 %v5509, %v5503
  %v5864 = vpack.c.b16 %v5510, %v5504
  %v5865 = vpack.c.b16 %v5517, %v5511
  %v5866 = vpack.c.b16 %v5518, %v5512
  %v5867 = vpack.c.b16 %v5519, %v5513
  %v5868 = vpack.c.b16 %v5520, %v5514
  %v5869 = vpack.c.b16 %v5521, %v5515
  %v5870 = vpack.c.b16 %v5522, %v5516
  %v5871 = vpack.c.b16 %v5529, %v5523
  %v5872 = vpack.c.b16 %v5530, %v5524
  %v5873 = vpack.c.b16 %v5531, %v5525
  %v5874 = vpack.c.b16 %v5532, %v5526
  %v5875 = vpack.c.b16 %v5533, %v5527
  %v5876 = vpack.c.b16 %v5534, %v5528
  %v5877 = vpack.c.b16 %v5541, %v5535
  %v5878 = vpack.c.b16 %v5542, %v5536
  %v5879 = vpack.c.b16 %v5543, %v5537
  %v5880 = vpack.c.b16 %v5544, %v5538
  %v5881 = vpack.c.b16 %v5545, %v5539
  %v5882 = vpack.c.b16 %v5546, %v5540
  %v5883 = vpack.c.b16 %v5553, %v5547
  %v5884 = vpack.c.b16 %v5554, %v5548
  %v5885 = vpack.c.b16 %v5555, %v5549
  %v5886 = vpack.c.b16 %v5556, %v5550
  %v5887 = vpack.c.b16 %v5557, %v5551
  %v5888 = vpack.c.b16 %v5558, %v5552
  %v5889 = vpack.c.b16 %v5565, %v5559
  %v5890 = vpack.c.b16 %v5566, %v5560
  %v5891 = vpack.c.b16 %v5567, %v5561
  %v5892 = vpack.c.b16 %v5568, %v5562
  %v5893 = vpack.c.b16 %v5569, %v5563
  %v5894 = vpack.c.b16 %v5570, %v5564
  %v5895 = vpack.c.b16 %v5577, %v5571
  %v5896 = vpack.c.b16 %v5578, %v5572
  %v5897 = vpack.c.b16 %v5579, %v5573
  %v5898 = vpack.c.b16 %v5580, %v5574
  %v5899 = vpack.c.b16 %v5581, %v5575
  %v5900 = vpack.c.b16 %v5582, %v5576
  %v5901 = vpack.c.b16 %v5589, %v5583
  %v5902 = vpack.c.b16 %v5590, %v5584
  %v5903 = vpack.c.b16 %v5591, %v5585
  %v5904 = vpack.c.b16 %v5592, %v5586
  %v5905 = vpack.c.b16 %v5593, %v5587
  %v5906 = vpack.c.b16 %v5594, %v5588
  %v5907 = vpack.c.b16 %v5601, %v5595
  %v5908 = vpack.c.b16 %v5602, %v5596
  %v5909 = vpack.c.b16 %v5603, %v5597
  %v5910 = vpack.c.b16 %v5604, %v5598
  %v5911 = vpack.c.b16 %v5605, %v5599
  %v5912 = vpack.c.b16 %v5606, %v5600
  %v5913 = vpack.c.b16 %v5613, %v5607
  %v5914 = vpack.c.b16 %v5614, %v5608
  %v5915 = vpack.c.b16 %v5615, %v5609
  %v5916 = vpack.c.b16 %v5616, %v5610
  %v5917 = vpack.c.b16 %v5617, %v5611
  %v5918 = vpack.c.b16 %v5618, %v5612
  %v5919 = vpack.c.b16 %v5625, %v5619
  %v5920 = vpack.c.b16 %v5626, %v5620
  %v5921 = vpack.c.b16 %v5627, %v5621
  %v5922 = vpack.c.b16 %v5628, %v5622
  %v5923 = vpack.c.b16 %v5629, %v5623
  %v5924 = vpack.c.b16 %v5630, %v5624
  %v5925 = vpack.c.b16 %v5637, %v5631
  %v5926 = vpack.c.b16 %v5638, %v5632
  %v5927 = vpack.c.b16 %v5639, %v5633
  %v5928 = vpack.c.b16 %v5640, %v5634
  %v5929 = vpack.c.b16 %v5641, %v5635
  %v5930 = vpack.c.b16 %v5642, %v5636
  %6219 = vmatprep.subr.bf16.mxu0 %v5686
  %6220 = vmatpush1.bf16.msra.mxu0 %v5685
  %6221 = vmatprep.subr.bf16.mxu0 %v5680
  %6222 = vmatpush1.bf16.msra.mxu0 %v5679
  %6223 = vmatprep.subr.bf16.mxu0 %v5674
  %6224 = vmatpush1.bf16.msra.mxu0 %v5673
  %6225 = vmatprep.subr.bf16.mxu0 %v5668
  %6226 = vmatpush1.bf16.msra.mxu0 %v5667
  %6227 = vmatprep.subr.bf16.mxu0 %v5662
  %6228 = vmatpush1.bf16.msra.mxu0 %v5661
  %6229 = vmatprep.subr.bf16.mxu0 %v5656
  %6230 = vmatpush1.bf16.msra.mxu0 %v5655
  %6231 = vmatprep.subr.bf16.mxu0 %v5650
  %6232 = vmatpush1.bf16.msra.mxu0 %v5649
  %6233 = vmatprep.subr.bf16.mxu0 %v5644
  %6234 = vmatpush1.bf16.msra.mxu0 %v5643
  %6235 = vmatprep.subr.bf16.mxu0 %v5734
  %6236 = vmatpush2.bf16.msra.mxu0 %v5733
  %6237 = vmatprep.subr.bf16.mxu0 %v5728
  %6238 = vmatpush2.bf16.msra.mxu0 %v5727
  %6239 = vmatprep.subr.bf16.mxu0 %v5722
  %6240 = vmatpush2.bf16.msra.mxu0 %v5721
  %6241 = vmatprep.subr.bf16.mxu0 %v5716
  %6242 = vmatpush2.bf16.msra.mxu0 %v5715
  %6243 = vmatprep.subr.bf16.mxu0 %v5710
  %6244 = vmatpush2.bf16.msra.mxu0 %v5709
  %6245 = vmatprep.subr.bf16.mxu0 %v5704
  %6246 = vmatpush2.bf16.msra.mxu0 %v5703
  %6247 = vmatprep.subr.bf16.mxu0 %v5698
  %6248 = vmatpush2.bf16.msra.mxu0 %v5697
  %6249 = vmatprep.subr.bf16.mxu0 %v5692
  %6250 = vmatpush2.bf16.msra.mxu0 %v5691
  %6251 = vmatprep.mubr.bf16.mxu0 %v72
  %6252 = vmatmul.mubr.bf16.gmra.mxu0 %v71
  %v6253 = vpop.f32.mrf.mxu0
  %v6254 = vadd.f32 %v4752, %v6253
  %v6255 = vpop.f32.mrf.mxu0
  %v6256 = vadd.f32 %v4756, %v6255
  %v6257 = vpop.f32.mrf.mxu0
  %v6258 = vadd.f32 %v4752, %v6257
  %v6259 = vpop.f32.mrf.mxu0
  %v6260 = vadd.f32 %v4756, %v6259
  %6261 = vdwg.mxu0
  %6262 = vmatprep.subr.bf16.mxu0 %v5782
  %6263 = vmatpush1.bf16.msra.mxu0 %v5781
  %6264 = vmatprep.subr.bf16.mxu0 %v5776
  %6265 = vmatpush1.bf16.msra.mxu0 %v5775
  %6266 = vmatprep.subr.bf16.mxu0 %v5770
  %6267 = vmatpush1.bf16.msra.mxu0 %v5769
  %6268 = vmatprep.subr.bf16.mxu0 %v5764
  %6269 = vmatpush1.bf16.msra.mxu0 %v5763
  %6270 = vmatprep.subr.bf16.mxu0 %v5758
  %6271 = vmatpush1.bf16.msra.mxu0 %v5757
  %6272 = vmatprep.subr.bf16.mxu0 %v5752
  %6273 = vmatpush1.bf16.msra.mxu0 %v5751
  %6274 = vmatprep.subr.bf16.mxu0 %v5746
  %6275 = vmatpush1.bf16.msra.mxu0 %v5745
  %6276 = vmatprep.subr.bf16.mxu0 %v5740
  %6277 = vmatpush1.bf16.msra.mxu0 %v5739
  %6278 = vmatprep.subr.bf16.mxu0 %v5830
  %6279 = vmatpush2.bf16.msra.mxu0 %v5829
  %6280 = vmatprep.subr.bf16.mxu0 %v5824
  %6281 = vmatpush2.bf16.msra.mxu0 %v5823
  %6282 = vmatprep.subr.bf16.mxu0 %v5818
  %6283 = vmatpush2.bf16.msra.mxu0 %v5817
  %6284 = vmatprep.subr.bf16.mxu0 %v5812
  %6285 = vmatpush2.bf16.msra.mxu0 %v5811
  %6286 = vmatprep.subr.bf16.mxu0 %v5806
  %6287 = vmatpush2.bf16.msra.mxu0 %v5805
  %6288 = vmatprep.subr.bf16.mxu0 %v5800
  %6289 = vmatpush2.bf16.msra.mxu0 %v5799
  %6290 = vmatprep.subr.bf16.mxu0 %v5794
  %6291 = vmatpush2.bf16.msra.mxu0 %v5793
  %6292 = vmatprep.subr.bf16.mxu0 %v5788
  %6293 = vmatpush2.bf16.msra.mxu0 %v5787
  %6294 = vmatprep.mubr.bf16.mxu0 %v74
  %6295 = vmatmul.mubr.bf16.gmra.mxu0 %v73
  %v6296 = vpop.f32.mrf.mxu0
  %v6297 = vadd.f32 %v6254, %v6296
  %v6298 = vpop.f32.mrf.mxu0
  %v6299 = vadd.f32 %v6256, %v6298
  %v6300 = vpop.f32.mrf.mxu0
  %v6301 = vadd.f32 %v6258, %v6300
  %v6302 = vpop.f32.mrf.mxu0
  %v6303 = vadd.f32 %v6260, %v6302
  %6304 = vdwg.mxu0
  %6305 = vmatprep.subr.bf16.mxu0 %v5878
  %6306 = vmatpush1.bf16.msra.mxu0 %v5877
  %6307 = vmatprep.subr.bf16.mxu0 %v5872
  %6308 = vmatpush1.bf16.msra.mxu0 %v5871
  %6309 = vmatprep.subr.bf16.mxu0 %v5866
  %6310 = vmatpush1.bf16.msra.mxu0 %v5865
  %6311 = vmatprep.subr.bf16.mxu0 %v5860
  %6312 = vmatpush1.bf16.msra.mxu0 %v5859
  %6313 = vmatprep.subr.bf16.mxu0 %v5854
  %6314 = vmatpush1.bf16.msra.mxu0 %v5853
  %6315 = vmatprep.subr.bf16.mxu0 %v5848
  %6316 = vmatpush1.bf16.msra.mxu0 %v5847
  %6317 = vmatprep.subr.bf16.mxu0 %v5842
  %6318 = vmatpush1.bf16.msra.mxu0 %v5841
  %6319 = vmatprep.subr.bf16.mxu0 %v5836
  %6320 = vmatpush1.bf16.msra.mxu0 %v5835
  %6321 = vmatprep.subr.bf16.mxu0 %v5926
  %6322 = vmatpush2.bf16.msra.mxu0 %v5925
  %6323 = vmatprep.subr.bf16.mxu0 %v5920
  %6324 = vmatpush2.bf16.msra.mxu0 %v5919
  %6325 = vmatprep.subr.bf16.mxu0 %v5914
  %6326 = vmatpush2.bf16.msra.mxu0 %v5913
  %6327 = vmatprep.subr.bf16.mxu0 %v5908
  %6328 = vmatpush2.bf16.msra.mxu0 %v5907
  %6329 = vmatprep.subr.bf16.mxu0 %v5902
  %6330 = vmatpush2.bf16.msra.mxu0 %v5901
  %6331 = vmatprep.subr.bf16.mxu0 %v5896
  %6332 = vmatpush2.bf16.msra.mxu0 %v5895
  %6333 = vmatprep.subr.bf16.mxu0 %v5890
  %6334 = vmatpush2.bf16.msra.mxu0 %v5889
  %6335 = vmatprep.subr.bf16.mxu0 %v5884
  %6336 = vmatpush2.bf16.msra.mxu0 %v5883
  %6337 = vmatprep.mubr.bf16.mxu0 %v76
  %6338 = vmatmul.mubr.bf16.gmra.mxu0 %v75
  %v6339 = vpop.f32.mrf.mxu0
  %v6340 = vadd.f32 %v6297, %v6339
  %v6341 = vpop.f32.mrf.mxu0
  %v6342 = vadd.f32 %v6299, %v6341
  %v6343 = vpop.f32.mrf.mxu0
  %v6344 = vadd.f32 %v6301, %v6343
  %v6345 = vpop.f32.mrf.mxu0
  %v6346 = vadd.f32 %v6303, %v6345
  %6347 = vdwg.mxu0
  %6348 = vmatprep.subr.bf16.mxu0 %v5688
  %6349 = vmatpush1.bf16.msra.mxu0 %v5687
  %6350 = vmatprep.subr.bf16.mxu0 %v5682
  %6351 = vmatpush1.bf16.msra.mxu0 %v5681
  %6352 = vmatprep.subr.bf16.mxu0 %v5676
  %6353 = vmatpush1.bf16.msra.mxu0 %v5675
  %6354 = vmatprep.subr.bf16.mxu0 %v5670
  %6355 = vmatpush1.bf16.msra.mxu0 %v5669
  %6356 = vmatprep.subr.bf16.mxu0 %v5664
  %6357 = vmatpush1.bf16.msra.mxu0 %v5663
  %6358 = vmatprep.subr.bf16.mxu0 %v5658
  %6359 = vmatpush1.bf16.msra.mxu0 %v5657
  %6360 = vmatprep.subr.bf16.mxu0 %v5652
  %6361 = vmatpush1.bf16.msra.mxu0 %v5651
  %6362 = vmatprep.subr.bf16.mxu0 %v5646
  %6363 = vmatpush1.bf16.msra.mxu0 %v5645
  %6364 = vmatprep.subr.bf16.mxu0 %v5736
  %6365 = vmatpush2.bf16.msra.mxu0 %v5735
  %6366 = vmatprep.subr.bf16.mxu0 %v5730
  %6367 = vmatpush2.bf16.msra.mxu0 %v5729
  %6368 = vmatprep.subr.bf16.mxu0 %v5724
  %6369 = vmatpush2.bf16.msra.mxu0 %v5723
  %6370 = vmatprep.subr.bf16.mxu0 %v5718
  %6371 = vmatpush2.bf16.msra.mxu0 %v5717
  %6372 = vmatprep.subr.bf16.mxu0 %v5712
  %6373 = vmatpush2.bf16.msra.mxu0 %v5711
  %6374 = vmatprep.subr.bf16.mxu0 %v5706
  %6375 = vmatpush2.bf16.msra.mxu0 %v5705
  %6376 = vmatprep.subr.bf16.mxu0 %v5700
  %6377 = vmatpush2.bf16.msra.mxu0 %v5699
  %6378 = vmatprep.subr.bf16.mxu0 %v5694
  %6379 = vmatpush2.bf16.msra.mxu0 %v5693
  %6380 = vmatprep.mubr.bf16.mxu0 %v72
  %6381 = vmatmul.mubr.bf16.gmra.mxu0 %v71
  %v6382 = vpop.f32.mrf.mxu0
  %v6383 = vadd.f32 %v4760, %v6382
  %v6384 = vpop.f32.mrf.mxu0
  %v6385 = vadd.f32 %v4764, %v6384
  %v6386 = vpop.f32.mrf.mxu0
  %v6387 = vadd.f32 %v4760, %v6386
  %v6388 = vpop.f32.mrf.mxu0
  %v6389 = vadd.f32 %v4764, %v6388
  %6390 = vdwg.mxu0
  %6391 = vmatprep.subr.bf16.mxu0 %v5784
  %6392 = vmatpush1.bf16.msra.mxu0 %v5783
  %6393 = vmatprep.subr.bf16.mxu0 %v5778
  %6394 = vmatpush1.bf16.msra.mxu0 %v5777
  %6395 = vmatprep.subr.bf16.mxu0 %v5772
  %6396 = vmatpush1.bf16.msra.mxu0 %v5771
  %6397 = vmatprep.subr.bf16.mxu0 %v5766
  %6398 = vmatpush1.bf16.msra.mxu0 %v5765
  %6399 = vmatprep.subr.bf16.mxu0 %v5760
  %6400 = vmatpush1.bf16.msra.mxu0 %v5759
  %6401 = vmatprep.subr.bf16.mxu0 %v5754
  %6402 = vmatpush1.bf16.msra.mxu0 %v5753
  %6403 = vmatprep.subr.bf16.mxu0 %v5748
  %6404 = vmatpush1.bf16.msra.mxu0 %v5747
  %6405 = vmatprep.subr.bf16.mxu0 %v5742
  %6406 = vmatpush1.bf16.msra.mxu0 %v5741
  %6407 = vmatprep.subr.bf16.mxu0 %v5832
  %6408 = vmatpush2.bf16.msra.mxu0 %v5831
  %6409 = vmatprep.subr.bf16.mxu0 %v5826
  %6410 = vmatpush2.bf16.msra.mxu0 %v5825
  %6411 = vmatprep.subr.bf16.mxu0 %v5820
  %6412 = vmatpush2.bf16.msra.mxu0 %v5819
  %6413 = vmatprep.subr.bf16.mxu0 %v5814
  %6414 = vmatpush2.bf16.msra.mxu0 %v5813
  %6415 = vmatprep.subr.bf16.mxu0 %v5808
  %6416 = vmatpush2.bf16.msra.mxu0 %v5807
  %6417 = vmatprep.subr.bf16.mxu0 %v5802
  %6418 = vmatpush2.bf16.msra.mxu0 %v5801
  %6419 = vmatprep.subr.bf16.mxu0 %v5796
  %6420 = vmatpush2.bf16.msra.mxu0 %v5795
  %6421 = vmatprep.subr.bf16.mxu0 %v5790
  %6422 = vmatpush2.bf16.msra.mxu0 %v5789
  %6423 = vmatprep.mubr.bf16.mxu0 %v74
  %6424 = vmatmul.mubr.bf16.gmra.mxu0 %v73
  %v6425 = vpop.f32.mrf.mxu0
  %v6426 = vadd.f32 %v6383, %v6425
  %v6427 = vpop.f32.mrf.mxu0
  %v6428 = vadd.f32 %v6385, %v6427
  %v6429 = vpop.f32.mrf.mxu0
  %v6430 = vadd.f32 %v6387, %v6429
  %v6431 = vpop.f32.mrf.mxu0
  %v6432 = vadd.f32 %v6389, %v6431
  %6433 = vdwg.mxu0
  %6434 = vmatprep.subr.bf16.mxu0 %v5880
  %6435 = vmatpush1.bf16.msra.mxu0 %v5879
  %6436 = vmatprep.subr.bf16.mxu0 %v5874
  %6437 = vmatpush1.bf16.msra.mxu0 %v5873
  %6438 = vmatprep.subr.bf16.mxu0 %v5868
  %6439 = vmatpush1.bf16.msra.mxu0 %v5867
  %6440 = vmatprep.subr.bf16.mxu0 %v5862
  %6441 = vmatpush1.bf16.msra.mxu0 %v5861
  %6442 = vmatprep.subr.bf16.mxu0 %v5856
  %6443 = vmatpush1.bf16.msra.mxu0 %v5855
  %6444 = vmatprep.subr.bf16.mxu0 %v5850
  %6445 = vmatpush1.bf16.msra.mxu0 %v5849
  %6446 = vmatprep.subr.bf16.mxu0 %v5844
  %6447 = vmatpush1.bf16.msra.mxu0 %v5843
  %6448 = vmatprep.subr.bf16.mxu0 %v5838
  %6449 = vmatpush1.bf16.msra.mxu0 %v5837
  %6450 = vmatprep.subr.bf16.mxu0 %v5928
  %6451 = vmatpush2.bf16.msra.mxu0 %v5927
  %6452 = vmatprep.subr.bf16.mxu0 %v5922
  %6453 = vmatpush2.bf16.msra.mxu0 %v5921
  %6454 = vmatprep.subr.bf16.mxu0 %v5916
  %6455 = vmatpush2.bf16.msra.mxu0 %v5915
  %6456 = vmatprep.subr.bf16.mxu0 %v5910
  %6457 = vmatpush2.bf16.msra.mxu0 %v5909
  %6458 = vmatprep.subr.bf16.mxu0 %v5904
  %6459 = vmatpush2.bf16.msra.mxu0 %v5903
  %6460 = vmatprep.subr.bf16.mxu0 %v5898
  %6461 = vmatpush2.bf16.msra.mxu0 %v5897
  %6462 = vmatprep.subr.bf16.mxu0 %v5892
  %6463 = vmatpush2.bf16.msra.mxu0 %v5891
  %6464 = vmatprep.subr.bf16.mxu0 %v5886
  %6465 = vmatpush2.bf16.msra.mxu0 %v5885
  %6466 = vmatprep.mubr.bf16.mxu0 %v76
  %6467 = vmatmul.mubr.bf16.gmra.mxu0 %v75
  %v6468 = vpop.f32.mrf.mxu0
  %v6469 = vadd.f32 %v6426, %v6468
  %v6470 = vpop.f32.mrf.mxu0
  %v6471 = vadd.f32 %v6428, %v6470
  %v6472 = vpop.f32.mrf.mxu0
  %v6473 = vadd.f32 %v6430, %v6472
  %v6474 = vpop.f32.mrf.mxu0
  %v6475 = vadd.f32 %v6432, %v6474
  %6476 = vdwg.mxu0
  %6477 = vmatprep.subr.bf16.mxu0 %v5690
  %6478 = vmatpush1.bf16.msra.mxu0 %v5689
  %6479 = vmatprep.subr.bf16.mxu0 %v5684
  %6480 = vmatpush1.bf16.msra.mxu0 %v5683
  %6481 = vmatprep.subr.bf16.mxu0 %v5678
  %6482 = vmatpush1.bf16.msra.mxu0 %v5677
  %6483 = vmatprep.subr.bf16.mxu0 %v5672
  %6484 = vmatpush1.bf16.msra.mxu0 %v5671
  %6485 = vmatprep.subr.bf16.mxu0 %v5666
  %6486 = vmatpush1.bf16.msra.mxu0 %v5665
  %6487 = vmatprep.subr.bf16.mxu0 %v5660
  %6488 = vmatpush1.bf16.msra.mxu0 %v5659
  %6489 = vmatprep.subr.bf16.mxu0 %v5654
  %6490 = vmatpush1.bf16.msra.mxu0 %v5653
  %6491 = vmatprep.subr.bf16.mxu0 %v5648
  %6492 = vmatpush1.bf16.msra.mxu0 %v5647
  %6493 = vmatprep.subr.bf16.mxu0 %v5738
  %6494 = vmatpush2.bf16.msra.mxu0 %v5737
  %6495 = vmatprep.subr.bf16.mxu0 %v5732
  %6496 = vmatpush2.bf16.msra.mxu0 %v5731
  %6497 = vmatprep.subr.bf16.mxu0 %v5726
  %6498 = vmatpush2.bf16.msra.mxu0 %v5725
  %6499 = vmatprep.subr.bf16.mxu0 %v5720
  %6500 = vmatpush2.bf16.msra.mxu0 %v5719
  %6501 = vmatprep.subr.bf16.mxu0 %v5714
  %6502 = vmatpush2.bf16.msra.mxu0 %v5713
  %6503 = vmatprep.subr.bf16.mxu0 %v5708
  %6504 = vmatpush2.bf16.msra.mxu0 %v5707
  %6505 = vmatprep.subr.bf16.mxu0 %v5702
  %6506 = vmatpush2.bf16.msra.mxu0 %v5701
  %6507 = vmatprep.subr.bf16.mxu0 %v5696
  %6508 = vmatpush2.bf16.msra.mxu0 %v5695
  %6509 = vmatprep.mubr.bf16.mxu0 %v72
  %6510 = vmatmul.mubr.bf16.gmra.mxu0 %v71
  %v6511 = vpop.f32.mrf.mxu0
  %v6512 = vadd.f32 %v4768, %v6511
  %v6513 = vpop.f32.mrf.mxu0
  %v6514 = vadd.f32 %v4772, %v6513
  %v6515 = vpop.f32.mrf.mxu0
  %v6516 = vadd.f32 %v4768, %v6515
  %v6517 = vpop.f32.mrf.mxu0
  %v6518 = vadd.f32 %v4772, %v6517
  %6519 = vdwg.mxu0
  %6520 = vmatprep.subr.bf16.mxu0 %v5786
  %6521 = vmatpush1.bf16.msra.mxu0 %v5785
  %6522 = vmatprep.subr.bf16.mxu0 %v5780
  %6523 = vmatpush1.bf16.msra.mxu0 %v5779
  %6524 = vmatprep.subr.bf16.mxu0 %v5774
  %6525 = vmatpush1.bf16.msra.mxu0 %v5773
  %6526 = vmatprep.subr.bf16.mxu0 %v5768
  %6527 = vmatpush1.bf16.msra.mxu0 %v5767
  %6528 = vmatprep.subr.bf16.mxu0 %v5762
  %6529 = vmatpush1.bf16.msra.mxu0 %v5761
  %6530 = vmatprep.subr.bf16.mxu0 %v5756
  %6531 = vmatpush1.bf16.msra.mxu0 %v5755
  %6532 = vmatprep.subr.bf16.mxu0 %v5750
  %6533 = vmatpush1.bf16.msra.mxu0 %v5749
  %6534 = vmatprep.subr.bf16.mxu0 %v5744
  %6535 = vmatpush1.bf16.msra.mxu0 %v5743
  %6536 = vmatprep.subr.bf16.mxu0 %v5834
  %6537 = vmatpush2.bf16.msra.mxu0 %v5833
  %6538 = vmatprep.subr.bf16.mxu0 %v5828
  %6539 = vmatpush2.bf16.msra.mxu0 %v5827
  %6540 = vmatprep.subr.bf16.mxu0 %v5822
  %6541 = vmatpush2.bf16.msra.mxu0 %v5821
  %6542 = vmatprep.subr.bf16.mxu0 %v5816
  %6543 = vmatpush2.bf16.msra.mxu0 %v5815
  %6544 = vmatprep.subr.bf16.mxu0 %v5810
  %6545 = vmatpush2.bf16.msra.mxu0 %v5809
  %6546 = vmatprep.subr.bf16.mxu0 %v5804
  %6547 = vmatpush2.bf16.msra.mxu0 %v5803
  %6548 = vmatprep.subr.bf16.mxu0 %v5798
  %6549 = vmatpush2.bf16.msra.mxu0 %v5797
  %6550 = vmatprep.subr.bf16.mxu0 %v5792
  %6551 = vmatpush2.bf16.msra.mxu0 %v5791
  %6552 = vmatprep.mubr.bf16.mxu0 %v74
  %6553 = vmatmul.mubr.bf16.gmra.mxu0 %v73
  %v6554 = vpop.f32.mrf.mxu0
  %v6555 = vadd.f32 %v6512, %v6554
  %v6556 = vpop.f32.mrf.mxu0
  %v6557 = vadd.f32 %v6514, %v6556
  %v6558 = vpop.f32.mrf.mxu0
  %v6559 = vadd.f32 %v6516, %v6558
  %v6560 = vpop.f32.mrf.mxu0
  %v6561 = vadd.f32 %v6518, %v6560
  %6562 = vdwg.mxu0
  %6563 = vmatprep.subr.bf16.mxu0 %v5882
  %6564 = vmatpush1.bf16.msra.mxu0 %v5881
  %6565 = vmatprep.subr.bf16.mxu0 %v5876
  %6566 = vmatpush1.bf16.msra.mxu0 %v5875
  %6567 = vmatprep.subr.bf16.mxu0 %v5870
  %6568 = vmatpush1.bf16.msra.mxu0 %v5869
  %6569 = vmatprep.subr.bf16.mxu0 %v5864
  %6570 = vmatpush1.bf16.msra.mxu0 %v5863
  %6571 = vmatprep.subr.bf16.mxu0 %v5858
  %6572 = vmatpush1.bf16.msra.mxu0 %v5857
  %6573 = vmatprep.subr.bf16.mxu0 %v5852
  %6574 = vmatpush1.bf16.msra.mxu0 %v5851
  %6575 = vmatprep.subr.bf16.mxu0 %v5846
  %6576 = vmatpush1.bf16.msra.mxu0 %v5845
  %6577 = vmatprep.subr.bf16.mxu0 %v5840
  %6578 = vmatpush1.bf16.msra.mxu0 %v5839
  %6579 = vmatprep.subr.bf16.mxu0 %v5930
  %6580 = vmatpush2.bf16.msra.mxu0 %v5929
  %6581 = vmatprep.subr.bf16.mxu0 %v5924
  %6582 = vmatpush2.bf16.msra.mxu0 %v5923
  %6583 = vmatprep.subr.bf16.mxu0 %v5918
  %6584 = vmatpush2.bf16.msra.mxu0 %v5917
  %6585 = vmatprep.subr.bf16.mxu0 %v5912
  %6586 = vmatpush2.bf16.msra.mxu0 %v5911
  %6587 = vmatprep.subr.bf16.mxu0 %v5906
  %6588 = vmatpush2.bf16.msra.mxu0 %v5905
  %6589 = vmatprep.subr.bf16.mxu0 %v5900
  %6590 = vmatpush2.bf16.msra.mxu0 %v5899
  %6591 = vmatprep.subr.bf16.mxu0 %v5894
  %6592 = vmatpush2.bf16.msra.mxu0 %v5893
  %6593 = vmatprep.subr.bf16.mxu0 %v5888
  %6594 = vmatpush2.bf16.msra.mxu0 %v5887
  %6595 = vmatprep.mubr.bf16.mxu0 %v76
  %6596 = vmatmul.mubr.bf16.gmra.mxu0 %v75
  %v6597 = vpop.f32.mrf.mxu0
  %v6598 = vadd.f32 %v6555, %v6597
  %v6599 = vpop.f32.mrf.mxu0
  %v6600 = vadd.f32 %v6557, %v6599
  %v6601 = vpop.f32.mrf.mxu0
  %v6602 = vadd.f32 %v6559, %v6601
  %v6603 = vpop.f32.mrf.mxu0
  %v6604 = vadd.f32 %v6561, %v6603
  %6605 = vdwg.mxu0
  %v6606 = vpack.c.bf16 %v6344, %v6340
  %v6607 = vpack.c.bf16 %v6346, %v6342
  %v6608 = vpack.c.bf16 %v6473, %v6469
  %v6609 = vpack.c.bf16 %v6475, %v6471
  %v6610 = vpack.c.bf16 %v6602, %v6598
  %v6611 = vpack.c.bf16 %v6604, %v6600
  %v6618 = vunpack.c.l.b16 %v6606
  %v6619 = vunpack.c.l.b16 %v6607
  %v6620 = vunpack.c.l.b16 %v6608
  %v6621 = vunpack.c.l.b16 %v6609
  %v6622 = vunpack.c.l.b16 %v6610
  %v6623 = vunpack.c.l.b16 %v6611
  %v6624 = vunpack.c.h.b16 %v6606
  %v6625 = vunpack.c.h.b16 %v6607
  %v6626 = vunpack.c.h.b16 %v6608
  %v6627 = vunpack.c.h.b16 %v6609
  %v6628 = vunpack.c.h.b16 %v6610
  %v6629 = vunpack.c.h.b16 %v6611
  %v6630 = vpack.c.b16 %v6619, %v6618
  %v6631 = vpack.c.b16 %v6621, %v6620
  %v6632 = vpack.c.b16 %v6623, %v6622
  %v6633 = vpack.c.b16 %v6625, %v6624
  %v6634 = vpack.c.b16 %v6627, %v6626
  %v6635 = vpack.c.b16 %v6629, %v6628
  %6642 = vst [vmem:[%s7] sm:$0xff] %v6630
  %6643 = vst [vmem:[%s7 + $0x8] sm:$0xff] %v6631
  %6644 = vst [vmem:[%s7 + $0x10] sm:$0xff] %v6632
  %6645 = vst [vmem:[%s7 + $0x18] sm:$0xff] %v6633
  %6646 = vst [vmem:[%s7 + $0x20] sm:$0xff] %v6634
  %6647 = vst [vmem:[%s7 + $0x28] sm:$0xff] %v6635
  // Predicated region
  $region22: #{multi_head_attention.3} parent=0 // pred_check
    _
  $region23: #{multi_head_attention.3} parent=0 // pred_check_branch
    %6649 = sbr.rel (0) target = $region25
  $region24: #{multi_head_attention.3} parent=0 // pred_region
    _
  $region25: #{multi_head_attention.3} parent=0 // pred_fallthru
    _
  // Predicated region
  $region26: #{multi_head_attention.3} parent=0 // pred_check
    _
  $region27: #{multi_head_attention.3} parent=0 // pred_check_branch
    %6651 = sbr.rel (0) target = $region29
  $region28: #{multi_head_attention.3} parent=0 // pred_region
    _
  $region29: #{multi_head_attention.3} parent=0 // pred_fallthru
    _
  // Predicated region
  $region30: #{multi_head_attention.3} parent=0 // pred_check
    _
  $region31: #{multi_head_attention.3} parent=0 // pred_check_branch
    %6653 = sbr.rel (0) target = $region33
  $region32: #{multi_head_attention.3} parent=0 // pred_region
    _
  $region33: #{multi_head_attention.3} parent=0 // pred_fallthru
    _
  // Predicated region
  $region34: #{multi_head_attention.3} parent=0 // pred_check
    _
  $region35: #{multi_head_attention.3} parent=0 // pred_check_branch
    %6655 = sbr.rel (0) target = $region37
  $region36: #{multi_head_attention.3} parent=0 // pred_region
    _
  $region37: #{multi_head_attention.3} parent=0 // pred_fallthru
    _
  // Predicated region
  $region38: #{multi_head_attention.3} parent=0 // pred_check
    _
  $region39: #{multi_head_attention.3} parent=0 // pred_check_branch
    %6657 = sbr.rel (0) target = $region41
  $region40: #{multi_head_attention.3} parent=0 // pred_region
    _
  $region41: #{multi_head_attention.3} parent=0 // pred_fallthru
    _
  // Predicated region
  $region42: #{multi_head_attention.3} parent=0 // pred_check
    _
  $region43: #{multi_head_attention.3} parent=0 // pred_check_branch
    %6659 = sbr.rel (0) target = $region45
  $region44: #{multi_head_attention.3} parent=0 // pred_region
    _
  $region45: #{multi_head_attention.3} parent=0 // pred_fallthru
    _

</llo_original>
